<compile_context>
chip_gen: v7x
topology: tpu7x:2x2x1
jax: 0.10.0
libtpu: 0.0.40
codegen_flags: <defaults>
</compile_context>

<pallas_src>
import numpy as np
import jax
import jax.numpy as jnp
from jax import lax
from jax.experimental import pallas as pl
from jax.experimental.pallas import tpu as pltpu

BN_EPS = 1e-5
VMEM_LIMIT_BYTES = 32 * 1024 * 1024   # explicit scoped-VMEM cap (safe v5e..v7x)


# ------------------------------ small helpers -------------------------------

def _round_up(v, m):
    return (v + m - 1) // m * m


def _pick_tm(m, cap=512):
    """Row tile for the matmul kernels: multiple of 8, capped at `cap`."""
    if m >= cap:
        return cap
    return max(8, _round_up(m, 8))


def _pick_row_tile(ho):
    """Output-row tile for the direct conv / pool kernels."""
    for t in (8, 4, 2, 1):
        if ho % t == 0:
            return t
    return 1


def _fold_bn(p):
    scale = p['gamma'] / jnp.sqrt(p['var'] + BN_EPS)
    bias = (p['beta'] - p['mean'] * scale).astype(jnp.float32)
    return scale, bias


# ------------------------------ Pallas kernels -------------------------------

def _matmul_bias_relu_kernel(x_ref, w_ref, b_ref, o_ref):
    # 1x1 conv as matmul.  x:(TM,Cin) bf16, w:(Cin,Cout) bf16 (BN folded),
    # b:(1,Cout) f32.  f32 MXU accumulation, fused bias + ReLU.
    acc = jnp.dot(x_ref[...], w_ref[...], preferred_element_type=jnp.float32)
    o_ref[...] = jnp.maximum(acc + b_ref[...], 0.0).astype(o_ref.dtype)


def _dual_matmul_bias_relu_kernel(xa_ref, xb_ref, wa_ref, wb_ref, b_ref, o_ref):
    # Fused channel-concat + 1x1 conv: relu([xa, xb] @ [wa; wb] + b).
    acc = jnp.dot(xa_ref[...], wa_ref[...], preferred_element_type=jnp.float32)
    acc = acc + jnp.dot(xb_ref[...], wb_ref[...],
                        preferred_element_type=jnp.float32)
    o_ref[...] = jnp.maximum(acc + b_ref[...], 0.0).astype(o_ref.dtype)


def _make_conv3x3s2_kernel(tho, wo):
    # Direct 3x3 / stride-2 / pad-1 conv with folded BN + ReLU.
    #   x_ref: (Hp, Wp2, 2*Cin)  whole padded image, W-pixel pairs in lanes
    #   w_ref: (6, 2*Cin, Cout)  combined tap weights (kh x {qw=0, qw=1})
    #   b_ref: (1, Cout) f32     folded BN bias
    #   o_ref: (THo, Wo, Cout)
    def kernel(x_ref, w_ref, b_ref, o_ref):
        t = pl.program_id(1)
        cout = o_ref.shape[-1]
        for j in range(tho):                       # static unroll over rows
            r0 = 2 * (t * tho + j)
            acc = jnp.zeros((wo, cout), jnp.float32)
            for kh in range(3):
                row = x_ref[r0 + kh]               # (Wp2, 2*Cin)
                acc = acc + jnp.dot(row[0:wo, :], w_ref[2 * kh],
                                    preferred_element_type=jnp.float32)
                acc = acc + jnp.dot(row[1:wo + 1, :], w_ref[2 * kh + 1],
                                    preferred_element_type=jnp.float32)
            o_ref[j] = jnp.maximum(acc + b_ref[...], 0.0).astype(o_ref.dtype)
    return kernel


def _make_maxpool2x2_kernel(tho, c):
    # MaxPool2d(2, 2).  x_ref: (H, W/2, 2*C) whole image, W pairs in lanes.
    def kernel(x_ref, o_ref):
        t = pl.program_id(1)
        for j in range(tho):
            r0 = 2 * (t * tho + j)
            m = jnp.maximum(x_ref[r0], x_ref[r0 + 1])      # (Wo, 2*C)
            o_ref[j] = jnp.maximum(m[:, :c], m[:, c:])
    return kernel


# --------------------------------- wrappers ----------------------------------

def conv3x3_s2_bn_relu(x, p, *, out_dtype=jnp.bfloat16):
    """3x3, stride 2, pad 1 Conv+BN+ReLU.  x: (N,H,W,Cin) NHWC."""
    N, H, W, Cin = x.shape
    Cout = p['w'].shape[0]
    assert H % 2 == 0 and W % 2 == 0
    Ho, Wo = H // 2, W // 2

    scale, bias = _fold_bn(p)
    bias = bias.reshape(1, Cout)
    wf = p['w'] * scale[:, None, None, None]           # fold BN scale (f32)
    # Combined tap weights for the W-pair-merged layout:
    #   qw=0 block: [W(kh,0); W(kh,1)],  qw=1 block: [W(kh,2); 0]
    blks = []
    for kh in range(3):
        blks.append(jnp.concatenate([wf[:, :, kh, 0].T, wf[:, :, kh, 1].T],
                                    axis=0))
        blks.append(jnp.concatenate([wf[:, :, kh, 2].T,
                                     jnp.zeros((Cin, Cout), wf.dtype)], axis=0))
    wc = jnp.stack(blks, axis=0).astype(jnp.bfloat16)   # (6, 2*Cin, Cout)

    xp = jnp.pad(x.astype(jnp.bfloat16), ((0, 0), (1, 1), (1, 1), (0, 0)))
    Hp, Wp = H + 2, W + 2
    Wp2 = Wp // 2
    xv = xp.reshape(N, Hp, Wp2, 2 * Cin)                # metadata-only view

    tho = _pick_row_tile(Ho)
    grid = (N, Ho // tho)
    return pl.pallas_call(
        _make_conv3x3s2_kernel(tho, Wo),
        out_shape=jax.ShapeDtypeStruct((N, Ho, Wo, Cout), out_dtype),
        grid=grid,
        in_specs=[
            pl.BlockSpec((None, Hp, Wp2, 2 * Cin), lambda n, t: (n, 0, 0, 0)),
            pl.BlockSpec((6, 2 * Cin, Cout), lambda n, t: (0, 0, 0)),
            pl.BlockSpec((1, Cout), lambda n, t: (0, 0)),
        ],
        out_specs=pl.BlockSpec((None, tho, Wo, Cout), lambda n, t: (n, t, 0, 0)),
        compiler_params=pltpu.CompilerParams(
            dimension_semantics=("parallel", "arbitrary"),
            vmem_limit_bytes=VMEM_LIMIT_BYTES),
    )(xv, wc, bias)


def conv1x1_bn_relu_mat(xmat, p, *, out_dtype=jnp.bfloat16):
    """1x1 Conv+BN+ReLU on an (M, Cin) activation matrix."""
    M, Cin = xmat.shape
    Cout = p['w'].shape[0]
    scale, bias = _fold_bn(p)
    bias = bias.reshape(1, Cout)
    wmat = (p['w'].reshape(Cout, Cin).T * scale[None, :]).astype(jnp.bfloat16)

    x16 = xmat.astype(jnp.bfloat16)
    tm = _pick_tm(M)
    Mp = _round_up(M, tm)
    if Mp != M:
        x16 = jnp.pad(x16, ((0, Mp - M), (0, 0)))

    out = pl.pallas_call(
        _matmul_bias_relu_kernel,
        out_shape=jax.ShapeDtypeStruct((Mp, Cout), out_dtype),
        grid=(Mp // tm,),
        in_specs=[
            pl.BlockSpec((tm, Cin), lambda i: (i, 0)),
            pl.BlockSpec((Cin, Cout), lambda i: (0, 0)),     # weight-resident
            pl.BlockSpec((1, Cout), lambda i: (0, 0)),
        ],
        out_specs=pl.BlockSpec((tm, Cout), lambda i: (i, 0)),
        compiler_params=pltpu.CompilerParams(
            dimension_semantics=("parallel",),
            vmem_limit_bytes=VMEM_LIMIT_BYTES),
    )(x16, wmat, bias)
    return out[:M] if Mp != M else out


def fused_concat_conv1x1_bn_relu(xa, xb, p, *, out_dtype=jnp.float32):
    """relu(BN(conv1x1(concat([xa, xb], -1)))) without materializing the concat."""
    M, Ca = xa.shape
    Cb = xb.shape[1]
    Cout = p['w'].shape[0]
    scale, bias = _fold_bn(p)
    bias = bias.reshape(1, Cout)
    wmat = p['w'].reshape(Cout, Ca + Cb).T * scale[None, :]
    wa = wmat[:Ca].astype(jnp.bfloat16)
    wb = wmat[Ca:].astype(jnp.bfloat16)

    xa16 = xa.astype(jnp.bfloat16)
    xb16 = xb.astype(jnp.bfloat16)
    tm = _pick_tm(M)
    Mp = _round_up(M, tm)
    if Mp != M:
        xa16 = jnp.pad(xa16, ((0, Mp - M), (0, 0)))
        xb16 = jnp.pad(xb16, ((0, Mp - M), (0, 0)))

    out = pl.pallas_call(
        _dual_matmul_bias_relu_kernel,
        out_shape=jax.ShapeDtypeStruct((Mp, Cout), out_dtype),
        grid=(Mp // tm,),
        in_specs=[
            pl.BlockSpec((tm, Ca), lambda i: (i, 0)),
            pl.BlockSpec((tm, Cb), lambda i: (i, 0)),
            pl.BlockSpec((Ca, Cout), lambda i: (0, 0)),
            pl.BlockSpec((Cb, Cout), lambda i: (0, 0)),
            pl.BlockSpec((1, Cout), lambda i: (0, 0)),
        ],
        out_specs=pl.BlockSpec((tm, Cout), lambda i: (i, 0)),
        compiler_params=pltpu.CompilerParams(
            dimension_semantics=("parallel",),
            vmem_limit_bytes=VMEM_LIMIT_BYTES),
    )(xa16, xb16, wa, wb, bias)
    return out[:M] if Mp != M else out


def maxpool2x2_nhwc(x):
    """MaxPool2d(kernel_size=2, stride=2) on NHWC input (single HBM read)."""
    N, H, W, C = x.shape
    assert H % 2 == 0 and W % 2 == 0
    Ho, Wo = H // 2, W // 2
    xv = x.reshape(N, H, W // 2, 2 * C)                 # metadata-only view

    tho = _pick_row_tile(Ho)
    return pl.pallas_call(
        _make_maxpool2x2_kernel(tho, C),
        out_shape=jax.ShapeDtypeStruct((N, Ho, Wo, C), x.dtype),
        grid=(N, Ho // tho),
        in_specs=[pl.BlockSpec((None, H, W // 2, 2 * C),
                               lambda n, t: (n, 0, 0, 0))],
        out_specs=pl.BlockSpec((None, tho, Wo, C), lambda n, t: (n, t, 0, 0)),
        compiler_params=pltpu.CompilerParams(
            dimension_semantics=("parallel", "arbitrary"),
            vmem_limit_bytes=VMEM_LIMIT_BYTES),
    )(xv)


# ------------------------------ StemBlock model -------------------------------

def init_params(key, inp=3, num_init_features=32):
    def conv_bn(k, cin, cout, ksz):
        kw_, kg, kb, km, kv = jax.random.split(k, 5)
        w = jax.random.normal(kw_, (cout, cin, ksz, ksz), jnp.float32)
        w = w * (1.0 / np.sqrt(cin * ksz * ksz))
        gamma = 1.0 + 0.1 * jax.random.normal(kg, (cout,), jnp.float32)
        beta = 0.1 * jax.random.normal(kb, (cout,), jnp.float32)
        mean = 0.1 * jax.random.normal(km, (cout,), jnp.float32)
        var = 1.0 + 0.1 * jnp.abs(jax.random.normal(kv, (cout,), jnp.float32))
        return dict(w=w, gamma=gamma, beta=beta, mean=mean, var=var)

    ks = jax.random.split(key, 4)
    nif = num_init_features
    return dict(
        stem_1=conv_bn(ks[0], inp, nif, 3),
        stem_2a=conv_bn(ks[1], nif, nif // 2, 1),
        stem_2b=conv_bn(ks[2], nif // 2, nif, 3),
        stem_3=conv_bn(ks[3], 2 * nif, nif, 1),
    )


def stem_block_forward(x_nchw, params):
    x = jnp.transpose(x_nchw, (0, 2, 3, 1)).astype(jnp.float32)   # -> NHWC
    N, H, W, _ = x.shape

    s1 = conv3x3_s2_bn_relu(x, params['stem_1'])                  # (N,H/2,W/2,32) bf16
    H1, W1, C1 = H // 2, W // 2, s1.shape[-1]

    s2a = conv1x1_bn_relu_mat(s1.reshape(N * H1 * W1, C1),
                              params['stem_2a'])                  # (M,16) bf16
    s2a_img = s2a.reshape(N, H1, W1, s2a.shape[-1])

    s2b = conv3x3_s2_bn_relu(s2a_img, params['stem_2b'])          # (N,H/4,W/4,32)
    s2p = maxpool2x2_nhwc(s1)                                     # (N,H/4,W/4,32)

    Ho, Wo, C = s2b.shape[1], s2b.shape[2], s2b.shape[3]
    out = fused_concat_conv1x1_bn_relu(
        s2b.reshape(N * Ho * Wo, C), s2p.reshape(N * Ho * Wo, C),
        params['stem_3'], out_dtype=jnp.float32)                  # fused concat

    return jnp.transpose(out.reshape(N, Ho, Wo, C), (0, 3, 1, 2))  # -> NCHW


# ------------------------------- references ----------------------------------

def _ref_conv_bn_relu_f32(x, p, stride, pad):
    y = lax.conv_general_dilated(x, p['w'], (stride, stride),
                                 [(pad, pad), (pad, pad)],
                                 dimension_numbers=('NCHW', 'OIHW', 'NCHW'))
    scale = p['gamma'] / jnp.sqrt(p['var'] + BN_EPS)
    bias = p['beta'] - p['mean'] * scale
    return jnp.maximum(y * scale[None, :, None, None]
                       + bias[None, :, None, None], 0.0)


def _ref_forward_f32(x, params):
    """Pure-f32 reference (exact PyTorch StemBlock semantics)."""
    s1 = _ref_conv_bn_relu_f32(x, params['stem_1'], 2, 1)
    s2a = _ref_conv_bn_relu_f32(s1, params['stem_2a'], 1, 0)
    s2b = _ref_conv_bn_relu_f32(s2a, params['stem_2b'], 2, 1)
    s2p = lax.reduce_window(s1, -jnp.inf, lax.max,
                            (1, 1, 2, 2), (1, 1, 2, 2), 'VALID')
    cat = jnp.concatenate([s2b, s2p], axis=1)
    return _ref_conv_bn_relu_f32(cat, params['stem_3'], 1, 0)


def _mirror_conv(x, p, stride, pad):
    scale = p['gamma'] / jnp.sqrt(p['var'] + BN_EPS)
    bias = (p['beta'] - p['mean'] * scale).astype(jnp.float32)
    wq = (p['w'] * scale[:, None, None, None]).astype(jnp.bfloat16)
    y = lax.conv_general_dilated(x, wq, (stride, stride),
                                 [(pad, pad), (pad, pad)],
                                 dimension_numbers=('NHWC', 'OIHW', 'NHWC'),
                                 preferred_element_type=jnp.float32)
    return jnp.maximum(y + bias[None, None, None, :], 0.0)


def _mirror_forward(x_nchw, params):
    """Plain-JAX mirror of the Pallas pipeline's numerics (bf16 operands,
    folded BN, f32 accumulation) -- used for a tight correctness check."""
    x = jnp.transpose(x_nchw, (0, 2, 3, 1)).astype(jnp.bfloat16)
    s1 = _mirror_conv(x, params['stem_1'], 2, 1).astype(jnp.bfloat16)
    s2a = _mirror_conv(s1, params['stem_2a'], 1, 0).astype(jnp.bfloat16)
    s2b = _mirror_conv(s2a, params['stem_2b'], 2, 1).astype(jnp.bfloat16)
    s2p = jnp.maximum(jnp.maximum(s1[:, 0::2, 0::2, :], s1[:, 0::2, 1::2, :]),
                      jnp.maximum(s1[:, 1::2, 0::2, :], s1[:, 1::2, 1::2, :]))
    cat = jnp.concatenate([s2b, s2p], axis=-1)
    out = _mirror_conv(cat, params['stem_3'], 1, 0)
    return jnp.transpose(out, (0, 3, 1, 2))


# ----------------------------------- main -------------------------------------

if __name__ == "__main__":
    key = jax.random.PRNGKey(0)
    kx, kp = jax.random.split(key)

    x = jax.random.normal(kx, (2, 3, 16, 16), jnp.float32)   # NCHW input
    params = init_params(kp, inp=3, num_init_features=32)

    fwd = jax.jit(stem_block_forward)
    out = jax.block_until_ready(fwd(x, params))
    assert out.shape == (2, 32, 4, 4), out.shape

    out_np = np.asarray(out, dtype=np.float32)

    # Tight check vs. a plain-JAX mirror of the kernel numerics (bf16 operands).
    mirror = np.asarray(jax.block_until_ready(_mirror_forward(x, params)),
                        dtype=np.float32)
    if not np.allclose(out_np, mirror, atol=2e-2, rtol=2e-2):
        raise AssertionError(
            "Pallas StemBlock mismatch vs bf16-mirror reference: max err %.4f"
            % float(np.max(np.abs(out_np - mirror))))

    # Loose sanity check vs. the exact f32 module semantics (bf16 tolerance).
    ref32 = np.asarray(jax.block_until_ready(_ref_forward_f32(x, params)),
                       dtype=np.float32)
    if not np.allclose(out_np, ref32, atol=0.3, rtol=0.1):
        raise AssertionError(
            "Pallas StemBlock mismatch vs f32 reference beyond bf16 tolerance: "
            "max err %.4f" % float(np.max(np.abs(out_np - ref32))))

    print("KERNEL_OK")
</pallas_src>

<mosaic_0001>
module attributes {stable_mosaic.version = 11 : i64} {
  func.func @kernel(%arg0: i32, %arg1: i32, %arg2: memref<1x18x9x6xbf16, #tpu.memory_space<vmem>>, %arg3: memref<6x6x32xbf16, #tpu.memory_space<vmem>>, %arg4: memref<1x32xf32, #tpu.memory_space<vmem>>, %arg5: memref<1x8x8x32xbf16, #tpu.memory_space<vmem>>) attributes {dimension_semantics = [#tpu.dimension_semantics<parallel>, #tpu.dimension_semantics<arbitrary>], iteration_bounds = array<i64: 2, 1>, scalar_prefetch = 0 : i64, scratch_operands = 0 : i64, tpu.core_type = #tpu.core_type<tc>, window_params = [{transform_indices = @transform_0, window_bounds = array<i64: 1, 18, 9, 6>}, {pipeline_mode = #tpu.pipeline_mode<synchronous>, transform_indices = @transform_1, window_bounds = array<i64: 6, 6, 32>}, {pipeline_mode = #tpu.pipeline_mode<synchronous>, transform_indices = @transform_2, window_bounds = array<i64: 1, 32>}, {transform_indices = @transform_3, window_bounds = array<i64: 1, 8, 8, 32>}]} {
    %c8_i32 = arith.constant 8 : i32
    %0 = arith.muli %arg1, %c8_i32 : i32
    %c0_i32 = arith.constant 0 : i32
    %1 = arith.addi %0, %c0_i32 : i32
    %c2_i32 = arith.constant 2 : i32
    %2 = arith.muli %c2_i32, %1 : i32
    %cst = arith.constant 0.000000e+00 : f32
    %3 = vector.broadcast %cst : f32 to vector<8x32xf32>
    %c0_i32_0 = arith.constant 0 : i32
    %4 = arith.addi %2, %c0_i32_0 : i32
    %c0 = arith.constant 0 : index
    %5 = arith.index_cast %4 : i32 to index
    %c0_1 = arith.constant 0 : index
    %c0_2 = arith.constant 0 : index
    %6 = vector.load %arg2[%c0, %5, %c0_1, %c0_2] : memref<1x18x9x6xbf16, #tpu.memory_space<vmem>>, vector<1x1x9x6xbf16>
    %7 = vector.shape_cast %6 : vector<1x1x9x6xbf16> to vector<9x6xbf16>
    %8 = vector.extract_strided_slice %7 {offsets = [0, 0], sizes = [8, 6], strides = [1, 1]} : vector<9x6xbf16> to vector<8x6xbf16>
    %c0_3 = arith.constant 0 : index
    %c0_4 = arith.constant 0 : index
    %c0_5 = arith.constant 0 : index
    %9 = vector.load %arg3[%c0_3, %c0_4, %c0_5] : memref<6x6x32xbf16, #tpu.memory_space<vmem>>, vector<1x6x32xbf16>
    %10 = vector.shape_cast %9 : vector<1x6x32xbf16> to vector<6x32xbf16>
    %cst_6 = arith.constant dense<0.000000e+00> : vector<8x32xf32>
    %11 = tpu.matmul %8, %10, %cst_6 {dimension_numbers = #tpu.dot_dimension_numbers<[1], [0], [0], [1], [0, 0, 1, 1], [], []>} : vector<8x6xbf16>, vector<6x32xbf16>, vector<8x32xf32> -> vector<8x32xf32>
    %12 = arith.addf %3, %11 : vector<8x32xf32>
    %13 = vector.extract_strided_slice %7 {offsets = [1, 0], sizes = [8, 6], strides = [1, 1]} : vector<9x6xbf16> to vector<8x6xbf16>
    %c1 = arith.constant 1 : index
    %c0_7 = arith.constant 0 : index
    %c0_8 = arith.constant 0 : index
    %14 = vector.load %arg3[%c1, %c0_7, %c0_8] : memref<6x6x32xbf16, #tpu.memory_space<vmem>>, vector<1x6x32xbf16>
    %15 = vector.shape_cast %14 : vector<1x6x32xbf16> to vector<6x32xbf16>
    %cst_9 = arith.constant dense<0.000000e+00> : vector<8x32xf32>
    %16 = tpu.matmul %13, %15, %cst_9 {dimension_numbers = #tpu.dot_dimension_numbers<[1], [0], [0], [1], [0, 0, 1, 1], [], []>} : vector<8x6xbf16>, vector<6x32xbf16>, vector<8x32xf32> -> vector<8x32xf32>
    %17 = arith.addf %12, %16 : vector<8x32xf32>
    %c1_i32 = arith.constant 1 : i32
    %18 = arith.addi %2, %c1_i32 : i32
    %c0_10 = arith.constant 0 : index
    %19 = arith.index_cast %18 : i32 to index
    %c0_11 = arith.constant 0 : index
    %c0_12 = arith.constant 0 : index
    %20 = vector.load %arg2[%c0_10, %19, %c0_11, %c0_12] : memref<1x18x9x6xbf16, #tpu.memory_space<vmem>>, vector<1x1x9x6xbf16>
    %21 = vector.shape_cast %20 : vector<1x1x9x6xbf16> to vector<9x6xbf16>
    %22 = vector.extract_strided_slice %21 {offsets = [0, 0], sizes = [8, 6], strides = [1, 1]} : vector<9x6xbf16> to vector<8x6xbf16>
    %c2 = arith.constant 2 : index
    %c0_13 = arith.constant 0 : index
    %c0_14 = arith.constant 0 : index
    %23 = vector.load %arg3[%c2, %c0_13, %c0_14] : memref<6x6x32xbf16, #tpu.memory_space<vmem>>, vector<1x6x32xbf16>
    %24 = vector.shape_cast %23 : vector<1x6x32xbf16> to vector<6x32xbf16>
    %cst_15 = arith.constant dense<0.000000e+00> : vector<8x32xf32>
    %25 = tpu.matmul %22, %24, %cst_15 {dimension_numbers = #tpu.dot_dimension_numbers<[1], [0], [0], [1], [0, 0, 1, 1], [], []>} : vector<8x6xbf16>, vector<6x32xbf16>, vector<8x32xf32> -> vector<8x32xf32>
    %26 = arith.addf %17, %25 : vector<8x32xf32>
    %27 = vector.extract_strided_slice %21 {offsets = [1, 0], sizes = [8, 6], strides = [1, 1]} : vector<9x6xbf16> to vector<8x6xbf16>
    %c3 = arith.constant 3 : index
    %c0_16 = arith.constant 0 : index
    %c0_17 = arith.constant 0 : index
    %28 = vector.load %arg3[%c3, %c0_16, %c0_17] : memref<6x6x32xbf16, #tpu.memory_space<vmem>>, vector<1x6x32xbf16>
    %29 = vector.shape_cast %28 : vector<1x6x32xbf16> to vector<6x32xbf16>
    %cst_18 = arith.constant dense<0.000000e+00> : vector<8x32xf32>
    %30 = tpu.matmul %27, %29, %cst_18 {dimension_numbers = #tpu.dot_dimension_numbers<[1], [0], [0], [1], [0, 0, 1, 1], [], []>} : vector<8x6xbf16>, vector<6x32xbf16>, vector<8x32xf32> -> vector<8x32xf32>
    %31 = arith.addf %26, %30 : vector<8x32xf32>
    %c2_i32_19 = arith.constant 2 : i32
    %32 = arith.addi %2, %c2_i32_19 : i32
    %c0_20 = arith.constant 0 : index
    %33 = arith.index_cast %32 : i32 to index
    %c0_21 = arith.constant 0 : index
    %c0_22 = arith.constant 0 : index
    %34 = vector.load %arg2[%c0_20, %33, %c0_21, %c0_22] : memref<1x18x9x6xbf16, #tpu.memory_space<vmem>>, vector<1x1x9x6xbf16>
    %35 = vector.shape_cast %34 : vector<1x1x9x6xbf16> to vector<9x6xbf16>
    %36 = vector.extract_strided_slice %35 {offsets = [0, 0], sizes = [8, 6], strides = [1, 1]} : vector<9x6xbf16> to vector<8x6xbf16>
    %c4 = arith.constant 4 : index
    %c0_23 = arith.constant 0 : index
    %c0_24 = arith.constant 0 : index
    %37 = vector.load %arg3[%c4, %c0_23, %c0_24] : memref<6x6x32xbf16, #tpu.memory_space<vmem>>, vector<1x6x32xbf16>
    %38 = vector.shape_cast %37 : vector<1x6x32xbf16> to vector<6x32xbf16>
    %cst_25 = arith.constant dense<0.000000e+00> : vector<8x32xf32>
    %39 = tpu.matmul %36, %38, %cst_25 {dimension_numbers = #tpu.dot_dimension_numbers<[1], [0], [0], [1], [0, 0, 1, 1], [], []>} : vector<8x6xbf16>, vector<6x32xbf16>, vector<8x32xf32> -> vector<8x32xf32>
    %40 = arith.addf %31, %39 : vector<8x32xf32>
    %41 = vector.extract_strided_slice %35 {offsets = [1, 0], sizes = [8, 6], strides = [1, 1]} : vector<9x6xbf16> to vector<8x6xbf16>
    %c5 = arith.constant 5 : index
    %c0_26 = arith.constant 0 : index
    %c0_27 = arith.constant 0 : index
    %42 = vector.load %arg3[%c5, %c0_26, %c0_27] : memref<6x6x32xbf16, #tpu.memory_space<vmem>>, vector<1x6x32xbf16>
    %43 = vector.shape_cast %42 : vector<1x6x32xbf16> to vector<6x32xbf16>
    %cst_28 = arith.constant dense<0.000000e+00> : vector<8x32xf32>
    %44 = tpu.matmul %41, %43, %cst_28 {dimension_numbers = #tpu.dot_dimension_numbers<[1], [0], [0], [1], [0, 0, 1, 1], [], []>} : vector<8x6xbf16>, vector<6x32xbf16>, vector<8x32xf32> -> vector<8x32xf32>
    %45 = arith.addf %40, %44 : vector<8x32xf32>
    %c0_29 = arith.constant 0 : index
    %c0_30 = arith.constant 0 : index
    %46 = vector.load %arg4[%c0_29, %c0_30] : memref<1x32xf32, #tpu.memory_space<vmem>>, vector<1x32xf32>
    %47 = vector.broadcast %46 : vector<1x32xf32> to vector<8x32xf32>
    %48 = arith.addf %45, %47 : vector<8x32xf32>
    %cst_31 = arith.constant 0.000000e+00 : f32
    %49 = vector.broadcast %cst_31 : f32 to vector<8x32xf32>
    %50 = arith.maximumf %48, %49 : vector<8x32xf32>
    %51 = arith.truncf %50 : vector<8x32xf32> to vector<8x32xbf16>
    %c0_32 = arith.constant 0 : index
    %c0_33 = arith.constant 0 : index
    %c0_34 = arith.constant 0 : index
    %c0_35 = arith.constant 0 : index
    %52 = vector.load %arg5[%c0_32, %c0_33, %c0_34, %c0_35] : memref<1x8x8x32xbf16, #tpu.memory_space<vmem>>, vector<1x1x8x32xbf16>
    %53 = vector.shape_cast %52 : vector<1x1x8x32xbf16> to vector<8x32xbf16>
    %54 = vector.shape_cast %51 : vector<8x32xbf16> to vector<1x1x8x32xbf16>
    tpu.vector_store %arg5[%c0_32, %c0_33, %c0_34, %c0_35], %54 {strides = array<i32>} : memref<1x8x8x32xbf16, #tpu.memory_space<vmem>>, vector<1x1x8x32xbf16>,
    %c8_i32_36 = arith.constant 8 : i32
    %55 = arith.muli %arg1, %c8_i32_36 : i32
    %c1_i32_37 = arith.constant 1 : i32
    %56 = arith.addi %55, %c1_i32_37 : i32
    %c2_i32_38 = arith.constant 2 : i32
    %57 = arith.muli %c2_i32_38, %56 : i32
    %cst_39 = arith.constant 0.000000e+00 : f32
    %58 = vector.broadcast %cst_39 : f32 to vector<8x32xf32>
    %c0_i32_40 = arith.constant 0 : i32
    %59 = arith.addi %57, %c0_i32_40 : i32
    %c0_41 = arith.constant 0 : index
    %60 = arith.index_cast %59 : i32 to index
    %c0_42 = arith.constant 0 : index
    %c0_43 = arith.constant 0 : index
    %61 = vector.load %arg2[%c0_41, %60, %c0_42, %c0_43] : memref<1x18x9x6xbf16, #tpu.memory_space<vmem>>, vector<1x1x9x6xbf16>
    %62 = vector.shape_cast %61 : vector<1x1x9x6xbf16> to vector<9x6xbf16>
    %63 = vector.extract_strided_slice %62 {offsets = [0, 0], sizes = [8, 6], strides = [1, 1]} : vector<9x6xbf16> to vector<8x6xbf16>
    %c0_44 = arith.constant 0 : index
    %c0_45 = arith.constant 0 : index
    %c0_46 = arith.constant 0 : index
    %64 = vector.load %arg3[%c0_44, %c0_45, %c0_46] : memref<6x6x32xbf16, #tpu.memory_space<vmem>>, vector<1x6x32xbf16>
    %65 = vector.shape_cast %64 : vector<1x6x32xbf16> to vector<6x32xbf16>
    %cst_47 = arith.constant dense<0.000000e+00> : vector<8x32xf32>
    %66 = tpu.matmul %63, %65, %cst_47 {dimension_numbers = #tpu.dot_dimension_numbers<[1], [0], [0], [1], [0, 0, 1, 1], [], []>} : vector<8x6xbf16>, vector<6x32xbf16>, vector<8x32xf32> -> vector<8x32xf32>
    %67 = arith.addf %58, %66 : vector<8x32xf32>
    %68 = vector.extract_strided_slice %62 {offsets = [1, 0], sizes = [8, 6], strides = [1, 1]} : vector<9x6xbf16> to vector<8x6xbf16>
    %c1_48 = arith.constant 1 : index
    %c0_49 = arith.constant 0 : index
    %c0_50 = arith.constant 0 : index
    %69 = vector.load %arg3[%c1_48, %c0_49, %c0_50] : memref<6x6x32xbf16, #tpu.memory_space<vmem>>, vector<1x6x32xbf16>
    %70 = vector.shape_cast %69 : vector<1x6x32xbf16> to vector<6x32xbf16>
    %cst_51 = arith.constant dense<0.000000e+00> : vector<8x32xf32>
    %71 = tpu.matmul %68, %70, %cst_51 {dimension_numbers = #tpu.dot_dimension_numbers<[1], [0], [0], [1], [0, 0, 1, 1], [], []>} : vector<8x6xbf16>, vector<6x32xbf16>, vector<8x32xf32> -> vector<8x32xf32>
    %72 = arith.addf %67, %71 : vector<8x32xf32>
    %c1_i32_52 = arith.constant 1 : i32
    %73 = arith.addi %57, %c1_i32_52 : i32
    %c0_53 = arith.constant 0 : index
    %74 = arith.index_cast %73 : i32 to index
    %c0_54 = arith.constant 0 : index
    %c0_55 = arith.constant 0 : index
    %75 = vector.load %arg2[%c0_53, %74, %c0_54, %c0_55] : memref<1x18x9x6xbf16, #tpu.memory_space<vmem>>, vector<1x1x9x6xbf16>
    %76 = vector.shape_cast %75 : vector<1x1x9x6xbf16> to vector<9x6xbf16>
    %77 = vector.extract_strided_slice %76 {offsets = [0, 0], sizes = [8, 6], strides = [1, 1]} : vector<9x6xbf16> to vector<8x6xbf16>
    %c2_56 = arith.constant 2 : index
    %c0_57 = arith.constant 0 : index
    %c0_58 = arith.constant 0 : index
    %78 = vector.load %arg3[%c2_56, %c0_57, %c0_58] : memref<6x6x32xbf16, #tpu.memory_space<vmem>>, vector<1x6x32xbf16>
    %79 = vector.shape_cast %78 : vector<1x6x32xbf16> to vector<6x32xbf16>
    %cst_59 = arith.constant dense<0.000000e+00> : vector<8x32xf32>
    %80 = tpu.matmul %77, %79, %cst_59 {dimension_numbers = #tpu.dot_dimension_numbers<[1], [0], [0], [1], [0, 0, 1, 1], [], []>} : vector<8x6xbf16>, vector<6x32xbf16>, vector<8x32xf32> -> vector<8x32xf32>
    %81 = arith.addf %72, %80 : vector<8x32xf32>
    %82 = vector.extract_strided_slice %76 {offsets = [1, 0], sizes = [8, 6], strides = [1, 1]} : vector<9x6xbf16> to vector<8x6xbf16>
    %c3_60 = arith.constant 3 : index
    %c0_61 = arith.constant 0 : index
    %c0_62 = arith.constant 0 : index
    %83 = vector.load %arg3[%c3_60, %c0_61, %c0_62] : memref<6x6x32xbf16, #tpu.memory_space<vmem>>, vector<1x6x32xbf16>
    %84 = vector.shape_cast %83 : vector<1x6x32xbf16> to vector<6x32xbf16>
    %cst_63 = arith.constant dense<0.000000e+00> : vector<8x32xf32>
    %85 = tpu.matmul %82, %84, %cst_63 {dimension_numbers = #tpu.dot_dimension_numbers<[1], [0], [0], [1], [0, 0, 1, 1], [], []>} : vector<8x6xbf16>, vector<6x32xbf16>, vector<8x32xf32> -> vector<8x32xf32>
    %86 = arith.addf %81, %85 : vector<8x32xf32>
    %c2_i32_64 = arith.constant 2 : i32
    %87 = arith.addi %57, %c2_i32_64 : i32
    %c0_65 = arith.constant 0 : index
    %88 = arith.index_cast %87 : i32 to index
    %c0_66 = arith.constant 0 : index
    %c0_67 = arith.constant 0 : index
    %89 = vector.load %arg2[%c0_65, %88, %c0_66, %c0_67] : memref<1x18x9x6xbf16, #tpu.memory_space<vmem>>, vector<1x1x9x6xbf16>
    %90 = vector.shape_cast %89 : vector<1x1x9x6xbf16> to vector<9x6xbf16>
    %91 = vector.extract_strided_slice %90 {offsets = [0, 0], sizes = [8, 6], strides = [1, 1]} : vector<9x6xbf16> to vector<8x6xbf16>
    %c4_68 = arith.constant 4 : index
    %c0_69 = arith.constant 0 : index
    %c0_70 = arith.constant 0 : index
    %92 = vector.load %arg3[%c4_68, %c0_69, %c0_70] : memref<6x6x32xbf16, #tpu.memory_space<vmem>>, vector<1x6x32xbf16>
    %93 = vector.shape_cast %92 : vector<1x6x32xbf16> to vector<6x32xbf16>
    %cst_71 = arith.constant dense<0.000000e+00> : vector<8x32xf32>
    %94 = tpu.matmul %91, %93, %cst_71 {dimension_numbers = #tpu.dot_dimension_numbers<[1], [0], [0], [1], [0, 0, 1, 1], [], []>} : vector<8x6xbf16>, vector<6x32xbf16>, vector<8x32xf32> -> vector<8x32xf32>
    %95 = arith.addf %86, %94 : vector<8x32xf32>
    %96 = vector.extract_strided_slice %90 {offsets = [1, 0], sizes = [8, 6], strides = [1, 1]} : vector<9x6xbf16> to vector<8x6xbf16>
    %c5_72 = arith.constant 5 : index
    %c0_73 = arith.constant 0 : index
    %c0_74 = arith.constant 0 : index
    %97 = vector.load %arg3[%c5_72, %c0_73, %c0_74] : memref<6x6x32xbf16, #tpu.memory_space<vmem>>, vector<1x6x32xbf16>
    %98 = vector.shape_cast %97 : vector<1x6x32xbf16> to vector<6x32xbf16>
    %cst_75 = arith.constant dense<0.000000e+00> : vector<8x32xf32>
    %99 = tpu.matmul %96, %98, %cst_75 {dimension_numbers = #tpu.dot_dimension_numbers<[1], [0], [0], [1], [0, 0, 1, 1], [], []>} : vector<8x6xbf16>, vector<6x32xbf16>, vector<8x32xf32> -> vector<8x32xf32>
    %100 = arith.addf %95, %99 : vector<8x32xf32>
    %c0_76 = arith.constant 0 : index
    %c0_77 = arith.constant 0 : index
    %101 = vector.load %arg4[%c0_76, %c0_77] : memref<1x32xf32, #tpu.memory_space<vmem>>, vector<1x32xf32>
    %102 = vector.broadcast %101 : vector<1x32xf32> to vector<8x32xf32>
    %103 = arith.addf %100, %102 : vector<8x32xf32>
    %cst_78 = arith.constant 0.000000e+00 : f32
    %104 = vector.broadcast %cst_78 : f32 to vector<8x32xf32>
    %105 = arith.maximumf %103, %104 : vector<8x32xf32>
    %106 = arith.truncf %105 : vector<8x32xf32> to vector<8x32xbf16>
    %c0_79 = arith.constant 0 : index
    %c1_80 = arith.constant 1 : index
    %c0_81 = arith.constant 0 : index
    %c0_82 = arith.constant 0 : index
    %107 = vector.load %arg5[%c0_79, %c1_80, %c0_81, %c0_82] : memref<1x8x8x32xbf16, #tpu.memory_space<vmem>>, vector<1x1x8x32xbf16>
    %108 = vector.shape_cast %107 : vector<1x1x8x32xbf16> to vector<8x32xbf16>
    %109 = vector.shape_cast %106 : vector<8x32xbf16> to vector<1x1x8x32xbf16>
    tpu.vector_store %arg5[%c0_79, %c1_80, %c0_81, %c0_82], %109 {strides = array<i32>} : memref<1x8x8x32xbf16, #tpu.memory_space<vmem>>, vector<1x1x8x32xbf16>,
    %c8_i32_83 = arith.constant 8 : i32
    %110 = arith.muli %arg1, %c8_i32_83 : i32
    %c2_i32_84 = arith.constant 2 : i32
    %111 = arith.addi %110, %c2_i32_84 : i32
    %c2_i32_85 = arith.constant 2 : i32
    %112 = arith.muli %c2_i32_85, %111 : i32
    %cst_86 = arith.constant 0.000000e+00 : f32
    %113 = vector.broadcast %cst_86 : f32 to vector<8x32xf32>
    %c0_i32_87 = arith.constant 0 : i32
    %114 = arith.addi %112, %c0_i32_87 : i32
    %c0_88 = arith.constant 0 : index
    %115 = arith.index_cast %114 : i32 to index
    %c0_89 = arith.constant 0 : index
    %c0_90 = arith.constant 0 : index
    %116 = vector.load %arg2[%c0_88, %115, %c0_89, %c0_90] : memref<1x18x9x6xbf16, #tpu.memory_space<vmem>>, vector<1x1x9x6xbf16>
    %117 = vector.shape_cast %116 : vector<1x1x9x6xbf16> to vector<9x6xbf16>
    %118 = vector.extract_strided_slice %117 {offsets = [0, 0], sizes = [8, 6], strides = [1, 1]} : vector<9x6xbf16> to vector<8x6xbf16>
    %c0_91 = arith.constant 0 : index
    %c0_92 = arith.constant 0 : index
    %c0_93 = arith.constant 0 : index
    %119 = vector.load %arg3[%c0_91, %c0_92, %c0_93] : memref<6x6x32xbf16, #tpu.memory_space<vmem>>, vector<1x6x32xbf16>
    %120 = vector.shape_cast %119 : vector<1x6x32xbf16> to vector<6x32xbf16>
    %cst_94 = arith.constant dense<0.000000e+00> : vector<8x32xf32>
    %121 = tpu.matmul %118, %120, %cst_94 {dimension_numbers = #tpu.dot_dimension_numbers<[1], [0], [0], [1], [0, 0, 1, 1], [], []>} : vector<8x6xbf16>, vector<6x32xbf16>, vector<8x32xf32> -> vector<8x32xf32>
    %122 = arith.addf %113, %121 : vector<8x32xf32>
    %123 = vector.extract_strided_slice %117 {offsets = [1, 0], sizes = [8, 6], strides = [1, 1]} : vector<9x6xbf16> to vector<8x6xbf16>
    %c1_95 = arith.constant 1 : index
    %c0_96 = arith.constant 0 : index
    %c0_97 = arith.constant 0 : index
    %124 = vector.load %arg3[%c1_95, %c0_96, %c0_97] : memref<6x6x32xbf16, #tpu.memory_space<vmem>>, vector<1x6x32xbf16>
    %125 = vector.shape_cast %124 : vector<1x6x32xbf16> to vector<6x32xbf16>
    %cst_98 = arith.constant dense<0.000000e+00> : vector<8x32xf32>
    %126 = tpu.matmul %123, %125, %cst_98 {dimension_numbers = #tpu.dot_dimension_numbers<[1], [0], [0], [1], [0, 0, 1, 1], [], []>} : vector<8x6xbf16>, vector<6x32xbf16>, vector<8x32xf32> -> vector<8x32xf32>
    %127 = arith.addf %122, %126 : vector<8x32xf32>
    %c1_i32_99 = arith.constant 1 : i32
    %128 = arith.addi %112, %c1_i32_99 : i32
    %c0_100 = arith.constant 0 : index
    %129 = arith.index_cast %128 : i32 to index
    %c0_101 = arith.constant 0 : index
    %c0_102 = arith.constant 0 : index
    %130 = vector.load %arg2[%c0_100, %129, %c0_101, %c0_102] : memref<1x18x9x6xbf16, #tpu.memory_space<vmem>>, vector<1x1x9x6xbf16>
    %131 = vector.shape_cast %130 : vector<1x1x9x6xbf16> to vector<9x6xbf16>
    %132 = vector.extract_strided_slice %131 {offsets = [0, 0], sizes = [8, 6], strides = [1, 1]} : vector<9x6xbf16> to vector<8x6xbf16>
    %c2_103 = arith.constant 2 : index
    %c0_104 = arith.constant 0 : index
    %c0_105 = arith.constant 0 : index
    %133 = vector.load %arg3[%c2_103, %c0_104, %c0_105] : memref<6x6x32xbf16, #tpu.memory_space<vmem>>, vector<1x6x32xbf16>
    %134 = vector.shape_cast %133 : vector<1x6x32xbf16> to vector<6x32xbf16>
    %cst_106 = arith.constant dense<0.000000e+00> : vector<8x32xf32>
    %135 = tpu.matmul %132, %134, %cst_106 {dimension_numbers = #tpu.dot_dimension_numbers<[1], [0], [0], [1], [0, 0, 1, 1], [], []>} : vector<8x6xbf16>, vector<6x32xbf16>, vector<8x32xf32> -> vector<8x32xf32>
    %136 = arith.addf %127, %135 : vector<8x32xf32>
    %137 = vector.extract_strided_slice %131 {offsets = [1, 0], sizes = [8, 6], strides = [1, 1]} : vector<9x6xbf16> to vector<8x6xbf16>
    %c3_107 = arith.constant 3 : index
    %c0_108 = arith.constant 0 : index
    %c0_109 = arith.constant 0 : index
    %138 = vector.load %arg3[%c3_107, %c0_108, %c0_109] : memref<6x6x32xbf16, #tpu.memory_space<vmem>>, vector<1x6x32xbf16>
    %139 = vector.shape_cast %138 : vector<1x6x32xbf16> to vector<6x32xbf16>
    %cst_110 = arith.constant dense<0.000000e+00> : vector<8x32xf32>
    %140 = tpu.matmul %137, %139, %cst_110 {dimension_numbers = #tpu.dot_dimension_numbers<[1], [0], [0], [1], [0, 0, 1, 1], [], []>} : vector<8x6xbf16>, vector<6x32xbf16>, vector<8x32xf32> -> vector<8x32xf32>
    %141 = arith.addf %136, %140 : vector<8x32xf32>
    %c2_i32_111 = arith.constant 2 : i32
    %142 = arith.addi %112, %c2_i32_111 : i32
    %c0_112 = arith.constant 0 : index
    %143 = arith.index_cast %142 : i32 to index
    %c0_113 = arith.constant 0 : index
    %c0_114 = arith.constant 0 : index
    %144 = vector.load %arg2[%c0_112, %143, %c0_113, %c0_114] : memref<1x18x9x6xbf16, #tpu.memory_space<vmem>>, vector<1x1x9x6xbf16>
    %145 = vector.shape_cast %144 : vector<1x1x9x6xbf16> to vector<9x6xbf16>
    %146 = vector.extract_strided_slice %145 {offsets = [0, 0], sizes = [8, 6], strides = [1, 1]} : vector<9x6xbf16> to vector<8x6xbf16>
    %c4_115 = arith.constant 4 : index
    %c0_116 = arith.constant 0 : index
    %c0_117 = arith.constant 0 : index
    %147 = vector.load %arg3[%c4_115, %c0_116, %c0_117] : memref<6x6x32xbf16, #tpu.memory_space<vmem>>, vector<1x6x32xbf16>
    %148 = vector.shape_cast %147 : vector<1x6x32xbf16> to vector<6x32xbf16>
    %cst_118 = arith.constant dense<0.000000e+00> : vector<8x32xf32>
    %149 = tpu.matmul %146, %148, %cst_118 {dimension_numbers = #tpu.dot_dimension_numbers<[1], [0], [0], [1], [0, 0, 1, 1], [], []>} : vector<8x6xbf16>, vector<6x32xbf16>, vector<8x32xf32> -> vector<8x32xf32>
    %150 = arith.addf %141, %149 : vector<8x32xf32>
    %151 = vector.extract_strided_slice %145 {offsets = [1, 0], sizes = [8, 6], strides = [1, 1]} : vector<9x6xbf16> to vector<8x6xbf16>
    %c5_119 = arith.constant 5 : index
    %c0_120 = arith.constant 0 : index
    %c0_121 = arith.constant 0 : index
    %152 = vector.load %arg3[%c5_119, %c0_120, %c0_121] : memref<6x6x32xbf16, #tpu.memory_space<vmem>>, vector<1x6x32xbf16>
    %153 = vector.shape_cast %152 : vector<1x6x32xbf16> to vector<6x32xbf16>
    %cst_122 = arith.constant dense<0.000000e+00> : vector<8x32xf32>
    %154 = tpu.matmul %151, %153, %cst_122 {dimension_numbers = #tpu.dot_dimension_numbers<[1], [0], [0], [1], [0, 0, 1, 1], [], []>} : vector<8x6xbf16>, vector<6x32xbf16>, vector<8x32xf32> -> vector<8x32xf32>
    %155 = arith.addf %150, %154 : vector<8x32xf32>
    %c0_123 = arith.constant 0 : index
    %c0_124 = arith.constant 0 : index
    %156 = vector.load %arg4[%c0_123, %c0_124] : memref<1x32xf32, #tpu.memory_space<vmem>>, vector<1x32xf32>
    %157 = vector.broadcast %156 : vector<1x32xf32> to vector<8x32xf32>
    %158 = arith.addf %155, %157 : vector<8x32xf32>
    %cst_125 = arith.constant 0.000000e+00 : f32
    %159 = vector.broadcast %cst_125 : f32 to vector<8x32xf32>
    %160 = arith.maximumf %158, %159 : vector<8x32xf32>
    %161 = arith.truncf %160 : vector<8x32xf32> to vector<8x32xbf16>
    %c0_126 = arith.constant 0 : index
    %c2_127 = arith.constant 2 : index
    %c0_128 = arith.constant 0 : index
    %c0_129 = arith.constant 0 : index
    %162 = vector.load %arg5[%c0_126, %c2_127, %c0_128, %c0_129] : memref<1x8x8x32xbf16, #tpu.memory_space<vmem>>, vector<1x1x8x32xbf16>
    %163 = vector.shape_cast %162 : vector<1x1x8x32xbf16> to vector<8x32xbf16>
    %164 = vector.shape_cast %161 : vector<8x32xbf16> to vector<1x1x8x32xbf16>
    tpu.vector_store %arg5[%c0_126, %c2_127, %c0_128, %c0_129], %164 {strides = array<i32>} : memref<1x8x8x32xbf16, #tpu.memory_space<vmem>>, vector<1x1x8x32xbf16>,
    %c8_i32_130 = arith.constant 8 : i32
    %165 = arith.muli %arg1, %c8_i32_130 : i32
    %c3_i32 = arith.constant 3 : i32
    %166 = arith.addi %165, %c3_i32 : i32
    %c2_i32_131 = arith.constant 2 : i32
    %167 = arith.muli %c2_i32_131, %166 : i32
    %cst_132 = arith.constant 0.000000e+00 : f32
    %168 = vector.broadcast %cst_132 : f32 to vector<8x32xf32>
    %c0_i32_133 = arith.constant 0 : i32
    %169 = arith.addi %167, %c0_i32_133 : i32
    %c0_134 = arith.constant 0 : index
    %170 = arith.index_cast %169 : i32 to index
    %c0_135 = arith.constant 0 : index
    %c0_136 = arith.constant 0 : index
    %171 = vector.load %arg2[%c0_134, %170, %c0_135, %c0_136] : memref<1x18x9x6xbf16, #tpu.memory_space<vmem>>, vector<1x1x9x6xbf16>
    %172 = vector.shape_cast %171 : vector<1x1x9x6xbf16> to vector<9x6xbf16>
    %173 = vector.extract_strided_slice %172 {offsets = [0, 0], sizes = [8, 6], strides = [1, 1]} : vector<9x6xbf16> to vector<8x6xbf16>
    %c0_137 = arith.constant 0 : index
    %c0_138 = arith.constant 0 : index
    %c0_139 = arith.constant 0 : index
    %174 = vector.load %arg3[%c0_137, %c0_138, %c0_139] : memref<6x6x32xbf16, #tpu.memory_space<vmem>>, vector<1x6x32xbf16>
    %175 = vector.shape_cast %174 : vector<1x6x32xbf16> to vector<6x32xbf16>
    %cst_140 = arith.constant dense<0.000000e+00> : vector<8x32xf32>
    %176 = tpu.matmul %173, %175, %cst_140 {dimension_numbers = #tpu.dot_dimension_numbers<[1], [0], [0], [1], [0, 0, 1, 1], [], []>} : vector<8x6xbf16>, vector<6x32xbf16>, vector<8x32xf32> -> vector<8x32xf32>
    %177 = arith.addf %168, %176 : vector<8x32xf32>
    %178 = vector.extract_strided_slice %172 {offsets = [1, 0], sizes = [8, 6], strides = [1, 1]} : vector<9x6xbf16> to vector<8x6xbf16>
    %c1_141 = arith.constant 1 : index
    %c0_142 = arith.constant 0 : index
    %c0_143 = arith.constant 0 : index
    %179 = vector.load %arg3[%c1_141, %c0_142, %c0_143] : memref<6x6x32xbf16, #tpu.memory_space<vmem>>, vector<1x6x32xbf16>
    %180 = vector.shape_cast %179 : vector<1x6x32xbf16> to vector<6x32xbf16>
    %cst_144 = arith.constant dense<0.000000e+00> : vector<8x32xf32>
    %181 = tpu.matmul %178, %180, %cst_144 {dimension_numbers = #tpu.dot_dimension_numbers<[1], [0], [0], [1], [0, 0, 1, 1], [], []>} : vector<8x6xbf16>, vector<6x32xbf16>, vector<8x32xf32> -> vector<8x32xf32>
    %182 = arith.addf %177, %181 : vector<8x32xf32>
    %c1_i32_145 = arith.constant 1 : i32
    %183 = arith.addi %167, %c1_i32_145 : i32
    %c0_146 = arith.constant 0 : index
    %184 = arith.index_cast %183 : i32 to index
    %c0_147 = arith.constant 0 : index
    %c0_148 = arith.constant 0 : index
    %185 = vector.load %arg2[%c0_146, %184, %c0_147, %c0_148] : memref<1x18x9x6xbf16, #tpu.memory_space<vmem>>, vector<1x1x9x6xbf16>
    %186 = vector.shape_cast %185 : vector<1x1x9x6xbf16> to vector<9x6xbf16>
    %187 = vector.extract_strided_slice %186 {offsets = [0, 0], sizes = [8, 6], strides = [1, 1]} : vector<9x6xbf16> to vector<8x6xbf16>
    %c2_149 = arith.constant 2 : index
    %c0_150 = arith.constant 0 : index
    %c0_151 = arith.constant 0 : index
    %188 = vector.load %arg3[%c2_149, %c0_150, %c0_151] : memref<6x6x32xbf16, #tpu.memory_space<vmem>>, vector<1x6x32xbf16>
    %189 = vector.shape_cast %188 : vector<1x6x32xbf16> to vector<6x32xbf16>
    %cst_152 = arith.constant dense<0.000000e+00> : vector<8x32xf32>
    %190 = tpu.matmul %187, %189, %cst_152 {dimension_numbers = #tpu.dot_dimension_numbers<[1], [0], [0], [1], [0, 0, 1, 1], [], []>} : vector<8x6xbf16>, vector<6x32xbf16>, vector<8x32xf32> -> vector<8x32xf32>
    %191 = arith.addf %182, %190 : vector<8x32xf32>
    %192 = vector.extract_strided_slice %186 {offsets = [1, 0], sizes = [8, 6], strides = [1, 1]} : vector<9x6xbf16> to vector<8x6xbf16>
    %c3_153 = arith.constant 3 : index
    %c0_154 = arith.constant 0 : index
    %c0_155 = arith.constant 0 : index
    %193 = vector.load %arg3[%c3_153, %c0_154, %c0_155] : memref<6x6x32xbf16, #tpu.memory_space<vmem>>, vector<1x6x32xbf16>
    %194 = vector.shape_cast %193 : vector<1x6x32xbf16> to vector<6x32xbf16>
    %cst_156 = arith.constant dense<0.000000e+00> : vector<8x32xf32>
    %195 = tpu.matmul %192, %194, %cst_156 {dimension_numbers = #tpu.dot_dimension_numbers<[1], [0], [0], [1], [0, 0, 1, 1], [], []>} : vector<8x6xbf16>, vector<6x32xbf16>, vector<8x32xf32> -> vector<8x32xf32>
    %196 = arith.addf %191, %195 : vector<8x32xf32>
    %c2_i32_157 = arith.constant 2 : i32
    %197 = arith.addi %167, %c2_i32_157 : i32
    %c0_158 = arith.constant 0 : index
    %198 = arith.index_cast %197 : i32 to index
    %c0_159 = arith.constant 0 : index
    %c0_160 = arith.constant 0 : index
    %199 = vector.load %arg2[%c0_158, %198, %c0_159, %c0_160] : memref<1x18x9x6xbf16, #tpu.memory_space<vmem>>, vector<1x1x9x6xbf16>
    %200 = vector.shape_cast %199 : vector<1x1x9x6xbf16> to vector<9x6xbf16>
    %201 = vector.extract_strided_slice %200 {offsets = [0, 0], sizes = [8, 6], strides = [1, 1]} : vector<9x6xbf16> to vector<8x6xbf16>
    %c4_161 = arith.constant 4 : index
    %c0_162 = arith.constant 0 : index
    %c0_163 = arith.constant 0 : index
    %202 = vector.load %arg3[%c4_161, %c0_162, %c0_163] : memref<6x6x32xbf16, #tpu.memory_space<vmem>>, vector<1x6x32xbf16>
    %203 = vector.shape_cast %202 : vector<1x6x32xbf16> to vector<6x32xbf16>
    %cst_164 = arith.constant dense<0.000000e+00> : vector<8x32xf32>
    %204 = tpu.matmul %201, %203, %cst_164 {dimension_numbers = #tpu.dot_dimension_numbers<[1], [0], [0], [1], [0, 0, 1, 1], [], []>} : vector<8x6xbf16>, vector<6x32xbf16>, vector<8x32xf32> -> vector<8x32xf32>
    %205 = arith.addf %196, %204 : vector<8x32xf32>
    %206 = vector.extract_strided_slice %200 {offsets = [1, 0], sizes = [8, 6], strides = [1, 1]} : vector<9x6xbf16> to vector<8x6xbf16>
    %c5_165 = arith.constant 5 : index
    %c0_166 = arith.constant 0 : index
    %c0_167 = arith.constant 0 : index
    %207 = vector.load %arg3[%c5_165, %c0_166, %c0_167] : memref<6x6x32xbf16, #tpu.memory_space<vmem>>, vector<1x6x32xbf16>
    %208 = vector.shape_cast %207 : vector<1x6x32xbf16> to vector<6x32xbf16>
    %cst_168 = arith.constant dense<0.000000e+00> : vector<8x32xf32>
    %209 = tpu.matmul %206, %208, %cst_168 {dimension_numbers = #tpu.dot_dimension_numbers<[1], [0], [0], [1], [0, 0, 1, 1], [], []>} : vector<8x6xbf16>, vector<6x32xbf16>, vector<8x32xf32> -> vector<8x32xf32>
    %210 = arith.addf %205, %209 : vector<8x32xf32>
    %c0_169 = arith.constant 0 : index
    %c0_170 = arith.constant 0 : index
    %211 = vector.load %arg4[%c0_169, %c0_170] : memref<1x32xf32, #tpu.memory_space<vmem>>, vector<1x32xf32>
    %212 = vector.broadcast %211 : vector<1x32xf32> to vector<8x32xf32>
    %213 = arith.addf %210, %212 : vector<8x32xf32>
    %cst_171 = arith.constant 0.000000e+00 : f32
    %214 = vector.broadcast %cst_171 : f32 to vector<8x32xf32>
    %215 = arith.maximumf %213, %214 : vector<8x32xf32>
    %216 = arith.truncf %215 : vector<8x32xf32> to vector<8x32xbf16>
    %c0_172 = arith.constant 0 : index
    %c3_173 = arith.constant 3 : index
    %c0_174 = arith.constant 0 : index
    %c0_175 = arith.constant 0 : index
    %217 = vector.load %arg5[%c0_172, %c3_173, %c0_174, %c0_175] : memref<1x8x8x32xbf16, #tpu.memory_space<vmem>>, vector<1x1x8x32xbf16>
    %218 = vector.shape_cast %217 : vector<1x1x8x32xbf16> to vector<8x32xbf16>
    %219 = vector.shape_cast %216 : vector<8x32xbf16> to vector<1x1x8x32xbf16>
    tpu.vector_store %arg5[%c0_172, %c3_173, %c0_174, %c0_175], %219 {strides = array<i32>} : memref<1x8x8x32xbf16, #tpu.memory_space<vmem>>, vector<1x1x8x32xbf16>,
    %c8_i32_176 = arith.constant 8 : i32
    %220 = arith.muli %arg1, %c8_i32_176 : i32
    %c4_i32 = arith.constant 4 : i32
    %221 = arith.addi %220, %c4_i32 : i32
    %c2_i32_177 = arith.constant 2 : i32
    %222 = arith.muli %c2_i32_177, %221 : i32
    %cst_178 = arith.constant 0.000000e+00 : f32
    %223 = vector.broadcast %cst_178 : f32 to vector<8x32xf32>
    %c0_i32_179 = arith.constant 0 : i32
    %224 = arith.addi %222, %c0_i32_179 : i32
    %c0_180 = arith.constant 0 : index
    %225 = arith.index_cast %224 : i32 to index
    %c0_181 = arith.constant 0 : index
    %c0_182 = arith.constant 0 : index
    %226 = vector.load %arg2[%c0_180, %225, %c0_181, %c0_182] : memref<1x18x9x6xbf16, #tpu.memory_space<vmem>>, vector<1x1x9x6xbf16>
    %227 = vector.shape_cast %226 : vector<1x1x9x6xbf16> to vector<9x6xbf16>
    %228 = vector.extract_strided_slice %227 {offsets = [0, 0], sizes = [8, 6], strides = [1, 1]} : vector<9x6xbf16> to vector<8x6xbf16>
    %c0_183 = arith.constant 0 : index
    %c0_184 = arith.constant 0 : index
    %c0_185 = arith.constant 0 : index
    %229 = vector.load %arg3[%c0_183, %c0_184, %c0_185] : memref<6x6x32xbf16, #tpu.memory_space<vmem>>, vector<1x6x32xbf16>
    %230 = vector.shape_cast %229 : vector<1x6x32xbf16> to vector<6x32xbf16>
    %cst_186 = arith.constant dense<0.000000e+00> : vector<8x32xf32>
    %231 = tpu.matmul %228, %230, %cst_186 {dimension_numbers = #tpu.dot_dimension_numbers<[1], [0], [0], [1], [0, 0, 1, 1], [], []>} : vector<8x6xbf16>, vector<6x32xbf16>, vector<8x32xf32> -> vector<8x32xf32>
    %232 = arith.addf %223, %231 : vector<8x32xf32>
    %233 = vector.extract_strided_slice %227 {offsets = [1, 0], sizes = [8, 6], strides = [1, 1]} : vector<9x6xbf16> to vector<8x6xbf16>
    %c1_187 = arith.constant 1 : index
    %c0_188 = arith.constant 0 : index
    %c0_189 = arith.constant 0 : index
    %234 = vector.load %arg3[%c1_187, %c0_188, %c0_189] : memref<6x6x32xbf16, #tpu.memory_space<vmem>>, vector<1x6x32xbf16>
    %235 = vector.shape_cast %234 : vector<1x6x32xbf16> to vector<6x32xbf16>
    %cst_190 = arith.constant dense<0.000000e+00> : vector<8x32xf32>
    %236 = tpu.matmul %233, %235, %cst_190 {dimension_numbers = #tpu.dot_dimension_numbers<[1], [0], [0], [1], [0, 0, 1, 1], [], []>} : vector<8x6xbf16>, vector<6x32xbf16>, vector<8x32xf32> -> vector<8x32xf32>
    %237 = arith.addf %232, %236 : vector<8x32xf32>
    %c1_i32_191 = arith.constant 1 : i32
    %238 = arith.addi %222, %c1_i32_191 : i32
    %c0_192 = arith.constant 0 : index
    %239 = arith.index_cast %238 : i32 to index
    %c0_193 = arith.constant 0 : index
    %c0_194 = arith.constant 0 : index
    %240 = vector.load %arg2[%c0_192, %239, %c0_193, %c0_194] : memref<1x18x9x6xbf16, #tpu.memory_space<vmem>>, vector<1x1x9x6xbf16>
    %241 = vector.shape_cast %240 : vector<1x1x9x6xbf16> to vector<9x6xbf16>
    %242 = vector.extract_strided_slice %241 {offsets = [0, 0], sizes = [8, 6], strides = [1, 1]} : vector<9x6xbf16> to vector<8x6xbf16>
    %c2_195 = arith.constant 2 : index
    %c0_196 = arith.constant 0 : index
    %c0_197 = arith.constant 0 : index
    %243 = vector.load %arg3[%c2_195, %c0_196, %c0_197] : memref<6x6x32xbf16, #tpu.memory_space<vmem>>, vector<1x6x32xbf16>
    %244 = vector.shape_cast %243 : vector<1x6x32xbf16> to vector<6x32xbf16>
    %cst_198 = arith.constant dense<0.000000e+00> : vector<8x32xf32>
    %245 = tpu.matmul %242, %244, %cst_198 {dimension_numbers = #tpu.dot_dimension_numbers<[1], [0], [0], [1], [0, 0, 1, 1], [], []>} : vector<8x6xbf16>, vector<6x32xbf16>, vector<8x32xf32> -> vector<8x32xf32>
    %246 = arith.addf %237, %245 : vector<8x32xf32>
    %247 = vector.extract_strided_slice %241 {offsets = [1, 0], sizes = [8, 6], strides = [1, 1]} : vector<9x6xbf16> to vector<8x6xbf16>
    %c3_199 = arith.constant 3 : index
    %c0_200 = arith.constant 0 : index
    %c0_201 = arith.constant 0 : index
    %248 = vector.load %arg3[%c3_199, %c0_200, %c0_201] : memref<6x6x32xbf16, #tpu.memory_space<vmem>>, vector<1x6x32xbf16>
    %249 = vector.shape_cast %248 : vector<1x6x32xbf16> to vector<6x32xbf16>
    %cst_202 = arith.constant dense<0.000000e+00> : vector<8x32xf32>
    %250 = tpu.matmul %247, %249, %cst_202 {dimension_numbers = #tpu.dot_dimension_numbers<[1], [0], [0], [1], [0, 0, 1, 1], [], []>} : vector<8x6xbf16>, vector<6x32xbf16>, vector<8x32xf32> -> vector<8x32xf32>
    %251 = arith.addf %246, %250 : vector<8x32xf32>
    %c2_i32_203 = arith.constant 2 : i32
    %252 = arith.addi %222, %c2_i32_203 : i32
    %c0_204 = arith.constant 0 : index
    %253 = arith.index_cast %252 : i32 to index
    %c0_205 = arith.constant 0 : index
    %c0_206 = arith.constant 0 : index
    %254 = vector.load %arg2[%c0_204, %253, %c0_205, %c0_206] : memref<1x18x9x6xbf16, #tpu.memory_space<vmem>>, vector<1x1x9x6xbf16>
    %255 = vector.shape_cast %254 : vector<1x1x9x6xbf16> to vector<9x6xbf16>
    %256 = vector.extract_strided_slice %255 {offsets = [0, 0], sizes = [8, 6], strides = [1, 1]} : vector<9x6xbf16> to vector<8x6xbf16>
    %c4_207 = arith.constant 4 : index
    %c0_208 = arith.constant 0 : index
    %c0_209 = arith.constant 0 : index
    %257 = vector.load %arg3[%c4_207, %c0_208, %c0_209] : memref<6x6x32xbf16, #tpu.memory_space<vmem>>, vector<1x6x32xbf16>
    %258 = vector.shape_cast %257 : vector<1x6x32xbf16> to vector<6x32xbf16>
    %cst_210 = arith.constant dense<0.000000e+00> : vector<8x32xf32>
    %259 = tpu.matmul %256, %258, %cst_210 {dimension_numbers = #tpu.dot_dimension_numbers<[1], [0], [0], [1], [0, 0, 1, 1], [], []>} : vector<8x6xbf16>, vector<6x32xbf16>, vector<8x32xf32> -> vector<8x32xf32>
    %260 = arith.addf %251, %259 : vector<8x32xf32>
    %261 = vector.extract_strided_slice %255 {offsets = [1, 0], sizes = [8, 6], strides = [1, 1]} : vector<9x6xbf16> to vector<8x6xbf16>
    %c5_211 = arith.constant 5 : index
    %c0_212 = arith.constant 0 : index
    %c0_213 = arith.constant 0 : index
    %262 = vector.load %arg3[%c5_211, %c0_212, %c0_213] : memref<6x6x32xbf16, #tpu.memory_space<vmem>>, vector<1x6x32xbf16>
    %263 = vector.shape_cast %262 : vector<1x6x32xbf16> to vector<6x32xbf16>
    %cst_214 = arith.constant dense<0.000000e+00> : vector<8x32xf32>
    %264 = tpu.matmul %261, %263, %cst_214 {dimension_numbers = #tpu.dot_dimension_numbers<[1], [0], [0], [1], [0, 0, 1, 1], [], []>} : vector<8x6xbf16>, vector<6x32xbf16>, vector<8x32xf32> -> vector<8x32xf32>
    %265 = arith.addf %260, %264 : vector<8x32xf32>
    %c0_215 = arith.constant 0 : index
    %c0_216 = arith.constant 0 : index
    %266 = vector.load %arg4[%c0_215, %c0_216] : memref<1x32xf32, #tpu.memory_space<vmem>>, vector<1x32xf32>
    %267 = vector.broadcast %266 : vector<1x32xf32> to vector<8x32xf32>
    %268 = arith.addf %265, %267 : vector<8x32xf32>
    %cst_217 = arith.constant 0.000000e+00 : f32
    %269 = vector.broadcast %cst_217 : f32 to vector<8x32xf32>
    %270 = arith.maximumf %268, %269 : vector<8x32xf32>
    %271 = arith.truncf %270 : vector<8x32xf32> to vector<8x32xbf16>
    %c0_218 = arith.constant 0 : index
    %c4_219 = arith.constant 4 : index
    %c0_220 = arith.constant 0 : index
    %c0_221 = arith.constant 0 : index
    %272 = vector.load %arg5[%c0_218, %c4_219, %c0_220, %c0_221] : memref<1x8x8x32xbf16, #tpu.memory_space<vmem>>, vector<1x1x8x32xbf16>
    %273 = vector.shape_cast %272 : vector<1x1x8x32xbf16> to vector<8x32xbf16>
    %274 = vector.shape_cast %271 : vector<8x32xbf16> to vector<1x1x8x32xbf16>
    tpu.vector_store %arg5[%c0_218, %c4_219, %c0_220, %c0_221], %274 {strides = array<i32>} : memref<1x8x8x32xbf16, #tpu.memory_space<vmem>>, vector<1x1x8x32xbf16>,
    %c8_i32_222 = arith.constant 8 : i32
    %275 = arith.muli %arg1, %c8_i32_222 : i32
    %c5_i32 = arith.constant 5 : i32
    %276 = arith.addi %275, %c5_i32 : i32
    %c2_i32_223 = arith.constant 2 : i32
    %277 = arith.muli %c2_i32_223, %276 : i32
    %cst_224 = arith.constant 0.000000e+00 : f32
    %278 = vector.broadcast %cst_224 : f32 to vector<8x32xf32>
    %c0_i32_225 = arith.constant 0 : i32
    %279 = arith.addi %277, %c0_i32_225 : i32
    %c0_226 = arith.constant 0 : index
    %280 = arith.index_cast %279 : i32 to index
    %c0_227 = arith.constant 0 : index
    %c0_228 = arith.constant 0 : index
    %281 = vector.load %arg2[%c0_226, %280, %c0_227, %c0_228] : memref<1x18x9x6xbf16, #tpu.memory_space<vmem>>, vector<1x1x9x6xbf16>
    %282 = vector.shape_cast %281 : vector<1x1x9x6xbf16> to vector<9x6xbf16>
    %283 = vector.extract_strided_slice %282 {offsets = [0, 0], sizes = [8, 6], strides = [1, 1]} : vector<9x6xbf16> to vector<8x6xbf16>
    %c0_229 = arith.constant 0 : index
    %c0_230 = arith.constant 0 : index
    %c0_231 = arith.constant 0 : index
    %284 = vector.load %arg3[%c0_229, %c0_230, %c0_231] : memref<6x6x32xbf16, #tpu.memory_space<vmem>>, vector<1x6x32xbf16>
    %285 = vector.shape_cast %284 : vector<1x6x32xbf16> to vector<6x32xbf16>
    %cst_232 = arith.constant dense<0.000000e+00> : vector<8x32xf32>
    %286 = tpu.matmul %283, %285, %cst_232 {dimension_numbers = #tpu.dot_dimension_numbers<[1], [0], [0], [1], [0, 0, 1, 1], [], []>} : vector<8x6xbf16>, vector<6x32xbf16>, vector<8x32xf32> -> vector<8x32xf32>
    %287 = arith.addf %278, %286 : vector<8x32xf32>
    %288 = vector.extract_strided_slice %282 {offsets = [1, 0], sizes = [8, 6], strides = [1, 1]} : vector<9x6xbf16> to vector<8x6xbf16>
    %c1_233 = arith.constant 1 : index
    %c0_234 = arith.constant 0 : index
    %c0_235 = arith.constant 0 : index
    %289 = vector.load %arg3[%c1_233, %c0_234, %c0_235] : memref<6x6x32xbf16, #tpu.memory_space<vmem>>, vector<1x6x32xbf16>
    %290 = vector.shape_cast %289 : vector<1x6x32xbf16> to vector<6x32xbf16>
    %cst_236 = arith.constant dense<0.000000e+00> : vector<8x32xf32>
    %291 = tpu.matmul %288, %290, %cst_236 {dimension_numbers = #tpu.dot_dimension_numbers<[1], [0], [0], [1], [0, 0, 1, 1], [], []>} : vector<8x6xbf16>, vector<6x32xbf16>, vector<8x32xf32> -> vector<8x32xf32>
    %292 = arith.addf %287, %291 : vector<8x32xf32>
    %c1_i32_237 = arith.constant 1 : i32
    %293 = arith.addi %277, %c1_i32_237 : i32
    %c0_238 = arith.constant 0 : index
    %294 = arith.index_cast %293 : i32 to index
    %c0_239 = arith.constant 0 : index
    %c0_240 = arith.constant 0 : index
    %295 = vector.load %arg2[%c0_238, %294, %c0_239, %c0_240] : memref<1x18x9x6xbf16, #tpu.memory_space<vmem>>, vector<1x1x9x6xbf16>
    %296 = vector.shape_cast %295 : vector<1x1x9x6xbf16> to vector<9x6xbf16>
    %297 = vector.extract_strided_slice %296 {offsets = [0, 0], sizes = [8, 6], strides = [1, 1]} : vector<9x6xbf16> to vector<8x6xbf16>
    %c2_241 = arith.constant 2 : index
    %c0_242 = arith.constant 0 : index
    %c0_243 = arith.constant 0 : index
    %298 = vector.load %arg3[%c2_241, %c0_242, %c0_243] : memref<6x6x32xbf16, #tpu.memory_space<vmem>>, vector<1x6x32xbf16>
    %299 = vector.shape_cast %298 : vector<1x6x32xbf16> to vector<6x32xbf16>
    %cst_244 = arith.constant dense<0.000000e+00> : vector<8x32xf32>
    %300 = tpu.matmul %297, %299, %cst_244 {dimension_numbers = #tpu.dot_dimension_numbers<[1], [0], [0], [1], [0, 0, 1, 1], [], []>} : vector<8x6xbf16>, vector<6x32xbf16>, vector<8x32xf32> -> vector<8x32xf32>
    %301 = arith.addf %292, %300 : vector<8x32xf32>
    %302 = vector.extract_strided_slice %296 {offsets = [1, 0], sizes = [8, 6], strides = [1, 1]} : vector<9x6xbf16> to vector<8x6xbf16>
    %c3_245 = arith.constant 3 : index
    %c0_246 = arith.constant 0 : index
    %c0_247 = arith.constant 0 : index
    %303 = vector.load %arg3[%c3_245, %c0_246, %c0_247] : memref<6x6x32xbf16, #tpu.memory_space<vmem>>, vector<1x6x32xbf16>
    %304 = vector.shape_cast %303 : vector<1x6x32xbf16> to vector<6x32xbf16>
    %cst_248 = arith.constant dense<0.000000e+00> : vector<8x32xf32>
    %305 = tpu.matmul %302, %304, %cst_248 {dimension_numbers = #tpu.dot_dimension_numbers<[1], [0], [0], [1], [0, 0, 1, 1], [], []>} : vector<8x6xbf16>, vector<6x32xbf16>, vector<8x32xf32> -> vector<8x32xf32>
    %306 = arith.addf %301, %305 : vector<8x32xf32>
    %c2_i32_249 = arith.constant 2 : i32
    %307 = arith.addi %277, %c2_i32_249 : i32
    %c0_250 = arith.constant 0 : index
    %308 = arith.index_cast %307 : i32 to index
    %c0_251 = arith.constant 0 : index
    %c0_252 = arith.constant 0 : index
    %309 = vector.load %arg2[%c0_250, %308, %c0_251, %c0_252] : memref<1x18x9x6xbf16, #tpu.memory_space<vmem>>, vector<1x1x9x6xbf16>
    %310 = vector.shape_cast %309 : vector<1x1x9x6xbf16> to vector<9x6xbf16>
    %311 = vector.extract_strided_slice %310 {offsets = [0, 0], sizes = [8, 6], strides = [1, 1]} : vector<9x6xbf16> to vector<8x6xbf16>
    %c4_253 = arith.constant 4 : index
    %c0_254 = arith.constant 0 : index
    %c0_255 = arith.constant 0 : index
    %312 = vector.load %arg3[%c4_253, %c0_254, %c0_255] : memref<6x6x32xbf16, #tpu.memory_space<vmem>>, vector<1x6x32xbf16>
    %313 = vector.shape_cast %312 : vector<1x6x32xbf16> to vector<6x32xbf16>
    %cst_256 = arith.constant dense<0.000000e+00> : vector<8x32xf32>
    %314 = tpu.matmul %311, %313, %cst_256 {dimension_numbers = #tpu.dot_dimension_numbers<[1], [0], [0], [1], [0, 0, 1, 1], [], []>} : vector<8x6xbf16>, vector<6x32xbf16>, vector<8x32xf32> -> vector<8x32xf32>
    %315 = arith.addf %306, %314 : vector<8x32xf32>
    %316 = vector.extract_strided_slice %310 {offsets = [1, 0], sizes = [8, 6], strides = [1, 1]} : vector<9x6xbf16> to vector<8x6xbf16>
    %c5_257 = arith.constant 5 : index
    %c0_258 = arith.constant 0 : index
    %c0_259 = arith.constant 0 : index
    %317 = vector.load %arg3[%c5_257, %c0_258, %c0_259] : memref<6x6x32xbf16, #tpu.memory_space<vmem>>, vector<1x6x32xbf16>
    %318 = vector.shape_cast %317 : vector<1x6x32xbf16> to vector<6x32xbf16>
    %cst_260 = arith.constant dense<0.000000e+00> : vector<8x32xf32>
    %319 = tpu.matmul %316, %318, %cst_260 {dimension_numbers = #tpu.dot_dimension_numbers<[1], [0], [0], [1], [0, 0, 1, 1], [], []>} : vector<8x6xbf16>, vector<6x32xbf16>, vector<8x32xf32> -> vector<8x32xf32>
    %320 = arith.addf %315, %319 : vector<8x32xf32>
    %c0_261 = arith.constant 0 : index
    %c0_262 = arith.constant 0 : index
    %321 = vector.load %arg4[%c0_261, %c0_262] : memref<1x32xf32, #tpu.memory_space<vmem>>, vector<1x32xf32>
    %322 = vector.broadcast %321 : vector<1x32xf32> to vector<8x32xf32>
    %323 = arith.addf %320, %322 : vector<8x32xf32>
    %cst_263 = arith.constant 0.000000e+00 : f32
    %324 = vector.broadcast %cst_263 : f32 to vector<8x32xf32>
    %325 = arith.maximumf %323, %324 : vector<8x32xf32>
    %326 = arith.truncf %325 : vector<8x32xf32> to vector<8x32xbf16>
    %c0_264 = arith.constant 0 : index
    %c5_265 = arith.constant 5 : index
    %c0_266 = arith.constant 0 : index
    %c0_267 = arith.constant 0 : index
    %327 = vector.load %arg5[%c0_264, %c5_265, %c0_266, %c0_267] : memref<1x8x8x32xbf16, #tpu.memory_space<vmem>>, vector<1x1x8x32xbf16>
    %328 = vector.shape_cast %327 : vector<1x1x8x32xbf16> to vector<8x32xbf16>
    %329 = vector.shape_cast %326 : vector<8x32xbf16> to vector<1x1x8x32xbf16>
    tpu.vector_store %arg5[%c0_264, %c5_265, %c0_266, %c0_267], %329 {strides = array<i32>} : memref<1x8x8x32xbf16, #tpu.memory_space<vmem>>, vector<1x1x8x32xbf16>,
    %c8_i32_268 = arith.constant 8 : i32
    %330 = arith.muli %arg1, %c8_i32_268 : i32
    %c6_i32 = arith.constant 6 : i32
    %331 = arith.addi %330, %c6_i32 : i32
    %c2_i32_269 = arith.constant 2 : i32
    %332 = arith.muli %c2_i32_269, %331 : i32
    %cst_270 = arith.constant 0.000000e+00 : f32
    %333 = vector.broadcast %cst_270 : f32 to vector<8x32xf32>
    %c0_i32_271 = arith.constant 0 : i32
    %334 = arith.addi %332, %c0_i32_271 : i32
    %c0_272 = arith.constant 0 : index
    %335 = arith.index_cast %334 : i32 to index
    %c0_273 = arith.constant 0 : index
    %c0_274 = arith.constant 0 : index
    %336 = vector.load %arg2[%c0_272, %335, %c0_273, %c0_274] : memref<1x18x9x6xbf16, #tpu.memory_space<vmem>>, vector<1x1x9x6xbf16>
    %337 = vector.shape_cast %336 : vector<1x1x9x6xbf16> to vector<9x6xbf16>
    %338 = vector.extract_strided_slice %337 {offsets = [0, 0], sizes = [8, 6], strides = [1, 1]} : vector<9x6xbf16> to vector<8x6xbf16>
    %c0_275 = arith.constant 0 : index
    %c0_276 = arith.constant 0 : index
    %c0_277 = arith.constant 0 : index
    %339 = vector.load %arg3[%c0_275, %c0_276, %c0_277] : memref<6x6x32xbf16, #tpu.memory_space<vmem>>, vector<1x6x32xbf16>
    %340 = vector.shape_cast %339 : vector<1x6x32xbf16> to vector<6x32xbf16>
    %cst_278 = arith.constant dense<0.000000e+00> : vector<8x32xf32>
    %341 = tpu.matmul %338, %340, %cst_278 {dimension_numbers = #tpu.dot_dimension_numbers<[1], [0], [0], [1], [0, 0, 1, 1], [], []>} : vector<8x6xbf16>, vector<6x32xbf16>, vector<8x32xf32> -> vector<8x32xf32>
    %342 = arith.addf %333, %341 : vector<8x32xf32>
    %343 = vector.extract_strided_slice %337 {offsets = [1, 0], sizes = [8, 6], strides = [1, 1]} : vector<9x6xbf16> to vector<8x6xbf16>
    %c1_279 = arith.constant 1 : index
    %c0_280 = arith.constant 0 : index
    %c0_281 = arith.constant 0 : index
    %344 = vector.load %arg3[%c1_279, %c0_280, %c0_281] : memref<6x6x32xbf16, #tpu.memory_space<vmem>>, vector<1x6x32xbf16>
    %345 = vector.shape_cast %344 : vector<1x6x32xbf16> to vector<6x32xbf16>
    %cst_282 = arith.constant dense<0.000000e+00> : vector<8x32xf32>
    %346 = tpu.matmul %343, %345, %cst_282 {dimension_numbers = #tpu.dot_dimension_numbers<[1], [0], [0], [1], [0, 0, 1, 1], [], []>} : vector<8x6xbf16>, vector<6x32xbf16>, vector<8x32xf32> -> vector<8x32xf32>
    %347 = arith.addf %342, %346 : vector<8x32xf32>
    %c1_i32_283 = arith.constant 1 : i32
    %348 = arith.addi %332, %c1_i32_283 : i32
    %c0_284 = arith.constant 0 : index
    %349 = arith.index_cast %348 : i32 to index
    %c0_285 = arith.constant 0 : index
    %c0_286 = arith.constant 0 : index
    %350 = vector.load %arg2[%c0_284, %349, %c0_285, %c0_286] : memref<1x18x9x6xbf16, #tpu.memory_space<vmem>>, vector<1x1x9x6xbf16>
    %351 = vector.shape_cast %350 : vector<1x1x9x6xbf16> to vector<9x6xbf16>
    %352 = vector.extract_strided_slice %351 {offsets = [0, 0], sizes = [8, 6], strides = [1, 1]} : vector<9x6xbf16> to vector<8x6xbf16>
    %c2_287 = arith.constant 2 : index
    %c0_288 = arith.constant 0 : index
    %c0_289 = arith.constant 0 : index
    %353 = vector.load %arg3[%c2_287, %c0_288, %c0_289] : memref<6x6x32xbf16, #tpu.memory_space<vmem>>, vector<1x6x32xbf16>
    %354 = vector.shape_cast %353 : vector<1x6x32xbf16> to vector<6x32xbf16>
    %cst_290 = arith.constant dense<0.000000e+00> : vector<8x32xf32>
    %355 = tpu.matmul %352, %354, %cst_290 {dimension_numbers = #tpu.dot_dimension_numbers<[1], [0], [0], [1], [0, 0, 1, 1], [], []>} : vector<8x6xbf16>, vector<6x32xbf16>, vector<8x32xf32> -> vector<8x32xf32>
    %356 = arith.addf %347, %355 : vector<8x32xf32>
    %357 = vector.extract_strided_slice %351 {offsets = [1, 0], sizes = [8, 6], strides = [1, 1]} : vector<9x6xbf16> to vector<8x6xbf16>
    %c3_291 = arith.constant 3 : index
    %c0_292 = arith.constant 0 : index
    %c0_293 = arith.constant 0 : index
    %358 = vector.load %arg3[%c3_291, %c0_292, %c0_293] : memref<6x6x32xbf16, #tpu.memory_space<vmem>>, vector<1x6x32xbf16>
    %359 = vector.shape_cast %358 : vector<1x6x32xbf16> to vector<6x32xbf16>
    %cst_294 = arith.constant dense<0.000000e+00> : vector<8x32xf32>
    %360 = tpu.matmul %357, %359, %cst_294 {dimension_numbers = #tpu.dot_dimension_numbers<[1], [0], [0], [1], [0, 0, 1, 1], [], []>} : vector<8x6xbf16>, vector<6x32xbf16>, vector<8x32xf32> -> vector<8x32xf32>
    %361 = arith.addf %356, %360 : vector<8x32xf32>
    %c2_i32_295 = arith.constant 2 : i32
    %362 = arith.addi %332, %c2_i32_295 : i32
    %c0_296 = arith.constant 0 : index
    %363 = arith.index_cast %362 : i32 to index
    %c0_297 = arith.constant 0 : index
    %c0_298 = arith.constant 0 : index
    %364 = vector.load %arg2[%c0_296, %363, %c0_297, %c0_298] : memref<1x18x9x6xbf16, #tpu.memory_space<vmem>>, vector<1x1x9x6xbf16>
    %365 = vector.shape_cast %364 : vector<1x1x9x6xbf16> to vector<9x6xbf16>
    %366 = vector.extract_strided_slice %365 {offsets = [0, 0], sizes = [8, 6], strides = [1, 1]} : vector<9x6xbf16> to vector<8x6xbf16>
    %c4_299 = arith.constant 4 : index
    %c0_300 = arith.constant 0 : index
    %c0_301 = arith.constant 0 : index
    %367 = vector.load %arg3[%c4_299, %c0_300, %c0_301] : memref<6x6x32xbf16, #tpu.memory_space<vmem>>, vector<1x6x32xbf16>
    %368 = vector.shape_cast %367 : vector<1x6x32xbf16> to vector<6x32xbf16>
    %cst_302 = arith.constant dense<0.000000e+00> : vector<8x32xf32>
    %369 = tpu.matmul %366, %368, %cst_302 {dimension_numbers = #tpu.dot_dimension_numbers<[1], [0], [0], [1], [0, 0, 1, 1], [], []>} : vector<8x6xbf16>, vector<6x32xbf16>, vector<8x32xf32> -> vector<8x32xf32>
    %370 = arith.addf %361, %369 : vector<8x32xf32>
    %371 = vector.extract_strided_slice %365 {offsets = [1, 0], sizes = [8, 6], strides = [1, 1]} : vector<9x6xbf16> to vector<8x6xbf16>
    %c5_303 = arith.constant 5 : index
    %c0_304 = arith.constant 0 : index
    %c0_305 = arith.constant 0 : index
    %372 = vector.load %arg3[%c5_303, %c0_304, %c0_305] : memref<6x6x32xbf16, #tpu.memory_space<vmem>>, vector<1x6x32xbf16>
    %373 = vector.shape_cast %372 : vector<1x6x32xbf16> to vector<6x32xbf16>
    %cst_306 = arith.constant dense<0.000000e+00> : vector<8x32xf32>
    %374 = tpu.matmul %371, %373, %cst_306 {dimension_numbers = #tpu.dot_dimension_numbers<[1], [0], [0], [1], [0, 0, 1, 1], [], []>} : vector<8x6xbf16>, vector<6x32xbf16>, vector<8x32xf32> -> vector<8x32xf32>
    %375 = arith.addf %370, %374 : vector<8x32xf32>
    %c0_307 = arith.constant 0 : index
    %c0_308 = arith.constant 0 : index
    %376 = vector.load %arg4[%c0_307, %c0_308] : memref<1x32xf32, #tpu.memory_space<vmem>>, vector<1x32xf32>
    %377 = vector.broadcast %376 : vector<1x32xf32> to vector<8x32xf32>
    %378 = arith.addf %375, %377 : vector<8x32xf32>
    %cst_309 = arith.constant 0.000000e+00 : f32
    %379 = vector.broadcast %cst_309 : f32 to vector<8x32xf32>
    %380 = arith.maximumf %378, %379 : vector<8x32xf32>
    %381 = arith.truncf %380 : vector<8x32xf32> to vector<8x32xbf16>
    %c0_310 = arith.constant 0 : index
    %c6 = arith.constant 6 : index
    %c0_311 = arith.constant 0 : index
    %c0_312 = arith.constant 0 : index
    %382 = vector.load %arg5[%c0_310, %c6, %c0_311, %c0_312] : memref<1x8x8x32xbf16, #tpu.memory_space<vmem>>, vector<1x1x8x32xbf16>
    %383 = vector.shape_cast %382 : vector<1x1x8x32xbf16> to vector<8x32xbf16>
    %384 = vector.shape_cast %381 : vector<8x32xbf16> to vector<1x1x8x32xbf16>
    tpu.vector_store %arg5[%c0_310, %c6, %c0_311, %c0_312], %384 {strides = array<i32>} : memref<1x8x8x32xbf16, #tpu.memory_space<vmem>>, vector<1x1x8x32xbf16>,
    %c8_i32_313 = arith.constant 8 : i32
    %385 = arith.muli %arg1, %c8_i32_313 : i32
    %c7_i32 = arith.constant 7 : i32
    %386 = arith.addi %385, %c7_i32 : i32
    %c2_i32_314 = arith.constant 2 : i32
    %387 = arith.muli %c2_i32_314, %386 : i32
    %cst_315 = arith.constant 0.000000e+00 : f32
    %388 = vector.broadcast %cst_315 : f32 to vector<8x32xf32>
    %c0_i32_316 = arith.constant 0 : i32
    %389 = arith.addi %387, %c0_i32_316 : i32
    %c0_317 = arith.constant 0 : index
    %390 = arith.index_cast %389 : i32 to index
    %c0_318 = arith.constant 0 : index
    %c0_319 = arith.constant 0 : index
    %391 = vector.load %arg2[%c0_317, %390, %c0_318, %c0_319] : memref<1x18x9x6xbf16, #tpu.memory_space<vmem>>, vector<1x1x9x6xbf16>
    %392 = vector.shape_cast %391 : vector<1x1x9x6xbf16> to vector<9x6xbf16>
    %393 = vector.extract_strided_slice %392 {offsets = [0, 0], sizes = [8, 6], strides = [1, 1]} : vector<9x6xbf16> to vector<8x6xbf16>
    %c0_320 = arith.constant 0 : index
    %c0_321 = arith.constant 0 : index
    %c0_322 = arith.constant 0 : index
    %394 = vector.load %arg3[%c0_320, %c0_321, %c0_322] : memref<6x6x32xbf16, #tpu.memory_space<vmem>>, vector<1x6x32xbf16>
    %395 = vector.shape_cast %394 : vector<1x6x32xbf16> to vector<6x32xbf16>
    %cst_323 = arith.constant dense<0.000000e+00> : vector<8x32xf32>
    %396 = tpu.matmul %393, %395, %cst_323 {dimension_numbers = #tpu.dot_dimension_numbers<[1], [0], [0], [1], [0, 0, 1, 1], [], []>} : vector<8x6xbf16>, vector<6x32xbf16>, vector<8x32xf32> -> vector<8x32xf32>
    %397 = arith.addf %388, %396 : vector<8x32xf32>
    %398 = vector.extract_strided_slice %392 {offsets = [1, 0], sizes = [8, 6], strides = [1, 1]} : vector<9x6xbf16> to vector<8x6xbf16>
    %c1_324 = arith.constant 1 : index
    %c0_325 = arith.constant 0 : index
    %c0_326 = arith.constant 0 : index
    %399 = vector.load %arg3[%c1_324, %c0_325, %c0_326] : memref<6x6x32xbf16, #tpu.memory_space<vmem>>, vector<1x6x32xbf16>
    %400 = vector.shape_cast %399 : vector<1x6x32xbf16> to vector<6x32xbf16>
    %cst_327 = arith.constant dense<0.000000e+00> : vector<8x32xf32>
    %401 = tpu.matmul %398, %400, %cst_327 {dimension_numbers = #tpu.dot_dimension_numbers<[1], [0], [0], [1], [0, 0, 1, 1], [], []>} : vector<8x6xbf16>, vector<6x32xbf16>, vector<8x32xf32> -> vector<8x32xf32>
    %402 = arith.addf %397, %401 : vector<8x32xf32>
    %c1_i32_328 = arith.constant 1 : i32
    %403 = arith.addi %387, %c1_i32_328 : i32
    %c0_329 = arith.constant 0 : index
    %404 = arith.index_cast %403 : i32 to index
    %c0_330 = arith.constant 0 : index
    %c0_331 = arith.constant 0 : index
    %405 = vector.load %arg2[%c0_329, %404, %c0_330, %c0_331] : memref<1x18x9x6xbf16, #tpu.memory_space<vmem>>, vector<1x1x9x6xbf16>
    %406 = vector.shape_cast %405 : vector<1x1x9x6xbf16> to vector<9x6xbf16>
    %407 = vector.extract_strided_slice %406 {offsets = [0, 0], sizes = [8, 6], strides = [1, 1]} : vector<9x6xbf16> to vector<8x6xbf16>
    %c2_332 = arith.constant 2 : index
    %c0_333 = arith.constant 0 : index
    %c0_334 = arith.constant 0 : index
    %408 = vector.load %arg3[%c2_332, %c0_333, %c0_334] : memref<6x6x32xbf16, #tpu.memory_space<vmem>>, vector<1x6x32xbf16>
    %409 = vector.shape_cast %408 : vector<1x6x32xbf16> to vector<6x32xbf16>
    %cst_335 = arith.constant dense<0.000000e+00> : vector<8x32xf32>
    %410 = tpu.matmul %407, %409, %cst_335 {dimension_numbers = #tpu.dot_dimension_numbers<[1], [0], [0], [1], [0, 0, 1, 1], [], []>} : vector<8x6xbf16>, vector<6x32xbf16>, vector<8x32xf32> -> vector<8x32xf32>
    %411 = arith.addf %402, %410 : vector<8x32xf32>
    %412 = vector.extract_strided_slice %406 {offsets = [1, 0], sizes = [8, 6], strides = [1, 1]} : vector<9x6xbf16> to vector<8x6xbf16>
    %c3_336 = arith.constant 3 : index
    %c0_337 = arith.constant 0 : index
    %c0_338 = arith.constant 0 : index
    %413 = vector.load %arg3[%c3_336, %c0_337, %c0_338] : memref<6x6x32xbf16, #tpu.memory_space<vmem>>, vector<1x6x32xbf16>
    %414 = vector.shape_cast %413 : vector<1x6x32xbf16> to vector<6x32xbf16>
    %cst_339 = arith.constant dense<0.000000e+00> : vector<8x32xf32>
    %415 = tpu.matmul %412, %414, %cst_339 {dimension_numbers = #tpu.dot_dimension_numbers<[1], [0], [0], [1], [0, 0, 1, 1], [], []>} : vector<8x6xbf16>, vector<6x32xbf16>, vector<8x32xf32> -> vector<8x32xf32>
    %416 = arith.addf %411, %415 : vector<8x32xf32>
    %c2_i32_340 = arith.constant 2 : i32
    %417 = arith.addi %387, %c2_i32_340 : i32
    %c0_341 = arith.constant 0 : index
    %418 = arith.index_cast %417 : i32 to index
    %c0_342 = arith.constant 0 : index
    %c0_343 = arith.constant 0 : index
    %419 = vector.load %arg2[%c0_341, %418, %c0_342, %c0_343] : memref<1x18x9x6xbf16, #tpu.memory_space<vmem>>, vector<1x1x9x6xbf16>
    %420 = vector.shape_cast %419 : vector<1x1x9x6xbf16> to vector<9x6xbf16>
    %421 = vector.extract_strided_slice %420 {offsets = [0, 0], sizes = [8, 6], strides = [1, 1]} : vector<9x6xbf16> to vector<8x6xbf16>
    %c4_344 = arith.constant 4 : index
    %c0_345 = arith.constant 0 : index
    %c0_346 = arith.constant 0 : index
    %422 = vector.load %arg3[%c4_344, %c0_345, %c0_346] : memref<6x6x32xbf16, #tpu.memory_space<vmem>>, vector<1x6x32xbf16>
    %423 = vector.shape_cast %422 : vector<1x6x32xbf16> to vector<6x32xbf16>
    %cst_347 = arith.constant dense<0.000000e+00> : vector<8x32xf32>
    %424 = tpu.matmul %421, %423, %cst_347 {dimension_numbers = #tpu.dot_dimension_numbers<[1], [0], [0], [1], [0, 0, 1, 1], [], []>} : vector<8x6xbf16>, vector<6x32xbf16>, vector<8x32xf32> -> vector<8x32xf32>
    %425 = arith.addf %416, %424 : vector<8x32xf32>
    %426 = vector.extract_strided_slice %420 {offsets = [1, 0], sizes = [8, 6], strides = [1, 1]} : vector<9x6xbf16> to vector<8x6xbf16>
    %c5_348 = arith.constant 5 : index
    %c0_349 = arith.constant 0 : index
    %c0_350 = arith.constant 0 : index
    %427 = vector.load %arg3[%c5_348, %c0_349, %c0_350] : memref<6x6x32xbf16, #tpu.memory_space<vmem>>, vector<1x6x32xbf16>
    %428 = vector.shape_cast %427 : vector<1x6x32xbf16> to vector<6x32xbf16>
    %cst_351 = arith.constant dense<0.000000e+00> : vector<8x32xf32>
    %429 = tpu.matmul %426, %428, %cst_351 {dimension_numbers = #tpu.dot_dimension_numbers<[1], [0], [0], [1], [0, 0, 1, 1], [], []>} : vector<8x6xbf16>, vector<6x32xbf16>, vector<8x32xf32> -> vector<8x32xf32>
    %430 = arith.addf %425, %429 : vector<8x32xf32>
    %c0_352 = arith.constant 0 : index
    %c0_353 = arith.constant 0 : index
    %431 = vector.load %arg4[%c0_352, %c0_353] : memref<1x32xf32, #tpu.memory_space<vmem>>, vector<1x32xf32>
    %432 = vector.broadcast %431 : vector<1x32xf32> to vector<8x32xf32>
    %433 = arith.addf %430, %432 : vector<8x32xf32>
    %cst_354 = arith.constant 0.000000e+00 : f32
    %434 = vector.broadcast %cst_354 : f32 to vector<8x32xf32>
    %435 = arith.maximumf %433, %434 : vector<8x32xf32>
    %436 = arith.truncf %435 : vector<8x32xf32> to vector<8x32xbf16>
    %c0_355 = arith.constant 0 : index
    %c7 = arith.constant 7 : index
    %c0_356 = arith.constant 0 : index
    %c0_357 = arith.constant 0 : index
    %437 = vector.load %arg5[%c0_355, %c7, %c0_356, %c0_357] : memref<1x8x8x32xbf16, #tpu.memory_space<vmem>>, vector<1x1x8x32xbf16>
    %438 = vector.shape_cast %437 : vector<1x1x8x32xbf16> to vector<8x32xbf16>
    %439 = vector.shape_cast %436 : vector<8x32xbf16> to vector<1x1x8x32xbf16>
    tpu.vector_store %arg5[%c0_355, %c7, %c0_356, %c0_357], %439 {strides = array<i32>} : memref<1x8x8x32xbf16, #tpu.memory_space<vmem>>, vector<1x1x8x32xbf16>,
    return
  }
  func.func @transform_0(%arg0: i32, %arg1: i32) -> (i32, i32, i32, i32) {
    %c0_i32 = arith.constant 0 : i32
    %c0_i32_0 = arith.constant 0 : i32
    %c0_i32_1 = arith.constant 0 : i32
    %c0_i32_2 = arith.constant 0 : i32
    return %arg0, %c0_i32, %c0_i32_0, %c0_i32_1 : i32, i32, i32, i32
  }
  func.func @transform_1(%arg0: i32, %arg1: i32) -> (i32, i32, i32) {
    %c0_i32 = arith.constant 0 : i32
    %c0_i32_0 = arith.constant 0 : i32
    %c0_i32_1 = arith.constant 0 : i32
    %c0_i32_2 = arith.constant 0 : i32
    return %c0_i32, %c0_i32_0, %c0_i32_1 : i32, i32, i32
  }
  func.func @transform_2(%arg0: i32, %arg1: i32) -> (i32, i32) {
    %c0_i32 = arith.constant 0 : i32
    %c0_i32_0 = arith.constant 0 : i32
    %c0_i32_1 = arith.constant 0 : i32
    return %c0_i32, %c0_i32_0 : i32, i32
  }
  func.func @transform_3(%arg0: i32, %arg1: i32) -> (i32, i32, i32, i32) {
    %c0_i32 = arith.constant 0 : i32
    %c0_i32_0 = arith.constant 0 : i32
    %c0_i32_1 = arith.constant 0 : i32
    return %arg0, %arg1, %c0_i32, %c0_i32_0 : i32, i32, i32, i32
  }
}

module attributes {stable_mosaic.version = 11 : i64} {
  func.func @_matmul_bias_relu_kernel(%arg0: i32, %arg1: memref<128x32xbf16, #tpu.memory_space<vmem>>, %arg2: memref<32x16xbf16, #tpu.memory_space<vmem>>, %arg3: memref<1x16xf32, #tpu.memory_space<vmem>>, %arg4: memref<128x16xbf16, #tpu.memory_space<vmem>>) attributes {dimension_semantics = [#tpu.dimension_semantics<parallel>], iteration_bounds = array<i64: 1>, scalar_prefetch = 0 : i64, scratch_operands = 0 : i64, tpu.core_type = #tpu.core_type<tc>, window_params = [{transform_indices = @transform_0, window_bounds = array<i64: 128, 32>}, {pipeline_mode = #tpu.pipeline_mode<synchronous>, transform_indices = @transform_1, window_bounds = array<i64: 32, 16>}, {pipeline_mode = #tpu.pipeline_mode<synchronous>, transform_indices = @transform_2, window_bounds = array<i64: 1, 16>}, {transform_indices = @transform_3, window_bounds = array<i64: 128, 16>}]} {
    %c0 = arith.constant 0 : index
    %c0_0 = arith.constant 0 : index
    %0 = vector.load %arg1[%c0, %c0_0] : memref<128x32xbf16, #tpu.memory_space<vmem>>, vector<128x32xbf16>
    %c0_1 = arith.constant 0 : index
    %c0_2 = arith.constant 0 : index
    %1 = vector.load %arg2[%c0_1, %c0_2] : memref<32x16xbf16, #tpu.memory_space<vmem>>, vector<32x16xbf16>
    %cst = arith.constant dense<0.000000e+00> : vector<128x16xf32>
    %2 = tpu.matmul %0, %1, %cst {dimension_numbers = #tpu.dot_dimension_numbers<[1], [0], [0], [1], [0, 0, 1, 1], [], []>} : vector<128x32xbf16>, vector<32x16xbf16>, vector<128x16xf32> -> vector<128x16xf32>
    %c0_3 = arith.constant 0 : index
    %c0_4 = arith.constant 0 : index
    %3 = vector.load %arg3[%c0_3, %c0_4] : memref<1x16xf32, #tpu.memory_space<vmem>>, vector<1x16xf32>
    %4 = vector.broadcast %3 : vector<1x16xf32> to vector<128x16xf32>
    %5 = arith.addf %2, %4 : vector<128x16xf32>
    %cst_5 = arith.constant 0.000000e+00 : f32
    %6 = vector.broadcast %cst_5 : f32 to vector<128x16xf32>
    %7 = arith.maximumf %5, %6 : vector<128x16xf32>
    %8 = arith.truncf %7 : vector<128x16xf32> to vector<128x16xbf16>
    %c0_6 = arith.constant 0 : index
    %c0_7 = arith.constant 0 : index
    %9 = vector.load %arg4[%c0_6, %c0_7] : memref<128x16xbf16, #tpu.memory_space<vmem>>, vector<128x16xbf16>
    tpu.vector_store %arg4[%c0_6, %c0_7], %8 {strides = array<i32>} : memref<128x16xbf16, #tpu.memory_space<vmem>>, vector<128x16xbf16>,
    return
  }
  func.func @transform_0(%arg0: i32) -> (i32, i32) {
    %c0_i32 = arith.constant 0 : i32
    %c0_i32_0 = arith.constant 0 : i32
    return %arg0, %c0_i32 : i32, i32
  }
  func.func @transform_1(%arg0: i32) -> (i32, i32) {
    %c0_i32 = arith.constant 0 : i32
    %c0_i32_0 = arith.constant 0 : i32
    %c0_i32_1 = arith.constant 0 : i32
    return %c0_i32, %c0_i32_0 : i32, i32
  }
  func.func @transform_2(%arg0: i32) -> (i32, i32) {
    %c0_i32 = arith.constant 0 : i32
    %c0_i32_0 = arith.constant 0 : i32
    %c0_i32_1 = arith.constant 0 : i32
    return %c0_i32, %c0_i32_0 : i32, i32
  }
  func.func @transform_3(%arg0: i32) -> (i32, i32) {
    %c0_i32 = arith.constant 0 : i32
    %c0_i32_0 = arith.constant 0 : i32
    return %arg0, %c0_i32 : i32, i32
  }
}

module attributes {stable_mosaic.version = 11 : i64} {
  func.func @kernel(%arg0: i32, %arg1: i32, %arg2: memref<1x10x5x32xbf16, #tpu.memory_space<vmem>>, %arg3: memref<6x32x32xbf16, #tpu.memory_space<vmem>>, %arg4: memref<1x32xf32, #tpu.memory_space<vmem>>, %arg5: memref<1x4x4x32xbf16, #tpu.memory_space<vmem>>) attributes {dimension_semantics = [#tpu.dimension_semantics<parallel>, #tpu.dimension_semantics<arbitrary>], iteration_bounds = array<i64: 2, 1>, scalar_prefetch = 0 : i64, scratch_operands = 0 : i64, tpu.core_type = #tpu.core_type<tc>, window_params = [{transform_indices = @transform_0, window_bounds = array<i64: 1, 10, 5, 32>}, {pipeline_mode = #tpu.pipeline_mode<synchronous>, transform_indices = @transform_1, window_bounds = array<i64: 6, 32, 32>}, {pipeline_mode = #tpu.pipeline_mode<synchronous>, transform_indices = @transform_2, window_bounds = array<i64: 1, 32>}, {transform_indices = @transform_3, window_bounds = array<i64: 1, 4, 4, 32>}]} {
    %c4_i32 = arith.constant 4 : i32
    %0 = arith.muli %arg1, %c4_i32 : i32
    %c0_i32 = arith.constant 0 : i32
    %1 = arith.addi %0, %c0_i32 : i32
    %c2_i32 = arith.constant 2 : i32
    %2 = arith.muli %c2_i32, %1 : i32
    %cst = arith.constant 0.000000e+00 : f32
    %3 = vector.broadcast %cst : f32 to vector<4x32xf32>
    %c0_i32_0 = arith.constant 0 : i32
    %4 = arith.addi %2, %c0_i32_0 : i32
    %c0 = arith.constant 0 : index
    %5 = arith.index_cast %4 : i32 to index
    %c0_1 = arith.constant 0 : index
    %c0_2 = arith.constant 0 : index
    %6 = vector.load %arg2[%c0, %5, %c0_1, %c0_2] : memref<1x10x5x32xbf16, #tpu.memory_space<vmem>>, vector<1x1x5x32xbf16>
    %7 = vector.shape_cast %6 : vector<1x1x5x32xbf16> to vector<5x32xbf16>
    %8 = vector.extract_strided_slice %7 {offsets = [0, 0], sizes = [4, 32], strides = [1, 1]} : vector<5x32xbf16> to vector<4x32xbf16>
    %c0_3 = arith.constant 0 : index
    %c0_4 = arith.constant 0 : index
    %c0_5 = arith.constant 0 : index
    %9 = vector.load %arg3[%c0_3, %c0_4, %c0_5] : memref<6x32x32xbf16, #tpu.memory_space<vmem>>, vector<1x32x32xbf16>
    %10 = vector.shape_cast %9 : vector<1x32x32xbf16> to vector<32x32xbf16>
    %cst_6 = arith.constant dense<0.000000e+00> : vector<4x32xf32>
    %11 = tpu.matmul %8, %10, %cst_6 {dimension_numbers = #tpu.dot_dimension_numbers<[1], [0], [0], [1], [0, 0, 1, 1], [], []>} : vector<4x32xbf16>, vector<32x32xbf16>, vector<4x32xf32> -> vector<4x32xf32>
    %12 = arith.addf %3, %11 : vector<4x32xf32>
    %13 = vector.extract_strided_slice %7 {offsets = [1, 0], sizes = [4, 32], strides = [1, 1]} : vector<5x32xbf16> to vector<4x32xbf16>
    %c1 = arith.constant 1 : index
    %c0_7 = arith.constant 0 : index
    %c0_8 = arith.constant 0 : index
    %14 = vector.load %arg3[%c1, %c0_7, %c0_8] : memref<6x32x32xbf16, #tpu.memory_space<vmem>>, vector<1x32x32xbf16>
    %15 = vector.shape_cast %14 : vector<1x32x32xbf16> to vector<32x32xbf16>
    %cst_9 = arith.constant dense<0.000000e+00> : vector<4x32xf32>
    %16 = tpu.matmul %13, %15, %cst_9 {dimension_numbers = #tpu.dot_dimension_numbers<[1], [0], [0], [1], [0, 0, 1, 1], [], []>} : vector<4x32xbf16>, vector<32x32xbf16>, vector<4x32xf32> -> vector<4x32xf32>
    %17 = arith.addf %12, %16 : vector<4x32xf32>
    %c1_i32 = arith.constant 1 : i32
    %18 = arith.addi %2, %c1_i32 : i32
    %c0_10 = arith.constant 0 : index
    %19 = arith.index_cast %18 : i32 to index
    %c0_11 = arith.constant 0 : index
    %c0_12 = arith.constant 0 : index
    %20 = vector.load %arg2[%c0_10, %19, %c0_11, %c0_12] : memref<1x10x5x32xbf16, #tpu.memory_space<vmem>>, vector<1x1x5x32xbf16>
    %21 = vector.shape_cast %20 : vector<1x1x5x32xbf16> to vector<5x32xbf16>
    %22 = vector.extract_strided_slice %21 {offsets = [0, 0], sizes = [4, 32], strides = [1, 1]} : vector<5x32xbf16> to vector<4x32xbf16>
    %c2 = arith.constant 2 : index
    %c0_13 = arith.constant 0 : index
    %c0_14 = arith.constant 0 : index
    %23 = vector.load %arg3[%c2, %c0_13, %c0_14] : memref<6x32x32xbf16, #tpu.memory_space<vmem>>, vector<1x32x32xbf16>
    %24 = vector.shape_cast %23 : vector<1x32x32xbf16> to vector<32x32xbf16>
    %cst_15 = arith.constant dense<0.000000e+00> : vector<4x32xf32>
    %25 = tpu.matmul %22, %24, %cst_15 {dimension_numbers = #tpu.dot_dimension_numbers<[1], [0], [0], [1], [0, 0, 1, 1], [], []>} : vector<4x32xbf16>, vector<32x32xbf16>, vector<4x32xf32> -> vector<4x32xf32>
    %26 = arith.addf %17, %25 : vector<4x32xf32>
    %27 = vector.extract_strided_slice %21 {offsets = [1, 0], sizes = [4, 32], strides = [1, 1]} : vector<5x32xbf16> to vector<4x32xbf16>
    %c3 = arith.constant 3 : index
    %c0_16 = arith.constant 0 : index
    %c0_17 = arith.constant 0 : index
    %28 = vector.load %arg3[%c3, %c0_16, %c0_17] : memref<6x32x32xbf16, #tpu.memory_space<vmem>>, vector<1x32x32xbf16>
    %29 = vector.shape_cast %28 : vector<1x32x32xbf16> to vector<32x32xbf16>
    %cst_18 = arith.constant dense<0.000000e+00> : vector<4x32xf32>
    %30 = tpu.matmul %27, %29, %cst_18 {dimension_numbers = #tpu.dot_dimension_numbers<[1], [0], [0], [1], [0, 0, 1, 1], [], []>} : vector<4x32xbf16>, vector<32x32xbf16>, vector<4x32xf32> -> vector<4x32xf32>
    %31 = arith.addf %26, %30 : vector<4x32xf32>
    %c2_i32_19 = arith.constant 2 : i32
    %32 = arith.addi %2, %c2_i32_19 : i32
    %c0_20 = arith.constant 0 : index
    %33 = arith.index_cast %32 : i32 to index
    %c0_21 = arith.constant 0 : index
    %c0_22 = arith.constant 0 : index
    %34 = vector.load %arg2[%c0_20, %33, %c0_21, %c0_22] : memref<1x10x5x32xbf16, #tpu.memory_space<vmem>>, vector<1x1x5x32xbf16>
    %35 = vector.shape_cast %34 : vector<1x1x5x32xbf16> to vector<5x32xbf16>
    %36 = vector.extract_strided_slice %35 {offsets = [0, 0], sizes = [4, 32], strides = [1, 1]} : vector<5x32xbf16> to vector<4x32xbf16>
    %c4 = arith.constant 4 : index
    %c0_23 = arith.constant 0 : index
    %c0_24 = arith.constant 0 : index
    %37 = vector.load %arg3[%c4, %c0_23, %c0_24] : memref<6x32x32xbf16, #tpu.memory_space<vmem>>, vector<1x32x32xbf16>
    %38 = vector.shape_cast %37 : vector<1x32x32xbf16> to vector<32x32xbf16>
    %cst_25 = arith.constant dense<0.000000e+00> : vector<4x32xf32>
    %39 = tpu.matmul %36, %38, %cst_25 {dimension_numbers = #tpu.dot_dimension_numbers<[1], [0], [0], [1], [0, 0, 1, 1], [], []>} : vector<4x32xbf16>, vector<32x32xbf16>, vector<4x32xf32> -> vector<4x32xf32>
    %40 = arith.addf %31, %39 : vector<4x32xf32>
    %41 = vector.extract_strided_slice %35 {offsets = [1, 0], sizes = [4, 32], strides = [1, 1]} : vector<5x32xbf16> to vector<4x32xbf16>
    %c5 = arith.constant 5 : index
    %c0_26 = arith.constant 0 : index
    %c0_27 = arith.constant 0 : index
    %42 = vector.load %arg3[%c5, %c0_26, %c0_27] : memref<6x32x32xbf16, #tpu.memory_space<vmem>>, vector<1x32x32xbf16>
    %43 = vector.shape_cast %42 : vector<1x32x32xbf16> to vector<32x32xbf16>
    %cst_28 = arith.constant dense<0.000000e+00> : vector<4x32xf32>
    %44 = tpu.matmul %41, %43, %cst_28 {dimension_numbers = #tpu.dot_dimension_numbers<[1], [0], [0], [1], [0, 0, 1, 1], [], []>} : vector<4x32xbf16>, vector<32x32xbf16>, vector<4x32xf32> -> vector<4x32xf32>
    %45 = arith.addf %40, %44 : vector<4x32xf32>
    %c0_29 = arith.constant 0 : index
    %c0_30 = arith.constant 0 : index
    %46 = vector.load %arg4[%c0_29, %c0_30] : memref<1x32xf32, #tpu.memory_space<vmem>>, vector<1x32xf32>
    %47 = vector.broadcast %46 : vector<1x32xf32> to vector<4x32xf32>
    %48 = arith.addf %45, %47 : vector<4x32xf32>
    %cst_31 = arith.constant 0.000000e+00 : f32
    %49 = vector.broadcast %cst_31 : f32 to vector<4x32xf32>
    %50 = arith.maximumf %48, %49 : vector<4x32xf32>
    %51 = arith.truncf %50 : vector<4x32xf32> to vector<4x32xbf16>
    %c0_32 = arith.constant 0 : index
    %c0_33 = arith.constant 0 : index
    %c0_34 = arith.constant 0 : index
    %c0_35 = arith.constant 0 : index
    %52 = vector.load %arg5[%c0_32, %c0_33, %c0_34, %c0_35] : memref<1x4x4x32xbf16, #tpu.memory_space<vmem>>, vector<1x1x4x32xbf16>
    %53 = vector.shape_cast %52 : vector<1x1x4x32xbf16> to vector<4x32xbf16>
    %54 = vector.shape_cast %51 : vector<4x32xbf16> to vector<1x1x4x32xbf16>
    tpu.vector_store %arg5[%c0_32, %c0_33, %c0_34, %c0_35], %54 {strides = array<i32>} : memref<1x4x4x32xbf16, #tpu.memory_space<vmem>>, vector<1x1x4x32xbf16>,
    %c4_i32_36 = arith.constant 4 : i32
    %55 = arith.muli %arg1, %c4_i32_36 : i32
    %c1_i32_37 = arith.constant 1 : i32
    %56 = arith.addi %55, %c1_i32_37 : i32
    %c2_i32_38 = arith.constant 2 : i32
    %57 = arith.muli %c2_i32_38, %56 : i32
    %cst_39 = arith.constant 0.000000e+00 : f32
    %58 = vector.broadcast %cst_39 : f32 to vector<4x32xf32>
    %c0_i32_40 = arith.constant 0 : i32
    %59 = arith.addi %57, %c0_i32_40 : i32
    %c0_41 = arith.constant 0 : index
    %60 = arith.index_cast %59 : i32 to index
    %c0_42 = arith.constant 0 : index
    %c0_43 = arith.constant 0 : index
    %61 = vector.load %arg2[%c0_41, %60, %c0_42, %c0_43] : memref<1x10x5x32xbf16, #tpu.memory_space<vmem>>, vector<1x1x5x32xbf16>
    %62 = vector.shape_cast %61 : vector<1x1x5x32xbf16> to vector<5x32xbf16>
    %63 = vector.extract_strided_slice %62 {offsets = [0, 0], sizes = [4, 32], strides = [1, 1]} : vector<5x32xbf16> to vector<4x32xbf16>
    %c0_44 = arith.constant 0 : index
    %c0_45 = arith.constant 0 : index
    %c0_46 = arith.constant 0 : index
    %64 = vector.load %arg3[%c0_44, %c0_45, %c0_46] : memref<6x32x32xbf16, #tpu.memory_space<vmem>>, vector<1x32x32xbf16>
    %65 = vector.shape_cast %64 : vector<1x32x32xbf16> to vector<32x32xbf16>
    %cst_47 = arith.constant dense<0.000000e+00> : vector<4x32xf32>
    %66 = tpu.matmul %63, %65, %cst_47 {dimension_numbers = #tpu.dot_dimension_numbers<[1], [0], [0], [1], [0, 0, 1, 1], [], []>} : vector<4x32xbf16>, vector<32x32xbf16>, vector<4x32xf32> -> vector<4x32xf32>
    %67 = arith.addf %58, %66 : vector<4x32xf32>
    %68 = vector.extract_strided_slice %62 {offsets = [1, 0], sizes = [4, 32], strides = [1, 1]} : vector<5x32xbf16> to vector<4x32xbf16>
    %c1_48 = arith.constant 1 : index
    %c0_49 = arith.constant 0 : index
    %c0_50 = arith.constant 0 : index
    %69 = vector.load %arg3[%c1_48, %c0_49, %c0_50] : memref<6x32x32xbf16, #tpu.memory_space<vmem>>, vector<1x32x32xbf16>
    %70 = vector.shape_cast %69 : vector<1x32x32xbf16> to vector<32x32xbf16>
    %cst_51 = arith.constant dense<0.000000e+00> : vector<4x32xf32>
    %71 = tpu.matmul %68, %70, %cst_51 {dimension_numbers = #tpu.dot_dimension_numbers<[1], [0], [0], [1], [0, 0, 1, 1], [], []>} : vector<4x32xbf16>, vector<32x32xbf16>, vector<4x32xf32> -> vector<4x32xf32>
    %72 = arith.addf %67, %71 : vector<4x32xf32>
    %c1_i32_52 = arith.constant 1 : i32
    %73 = arith.addi %57, %c1_i32_52 : i32
    %c0_53 = arith.constant 0 : index
    %74 = arith.index_cast %73 : i32 to index
    %c0_54 = arith.constant 0 : index
    %c0_55 = arith.constant 0 : index
    %75 = vector.load %arg2[%c0_53, %74, %c0_54, %c0_55] : memref<1x10x5x32xbf16, #tpu.memory_space<vmem>>, vector<1x1x5x32xbf16>
    %76 = vector.shape_cast %75 : vector<1x1x5x32xbf16> to vector<5x32xbf16>
    %77 = vector.extract_strided_slice %76 {offsets = [0, 0], sizes = [4, 32], strides = [1, 1]} : vector<5x32xbf16> to vector<4x32xbf16>
    %c2_56 = arith.constant 2 : index
    %c0_57 = arith.constant 0 : index
    %c0_58 = arith.constant 0 : index
    %78 = vector.load %arg3[%c2_56, %c0_57, %c0_58] : memref<6x32x32xbf16, #tpu.memory_space<vmem>>, vector<1x32x32xbf16>
    %79 = vector.shape_cast %78 : vector<1x32x32xbf16> to vector<32x32xbf16>
    %cst_59 = arith.constant dense<0.000000e+00> : vector<4x32xf32>
    %80 = tpu.matmul %77, %79, %cst_59 {dimension_numbers = #tpu.dot_dimension_numbers<[1], [0], [0], [1], [0, 0, 1, 1], [], []>} : vector<4x32xbf16>, vector<32x32xbf16>, vector<4x32xf32> -> vector<4x32xf32>
    %81 = arith.addf %72, %80 : vector<4x32xf32>
    %82 = vector.extract_strided_slice %76 {offsets = [1, 0], sizes = [4, 32], strides = [1, 1]} : vector<5x32xbf16> to vector<4x32xbf16>
    %c3_60 = arith.constant 3 : index
    %c0_61 = arith.constant 0 : index
    %c0_62 = arith.constant 0 : index
    %83 = vector.load %arg3[%c3_60, %c0_61, %c0_62] : memref<6x32x32xbf16, #tpu.memory_space<vmem>>, vector<1x32x32xbf16>
    %84 = vector.shape_cast %83 : vector<1x32x32xbf16> to vector<32x32xbf16>
    %cst_63 = arith.constant dense<0.000000e+00> : vector<4x32xf32>
    %85 = tpu.matmul %82, %84, %cst_63 {dimension_numbers = #tpu.dot_dimension_numbers<[1], [0], [0], [1], [0, 0, 1, 1], [], []>} : vector<4x32xbf16>, vector<32x32xbf16>, vector<4x32xf32> -> vector<4x32xf32>
    %86 = arith.addf %81, %85 : vector<4x32xf32>
    %c2_i32_64 = arith.constant 2 : i32
    %87 = arith.addi %57, %c2_i32_64 : i32
    %c0_65 = arith.constant 0 : index
    %88 = arith.index_cast %87 : i32 to index
    %c0_66 = arith.constant 0 : index
    %c0_67 = arith.constant 0 : index
    %89 = vector.load %arg2[%c0_65, %88, %c0_66, %c0_67] : memref<1x10x5x32xbf16, #tpu.memory_space<vmem>>, vector<1x1x5x32xbf16>
    %90 = vector.shape_cast %89 : vector<1x1x5x32xbf16> to vector<5x32xbf16>
    %91 = vector.extract_strided_slice %90 {offsets = [0, 0], sizes = [4, 32], strides = [1, 1]} : vector<5x32xbf16> to vector<4x32xbf16>
    %c4_68 = arith.constant 4 : index
    %c0_69 = arith.constant 0 : index
    %c0_70 = arith.constant 0 : index
    %92 = vector.load %arg3[%c4_68, %c0_69, %c0_70] : memref<6x32x32xbf16, #tpu.memory_space<vmem>>, vector<1x32x32xbf16>
    %93 = vector.shape_cast %92 : vector<1x32x32xbf16> to vector<32x32xbf16>
    %cst_71 = arith.constant dense<0.000000e+00> : vector<4x32xf32>
    %94 = tpu.matmul %91, %93, %cst_71 {dimension_numbers = #tpu.dot_dimension_numbers<[1], [0], [0], [1], [0, 0, 1, 1], [], []>} : vector<4x32xbf16>, vector<32x32xbf16>, vector<4x32xf32> -> vector<4x32xf32>
    %95 = arith.addf %86, %94 : vector<4x32xf32>
    %96 = vector.extract_strided_slice %90 {offsets = [1, 0], sizes = [4, 32], strides = [1, 1]} : vector<5x32xbf16> to vector<4x32xbf16>
    %c5_72 = arith.constant 5 : index
    %c0_73 = arith.constant 0 : index
    %c0_74 = arith.constant 0 : index
    %97 = vector.load %arg3[%c5_72, %c0_73, %c0_74] : memref<6x32x32xbf16, #tpu.memory_space<vmem>>, vector<1x32x32xbf16>
    %98 = vector.shape_cast %97 : vector<1x32x32xbf16> to vector<32x32xbf16>
    %cst_75 = arith.constant dense<0.000000e+00> : vector<4x32xf32>
    %99 = tpu.matmul %96, %98, %cst_75 {dimension_numbers = #tpu.dot_dimension_numbers<[1], [0], [0], [1], [0, 0, 1, 1], [], []>} : vector<4x32xbf16>, vector<32x32xbf16>, vector<4x32xf32> -> vector<4x32xf32>
    %100 = arith.addf %95, %99 : vector<4x32xf32>
    %c0_76 = arith.constant 0 : index
    %c0_77 = arith.constant 0 : index
    %101 = vector.load %arg4[%c0_76, %c0_77] : memref<1x32xf32, #tpu.memory_space<vmem>>, vector<1x32xf32>
    %102 = vector.broadcast %101 : vector<1x32xf32> to vector<4x32xf32>
    %103 = arith.addf %100, %102 : vector<4x32xf32>
    %cst_78 = arith.constant 0.000000e+00 : f32
    %104 = vector.broadcast %cst_78 : f32 to vector<4x32xf32>
    %105 = arith.maximumf %103, %104 : vector<4x32xf32>
    %106 = arith.truncf %105 : vector<4x32xf32> to vector<4x32xbf16>
    %c0_79 = arith.constant 0 : index
    %c1_80 = arith.constant 1 : index
    %c0_81 = arith.constant 0 : index
    %c0_82 = arith.constant 0 : index
    %107 = vector.load %arg5[%c0_79, %c1_80, %c0_81, %c0_82] : memref<1x4x4x32xbf16, #tpu.memory_space<vmem>>, vector<1x1x4x32xbf16>
    %108 = vector.shape_cast %107 : vector<1x1x4x32xbf16> to vector<4x32xbf16>
    %109 = vector.shape_cast %106 : vector<4x32xbf16> to vector<1x1x4x32xbf16>
    tpu.vector_store %arg5[%c0_79, %c1_80, %c0_81, %c0_82], %109 {strides = array<i32>} : memref<1x4x4x32xbf16, #tpu.memory_space<vmem>>, vector<1x1x4x32xbf16>,
    %c4_i32_83 = arith.constant 4 : i32
    %110 = arith.muli %arg1, %c4_i32_83 : i32
    %c2_i32_84 = arith.constant 2 : i32
    %111 = arith.addi %110, %c2_i32_84 : i32
    %c2_i32_85 = arith.constant 2 : i32
    %112 = arith.muli %c2_i32_85, %111 : i32
    %cst_86 = arith.constant 0.000000e+00 : f32
    %113 = vector.broadcast %cst_86 : f32 to vector<4x32xf32>
    %c0_i32_87 = arith.constant 0 : i32
    %114 = arith.addi %112, %c0_i32_87 : i32
    %c0_88 = arith.constant 0 : index
    %115 = arith.index_cast %114 : i32 to index
    %c0_89 = arith.constant 0 : index
    %c0_90 = arith.constant 0 : index
    %116 = vector.load %arg2[%c0_88, %115, %c0_89, %c0_90] : memref<1x10x5x32xbf16, #tpu.memory_space<vmem>>, vector<1x1x5x32xbf16>
    %117 = vector.shape_cast %116 : vector<1x1x5x32xbf16> to vector<5x32xbf16>
    %118 = vector.extract_strided_slice %117 {offsets = [0, 0], sizes = [4, 32], strides = [1, 1]} : vector<5x32xbf16> to vector<4x32xbf16>
    %c0_91 = arith.constant 0 : index
    %c0_92 = arith.constant 0 : index
    %c0_93 = arith.constant 0 : index
    %119 = vector.load %arg3[%c0_91, %c0_92, %c0_93] : memref<6x32x32xbf16, #tpu.memory_space<vmem>>, vector<1x32x32xbf16>
    %120 = vector.shape_cast %119 : vector<1x32x32xbf16> to vector<32x32xbf16>
    %cst_94 = arith.constant dense<0.000000e+00> : vector<4x32xf32>
    %121 = tpu.matmul %118, %120, %cst_94 {dimension_numbers = #tpu.dot_dimension_numbers<[1], [0], [0], [1], [0, 0, 1, 1], [], []>} : vector<4x32xbf16>, vector<32x32xbf16>, vector<4x32xf32> -> vector<4x32xf32>
    %122 = arith.addf %113, %121 : vector<4x32xf32>
    %123 = vector.extract_strided_slice %117 {offsets = [1, 0], sizes = [4, 32], strides = [1, 1]} : vector<5x32xbf16> to vector<4x32xbf16>
    %c1_95 = arith.constant 1 : index
    %c0_96 = arith.constant 0 : index
    %c0_97 = arith.constant 0 : index
    %124 = vector.load %arg3[%c1_95, %c0_96, %c0_97] : memref<6x32x32xbf16, #tpu.memory_space<vmem>>, vector<1x32x32xbf16>
    %125 = vector.shape_cast %124 : vector<1x32x32xbf16> to vector<32x32xbf16>
    %cst_98 = arith.constant dense<0.000000e+00> : vector<4x32xf32>
    %126 = tpu.matmul %123, %125, %cst_98 {dimension_numbers = #tpu.dot_dimension_numbers<[1], [0], [0], [1], [0, 0, 1, 1], [], []>} : vector<4x32xbf16>, vector<32x32xbf16>, vector<4x32xf32> -> vector<4x32xf32>
    %127 = arith.addf %122, %126 : vector<4x32xf32>
    %c1_i32_99 = arith.constant 1 : i32
    %128 = arith.addi %112, %c1_i32_99 : i32
    %c0_100 = arith.constant 0 : index
    %129 = arith.index_cast %128 : i32 to index
    %c0_101 = arith.constant 0 : index
    %c0_102 = arith.constant 0 : index
    %130 = vector.load %arg2[%c0_100, %129, %c0_101, %c0_102] : memref<1x10x5x32xbf16, #tpu.memory_space<vmem>>, vector<1x1x5x32xbf16>
    %131 = vector.shape_cast %130 : vector<1x1x5x32xbf16> to vector<5x32xbf16>
    %132 = vector.extract_strided_slice %131 {offsets = [0, 0], sizes = [4, 32], strides = [1, 1]} : vector<5x32xbf16> to vector<4x32xbf16>
    %c2_103 = arith.constant 2 : index
    %c0_104 = arith.constant 0 : index
    %c0_105 = arith.constant 0 : index
    %133 = vector.load %arg3[%c2_103, %c0_104, %c0_105] : memref<6x32x32xbf16, #tpu.memory_space<vmem>>, vector<1x32x32xbf16>
    %134 = vector.shape_cast %133 : vector<1x32x32xbf16> to vector<32x32xbf16>
    %cst_106 = arith.constant dense<0.000000e+00> : vector<4x32xf32>
    %135 = tpu.matmul %132, %134, %cst_106 {dimension_numbers = #tpu.dot_dimension_numbers<[1], [0], [0], [1], [0, 0, 1, 1], [], []>} : vector<4x32xbf16>, vector<32x32xbf16>, vector<4x32xf32> -> vector<4x32xf32>
    %136 = arith.addf %127, %135 : vector<4x32xf32>
    %137 = vector.extract_strided_slice %131 {offsets = [1, 0], sizes = [4, 32], strides = [1, 1]} : vector<5x32xbf16> to vector<4x32xbf16>
    %c3_107 = arith.constant 3 : index
    %c0_108 = arith.constant 0 : index
    %c0_109 = arith.constant 0 : index
    %138 = vector.load %arg3[%c3_107, %c0_108, %c0_109] : memref<6x32x32xbf16, #tpu.memory_space<vmem>>, vector<1x32x32xbf16>
    %139 = vector.shape_cast %138 : vector<1x32x32xbf16> to vector<32x32xbf16>
    %cst_110 = arith.constant dense<0.000000e+00> : vector<4x32xf32>
    %140 = tpu.matmul %137, %139, %cst_110 {dimension_numbers = #tpu.dot_dimension_numbers<[1], [0], [0], [1], [0, 0, 1, 1], [], []>} : vector<4x32xbf16>, vector<32x32xbf16>, vector<4x32xf32> -> vector<4x32xf32>
    %141 = arith.addf %136, %140 : vector<4x32xf32>
    %c2_i32_111 = arith.constant 2 : i32
    %142 = arith.addi %112, %c2_i32_111 : i32
    %c0_112 = arith.constant 0 : index
    %143 = arith.index_cast %142 : i32 to index
    %c0_113 = arith.constant 0 : index
    %c0_114 = arith.constant 0 : index
    %144 = vector.load %arg2[%c0_112, %143, %c0_113, %c0_114] : memref<1x10x5x32xbf16, #tpu.memory_space<vmem>>, vector<1x1x5x32xbf16>
    %145 = vector.shape_cast %144 : vector<1x1x5x32xbf16> to vector<5x32xbf16>
    %146 = vector.extract_strided_slice %145 {offsets = [0, 0], sizes = [4, 32], strides = [1, 1]} : vector<5x32xbf16> to vector<4x32xbf16>
    %c4_115 = arith.constant 4 : index
    %c0_116 = arith.constant 0 : index
    %c0_117 = arith.constant 0 : index
    %147 = vector.load %arg3[%c4_115, %c0_116, %c0_117] : memref<6x32x32xbf16, #tpu.memory_space<vmem>>, vector<1x32x32xbf16>
    %148 = vector.shape_cast %147 : vector<1x32x32xbf16> to vector<32x32xbf16>
    %cst_118 = arith.constant dense<0.000000e+00> : vector<4x32xf32>
    %149 = tpu.matmul %146, %148, %cst_118 {dimension_numbers = #tpu.dot_dimension_numbers<[1], [0], [0], [1], [0, 0, 1, 1], [], []>} : vector<4x32xbf16>, vector<32x32xbf16>, vector<4x32xf32> -> vector<4x32xf32>
    %150 = arith.addf %141, %149 : vector<4x32xf32>
    %151 = vector.extract_strided_slice %145 {offsets = [1, 0], sizes = [4, 32], strides = [1, 1]} : vector<5x32xbf16> to vector<4x32xbf16>
    %c5_119 = arith.constant 5 : index
    %c0_120 = arith.constant 0 : index
    %c0_121 = arith.constant 0 : index
    %152 = vector.load %arg3[%c5_119, %c0_120, %c0_121] : memref<6x32x32xbf16, #tpu.memory_space<vmem>>, vector<1x32x32xbf16>
    %153 = vector.shape_cast %152 : vector<1x32x32xbf16> to vector<32x32xbf16>
    %cst_122 = arith.constant dense<0.000000e+00> : vector<4x32xf32>
    %154 = tpu.matmul %151, %153, %cst_122 {dimension_numbers = #tpu.dot_dimension_numbers<[1], [0], [0], [1], [0, 0, 1, 1], [], []>} : vector<4x32xbf16>, vector<32x32xbf16>, vector<4x32xf32> -> vector<4x32xf32>
    %155 = arith.addf %150, %154 : vector<4x32xf32>
    %c0_123 = arith.constant 0 : index
    %c0_124 = arith.constant 0 : index
    %156 = vector.load %arg4[%c0_123, %c0_124] : memref<1x32xf32, #tpu.memory_space<vmem>>, vector<1x32xf32>
    %157 = vector.broadcast %156 : vector<1x32xf32> to vector<4x32xf32>
    %158 = arith.addf %155, %157 : vector<4x32xf32>
    %cst_125 = arith.constant 0.000000e+00 : f32
    %159 = vector.broadcast %cst_125 : f32 to vector<4x32xf32>
    %160 = arith.maximumf %158, %159 : vector<4x32xf32>
    %161 = arith.truncf %160 : vector<4x32xf32> to vector<4x32xbf16>
    %c0_126 = arith.constant 0 : index
    %c2_127 = arith.constant 2 : index
    %c0_128 = arith.constant 0 : index
    %c0_129 = arith.constant 0 : index
    %162 = vector.load %arg5[%c0_126, %c2_127, %c0_128, %c0_129] : memref<1x4x4x32xbf16, #tpu.memory_space<vmem>>, vector<1x1x4x32xbf16>
    %163 = vector.shape_cast %162 : vector<1x1x4x32xbf16> to vector<4x32xbf16>
    %164 = vector.shape_cast %161 : vector<4x32xbf16> to vector<1x1x4x32xbf16>
    tpu.vector_store %arg5[%c0_126, %c2_127, %c0_128, %c0_129], %164 {strides = array<i32>} : memref<1x4x4x32xbf16, #tpu.memory_space<vmem>>, vector<1x1x4x32xbf16>,
    %c4_i32_130 = arith.constant 4 : i32
    %165 = arith.muli %arg1, %c4_i32_130 : i32
    %c3_i32 = arith.constant 3 : i32
    %166 = arith.addi %165, %c3_i32 : i32
    %c2_i32_131 = arith.constant 2 : i32
    %167 = arith.muli %c2_i32_131, %166 : i32
    %cst_132 = arith.constant 0.000000e+00 : f32
    %168 = vector.broadcast %cst_132 : f32 to vector<4x32xf32>
    %c0_i32_133 = arith.constant 0 : i32
    %169 = arith.addi %167, %c0_i32_133 : i32
    %c0_134 = arith.constant 0 : index
    %170 = arith.index_cast %169 : i32 to index
    %c0_135 = arith.constant 0 : index
    %c0_136 = arith.constant 0 : index
    %171 = vector.load %arg2[%c0_134, %170, %c0_135, %c0_136] : memref<1x10x5x32xbf16, #tpu.memory_space<vmem>>, vector<1x1x5x32xbf16>
    %172 = vector.shape_cast %171 : vector<1x1x5x32xbf16> to vector<5x32xbf16>
    %173 = vector.extract_strided_slice %172 {offsets = [0, 0], sizes = [4, 32], strides = [1, 1]} : vector<5x32xbf16> to vector<4x32xbf16>
    %c0_137 = arith.constant 0 : index
    %c0_138 = arith.constant 0 : index
    %c0_139 = arith.constant 0 : index
    %174 = vector.load %arg3[%c0_137, %c0_138, %c0_139] : memref<6x32x32xbf16, #tpu.memory_space<vmem>>, vector<1x32x32xbf16>
    %175 = vector.shape_cast %174 : vector<1x32x32xbf16> to vector<32x32xbf16>
    %cst_140 = arith.constant dense<0.000000e+00> : vector<4x32xf32>
    %176 = tpu.matmul %173, %175, %cst_140 {dimension_numbers = #tpu.dot_dimension_numbers<[1], [0], [0], [1], [0, 0, 1, 1], [], []>} : vector<4x32xbf16>, vector<32x32xbf16>, vector<4x32xf32> -> vector<4x32xf32>
    %177 = arith.addf %168, %176 : vector<4x32xf32>
    %178 = vector.extract_strided_slice %172 {offsets = [1, 0], sizes = [4, 32], strides = [1, 1]} : vector<5x32xbf16> to vector<4x32xbf16>
    %c1_141 = arith.constant 1 : index
    %c0_142 = arith.constant 0 : index
    %c0_143 = arith.constant 0 : index
    %179 = vector.load %arg3[%c1_141, %c0_142, %c0_143] : memref<6x32x32xbf16, #tpu.memory_space<vmem>>, vector<1x32x32xbf16>
    %180 = vector.shape_cast %179 : vector<1x32x32xbf16> to vector<32x32xbf16>
    %cst_144 = arith.constant dense<0.000000e+00> : vector<4x32xf32>
    %181 = tpu.matmul %178, %180, %cst_144 {dimension_numbers = #tpu.dot_dimension_numbers<[1], [0], [0], [1], [0, 0, 1, 1], [], []>} : vector<4x32xbf16>, vector<32x32xbf16>, vector<4x32xf32> -> vector<4x32xf32>
    %182 = arith.addf %177, %181 : vector<4x32xf32>
    %c1_i32_145 = arith.constant 1 : i32
    %183 = arith.addi %167, %c1_i32_145 : i32
    %c0_146 = arith.constant 0 : index
    %184 = arith.index_cast %183 : i32 to index
    %c0_147 = arith.constant 0 : index
    %c0_148 = arith.constant 0 : index
    %185 = vector.load %arg2[%c0_146, %184, %c0_147, %c0_148] : memref<1x10x5x32xbf16, #tpu.memory_space<vmem>>, vector<1x1x5x32xbf16>
    %186 = vector.shape_cast %185 : vector<1x1x5x32xbf16> to vector<5x32xbf16>
    %187 = vector.extract_strided_slice %186 {offsets = [0, 0], sizes = [4, 32], strides = [1, 1]} : vector<5x32xbf16> to vector<4x32xbf16>
    %c2_149 = arith.constant 2 : index
    %c0_150 = arith.constant 0 : index
    %c0_151 = arith.constant 0 : index
    %188 = vector.load %arg3[%c2_149, %c0_150, %c0_151] : memref<6x32x32xbf16, #tpu.memory_space<vmem>>, vector<1x32x32xbf16>
    %189 = vector.shape_cast %188 : vector<1x32x32xbf16> to vector<32x32xbf16>
    %cst_152 = arith.constant dense<0.000000e+00> : vector<4x32xf32>
    %190 = tpu.matmul %187, %189, %cst_152 {dimension_numbers = #tpu.dot_dimension_numbers<[1], [0], [0], [1], [0, 0, 1, 1], [], []>} : vector<4x32xbf16>, vector<32x32xbf16>, vector<4x32xf32> -> vector<4x32xf32>
    %191 = arith.addf %182, %190 : vector<4x32xf32>
    %192 = vector.extract_strided_slice %186 {offsets = [1, 0], sizes = [4, 32], strides = [1, 1]} : vector<5x32xbf16> to vector<4x32xbf16>
    %c3_153 = arith.constant 3 : index
    %c0_154 = arith.constant 0 : index
    %c0_155 = arith.constant 0 : index
    %193 = vector.load %arg3[%c3_153, %c0_154, %c0_155] : memref<6x32x32xbf16, #tpu.memory_space<vmem>>, vector<1x32x32xbf16>
    %194 = vector.shape_cast %193 : vector<1x32x32xbf16> to vector<32x32xbf16>
    %cst_156 = arith.constant dense<0.000000e+00> : vector<4x32xf32>
    %195 = tpu.matmul %192, %194, %cst_156 {dimension_numbers = #tpu.dot_dimension_numbers<[1], [0], [0], [1], [0, 0, 1, 1], [], []>} : vector<4x32xbf16>, vector<32x32xbf16>, vector<4x32xf32> -> vector<4x32xf32>
    %196 = arith.addf %191, %195 : vector<4x32xf32>
    %c2_i32_157 = arith.constant 2 : i32
    %197 = arith.addi %167, %c2_i32_157 : i32
    %c0_158 = arith.constant 0 : index
    %198 = arith.index_cast %197 : i32 to index
    %c0_159 = arith.constant 0 : index
    %c0_160 = arith.constant 0 : index
    %199 = vector.load %arg2[%c0_158, %198, %c0_159, %c0_160] : memref<1x10x5x32xbf16, #tpu.memory_space<vmem>>, vector<1x1x5x32xbf16>
    %200 = vector.shape_cast %199 : vector<1x1x5x32xbf16> to vector<5x32xbf16>
    %201 = vector.extract_strided_slice %200 {offsets = [0, 0], sizes = [4, 32], strides = [1, 1]} : vector<5x32xbf16> to vector<4x32xbf16>
    %c4_161 = arith.constant 4 : index
    %c0_162 = arith.constant 0 : index
    %c0_163 = arith.constant 0 : index
    %202 = vector.load %arg3[%c4_161, %c0_162, %c0_163] : memref<6x32x32xbf16, #tpu.memory_space<vmem>>, vector<1x32x32xbf16>
    %203 = vector.shape_cast %202 : vector<1x32x32xbf16> to vector<32x32xbf16>
    %cst_164 = arith.constant dense<0.000000e+00> : vector<4x32xf32>
    %204 = tpu.matmul %201, %203, %cst_164 {dimension_numbers = #tpu.dot_dimension_numbers<[1], [0], [0], [1], [0, 0, 1, 1], [], []>} : vector<4x32xbf16>, vector<32x32xbf16>, vector<4x32xf32> -> vector<4x32xf32>
    %205 = arith.addf %196, %204 : vector<4x32xf32>
    %206 = vector.extract_strided_slice %200 {offsets = [1, 0], sizes = [4, 32], strides = [1, 1]} : vector<5x32xbf16> to vector<4x32xbf16>
    %c5_165 = arith.constant 5 : index
    %c0_166 = arith.constant 0 : index
    %c0_167 = arith.constant 0 : index
    %207 = vector.load %arg3[%c5_165, %c0_166, %c0_167] : memref<6x32x32xbf16, #tpu.memory_space<vmem>>, vector<1x32x32xbf16>
    %208 = vector.shape_cast %207 : vector<1x32x32xbf16> to vector<32x32xbf16>
    %cst_168 = arith.constant dense<0.000000e+00> : vector<4x32xf32>
    %209 = tpu.matmul %206, %208, %cst_168 {dimension_numbers = #tpu.dot_dimension_numbers<[1], [0], [0], [1], [0, 0, 1, 1], [], []>} : vector<4x32xbf16>, vector<32x32xbf16>, vector<4x32xf32> -> vector<4x32xf32>
    %210 = arith.addf %205, %209 : vector<4x32xf32>
    %c0_169 = arith.constant 0 : index
    %c0_170 = arith.constant 0 : index
    %211 = vector.load %arg4[%c0_169, %c0_170] : memref<1x32xf32, #tpu.memory_space<vmem>>, vector<1x32xf32>
    %212 = vector.broadcast %211 : vector<1x32xf32> to vector<4x32xf32>
    %213 = arith.addf %210, %212 : vector<4x32xf32>
    %cst_171 = arith.constant 0.000000e+00 : f32
    %214 = vector.broadcast %cst_171 : f32 to vector<4x32xf32>
    %215 = arith.maximumf %213, %214 : vector<4x32xf32>
    %216 = arith.truncf %215 : vector<4x32xf32> to vector<4x32xbf16>
    %c0_172 = arith.constant 0 : index
    %c3_173 = arith.constant 3 : index
    %c0_174 = arith.constant 0 : index
    %c0_175 = arith.constant 0 : index
    %217 = vector.load %arg5[%c0_172, %c3_173, %c0_174, %c0_175] : memref<1x4x4x32xbf16, #tpu.memory_space<vmem>>, vector<1x1x4x32xbf16>
    %218 = vector.shape_cast %217 : vector<1x1x4x32xbf16> to vector<4x32xbf16>
    %219 = vector.shape_cast %216 : vector<4x32xbf16> to vector<1x1x4x32xbf16>
    tpu.vector_store %arg5[%c0_172, %c3_173, %c0_174, %c0_175], %219 {strides = array<i32>} : memref<1x4x4x32xbf16, #tpu.memory_space<vmem>>, vector<1x1x4x32xbf16>,
    return
  }
  func.func @transform_0(%arg0: i32, %arg1: i32) -> (i32, i32, i32, i32) {
    %c0_i32 = arith.constant 0 : i32
    %c0_i32_0 = arith.constant 0 : i32
    %c0_i32_1 = arith.constant 0 : i32
    %c0_i32_2 = arith.constant 0 : i32
    return %arg0, %c0_i32, %c0_i32_0, %c0_i32_1 : i32, i32, i32, i32
  }
  func.func @transform_1(%arg0: i32, %arg1: i32) -> (i32, i32, i32) {
    %c0_i32 = arith.constant 0 : i32
    %c0_i32_0 = arith.constant 0 : i32
    %c0_i32_1 = arith.constant 0 : i32
    %c0_i32_2 = arith.constant 0 : i32
    return %c0_i32, %c0_i32_0, %c0_i32_1 : i32, i32, i32
  }
  func.func @transform_2(%arg0: i32, %arg1: i32) -> (i32, i32) {
    %c0_i32 = arith.constant 0 : i32
    %c0_i32_0 = arith.constant 0 : i32
    %c0_i32_1 = arith.constant 0 : i32
    return %c0_i32, %c0_i32_0 : i32, i32
  }
  func.func @transform_3(%arg0: i32, %arg1: i32) -> (i32, i32, i32, i32) {
    %c0_i32 = arith.constant 0 : i32
    %c0_i32_0 = arith.constant 0 : i32
    %c0_i32_1 = arith.constant 0 : i32
    return %arg0, %arg1, %c0_i32, %c0_i32_0 : i32, i32, i32, i32
  }
}

module attributes {stable_mosaic.version = 11 : i64} {
  func.func @kernel(%arg0: i32, %arg1: i32, %arg2: memref<1x8x4x64xbf16, #tpu.memory_space<vmem>>, %arg3: memref<1x4x4x32xbf16, #tpu.memory_space<vmem>>) attributes {dimension_semantics = [#tpu.dimension_semantics<parallel>, #tpu.dimension_semantics<arbitrary>], iteration_bounds = array<i64: 2, 1>, scalar_prefetch = 0 : i64, scratch_operands = 0 : i64, tpu.core_type = #tpu.core_type<tc>, window_params = [{transform_indices = @transform_0, window_bounds = array<i64: 1, 8, 4, 64>}, {transform_indices = @transform_1, window_bounds = array<i64: 1, 4, 4, 32>}]} {
    %c4_i32 = arith.constant 4 : i32
    %0 = arith.muli %arg1, %c4_i32 : i32
    %c0_i32 = arith.constant 0 : i32
    %1 = arith.addi %0, %c0_i32 : i32
    %c2_i32 = arith.constant 2 : i32
    %2 = arith.muli %c2_i32, %1 : i32
    %c0 = arith.constant 0 : index
    %3 = arith.index_cast %2 : i32 to index
    %c0_0 = arith.constant 0 : index
    %c0_1 = arith.constant 0 : index
    %4 = vector.load %arg2[%c0, %3, %c0_0, %c0_1] : memref<1x8x4x64xbf16, #tpu.memory_space<vmem>>, vector<1x1x4x64xbf16>
    %5 = vector.shape_cast %4 : vector<1x1x4x64xbf16> to vector<4x64xbf16>
    %c1_i32 = arith.constant 1 : i32
    %6 = arith.addi %2, %c1_i32 : i32
    %c0_2 = arith.constant 0 : index
    %7 = arith.index_cast %6 : i32 to index
    %c0_3 = arith.constant 0 : index
    %c0_4 = arith.constant 0 : index
    %8 = vector.load %arg2[%c0_2, %7, %c0_3, %c0_4] : memref<1x8x4x64xbf16, #tpu.memory_space<vmem>>, vector<1x1x4x64xbf16>
    %9 = vector.shape_cast %8 : vector<1x1x4x64xbf16> to vector<4x64xbf16>
    %10 = arith.maximumf %5, %9 : vector<4x64xbf16>
    %11 = vector.extract_strided_slice %10 {offsets = [0, 0], sizes = [4, 32], strides = [1, 1]} : vector<4x64xbf16> to vector<4x32xbf16>
    %12 = vector.extract_strided_slice %10 {offsets = [0, 32], sizes = [4, 32], strides = [1, 1]} : vector<4x64xbf16> to vector<4x32xbf16>
    %13 = arith.maximumf %11, %12 : vector<4x32xbf16>
    %c0_5 = arith.constant 0 : index
    %c0_6 = arith.constant 0 : index
    %c0_7 = arith.constant 0 : index
    %c0_8 = arith.constant 0 : index
    %14 = vector.load %arg3[%c0_5, %c0_6, %c0_7, %c0_8] : memref<1x4x4x32xbf16, #tpu.memory_space<vmem>>, vector<1x1x4x32xbf16>
    %15 = vector.shape_cast %14 : vector<1x1x4x32xbf16> to vector<4x32xbf16>
    %16 = vector.shape_cast %13 : vector<4x32xbf16> to vector<1x1x4x32xbf16>
    tpu.vector_store %arg3[%c0_5, %c0_6, %c0_7, %c0_8], %16 {strides = array<i32>} : memref<1x4x4x32xbf16, #tpu.memory_space<vmem>>, vector<1x1x4x32xbf16>,
    %c4_i32_9 = arith.constant 4 : i32
    %17 = arith.muli %arg1, %c4_i32_9 : i32
    %c1_i32_10 = arith.constant 1 : i32
    %18 = arith.addi %17, %c1_i32_10 : i32
    %c2_i32_11 = arith.constant 2 : i32
    %19 = arith.muli %c2_i32_11, %18 : i32
    %c0_12 = arith.constant 0 : index
    %20 = arith.index_cast %19 : i32 to index
    %c0_13 = arith.constant 0 : index
    %c0_14 = arith.constant 0 : index
    %21 = vector.load %arg2[%c0_12, %20, %c0_13, %c0_14] : memref<1x8x4x64xbf16, #tpu.memory_space<vmem>>, vector<1x1x4x64xbf16>
    %22 = vector.shape_cast %21 : vector<1x1x4x64xbf16> to vector<4x64xbf16>
    %c1_i32_15 = arith.constant 1 : i32
    %23 = arith.addi %19, %c1_i32_15 : i32
    %c0_16 = arith.constant 0 : index
    %24 = arith.index_cast %23 : i32 to index
    %c0_17 = arith.constant 0 : index
    %c0_18 = arith.constant 0 : index
    %25 = vector.load %arg2[%c0_16, %24, %c0_17, %c0_18] : memref<1x8x4x64xbf16, #tpu.memory_space<vmem>>, vector<1x1x4x64xbf16>
    %26 = vector.shape_cast %25 : vector<1x1x4x64xbf16> to vector<4x64xbf16>
    %27 = arith.maximumf %22, %26 : vector<4x64xbf16>
    %28 = vector.extract_strided_slice %27 {offsets = [0, 0], sizes = [4, 32], strides = [1, 1]} : vector<4x64xbf16> to vector<4x32xbf16>
    %29 = vector.extract_strided_slice %27 {offsets = [0, 32], sizes = [4, 32], strides = [1, 1]} : vector<4x64xbf16> to vector<4x32xbf16>
    %30 = arith.maximumf %28, %29 : vector<4x32xbf16>
    %c0_19 = arith.constant 0 : index
    %c1 = arith.constant 1 : index
    %c0_20 = arith.constant 0 : index
    %c0_21 = arith.constant 0 : index
    %31 = vector.load %arg3[%c0_19, %c1, %c0_20, %c0_21] : memref<1x4x4x32xbf16, #tpu.memory_space<vmem>>, vector<1x1x4x32xbf16>
    %32 = vector.shape_cast %31 : vector<1x1x4x32xbf16> to vector<4x32xbf16>
    %33 = vector.shape_cast %30 : vector<4x32xbf16> to vector<1x1x4x32xbf16>
    tpu.vector_store %arg3[%c0_19, %c1, %c0_20, %c0_21], %33 {strides = array<i32>} : memref<1x4x4x32xbf16, #tpu.memory_space<vmem>>, vector<1x1x4x32xbf16>,
    %c4_i32_22 = arith.constant 4 : i32
    %34 = arith.muli %arg1, %c4_i32_22 : i32
    %c2_i32_23 = arith.constant 2 : i32
    %35 = arith.addi %34, %c2_i32_23 : i32
    %c2_i32_24 = arith.constant 2 : i32
    %36 = arith.muli %c2_i32_24, %35 : i32
    %c0_25 = arith.constant 0 : index
    %37 = arith.index_cast %36 : i32 to index
    %c0_26 = arith.constant 0 : index
    %c0_27 = arith.constant 0 : index
    %38 = vector.load %arg2[%c0_25, %37, %c0_26, %c0_27] : memref<1x8x4x64xbf16, #tpu.memory_space<vmem>>, vector<1x1x4x64xbf16>
    %39 = vector.shape_cast %38 : vector<1x1x4x64xbf16> to vector<4x64xbf16>
    %c1_i32_28 = arith.constant 1 : i32
    %40 = arith.addi %36, %c1_i32_28 : i32
    %c0_29 = arith.constant 0 : index
    %41 = arith.index_cast %40 : i32 to index
    %c0_30 = arith.constant 0 : index
    %c0_31 = arith.constant 0 : index
    %42 = vector.load %arg2[%c0_29, %41, %c0_30, %c0_31] : memref<1x8x4x64xbf16, #tpu.memory_space<vmem>>, vector<1x1x4x64xbf16>
    %43 = vector.shape_cast %42 : vector<1x1x4x64xbf16> to vector<4x64xbf16>
    %44 = arith.maximumf %39, %43 : vector<4x64xbf16>
    %45 = vector.extract_strided_slice %44 {offsets = [0, 0], sizes = [4, 32], strides = [1, 1]} : vector<4x64xbf16> to vector<4x32xbf16>
    %46 = vector.extract_strided_slice %44 {offsets = [0, 32], sizes = [4, 32], strides = [1, 1]} : vector<4x64xbf16> to vector<4x32xbf16>
    %47 = arith.maximumf %45, %46 : vector<4x32xbf16>
    %c0_32 = arith.constant 0 : index
    %c2 = arith.constant 2 : index
    %c0_33 = arith.constant 0 : index
    %c0_34 = arith.constant 0 : index
    %48 = vector.load %arg3[%c0_32, %c2, %c0_33, %c0_34] : memref<1x4x4x32xbf16, #tpu.memory_space<vmem>>, vector<1x1x4x32xbf16>
    %49 = vector.shape_cast %48 : vector<1x1x4x32xbf16> to vector<4x32xbf16>
    %50 = vector.shape_cast %47 : vector<4x32xbf16> to vector<1x1x4x32xbf16>
    tpu.vector_store %arg3[%c0_32, %c2, %c0_33, %c0_34], %50 {strides = array<i32>} : memref<1x4x4x32xbf16, #tpu.memory_space<vmem>>, vector<1x1x4x32xbf16>,
    %c4_i32_35 = arith.constant 4 : i32
    %51 = arith.muli %arg1, %c4_i32_35 : i32
    %c3_i32 = arith.constant 3 : i32
    %52 = arith.addi %51, %c3_i32 : i32
    %c2_i32_36 = arith.constant 2 : i32
    %53 = arith.muli %c2_i32_36, %52 : i32
    %c0_37 = arith.constant 0 : index
    %54 = arith.index_cast %53 : i32 to index
    %c0_38 = arith.constant 0 : index
    %c0_39 = arith.constant 0 : index
    %55 = vector.load %arg2[%c0_37, %54, %c0_38, %c0_39] : memref<1x8x4x64xbf16, #tpu.memory_space<vmem>>, vector<1x1x4x64xbf16>
    %56 = vector.shape_cast %55 : vector<1x1x4x64xbf16> to vector<4x64xbf16>
    %c1_i32_40 = arith.constant 1 : i32
    %57 = arith.addi %53, %c1_i32_40 : i32
    %c0_41 = arith.constant 0 : index
    %58 = arith.index_cast %57 : i32 to index
    %c0_42 = arith.constant 0 : index
    %c0_43 = arith.constant 0 : index
    %59 = vector.load %arg2[%c0_41, %58, %c0_42, %c0_43] : memref<1x8x4x64xbf16, #tpu.memory_space<vmem>>, vector<1x1x4x64xbf16>
    %60 = vector.shape_cast %59 : vector<1x1x4x64xbf16> to vector<4x64xbf16>
    %61 = arith.maximumf %56, %60 : vector<4x64xbf16>
    %62 = vector.extract_strided_slice %61 {offsets = [0, 0], sizes = [4, 32], strides = [1, 1]} : vector<4x64xbf16> to vector<4x32xbf16>
    %63 = vector.extract_strided_slice %61 {offsets = [0, 32], sizes = [4, 32], strides = [1, 1]} : vector<4x64xbf16> to vector<4x32xbf16>
    %64 = arith.maximumf %62, %63 : vector<4x32xbf16>
    %c0_44 = arith.constant 0 : index
    %c3 = arith.constant 3 : index
    %c0_45 = arith.constant 0 : index
    %c0_46 = arith.constant 0 : index
    %65 = vector.load %arg3[%c0_44, %c3, %c0_45, %c0_46] : memref<1x4x4x32xbf16, #tpu.memory_space<vmem>>, vector<1x1x4x32xbf16>
    %66 = vector.shape_cast %65 : vector<1x1x4x32xbf16> to vector<4x32xbf16>
    %67 = vector.shape_cast %64 : vector<4x32xbf16> to vector<1x1x4x32xbf16>
    tpu.vector_store %arg3[%c0_44, %c3, %c0_45, %c0_46], %67 {strides = array<i32>} : memref<1x4x4x32xbf16, #tpu.memory_space<vmem>>, vector<1x1x4x32xbf16>,
    return
  }
  func.func @transform_0(%arg0: i32, %arg1: i32) -> (i32, i32, i32, i32) {
    %c0_i32 = arith.constant 0 : i32
    %c0_i32_0 = arith.constant 0 : i32
    %c0_i32_1 = arith.constant 0 : i32
    %c0_i32_2 = arith.constant 0 : i32
    return %arg0, %c0_i32, %c0_i32_0, %c0_i32_1 : i32, i32, i32, i32
  }
  func.func @transform_1(%arg0: i32, %arg1: i32) -> (i32, i32, i32, i32) {
    %c0_i32 = arith.constant 0 : i32
    %c0_i32_0 = arith.constant 0 : i32
    %c0_i32_1 = arith.constant 0 : i32
    return %arg0, %arg1, %c0_i32, %c0_i32_0 : i32, i32, i32, i32
  }
}

module attributes {stable_mosaic.version = 11 : i64} {
  func.func @_dual_matmul_bias_relu_kernel(%arg0: i32, %arg1: memref<32x32xbf16, #tpu.memory_space<vmem>>, %arg2: memref<32x32xbf16, #tpu.memory_space<vmem>>, %arg3: memref<32x32xbf16, #tpu.memory_space<vmem>>, %arg4: memref<32x32xbf16, #tpu.memory_space<vmem>>, %arg5: memref<1x32xf32, #tpu.memory_space<vmem>>, %arg6: memref<32x32xf32, #tpu.memory_space<vmem>>) attributes {dimension_semantics = [#tpu.dimension_semantics<parallel>], iteration_bounds = array<i64: 1>, scalar_prefetch = 0 : i64, scratch_operands = 0 : i64, tpu.core_type = #tpu.core_type<tc>, window_params = [{transform_indices = @transform_0, window_bounds = array<i64: 32, 32>}, {transform_indices = @transform_1, window_bounds = array<i64: 32, 32>}, {pipeline_mode = #tpu.pipeline_mode<synchronous>, transform_indices = @transform_2, window_bounds = array<i64: 32, 32>}, {pipeline_mode = #tpu.pipeline_mode<synchronous>, transform_indices = @transform_3, window_bounds = array<i64: 32, 32>}, {pipeline_mode = #tpu.pipeline_mode<synchronous>, transform_indices = @transform_4, window_bounds = array<i64: 1, 32>}, {transform_indices = @transform_5, window_bounds = array<i64: 32, 32>}]} {
    %c0 = arith.constant 0 : index
    %c0_0 = arith.constant 0 : index
    %0 = vector.load %arg1[%c0, %c0_0] : memref<32x32xbf16, #tpu.memory_space<vmem>>, vector<32x32xbf16>
    %c0_1 = arith.constant 0 : index
    %c0_2 = arith.constant 0 : index
    %1 = vector.load %arg3[%c0_1, %c0_2] : memref<32x32xbf16, #tpu.memory_space<vmem>>, vector<32x32xbf16>
    %cst = arith.constant dense<0.000000e+00> : vector<32x32xf32>
    %2 = tpu.matmul %0, %1, %cst {dimension_numbers = #tpu.dot_dimension_numbers<[1], [0], [0], [1], [0, 0, 1, 1], [], []>} : vector<32x32xbf16>, vector<32x32xbf16>, vector<32x32xf32> -> vector<32x32xf32>
    %c0_3 = arith.constant 0 : index
    %c0_4 = arith.constant 0 : index
    %3 = vector.load %arg2[%c0_3, %c0_4] : memref<32x32xbf16, #tpu.memory_space<vmem>>, vector<32x32xbf16>
    %c0_5 = arith.constant 0 : index
    %c0_6 = arith.constant 0 : index
    %4 = vector.load %arg4[%c0_5, %c0_6] : memref<32x32xbf16, #tpu.memory_space<vmem>>, vector<32x32xbf16>
    %cst_7 = arith.constant dense<0.000000e+00> : vector<32x32xf32>
    %5 = tpu.matmul %3, %4, %cst_7 {dimension_numbers = #tpu.dot_dimension_numbers<[1], [0], [0], [1], [0, 0, 1, 1], [], []>} : vector<32x32xbf16>, vector<32x32xbf16>, vector<32x32xf32> -> vector<32x32xf32>
    %6 = arith.addf %2, %5 : vector<32x32xf32>
    %c0_8 = arith.constant 0 : index
    %c0_9 = arith.constant 0 : index
    %7 = vector.load %arg5[%c0_8, %c0_9] : memref<1x32xf32, #tpu.memory_space<vmem>>, vector<1x32xf32>
    %8 = vector.broadcast %7 : vector<1x32xf32> to vector<32x32xf32>
    %9 = arith.addf %6, %8 : vector<32x32xf32>
    %cst_10 = arith.constant 0.000000e+00 : f32
    %10 = vector.broadcast %cst_10 : f32 to vector<32x32xf32>
    %11 = arith.maximumf %9, %10 : vector<32x32xf32>
    %c0_11 = arith.constant 0 : index
    %c0_12 = arith.constant 0 : index
    %12 = vector.load %arg6[%c0_11, %c0_12] : memref<32x32xf32, #tpu.memory_space<vmem>>, vector<32x32xf32>
    tpu.vector_store %arg6[%c0_11, %c0_12], %11 {strides = array<i32>} : memref<32x32xf32, #tpu.memory_space<vmem>>, vector<32x32xf32>,
    return
  }
  func.func @transform_0(%arg0: i32) -> (i32, i32) {
    %c0_i32 = arith.constant 0 : i32
    %c0_i32_0 = arith.constant 0 : i32
    return %arg0, %c0_i32 : i32, i32
  }
  func.func @transform_1(%arg0: i32) -> (i32, i32) {
    %c0_i32 = arith.constant 0 : i32
    %c0_i32_0 = arith.constant 0 : i32
    return %arg0, %c0_i32 : i32, i32
  }
  func.func @transform_2(%arg0: i32) -> (i32, i32) {
    %c0_i32 = arith.constant 0 : i32
    %c0_i32_0 = arith.constant 0 : i32
    %c0_i32_1 = arith.constant 0 : i32
    return %c0_i32, %c0_i32_0 : i32, i32
  }
  func.func @transform_3(%arg0: i32) -> (i32, i32) {
    %c0_i32 = arith.constant 0 : i32
    %c0_i32_0 = arith.constant 0 : i32
    %c0_i32_1 = arith.constant 0 : i32
    return %c0_i32, %c0_i32_0 : i32, i32
  }
  func.func @transform_4(%arg0: i32) -> (i32, i32) {
    %c0_i32 = arith.constant 0 : i32
    %c0_i32_0 = arith.constant 0 : i32
    %c0_i32_1 = arith.constant 0 : i32
    return %c0_i32, %c0_i32_0 : i32, i32
  }
  func.func @transform_5(%arg0: i32) -> (i32, i32) {
    %c0_i32 = arith.constant 0 : i32
    %c0_i32_0 = arith.constant 0 : i32
    return %arg0, %c0_i32 : i32, i32
  }
}

</mosaic_0001>

<llo_original>
// kernel: stem_block_forward.6
$region0: #{stem_block_forward.6}
  #allocation0 [shape = 'u32[]', space=smem, size = 0x4, offset = 0x4, fixed_abs, tag = 'smem constant byte address 0x4 - core index']
  #allocation1 [shape = 'u32[144,128]{1,0:T(1,128)}', space=vmem, size = 0x12000, scoped, tag = 'internal scratch']
  %s0 = inlined_call_operand.vmem [shape: bf16[128,32], index: 0, kind: input, shape index: {}]
  %s1 = inlined_call_operand.vmem [shape: bf16[32,16], index: 1, kind: input, shape index: {}]
  %s2 = inlined_call_operand.vmem [shape: f32[1,16], index: 2, kind: input, shape index: {}]
  %s3 = inlined_call_operand.vmem [shape: bf16[128,16], index: 3, kind: output, shape index: {}]
  %s4 = sld [smem:[#allocation0]]
  $region22: #{stem_block_forward.6} parent=0
    _
  %s6 = ssub.s32 1, %s4
  %s7 = scalar_select 0, %s6, %s4
  // Predicated region
  $region2: #{stem_block_forward.6} parent=0 // pred_check
    _
  $region3: #{stem_block_forward.6} parent=0 // pred_check_branch
    %9 = sbr.rel (0) target = $region5
  $region4: #{stem_block_forward.6} parent=0 // pred_region
    _
  $region5: #{stem_block_forward.6} parent=0 // pred_fallthru
    _
  // Predicated region
  $region6: #{stem_block_forward.6} parent=0 // pred_check
    _
  $region7: #{stem_block_forward.6} parent=0 // pred_check_branch
    %11 = sbr.rel (0) target = $region9
  $region8: #{stem_block_forward.6} parent=0 // pred_region
    _
  $region9: #{stem_block_forward.6} parent=0 // pred_fallthru
    _
  // Predicated region
  $region10: #{stem_block_forward.6} parent=0 // pred_check
    _
  $region11: #{stem_block_forward.6} parent=0 // pred_check_branch
    %13 = sbr.rel (0) target = $region13
  $region12: #{stem_block_forward.6} parent=0 // pred_region
    _
  $region13: #{stem_block_forward.6} parent=0 // pred_fallthru
    _
  %v15 = vld [vmem:[%s0] sm:$0xf]
  %v16 = vld [vmem:[%s0 + $0x4] sm:$0xf]
  %v17 = vld [vmem:[%s0 + $0x8] sm:$0xf]
  %v18 = vld [vmem:[%s0 + $0xc] sm:$0xf]
  %v19 = vld [vmem:[%s0 + $0x10] sm:$0xf]
  %v20 = vld [vmem:[%s0 + $0x14] sm:$0xf]
  %v21 = vld [vmem:[%s0 + $0x18] sm:$0xf]
  %v22 = vld [vmem:[%s0 + $0x1c] sm:$0xf]
  %v23 = vld [vmem:[%s0 + $0x20] sm:$0xf]
  %v24 = vld [vmem:[%s0 + $0x24] sm:$0xf]
  %v25 = vld [vmem:[%s0 + $0x28] sm:$0xf]
  %v26 = vld [vmem:[%s0 + $0x2c] sm:$0xf]
  %v27 = vld [vmem:[%s0 + $0x30] sm:$0xf]
  %v28 = vld [vmem:[%s0 + $0x34] sm:$0xf]
  %v29 = vld [vmem:[%s0 + $0x38] sm:$0xf]
  %v30 = vld [vmem:[%s0 + $0x3c] sm:$0xf]
  %v31 = vld [vmem:[%s1] sm:$0xf]
  %v32 = vld [vmem:[%s1 + $0x4] sm:$0xf]
  %v33 = vld [vmem:[%s1 + $0x8] sm:$0xf]
  %v34 = vld [vmem:[%s1 + $0xc] sm:$0xf]
  %v35 = vld [vmem:[%s2] sm:$0x1]
  %v37 = vlaneseq
  %v38 = vshrl.u32 %v37, 7
  %v39 = vsub.s32 0, %v38
  %v40 = vrot.slane %v35, %v39
  %v58 = vunpack.c.l.b16 %v15
  %v59 = vunpack.c.l.b16 %v16
  %v60 = vunpack.c.l.b16 %v17
  %v61 = vunpack.c.l.b16 %v18
  %v62 = vunpack.c.l.b16 %v19
  %v63 = vunpack.c.l.b16 %v20
  %v64 = vunpack.c.l.b16 %v21
  %v65 = vunpack.c.l.b16 %v22
  %v66 = vunpack.c.l.b16 %v23
  %v67 = vunpack.c.l.b16 %v24
  %v68 = vunpack.c.l.b16 %v25
  %v69 = vunpack.c.l.b16 %v26
  %v70 = vunpack.c.l.b16 %v27
  %v71 = vunpack.c.l.b16 %v28
  %v72 = vunpack.c.l.b16 %v29
  %v73 = vunpack.c.l.b16 %v30
  %v74 = vpack.c.b16 %v59, %v58
  %v75 = vpack.c.b16 %v61, %v60
  %v76 = vpack.c.b16 %v63, %v62
  %v77 = vpack.c.b16 %v65, %v64
  %v78 = vpack.c.b16 %v67, %v66
  %v79 = vpack.c.b16 %v69, %v68
  %v80 = vpack.c.b16 %v71, %v70
  %v81 = vpack.c.b16 %v73, %v72
  %v86 = vunpack.c.l.b16 %v31
  %v87 = vunpack.c.l.b16 %v32
  %v88 = vunpack.c.l.b16 %v33
  %v89 = vunpack.c.l.b16 %v34
  %v90 = vpack.c.b16 %v87, %v86
  %v91 = vpack.c.b16 %v89, %v88
  %vm94 = vcmask 261120
  %v96 = vsel %vm94, %v74, 0
  %v99 = vsel %vm94, %v75, 0
  %v102 = vsel %vm94, %v76, 0
  %v105 = vsel %vm94, %v77, 0
  %v108 = vsel %vm94, %v78, 0
  %v111 = vsel %vm94, %v79, 0
  %v114 = vsel %vm94, %v80, 0
  %v117 = vsel %vm94, %v81, 0
  %119 = vmatprep.subr.bf16.mxu0 0
  %120 = vmatpush1.bf16.msra.mxu0 %v90
  %121 = vmatprep.subr.bf16.mxu0 0
  %122 = vmatpush1.bf16.msra.mxu0 %v91
  %123 = vmatprep.subr.bf16.mxu0 0
  %124 = vmatpush1.bf16.msra.mxu0 0
  %125 = vmatprep.subr.bf16.mxu0 0
  %126 = vmatpush1.bf16.msra.mxu0 0
  %127 = vmatprep.subr.bf16.mxu0 0
  %128 = vmatpush1.bf16.msra.mxu0 0
  %129 = vmatprep.subr.bf16.mxu0 0
  %130 = vmatpush1.bf16.msra.mxu0 0
  %131 = vmatprep.subr.bf16.mxu0 0
  %132 = vmatpush1.bf16.msra.mxu0 0
  %133 = vmatprep.subr.bf16.mxu0 0
  %134 = vmatpush1.bf16.msra.mxu0 0
  %135 = vmatprep.subr.bf16.mxu0 0
  %136 = vmatpush1.bf16.msra.mxu0 0
  %137 = vmatprep.subr.bf16.mxu0 0
  %138 = vmatpush1.bf16.msra.mxu0 0
  %139 = vmatprep.subr.bf16.mxu0 0
  %140 = vmatpush1.bf16.msra.mxu0 0
  %141 = vmatprep.subr.bf16.mxu0 0
  %142 = vmatpush1.bf16.msra.mxu0 0
  %143 = vmatprep.subr.bf16.mxu0 0
  %144 = vmatpush1.bf16.msra.mxu0 0
  %145 = vmatprep.subr.bf16.mxu0 0
  %146 = vmatpush1.bf16.msra.mxu0 0
  %147 = vmatprep.subr.bf16.mxu0 0
  %148 = vmatpush1.bf16.msra.mxu0 0
  %149 = vmatprep.subr.bf16.mxu0 0
  %150 = vmatpush1.bf16.msra.mxu0 0
  %151 = vmatprep.mubr.bf16.mxu0 0
  %152 = vmatmul.mubr.bf16.gmra.mrb[0].mxu0 %v96
  %v153 = vpop.f32.mrb[0].mxu0
  %v154 = vadd.f32 %v40, %v153
  %v155 = vpop.f32.mrb[0].mxu0
  %v156 = vpop.f32.mrb[0].mxu0
  %v157 = vadd.f32 %v40, %v156
  %v158 = vpop.f32.mrb[0].mxu0
  %159 = vmatprep.mubr.bf16.mxu0 0
  %160 = vmatmul.mubr.bf16.gmra.mrb[0].mxu0 %v99
  %v161 = vpop.f32.mrb[0].mxu0
  %v162 = vadd.f32 %v40, %v161
  %v163 = vpop.f32.mrb[0].mxu0
  %v164 = vpop.f32.mrb[0].mxu0
  %v165 = vadd.f32 %v40, %v164
  %v166 = vpop.f32.mrb[0].mxu0
  %167 = vmatprep.mubr.bf16.mxu0 0
  %168 = vmatmul.mubr.bf16.gmra.mrb[0].mxu0 %v102
  %v169 = vpop.f32.mrb[0].mxu0
  %v170 = vadd.f32 %v40, %v169
  %v171 = vpop.f32.mrb[0].mxu0
  %v172 = vpop.f32.mrb[0].mxu0
  %v173 = vadd.f32 %v40, %v172
  %v174 = vpop.f32.mrb[0].mxu0
  %175 = vmatprep.mubr.bf16.mxu0 0
  %176 = vmatmul.mubr.bf16.gmra.mrb[0].mxu0 %v105
  %v177 = vpop.f32.mrb[0].mxu0
  %v178 = vadd.f32 %v40, %v177
  %v179 = vpop.f32.mrb[0].mxu0
  %v180 = vpop.f32.mrb[0].mxu0
  %v181 = vadd.f32 %v40, %v180
  %v182 = vpop.f32.mrb[0].mxu0
  %183 = vmatprep.mubr.bf16.mxu0 0
  %184 = vmatmul.mubr.bf16.gmra.mrb[0].mxu0 %v108
  %v185 = vpop.f32.mrb[0].mxu0
  %v186 = vadd.f32 %v40, %v185
  %v187 = vpop.f32.mrb[0].mxu0
  %v188 = vpop.f32.mrb[0].mxu0
  %v189 = vadd.f32 %v40, %v188
  %v190 = vpop.f32.mrb[0].mxu0
  %191 = vmatprep.mubr.bf16.mxu0 0
  %192 = vmatmul.mubr.bf16.gmra.mrb[0].mxu0 %v111
  %v193 = vpop.f32.mrb[0].mxu0
  %v194 = vadd.f32 %v40, %v193
  %v195 = vpop.f32.mrb[0].mxu0
  %v196 = vpop.f32.mrb[0].mxu0
  %v197 = vadd.f32 %v40, %v196
  %v198 = vpop.f32.mrb[0].mxu0
  %199 = vmatprep.mubr.bf16.mxu0 0
  %200 = vmatmul.mubr.bf16.gmra.mrb[0].mxu0 %v114
  %v201 = vpop.f32.mrb[0].mxu0
  %v202 = vadd.f32 %v40, %v201
  %v203 = vpop.f32.mrb[0].mxu0
  %v204 = vpop.f32.mrb[0].mxu0
  %v205 = vadd.f32 %v40, %v204
  %v206 = vpop.f32.mrb[0].mxu0
  %207 = vmatprep.mubr.bf16.mxu0 0
  %208 = vmatmul.mubr.bf16.gmra.mrb[0].mxu0 %v117
  %v209 = vpop.f32.mrb[0].mxu0
  %v210 = vadd.f32 %v40, %v209
  %v211 = vpop.f32.mrb[0].mxu0
  %v212 = vpop.f32.mrb[0].mxu0
  %v213 = vadd.f32 %v40, %v212
  %v214 = vpop.f32.mrb[0].mxu0
  %215 = vdwg.mxu0
  %v216 = vmax.f32 %v154, 0.0
  %v217 = vmax.f32 %v157, 0.0
  %v218 = vmax.f32 %v162, 0.0
  %v219 = vmax.f32 %v165, 0.0
  %v220 = vmax.f32 %v170, 0.0
  %v221 = vmax.f32 %v173, 0.0
  %v222 = vmax.f32 %v178, 0.0
  %v223 = vmax.f32 %v181, 0.0
  %v224 = vmax.f32 %v186, 0.0
  %v225 = vmax.f32 %v189, 0.0
  %v226 = vmax.f32 %v194, 0.0
  %v227 = vmax.f32 %v197, 0.0
  %v228 = vmax.f32 %v202, 0.0
  %v229 = vmax.f32 %v205, 0.0
  %v230 = vmax.f32 %v210, 0.0
  %v231 = vmax.f32 %v213, 0.0
  %v232 = vpack.c.bf16 %v217, %v216
  %v233 = vpack.c.bf16 %v219, %v218
  %v234 = vpack.c.bf16 %v221, %v220
  %v235 = vpack.c.bf16 %v223, %v222
  %v236 = vpack.c.bf16 %v225, %v224
  %v237 = vpack.c.bf16 %v227, %v226
  %v238 = vpack.c.bf16 %v229, %v228
  %v239 = vpack.c.bf16 %v231, %v230
  %v248 = vunpack.c.l.b16 %v232
  %v249 = vunpack.c.h.b16 %v232
  %v250 = vunpack.c.l.b16 %v233
  %v251 = vunpack.c.h.b16 %v233
  %v252 = vunpack.c.l.b16 %v234
  %v253 = vunpack.c.h.b16 %v234
  %v254 = vunpack.c.l.b16 %v235
  %v255 = vunpack.c.h.b16 %v235
  %v256 = vunpack.c.l.b16 %v236
  %v257 = vunpack.c.h.b16 %v236
  %v258 = vunpack.c.l.b16 %v237
  %v259 = vunpack.c.h.b16 %v237
  %v260 = vunpack.c.l.b16 %v238
  %v261 = vunpack.c.h.b16 %v238
  %v262 = vunpack.c.l.b16 %v239
  %v263 = vunpack.c.h.b16 %v239
  %v264 = vpack.c.b16 %v248, %v248
  %v265 = vpack.c.b16 %v249, %v249
  %v266 = vpack.c.b16 %v250, %v250
  %v267 = vpack.c.b16 %v251, %v251
  %v268 = vpack.c.b16 %v252, %v252
  %v269 = vpack.c.b16 %v253, %v253
  %v270 = vpack.c.b16 %v254, %v254
  %v271 = vpack.c.b16 %v255, %v255
  %v272 = vpack.c.b16 %v256, %v256
  %v273 = vpack.c.b16 %v257, %v257
  %v274 = vpack.c.b16 %v258, %v258
  %v275 = vpack.c.b16 %v259, %v259
  %v276 = vpack.c.b16 %v260, %v260
  %v277 = vpack.c.b16 %v261, %v261
  %v278 = vpack.c.b16 %v262, %v262
  %v279 = vpack.c.b16 %v263, %v263
  %vm296 = vcmask 125952
  %297 = vst.msk [vmem:[%s3] sm:$0xf] %vm296, %v264
  %298 = vst.msk [vmem:[%s3 + $0x4] sm:$0xf] %vm296, %v265
  %299 = vst.msk [vmem:[%s3 + $0x8] sm:$0xf] %vm296, %v266
  %300 = vst.msk [vmem:[%s3 + $0xc] sm:$0xf] %vm296, %v267
  %301 = vst.msk [vmem:[%s3 + $0x10] sm:$0xf] %vm296, %v268
  %302 = vst.msk [vmem:[%s3 + $0x14] sm:$0xf] %vm296, %v269
  %303 = vst.msk [vmem:[%s3 + $0x18] sm:$0xf] %vm296, %v270
  %304 = vst.msk [vmem:[%s3 + $0x1c] sm:$0xf] %vm296, %v271
  %305 = vst.msk [vmem:[%s3 + $0x20] sm:$0xf] %vm296, %v272
  %306 = vst.msk [vmem:[%s3 + $0x24] sm:$0xf] %vm296, %v273
  %307 = vst.msk [vmem:[%s3 + $0x28] sm:$0xf] %vm296, %v274
  %308 = vst.msk [vmem:[%s3 + $0x2c] sm:$0xf] %vm296, %v275
  %309 = vst.msk [vmem:[%s3 + $0x30] sm:$0xf] %vm296, %v276
  %310 = vst.msk [vmem:[%s3 + $0x34] sm:$0xf] %vm296, %v277
  %311 = vst.msk [vmem:[%s3 + $0x38] sm:$0xf] %vm296, %v278
  %312 = vst.msk [vmem:[%s3 + $0x3c] sm:$0xf] %vm296, %v279
  // Predicated region
  $region14: #{stem_block_forward.6} parent=0 // pred_check
    _
  $region15: #{stem_block_forward.6} parent=0 // pred_check_branch
    %314 = sbr.rel (0) target = $region17
  $region16: #{stem_block_forward.6} parent=0 // pred_region
    _
  $region17: #{stem_block_forward.6} parent=0 // pred_fallthru
    _
  // Predicated region
  $region18: #{stem_block_forward.6} parent=0 // pred_check
    _
  $region19: #{stem_block_forward.6} parent=0 // pred_check_branch
    %316 = sbr.rel (0) target = $region21
  $region20: #{stem_block_forward.6} parent=0 // pred_region
    _
  $region21: #{stem_block_forward.6} parent=0 // pred_fallthru
    _

// kernel: stem_block_forward.8
$region0: #{stem_block_forward.8}
  #allocation0 [shape = 'u32[]', space=smem, size = 0x4, offset = 0x4, fixed_abs, tag = 'smem constant byte address 0x4 - core index']
  #allocation1 [shape = 'u32[144,128]{1,0:T(1,128)}', space=vmem, size = 0x12000, scoped, tag = 'internal scratch']
  %s0 = inlined_call_operand.vmem [shape: bf16[2,8,4,64], index: 0, kind: input, shape index: {}]
  %s1 = inlined_call_operand.vmem [shape: bf16[2,4,4,32], index: 1, kind: output, shape index: {}]
  %s2 = sld [smem:[#allocation0]]
  $region37: #{stem_block_forward.8} parent=0
    _
  %s4 = ssub.s32 1, %s2
  %s5 = scalar_select 0, %s4, %s2
  loop: start=0, step=1, limit=4
  $region2: #{stem_block_forward.8} parent=0 // loop_pre_header
    _
  $region3: #{stem_block_forward.8} parent=0 // loop_header
    %s7 = sphi 0, %s11
    %p8 = scmp.ge.s32.totalorder %s7, 4
    %s14 = sphi 0, %s26
    %s15 = sphi 0, %s22
    %s16 = sphi 0, %s14
    %s17 = sphi 0, %s15
    %s18 = sphi 0, %s16
    %s19 = sphi 0, %s17
    %s29 = sphi 0, %s31
    %s32 = sphi 0, %s29
    %s33 = sphi 0, %s32
    %s49 = sphi 0, %s33
    %s57 = sphi 0, %s59
    %s60 = sphi 0, %s57
    %s61 = sphi 0, %s60
    %s77 = sphi 0, %s61
  $region4: #{stem_block_forward.8} parent=0 // loop_header_branch
    %10 = sbr.rel (%p8) target = $region8
  $region5: #{stem_block_forward.8} parent=0 // loop_body
    %s12 = ssub.s32 %s7, 1
    %s13 = ssub.s32 %s7, 2
    %s20 = sadd.s32 1, %s15
    %p21 = scmp.ge.s32.totalorder %s20, 1
    %s22 = scalar_select %p21, 0, %s20
    %s23 = sadd.s32 1, %s14
    %s24 = scalar_select %p21, %s23, %s14
    %p25 = scmp.ge.s32.totalorder %s24, 2
    %s26 = scalar_select %p25, 0, %s24
    %s27 = ssub.s32 %s14, %s26
    %p28 = scmp.eq.s32.totalorder %s27, 0
    %s30 = sadd.s32 %s29, 1
    %s31 = scalar_select %p28, %s29, %s30
    %p34 = pneg %p28
    %p35 = scmp.eq.s32.totalorder %s7, 1
    %p36 = por %p34, %p35
    %p37 = scmp.ne.s32.totalorder %s29, %s32
    %p38 = scmp.eq.s32.totalorder %s7, 0
    %p39 = por %p37, %p38
    %p40 = scmp.ne.s32.totalorder %s29, %s32
    %p41 = scmp.eq.s32.totalorder %s12, 1
    %p42 = por %p40, %p41
    %p43 = scmp.ne.s32.totalorder %s32, %s33
    %p44 = scmp.eq.s32.totalorder %s12, 0
    %p45 = por %p43, %p44
    %p46 = scmp.ne.s32.totalorder %s32, %s33
    %p47 = scmp.eq.s32.totalorder %s13, 1
    %p48 = por %p46, %p47
    %p50 = scmp.ne.s32.totalorder %s33, %s49
    %p51 = scmp.eq.s32.totalorder %s13, 0
    %p52 = por %p50, %p51
    %s53 = ssub.s32 %s14, %s26
    %s54 = ssub.s32 %s15, %s22
    %s55 = sor.u32 %s53, %s54
    %p56 = scmp.eq.s32.totalorder %s55, 0
    %s58 = sadd.s32 %s57, 1
    %s59 = scalar_select %p56, %s57, %s58
    %p62 = pneg %p56
    %p63 = scmp.eq.s32.totalorder %s7, 1
    %p64 = por %p62, %p63
    %p65 = scmp.ne.s32.totalorder %s57, %s60
    %p66 = scmp.eq.s32.totalorder %s7, 0
    %p67 = por %p65, %p66
    %p68 = scmp.ne.s32.totalorder %s57, %s60
    %p69 = scmp.eq.s32.totalorder %s12, 1
    %p70 = por %p68, %p69
    %p71 = scmp.ne.s32.totalorder %s60, %s61
    %p72 = scmp.eq.s32.totalorder %s12, 0
    %p73 = por %p71, %p72
    %p74 = scmp.ne.s32.totalorder %s60, %s61
    %p75 = scmp.eq.s32.totalorder %s13, 1
    %p76 = por %p74, %p75
    %p78 = scmp.ne.s32.totalorder %s61, %s77
    %p79 = scmp.eq.s32.totalorder %s13, 0
    %p80 = por %p78, %p79
    %p81 = scmp.le.s32.totalorder 1, %s7
    %p82 = scmp.lt.s32.totalorder %s7, 3
    %p83 = pnand %p81, %p82
    %p84 = pneg %p83
    // Predicated region
    $region9: #{stem_block_forward.8} parent=5 // pred_check
      _
    $region10: #{stem_block_forward.8} parent=5 // pred_check_branch
      %86 = sbr.rel (%p83) target = $region12
    $region11: #{stem_block_forward.8} parent=5 // pred_region
      %s87 = ssub.s32 %s7, 1
    $region12: #{stem_block_forward.8} parent=5 // pred_fallthru
      _
    %p88 = scmp.lt.s32.totalorder %s7, 2
    // Predicated region
    $region13: #{stem_block_forward.8} parent=5 // pred_check
      %p89 = pneg %p88
    $region14: #{stem_block_forward.8} parent=5 // pred_check_branch
      %91 = sbr.rel (%p89) target = $region16
    $region15: #{stem_block_forward.8} parent=5 // pred_region
      // Predicated region
      $region17: #{stem_block_forward.8} parent=15 // pred_check
        %p92 = pneg %p39
      $region18: #{stem_block_forward.8} parent=15 // pred_check_branch
        %94 = sbr.rel (%p92) target = $region20
      $region19: #{stem_block_forward.8} parent=15 // pred_region
        %p95 = scmp.lt.s32.totalorder %s14, 1
        %s96 = scalar_select %p95, %s14, 1
        %s97 = smul.addr %s96, 8
        %s98 = smul.addr %s97, 2
        %s99 = scalar_lea.vmem %s0, %s98
      $region20: #{stem_block_forward.8} parent=15 // pred_fallthru
        _
    $region16: #{stem_block_forward.8} parent=5 // pred_fallthru
      _
    %p100 = scmp.le.s32.totalorder 1, %s7
    %p101 = scmp.lt.s32.totalorder %s7, 3
    %p102 = pnand %p100, %p101
    %p103 = pneg %p102
    // Predicated region
    $region21: #{stem_block_forward.8} parent=5 // pred_check
      _
    $region22: #{stem_block_forward.8} parent=5 // pred_check_branch
      %105 = sbr.rel (%p102) target = $region24
    $region23: #{stem_block_forward.8} parent=5 // pred_region
      %s106 = ssub.s32 %s7, 1
      %p107 = scmp.lt.s32.totalorder %s16, 1
      %s108 = scalar_select %p107, %s16, 1
      %s109 = smul.addr %s108, 8
      %s110 = smul.addr %s109, 2
      %s111 = scalar_lea.vmem %s0, %s110
      %p112 = pneg %p45
      %p113 = pneg %p42
      %p114 = pneg %p73
      %p115 = pneg %p70
      %s116 = smul.u32 4, %s17
      %p117 = scmp.lt.s32.totalorder %s16, 1
      %s118 = scalar_select %p117, %s16, 1
      %p119 = scmp.lt.s32.totalorder %s116, 3
      %s120 = scalar_select %p119, %s116, 3
      %s121 = smul.addr %s118, 4
      %s122 = sadd.s32 %s120, %s121
      %s123 = smul.addr %s122, 2
      %s124 = scalar_lea.vmem %s1, %s123
      %p125 = scmp.lt.s32.totalorder %s16, 1
      %s126 = scalar_select %p125, %s16, 1
      %s127 = smul.addr %s126, 8
      %s128 = smul.addr %s127, 2
      %s129 = scalar_lea.vmem %s0, %s128
      %s130 = smul.u32 4, %s17
      %p131 = scmp.lt.s32.totalorder %s16, 1
      %s132 = scalar_select %p131, %s16, 1
      %p133 = scmp.lt.s32.totalorder %s130, 3
      %s134 = scalar_select %p133, %s130, 3
      %s135 = smul.addr %s132, 4
      %s136 = sadd.s32 %s134, %s135
      %s137 = smul.addr %s136, 2
      %s138 = scalar_lea.vmem %s1, %s137
      %s139 = smul.u32 4, %s17
      %s140 = smul.u32 %s17, 8
      %s141 = smul.addr %s140, 2
      %s142 = scalar_lea.vmem %s129, %s141
      %v143 = vld [vmem:[%s142] sm:$0x3]
      %s144 = sadd.s32 %s140, 1
      %s145 = smul.addr %s144, 2
      %s146 = scalar_lea.vmem %s129, %s145
      %v147 = vld [vmem:[%s146] sm:$0x3]
      %v148 = vmax.bf16 %v143, %v147
      %150 = vrot.lane.b32.xlu0 %v148, 96
      %v151 = vpop.permute.xlu0 %150
      %v153 = vmax.bf16 %v148, %v151
      %vm154 = vcmask 254976
      %155 = vst.msk [vmem:[%s138] sm:$0x3] %vm154, %v153
      %s156 = smul.u32 %s17, 4
      %s157 = sadd.s32 %s156, 1
      %s158 = smul.u32 %s157, 2
      %s159 = smul.addr %s158, 2
      %s160 = scalar_lea.vmem %s129, %s159
      %v161 = vld [vmem:[%s160] sm:$0x3]
      %s162 = sadd.s32 %s158, 1
      %s163 = smul.addr %s162, 2
      %s164 = scalar_lea.vmem %s129, %s163
      %v165 = vld [vmem:[%s164] sm:$0x3]
      %v166 = vmax.bf16 %v161, %v165
      %168 = vrot.lane.b32.xlu0 %v166, 96
      %v169 = vpop.permute.xlu0 %168
      %v171 = vmax.bf16 %v166, %v169
      %s172 = scalar_lea.vmem %s138, 2
      %173 = vst.msk [vmem:[%s172] sm:$0x3] %vm154, %v171
      %s174 = sadd.s32 %s156, 2
      %s175 = smul.u32 %s174, 2
      %s176 = smul.addr %s175, 2
      %s177 = scalar_lea.vmem %s129, %s176
      %v178 = vld [vmem:[%s177] sm:$0x3]
      %s179 = sadd.s32 %s175, 1
      %s180 = smul.addr %s179, 2
      %s181 = scalar_lea.vmem %s129, %s180
      %v182 = vld [vmem:[%s181] sm:$0x3]
      %v183 = vmax.bf16 %v178, %v182
      %185 = vrot.lane.b32.xlu0 %v183, 96
      %v186 = vpop.permute.xlu0 %185
      %v188 = vmax.bf16 %v183, %v186
      %s189 = scalar_lea.vmem %s138, 4
      %190 = vst.msk [vmem:[%s189] sm:$0x3] %vm154, %v188
      %s191 = sadd.s32 %s156, 3
      %s192 = smul.u32 %s191, 2
      %s193 = smul.addr %s192, 2
      %s194 = scalar_lea.vmem %s129, %s193
      %v195 = vld [vmem:[%s194] sm:$0x3]
      %s196 = sadd.s32 %s192, 1
      %s197 = smul.addr %s196, 2
      %s198 = scalar_lea.vmem %s129, %s197
      %v199 = vld [vmem:[%s198] sm:$0x3]
      %v200 = vmax.bf16 %v195, %v199
      %202 = vrot.lane.b32.xlu0 %v200, 96
      %v203 = vpop.permute.xlu0 %202
      %v205 = vmax.bf16 %v200, %v203
      %s206 = scalar_lea.vmem %s138, 6
      %207 = vst.msk [vmem:[%s206] sm:$0x3] %vm154, %v205
      %s208 = smul.u32 4, %s17
      %p209 = scmp.lt.s32.totalorder %s16, 1
      %s210 = scalar_select %p209, %s16, 1
      %p211 = scmp.lt.s32.totalorder %s208, 3
      %s212 = scalar_select %p211, %s208, 3
      %s213 = smul.addr %s210, 4
      %s214 = sadd.s32 %s212, %s213
      %s215 = smul.addr %s214, 2
      %s216 = scalar_lea.vmem %s1, %s215
      // Predicated region
      $region25: #{stem_block_forward.8} parent=23 // pred_check
        %p217 = pneg %p70
      $region26: #{stem_block_forward.8} parent=23 // pred_check_branch
        %219 = sbr.rel (%p217) target = $region28
      $region27: #{stem_block_forward.8} parent=23 // pred_region
        %s220 = smul.u32 4, %s17
      $region28: #{stem_block_forward.8} parent=23 // pred_fallthru
        _
    $region24: #{stem_block_forward.8} parent=5 // pred_fallthru
      _
    %p221 = scmp.le.s32.totalorder 2, %s7
    // Predicated region
    $region29: #{stem_block_forward.8} parent=5 // pred_check
      %p222 = pneg %p221
    $region30: #{stem_block_forward.8} parent=5 // pred_check_branch
      %224 = sbr.rel (%p222) target = $region32
    $region31: #{stem_block_forward.8} parent=5 // pred_region
      %s225 = ssub.s32 %s7, 2
      // Predicated region
      $region33: #{stem_block_forward.8} parent=31 // pred_check
        %p226 = pneg %p76
      $region34: #{stem_block_forward.8} parent=31 // pred_check_branch
        %228 = sbr.rel (%p226) target = $region36
      $region35: #{stem_block_forward.8} parent=31 // pred_region
        %s229 = smul.u32 4, %s19
        %p230 = scmp.lt.s32.totalorder %s18, 1
        %s231 = scalar_select %p230, %s18, 1
        %p232 = scmp.lt.s32.totalorder %s229, 3
        %s233 = scalar_select %p232, %s229, 3
        %s234 = smul.addr %s231, 4
        %s235 = sadd.s32 %s233, %s234
        %s236 = smul.addr %s235, 2
        %s237 = scalar_lea.vmem %s1, %s236
      $region36: #{stem_block_forward.8} parent=31 // pred_fallthru
        _
    $region32: #{stem_block_forward.8} parent=5 // pred_fallthru
      _
  $region6: #{stem_block_forward.8} parent=0 // loop_footer
    %s11 = sadd.s32 1, %s7
  $region7: #{stem_block_forward.8} parent=0 // loop_footer_branch
    %6 = sbr.rel target = $region3
  $region8: #{stem_block_forward.8} parent=0 // loop_exit
    _

// kernel: stem_block_forward.9
$region0: #{stem_block_forward.9}
  #allocation0 [shape = 'u32[]', space=smem, size = 0x4, offset = 0x4, fixed_abs, tag = 'smem constant byte address 0x4 - core index']
  #allocation1 [shape = 'u32[144,128]{1,0:T(1,128)}', space=vmem, size = 0x12000, scoped, tag = 'internal scratch']
  %s0 = inlined_call_operand.vmem [shape: bf16[32,32], index: 0, kind: input, shape index: {}]
  %s1 = inlined_call_operand.vmem [shape: bf16[32,32], index: 1, kind: input, shape index: {}]
  %s2 = inlined_call_operand.vmem [shape: bf16[32,32], index: 2, kind: input, shape index: {}]
  %s3 = inlined_call_operand.vmem [shape: bf16[32,32], index: 3, kind: input, shape index: {}]
  %s4 = inlined_call_operand.vmem [shape: f32[1,32], index: 4, kind: input, shape index: {}]
  %s5 = inlined_call_operand.hbm [shape: f32[32,32], index: 5, kind: output, shape index: {}]
  %s6 = sld [smem:[#allocation0]]
  $region30: #{stem_block_forward.9} parent=0
    _
  %s8 = ssub.s32 1, %s6
  %s9 = scalar_select 0, %s8, %s6
  $region1: #{stem_block_forward.9} parent=0
    #allocation2 [shape = 'u8[16384]{0}', space=vmem, size = 0x4000, scoped, tag = 'output window, operand 0, single buffered']
    #allocation3 [shape = 's32[1]{0}', space=sflag, size = 0x4, scoped, tag = 'scoped memory for stem_block_forward.9']
    %10 = vsyncpa [#allocation3], 0
    // Predicated region
    $region2: #{stem_block_forward.9} parent=1 // pred_check
      _
    $region3: #{stem_block_forward.9} parent=1 // pred_check_branch
      %12 = sbr.rel (0) target = $region5
    $region4: #{stem_block_forward.9} parent=1 // pred_region
      _
    $region5: #{stem_block_forward.9} parent=1 // pred_fallthru
      _
    // Predicated region
    $region6: #{stem_block_forward.9} parent=1 // pred_check
      _
    $region7: #{stem_block_forward.9} parent=1 // pred_check_branch
      %14 = sbr.rel (0) target = $region9
    $region8: #{stem_block_forward.9} parent=1 // pred_region
      _
    $region9: #{stem_block_forward.9} parent=1 // pred_fallthru
      _
    // Predicated region
    $region10: #{stem_block_forward.9} parent=1 // pred_check
      _
    $region11: #{stem_block_forward.9} parent=1 // pred_check_branch
      %16 = sbr.rel (0) target = $region13
    $region12: #{stem_block_forward.9} parent=1 // pred_region
      _
    $region13: #{stem_block_forward.9} parent=1 // pred_fallthru
      _
    // Predicated region
    $region14: #{stem_block_forward.9} parent=1 // pred_check
      _
    $region15: #{stem_block_forward.9} parent=1 // pred_check_branch
      %18 = sbr.rel (0) target = $region17
    $region16: #{stem_block_forward.9} parent=1 // pred_region
      _
    $region17: #{stem_block_forward.9} parent=1 // pred_fallthru
      _
    // Predicated region
    $region18: #{stem_block_forward.9} parent=1 // pred_check
      _
    $region19: #{stem_block_forward.9} parent=1 // pred_check_branch
      %20 = sbr.rel (0) target = $region21
    $region20: #{stem_block_forward.9} parent=1 // pred_region
      _
    $region21: #{stem_block_forward.9} parent=1 // pred_fallthru
      _
    %v22 = vld [vmem:[%s0] sm:$0xf]
    %v23 = vld [vmem:[%s0 + $0x4] sm:$0xf]
    %v24 = vld [vmem:[%s0 + $0x8] sm:$0xf]
    %v25 = vld [vmem:[%s0 + $0xc] sm:$0xf]
    %v26 = vld [vmem:[%s2] sm:$0xf]
    %v27 = vld [vmem:[%s2 + $0x4] sm:$0xf]
    %v28 = vld [vmem:[%s2 + $0x8] sm:$0xf]
    %v29 = vld [vmem:[%s2 + $0xc] sm:$0xf]
    %v30 = vld [vmem:[%s1] sm:$0xf]
    %v31 = vld [vmem:[%s1 + $0x4] sm:$0xf]
    %v32 = vld [vmem:[%s1 + $0x8] sm:$0xf]
    %v33 = vld [vmem:[%s1 + $0xc] sm:$0xf]
    %v34 = vld [vmem:[%s3] sm:$0xf]
    %v35 = vld [vmem:[%s3 + $0x4] sm:$0xf]
    %v36 = vld [vmem:[%s3 + $0x8] sm:$0xf]
    %v37 = vld [vmem:[%s3 + $0xc] sm:$0xf]
    %v42 = vunpack.c.l.b16 %v30
    %v43 = vunpack.c.l.b16 %v31
    %v44 = vunpack.c.l.b16 %v32
    %v45 = vunpack.c.l.b16 %v33
    %v46 = vpack.c.b16 %v43, %v42
    %v47 = vpack.c.b16 %v45, %v44
    %v52 = vunpack.c.l.b16 %v34
    %v53 = vunpack.c.l.b16 %v35
    %v54 = vunpack.c.l.b16 %v36
    %v55 = vunpack.c.l.b16 %v37
    %v56 = vpack.c.b16 %v53, %v52
    %v57 = vpack.c.b16 %v55, %v54
    %vm60 = vcmask 261120
    %v62 = vsel %vm60, %v46, 0
    %v65 = vsel %vm60, %v47, 0
    %67 = vmatprep.subr.bf16.mxu0 0
    %68 = vmatpush1.bf16.msra.mxu0 %v56
    %69 = vmatprep.subr.bf16.mxu0 0
    %70 = vmatpush1.bf16.msra.mxu0 %v57
    %71 = vmatprep.subr.bf16.mxu0 0
    %72 = vmatpush1.bf16.msra.mxu0 0
    %73 = vmatprep.subr.bf16.mxu0 0
    %74 = vmatpush1.bf16.msra.mxu0 0
    %75 = vmatprep.subr.bf16.mxu0 0
    %76 = vmatpush1.bf16.msra.mxu0 0
    %77 = vmatprep.subr.bf16.mxu0 0
    %78 = vmatpush1.bf16.msra.mxu0 0
    %79 = vmatprep.subr.bf16.mxu0 0
    %80 = vmatpush1.bf16.msra.mxu0 0
    %81 = vmatprep.subr.bf16.mxu0 0
    %82 = vmatpush1.bf16.msra.mxu0 0
    %83 = vmatprep.subr.bf16.mxu0 0
    %84 = vmatpush1.bf16.msra.mxu0 0
    %85 = vmatprep.subr.bf16.mxu0 0
    %86 = vmatpush1.bf16.msra.mxu0 0
    %87 = vmatprep.subr.bf16.mxu0 0
    %88 = vmatpush1.bf16.msra.mxu0 0
    %89 = vmatprep.subr.bf16.mxu0 0
    %90 = vmatpush1.bf16.msra.mxu0 0
    %91 = vmatprep.subr.bf16.mxu0 0
    %92 = vmatpush1.bf16.msra.mxu0 0
    %93 = vmatprep.subr.bf16.mxu0 0
    %94 = vmatpush1.bf16.msra.mxu0 0
    %95 = vmatprep.subr.bf16.mxu0 0
    %96 = vmatpush1.bf16.msra.mxu0 0
    %97 = vmatprep.subr.bf16.mxu0 0
    %98 = vmatpush1.bf16.msra.mxu0 0
    %99 = vmatprep.mubr.bf16.mxu0 0
    %100 = vmatmul.mubr.bf16.gmra.mrb[0].mxu0 %v62
    %v101 = vpop.f32.mrb[0].mxu0
    %v102 = vadd.f32 0.0, %v101
    %v103 = vpop.f32.mrb[0].mxu0
    %v104 = vpop.f32.mrb[0].mxu0
    %v105 = vadd.f32 0.0, %v104
    %v106 = vpop.f32.mrb[0].mxu0
    %107 = vmatprep.mubr.bf16.mxu0 0
    %108 = vmatmul.mubr.bf16.gmra.mrb[0].mxu0 %v65
    %v109 = vpop.f32.mrb[0].mxu0
    %v110 = vadd.f32 0.0, %v109
    %v111 = vpop.f32.mrb[0].mxu0
    %v112 = vpop.f32.mrb[0].mxu0
    %v113 = vadd.f32 0.0, %v112
    %v114 = vpop.f32.mrb[0].mxu0
    %115 = vdwg.mxu0
    %v120 = vunpack.c.l.b16 %v22
    %v121 = vunpack.c.l.b16 %v23
    %v122 = vunpack.c.l.b16 %v24
    %v123 = vunpack.c.l.b16 %v25
    %v124 = vpack.c.b16 %v121, %v120
    %v125 = vpack.c.b16 %v123, %v122
    %v130 = vunpack.c.l.b16 %v26
    %v131 = vunpack.c.l.b16 %v27
    %v132 = vunpack.c.l.b16 %v28
    %v133 = vunpack.c.l.b16 %v29
    %v134 = vpack.c.b16 %v131, %v130
    %v135 = vpack.c.b16 %v133, %v132
    %v139 = vsel %vm60, %v124, 0
    %v142 = vsel %vm60, %v125, 0
    %144 = vmatprep.subr.bf16.mxu0 0
    %145 = vmatpush1.bf16.msra.mxu0 %v134
    %146 = vmatprep.subr.bf16.mxu0 0
    %147 = vmatpush1.bf16.msra.mxu0 %v135
    %148 = vmatprep.subr.bf16.mxu0 0
    %149 = vmatpush1.bf16.msra.mxu0 0
    %150 = vmatprep.subr.bf16.mxu0 0
    %151 = vmatpush1.bf16.msra.mxu0 0
    %152 = vmatprep.subr.bf16.mxu0 0
    %153 = vmatpush1.bf16.msra.mxu0 0
    %154 = vmatprep.subr.bf16.mxu0 0
    %155 = vmatpush1.bf16.msra.mxu0 0
    %156 = vmatprep.subr.bf16.mxu0 0
    %157 = vmatpush1.bf16.msra.mxu0 0
    %158 = vmatprep.subr.bf16.mxu0 0
    %159 = vmatpush1.bf16.msra.mxu0 0
    %160 = vmatprep.subr.bf16.mxu0 0
    %161 = vmatpush1.bf16.msra.mxu0 0
    %162 = vmatprep.subr.bf16.mxu0 0
    %163 = vmatpush1.bf16.msra.mxu0 0
    %164 = vmatprep.subr.bf16.mxu0 0
    %165 = vmatpush1.bf16.msra.mxu0 0
    %166 = vmatprep.subr.bf16.mxu0 0
    %167 = vmatpush1.bf16.msra.mxu0 0
    %168 = vmatprep.subr.bf16.mxu0 0
    %169 = vmatpush1.bf16.msra.mxu0 0
    %170 = vmatprep.subr.bf16.mxu0 0
    %171 = vmatpush1.bf16.msra.mxu0 0
    %172 = vmatprep.subr.bf16.mxu0 0
    %173 = vmatpush1.bf16.msra.mxu0 0
    %174 = vmatprep.subr.bf16.mxu0 0
    %175 = vmatpush1.bf16.msra.mxu0 0
    %176 = vmatprep.mubr.bf16.mxu0 0
    %177 = vmatmul.mubr.bf16.gmra.mrb[0].mxu0 %v139
    %v178 = vpop.f32.mrb[0].mxu0
    %v179 = vadd.f32 %v102, %v178
    %v180 = vpop.f32.mrb[0].mxu0
    %v181 = vpop.f32.mrb[0].mxu0
    %v182 = vadd.f32 %v105, %v181
    %v183 = vpop.f32.mrb[0].mxu0
    %184 = vmatprep.mubr.bf16.mxu0 0
    %185 = vmatmul.mubr.bf16.gmra.mrb[0].mxu0 %v142
    %v186 = vpop.f32.mrb[0].mxu0
    %v187 = vadd.f32 %v110, %v186
    %v188 = vpop.f32.mrb[0].mxu0
    %v189 = vpop.f32.mrb[0].mxu0
    %v190 = vadd.f32 %v113, %v189
    %v191 = vpop.f32.mrb[0].mxu0
    %192 = vdwg.mxu0
    %v193 = vld [vmem:[%s4] sm:$0x1]
    %v195 = vlaneseq
    %v196 = vshrl.u32 %v195, 7
    %v197 = vsub.s32 0, %v196
    %v198 = vrot.slane %v193, %v197
    %v200 = vadd.f32 %v179, %v198
    %v201 = vadd.f32 %v182, %v198
    %v202 = vadd.f32 %v187, %v198
    %v203 = vadd.f32 %v190, %v198
    %v204 = vmax.f32 %v200, 0.0
    %v205 = vmax.f32 %v201, 0.0
    %v206 = vmax.f32 %v202, 0.0
    %v207 = vmax.f32 %v203, 0.0
    %208 = vst.msk [vmem:[#allocation2] sm:$0xff] %vm60, %v204
    %209 = vst.msk [vmem:[#allocation2 + $0x8] sm:$0xff] %vm60, %v205
    %210 = vst.msk [vmem:[#allocation2 + $0x10] sm:$0xff] %vm60, %v206
    %211 = vst.msk [vmem:[#allocation2 + $0x18] sm:$0xff] %vm60, %v207
    // Predicated region
    $region22: #{stem_block_forward.9} parent=1 // pred_check
      _
    $region23: #{stem_block_forward.9} parent=1 // pred_check_branch
      %213 = sbr.rel (0) target = $region25
    $region24: #{stem_block_forward.9} parent=1 // pred_region
      %s215 = ssub.s32 512, 512
      %216 = vsyncadd [#allocation3], %s215
      %s217 = sshll.u32 [#allocation2], 4
      %s218 = int_to_ptr.vmem [resolvable:$true] %s217
      %223 = dma.vmem_to_hbm [thread:$0]  %s218, 512, %s5, [#allocation3], 128, 128, 8
    $region25: #{stem_block_forward.9} parent=1 // pred_fallthru
      _
    // Predicated region
    $region26: #{stem_block_forward.9} parent=1 // pred_check
      _
    $region27: #{stem_block_forward.9} parent=1 // pred_check_branch
      %225 = sbr.rel (0) target = $region29
    $region28: #{stem_block_forward.9} parent=1 // pred_region
      %226 = dma.done [#allocation3], 512
    $region29: #{stem_block_forward.9} parent=1 // pred_fallthru
      _
    %227 = vsyncpa [#allocation3], 1

// kernel: stem_block_forward.5
$region0: #{stem_block_forward.5}
  #allocation0 [shape = 'u32[]', space=smem, size = 0x4, offset = 0x4, fixed_abs, tag = 'smem constant byte address 0x4 - core index']
  #allocation1 [shape = 'u32[144,128]{1,0:T(1,128)}', space=vmem, size = 0x12000, scoped, tag = 'internal scratch']
  %s0 = inlined_call_operand.vmem [shape: bf16[2,18,9,6], index: 0, kind: input, shape index: {}]
  %s1 = inlined_call_operand.vmem [shape: bf16[6,6,32], index: 1, kind: input, shape index: {}]
  %s2 = inlined_call_operand.vmem [shape: f32[1,32], index: 2, kind: input, shape index: {}]
  %s3 = inlined_call_operand.vmem [shape: bf16[2,8,8,32], index: 3, kind: output, shape index: {}]
  %s4 = sld [smem:[#allocation0]]
  $region45: #{stem_block_forward.5} parent=0
    _
  %s6 = ssub.s32 1, %s4
  %s7 = scalar_select 0, %s6, %s4
  loop: start=0, step=1, limit=4
  $region2: #{stem_block_forward.5} parent=0 // loop_pre_header
    _
  $region3: #{stem_block_forward.5} parent=0 // loop_header
    %s9 = sphi 0, %s13
    %p10 = scmp.ge.s32.totalorder %s9, 4
    %s16 = sphi 0, %s28
    %s17 = sphi 0, %s24
    %s18 = sphi 0, %s16
    %s19 = sphi 0, %s17
    %s20 = sphi 0, %s18
    %s21 = sphi 0, %s19
    %s31 = sphi 0, %s33
    %s34 = sphi 0, %s31
    %s35 = sphi 0, %s34
    %s51 = sphi 0, %s35
    %s55 = sphi 0, %s55
    %s57 = sphi 0, %s55
    %s58 = sphi 0, %s57
    %s72 = sphi 0, %s58
    %s76 = sphi 0, %s76
    %s78 = sphi 0, %s76
    %s79 = sphi 0, %s78
    %s93 = sphi 0, %s79
    %s101 = sphi 0, %s103
    %s104 = sphi 0, %s101
    %s105 = sphi 0, %s104
    %s121 = sphi 0, %s105
  $region4: #{stem_block_forward.5} parent=0 // loop_header_branch
    %12 = sbr.rel (%p10) target = $region8
  $region5: #{stem_block_forward.5} parent=0 // loop_body
    %s14 = ssub.s32 %s9, 1
    %s15 = ssub.s32 %s9, 2
    %s22 = sadd.s32 1, %s17
    %p23 = scmp.ge.s32.totalorder %s22, 1
    %s24 = scalar_select %p23, 0, %s22
    %s25 = sadd.s32 1, %s16
    %s26 = scalar_select %p23, %s25, %s16
    %p27 = scmp.ge.s32.totalorder %s26, 2
    %s28 = scalar_select %p27, 0, %s26
    %s29 = ssub.s32 %s16, %s28
    %p30 = scmp.eq.s32.totalorder %s29, 0
    %s32 = sadd.s32 %s31, 1
    %s33 = scalar_select %p30, %s31, %s32
    %p36 = pneg %p30
    %p37 = scmp.eq.s32.totalorder %s9, 1
    %p38 = por %p36, %p37
    %p39 = scmp.ne.s32.totalorder %s31, %s34
    %p40 = scmp.eq.s32.totalorder %s9, 0
    %p41 = por %p39, %p40
    %p42 = scmp.ne.s32.totalorder %s31, %s34
    %p43 = scmp.eq.s32.totalorder %s14, 1
    %p44 = por %p42, %p43
    %p45 = scmp.ne.s32.totalorder %s34, %s35
    %p46 = scmp.eq.s32.totalorder %s14, 0
    %p47 = por %p45, %p46
    %p48 = scmp.ne.s32.totalorder %s34, %s35
    %p49 = scmp.eq.s32.totalorder %s15, 1
    %p50 = por %p48, %p49
    %p52 = scmp.ne.s32.totalorder %s35, %s51
    %p53 = scmp.eq.s32.totalorder %s15, 0
    %p54 = por %p52, %p53
    %s56 = sadd.s32 %s55, 1
    %p59 = scmp.eq.s32.totalorder %s9, 1
    %p60 = scmp.ne.s32.totalorder %s55, %s57
    %p61 = scmp.eq.s32.totalorder %s9, 0
    %p62 = por %p60, %p61
    %p63 = scmp.ne.s32.totalorder %s55, %s57
    %p64 = scmp.eq.s32.totalorder %s14, 1
    %p65 = por %p63, %p64
    %p66 = scmp.ne.s32.totalorder %s57, %s58
    %p67 = scmp.eq.s32.totalorder %s14, 0
    %p68 = por %p66, %p67
    %p69 = scmp.ne.s32.totalorder %s57, %s58
    %p70 = scmp.eq.s32.totalorder %s15, 1
    %p71 = por %p69, %p70
    %p73 = scmp.ne.s32.totalorder %s58, %s72
    %p74 = scmp.eq.s32.totalorder %s15, 0
    %p75 = por %p73, %p74
    %s77 = sadd.s32 %s76, 1
    %p80 = scmp.eq.s32.totalorder %s9, 1
    %p81 = scmp.ne.s32.totalorder %s76, %s78
    %p82 = scmp.eq.s32.totalorder %s9, 0
    %p83 = por %p81, %p82
    %p84 = scmp.ne.s32.totalorder %s76, %s78
    %p85 = scmp.eq.s32.totalorder %s14, 1
    %p86 = por %p84, %p85
    %p87 = scmp.ne.s32.totalorder %s78, %s79
    %p88 = scmp.eq.s32.totalorder %s14, 0
    %p89 = por %p87, %p88
    %p90 = scmp.ne.s32.totalorder %s78, %s79
    %p91 = scmp.eq.s32.totalorder %s15, 1
    %p92 = por %p90, %p91
    %p94 = scmp.ne.s32.totalorder %s79, %s93
    %p95 = scmp.eq.s32.totalorder %s15, 0
    %p96 = por %p94, %p95
    %s97 = ssub.s32 %s16, %s28
    %s98 = ssub.s32 %s17, %s24
    %s99 = sor.u32 %s97, %s98
    %p100 = scmp.eq.s32.totalorder %s99, 0
    %s102 = sadd.s32 %s101, 1
    %s103 = scalar_select %p100, %s101, %s102
    %p106 = pneg %p100
    %p107 = scmp.eq.s32.totalorder %s9, 1
    %p108 = por %p106, %p107
    %p109 = scmp.ne.s32.totalorder %s101, %s104
    %p110 = scmp.eq.s32.totalorder %s9, 0
    %p111 = por %p109, %p110
    %p112 = scmp.ne.s32.totalorder %s101, %s104
    %p113 = scmp.eq.s32.totalorder %s14, 1
    %p114 = por %p112, %p113
    %p115 = scmp.ne.s32.totalorder %s104, %s105
    %p116 = scmp.eq.s32.totalorder %s14, 0
    %p117 = por %p115, %p116
    %p118 = scmp.ne.s32.totalorder %s104, %s105
    %p119 = scmp.eq.s32.totalorder %s15, 1
    %p120 = por %p118, %p119
    %p122 = scmp.ne.s32.totalorder %s105, %s121
    %p123 = scmp.eq.s32.totalorder %s15, 0
    %p124 = por %p122, %p123
    %p125 = scmp.le.s32.totalorder 1, %s9
    %p126 = scmp.lt.s32.totalorder %s9, 3
    %p127 = pnand %p125, %p126
    %p128 = pneg %p127
    // Predicated region
    $region9: #{stem_block_forward.5} parent=5 // pred_check
      _
    $region10: #{stem_block_forward.5} parent=5 // pred_check_branch
      %130 = sbr.rel (%p127) target = $region12
    $region11: #{stem_block_forward.5} parent=5 // pred_region
      %s131 = ssub.s32 %s9, 1
      // Predicated region
      $region13: #{stem_block_forward.5} parent=11 // pred_check
        %p132 = pneg %p68
      $region14: #{stem_block_forward.5} parent=11 // pred_check_branch
        %134 = sbr.rel (%p132) target = $region16
      $region15: #{stem_block_forward.5} parent=11 // pred_region
        _
      $region16: #{stem_block_forward.5} parent=11 // pred_fallthru
        _
      // Predicated region
      $region17: #{stem_block_forward.5} parent=11 // pred_check
        %p135 = pneg %p89
      $region18: #{stem_block_forward.5} parent=11 // pred_check_branch
        %137 = sbr.rel (%p135) target = $region20
      $region19: #{stem_block_forward.5} parent=11 // pred_region
        _
      $region20: #{stem_block_forward.5} parent=11 // pred_fallthru
        _
    $region12: #{stem_block_forward.5} parent=5 // pred_fallthru
      _
    %p138 = scmp.lt.s32.totalorder %s9, 2
    // Predicated region
    $region21: #{stem_block_forward.5} parent=5 // pred_check
      %p139 = pneg %p138
    $region22: #{stem_block_forward.5} parent=5 // pred_check_branch
      %141 = sbr.rel (%p139) target = $region24
    $region23: #{stem_block_forward.5} parent=5 // pred_region
      // Predicated region
      $region25: #{stem_block_forward.5} parent=23 // pred_check
        %p142 = pneg %p41
      $region26: #{stem_block_forward.5} parent=23 // pred_check_branch
        %144 = sbr.rel (%p142) target = $region28
      $region27: #{stem_block_forward.5} parent=23 // pred_region
        %p145 = scmp.lt.s32.totalorder %s16, 1
        %s146 = scalar_select %p145, %s16, 1
        %s147 = smul.addr %s146, 36
        %s148 = smul.addr %s147, 4
        %s149 = scalar_lea.vmem %s0, %s148
      $region28: #{stem_block_forward.5} parent=23 // pred_fallthru
        _
    $region24: #{stem_block_forward.5} parent=5 // pred_fallthru
      _
    %p150 = scmp.le.s32.totalorder 1, %s9
    %p151 = scmp.lt.s32.totalorder %s9, 3
    %p152 = pnand %p150, %p151
    %p153 = pneg %p152
    // Predicated region
    $region29: #{stem_block_forward.5} parent=5 // pred_check
      _
    $region30: #{stem_block_forward.5} parent=5 // pred_check_branch
      %155 = sbr.rel (%p152) target = $region32
    $region31: #{stem_block_forward.5} parent=5 // pred_region
      %s156 = ssub.s32 %s9, 1
      %p157 = scmp.lt.s32.totalorder %s18, 1
      %s158 = scalar_select %p157, %s18, 1
      %s159 = smul.addr %s158, 36
      %s160 = smul.addr %s159, 4
      %s161 = scalar_lea.vmem %s0, %s160
      %p162 = pneg %p47
      %p163 = pneg %p44
      %p164 = pneg %p68
      %p165 = pneg %p65
      %p166 = pneg %p89
      %p167 = pneg %p86
      %p168 = pneg %p117
      %p169 = pneg %p114
      %s170 = smul.u32 8, %s19
      %p171 = scmp.lt.s32.totalorder %s18, 1
      %s172 = scalar_select %p171, %s18, 1
      %p173 = scmp.lt.s32.totalorder %s170, 7
      %s174 = scalar_select %p173, %s170, 7
      %s175 = smul.addr %s172, 8
      %s176 = sadd.s32 %s174, %s175
      %s177 = smul.addr %s176, 4
      %s178 = scalar_lea.vmem %s3, %s177
      %p179 = scmp.lt.s32.totalorder %s18, 1
      %s180 = scalar_select %p179, %s18, 1
      %s181 = smul.addr %s180, 36
      %s182 = smul.addr %s181, 4
      %s183 = scalar_lea.vmem %s0, %s182
      %s184 = smul.u32 8, %s19
      %p185 = scmp.lt.s32.totalorder %s18, 1
      %s186 = scalar_select %p185, %s18, 1
      %p187 = scmp.lt.s32.totalorder %s184, 7
      %s188 = scalar_select %p187, %s184, 7
      %s189 = smul.addr %s186, 8
      %s190 = sadd.s32 %s188, %s189
      %s191 = smul.addr %s190, 4
      %s192 = scalar_lea.vmem %s3, %s191
      %s193 = smul.u32 8, %s19
      %s195 = smul.u32 %s19, 16
      %s196 = smul.u32 %s195, 2
      %s197 = smul.addr %s196, 4
      %s198 = scalar_lea.vmem %s183, %s197
      %v199 = vld [vmem:[%s198] sm:$0xf]
      %v200 = vld [vmem:[%s198 + $0x4] sm:$0x1]
      %v201 = vld [vmem:[%s1] sm:$0x7]
      %s202 = scalar_lea.vmem %s1, 4
      %v203 = vld [vmem:[%s202] sm:$0x7]
      %v206 = vunpack.c.l.b16 %v199
      %v207 = vunpack.c.l.b16 %v200
      %v208 = vpack.c.b16 %v207, %v206
      %v210 = vshrl.u32 %v208, 16
      %v212 = vshll.u32 %v208, 16
      %v214 = vrot.slane %v212, 1
      %v215 = vor.u32 %v210, %v214
      %vm216 = vcmask 48128
      %v218 = vsel %vm216, %v215, 0
      %vm220 = vcmask 1042432
      %v222 = vsel %vm220, %v203, 0
      %224 = vmatprep.subr.bf16.mxu0 0
      %225 = vmatpush1.bf16.msra.mxu0 %v222
      %226 = vmatprep.subr.bf16.mxu0 0
      %227 = vmatpush1.bf16.msra.mxu0 0
      %228 = vmatprep.subr.bf16.mxu0 0
      %229 = vmatpush1.bf16.msra.mxu0 0
      %230 = vmatprep.subr.bf16.mxu0 0
      %231 = vmatpush1.bf16.msra.mxu0 0
      %232 = vmatprep.subr.bf16.mxu0 0
      %233 = vmatpush1.bf16.msra.mxu0 0
      %234 = vmatprep.subr.bf16.mxu0 0
      %235 = vmatpush1.bf16.msra.mxu0 0
      %236 = vmatprep.subr.bf16.mxu0 0
      %237 = vmatpush1.bf16.msra.mxu0 0
      %238 = vmatprep.subr.bf16.mxu0 0
      %239 = vmatpush1.bf16.msra.mxu0 0
      %240 = vmatprep.subr.bf16.mxu0 0
      %241 = vmatpush1.bf16.msra.mxu0 0
      %242 = vmatprep.subr.bf16.mxu0 0
      %243 = vmatpush1.bf16.msra.mxu0 0
      %244 = vmatprep.subr.bf16.mxu0 0
      %245 = vmatpush1.bf16.msra.mxu0 0
      %246 = vmatprep.subr.bf16.mxu0 0
      %247 = vmatpush1.bf16.msra.mxu0 0
      %248 = vmatprep.subr.bf16.mxu0 0
      %249 = vmatpush1.bf16.msra.mxu0 0
      %250 = vmatprep.subr.bf16.mxu0 0
      %251 = vmatpush1.bf16.msra.mxu0 0
      %252 = vmatprep.subr.bf16.mxu0 0
      %253 = vmatpush1.bf16.msra.mxu0 0
      %254 = vmatprep.subr.bf16.mxu0 0
      %255 = vmatpush1.bf16.msra.mxu0 0
      %256 = vmatprep.mubr.bf16.mxu0 0
      %257 = vmatmul.mubr.bf16.gmra.mrb[0].mxu0 %v218
      %v258 = vpop.f32.mrb[0].mxu0
      %v259 = vadd.f32 0.0, %v258
      %v260 = vpop.f32.mrb[0].mxu0
      %v261 = vpop.f32.mrb[0].mxu0
      %v262 = vpop.f32.mrb[0].mxu0
      %263 = vdwg.mxu0
      %v265 = vsel %vm216, %v199, 0
      %v268 = vsel %vm220, %v201, 0
      %270 = vmatprep.subr.bf16.mxu0 0
      %271 = vmatpush1.bf16.msra.mxu0 %v268
      %272 = vmatprep.subr.bf16.mxu0 0
      %273 = vmatpush1.bf16.msra.mxu0 0
      %274 = vmatprep.subr.bf16.mxu0 0
      %275 = vmatpush1.bf16.msra.mxu0 0
      %276 = vmatprep.subr.bf16.mxu0 0
      %277 = vmatpush1.bf16.msra.mxu0 0
      %278 = vmatprep.subr.bf16.mxu0 0
      %279 = vmatpush1.bf16.msra.mxu0 0
      %280 = vmatprep.subr.bf16.mxu0 0
      %281 = vmatpush1.bf16.msra.mxu0 0
      %282 = vmatprep.subr.bf16.mxu0 0
      %283 = vmatpush1.bf16.msra.mxu0 0
      %284 = vmatprep.subr.bf16.mxu0 0
      %285 = vmatpush1.bf16.msra.mxu0 0
      %286 = vmatprep.subr.bf16.mxu0 0
      %287 = vmatpush1.bf16.msra.mxu0 0
      %288 = vmatprep.subr.bf16.mxu0 0
      %289 = vmatpush1.bf16.msra.mxu0 0
      %290 = vmatprep.subr.bf16.mxu0 0
      %291 = vmatpush1.bf16.msra.mxu0 0
      %292 = vmatprep.subr.bf16.mxu0 0
      %293 = vmatpush1.bf16.msra.mxu0 0
      %294 = vmatprep.subr.bf16.mxu0 0
      %295 = vmatpush1.bf16.msra.mxu0 0
      %296 = vmatprep.subr.bf16.mxu0 0
      %297 = vmatpush1.bf16.msra.mxu0 0
      %298 = vmatprep.subr.bf16.mxu0 0
      %299 = vmatpush1.bf16.msra.mxu0 0
      %300 = vmatprep.subr.bf16.mxu0 0
      %301 = vmatpush1.bf16.msra.mxu0 0
      %302 = vmatprep.mubr.bf16.mxu0 0
      %303 = vmatmul.mubr.bf16.gmra.mrb[0].mxu0 %v265
      %v304 = vpop.f32.mrb[0].mxu0
      %v305 = vadd.f32 %v259, %v304
      %v306 = vpop.f32.mrb[0].mxu0
      %v307 = vpop.f32.mrb[0].mxu0
      %v308 = vpop.f32.mrb[0].mxu0
      %309 = vdwg.mxu0
      %s310 = sadd.s32 %s195, 1
      %s311 = smul.u32 %s310, 2
      %s312 = smul.addr %s311, 4
      %s313 = scalar_lea.vmem %s183, %s312
      %v314 = vld [vmem:[%s313] sm:$0xf]
      %v315 = vld [vmem:[%s313 + $0x4] sm:$0x1]
      %s316 = scalar_lea.vmem %s1, 8
      %v317 = vld [vmem:[%s316] sm:$0x7]
      %v319 = vsel %vm216, %v314, 0
      %v322 = vsel %vm220, %v317, 0
      %324 = vmatprep.subr.bf16.mxu0 0
      %325 = vmatpush1.bf16.msra.mxu0 %v322
      %326 = vmatprep.subr.bf16.mxu0 0
      %327 = vmatpush1.bf16.msra.mxu0 0
      %328 = vmatprep.subr.bf16.mxu0 0
      %329 = vmatpush1.bf16.msra.mxu0 0
      %330 = vmatprep.subr.bf16.mxu0 0
      %331 = vmatpush1.bf16.msra.mxu0 0
      %332 = vmatprep.subr.bf16.mxu0 0
      %333 = vmatpush1.bf16.msra.mxu0 0
      %334 = vmatprep.subr.bf16.mxu0 0
      %335 = vmatpush1.bf16.msra.mxu0 0
      %336 = vmatprep.subr.bf16.mxu0 0
      %337 = vmatpush1.bf16.msra.mxu0 0
      %338 = vmatprep.subr.bf16.mxu0 0
      %339 = vmatpush1.bf16.msra.mxu0 0
      %340 = vmatprep.subr.bf16.mxu0 0
      %341 = vmatpush1.bf16.msra.mxu0 0
      %342 = vmatprep.subr.bf16.mxu0 0
      %343 = vmatpush1.bf16.msra.mxu0 0
      %344 = vmatprep.subr.bf16.mxu0 0
      %345 = vmatpush1.bf16.msra.mxu0 0
      %346 = vmatprep.subr.bf16.mxu0 0
      %347 = vmatpush1.bf16.msra.mxu0 0
      %348 = vmatprep.subr.bf16.mxu0 0
      %349 = vmatpush1.bf16.msra.mxu0 0
      %350 = vmatprep.subr.bf16.mxu0 0
      %351 = vmatpush1.bf16.msra.mxu0 0
      %352 = vmatprep.subr.bf16.mxu0 0
      %353 = vmatpush1.bf16.msra.mxu0 0
      %354 = vmatprep.subr.bf16.mxu0 0
      %355 = vmatpush1.bf16.msra.mxu0 0
      %356 = vmatprep.mubr.bf16.mxu0 0
      %357 = vmatmul.mubr.bf16.gmra.mrb[0].mxu0 %v319
      %v358 = vpop.f32.mrb[0].mxu0
      %v359 = vadd.f32 0.0, %v358
      %v360 = vpop.f32.mrb[0].mxu0
      %v361 = vpop.f32.mrb[0].mxu0
      %v362 = vpop.f32.mrb[0].mxu0
      %363 = vdwg.mxu0
      %v364 = vadd.f32 %v305, %v359
      %s365 = scalar_lea.vmem %s1, 12
      %v366 = vld [vmem:[%s365] sm:$0x7]
      %v369 = vunpack.c.l.b16 %v314
      %v370 = vunpack.c.l.b16 %v315
      %v371 = vpack.c.b16 %v370, %v369
      %v373 = vshrl.u32 %v371, 16
      %v375 = vshll.u32 %v371, 16
      %v377 = vrot.slane %v375, 1
      %v378 = vor.u32 %v373, %v377
      %v380 = vsel %vm216, %v378, 0
      %v383 = vsel %vm220, %v366, 0
      %385 = vmatprep.subr.bf16.mxu0 0
      %386 = vmatpush1.bf16.msra.mxu0 %v383
      %387 = vmatprep.subr.bf16.mxu0 0
      %388 = vmatpush1.bf16.msra.mxu0 0
      %389 = vmatprep.subr.bf16.mxu0 0
      %390 = vmatpush1.bf16.msra.mxu0 0
      %391 = vmatprep.subr.bf16.mxu0 0
      %392 = vmatpush1.bf16.msra.mxu0 0
      %393 = vmatprep.subr.bf16.mxu0 0
      %394 = vmatpush1.bf16.msra.mxu0 0
      %395 = vmatprep.subr.bf16.mxu0 0
      %396 = vmatpush1.bf16.msra.mxu0 0
      %397 = vmatprep.subr.bf16.mxu0 0
      %398 = vmatpush1.bf16.msra.mxu0 0
      %399 = vmatprep.subr.bf16.mxu0 0
      %400 = vmatpush1.bf16.msra.mxu0 0
      %401 = vmatprep.subr.bf16.mxu0 0
      %402 = vmatpush1.bf16.msra.mxu0 0
      %403 = vmatprep.subr.bf16.mxu0 0
      %404 = vmatpush1.bf16.msra.mxu0 0
      %405 = vmatprep.subr.bf16.mxu0 0
      %406 = vmatpush1.bf16.msra.mxu0 0
      %407 = vmatprep.subr.bf16.mxu0 0
      %408 = vmatpush1.bf16.msra.mxu0 0
      %409 = vmatprep.subr.bf16.mxu0 0
      %410 = vmatpush1.bf16.msra.mxu0 0
      %411 = vmatprep.subr.bf16.mxu0 0
      %412 = vmatpush1.bf16.msra.mxu0 0
      %413 = vmatprep.subr.bf16.mxu0 0
      %414 = vmatpush1.bf16.msra.mxu0 0
      %415 = vmatprep.subr.bf16.mxu0 0
      %416 = vmatpush1.bf16.msra.mxu0 0
      %417 = vmatprep.mubr.bf16.mxu0 0
      %418 = vmatmul.mubr.bf16.gmra.mrb[0].mxu0 %v380
      %v419 = vpop.f32.mrb[0].mxu0
      %v420 = vadd.f32 0.0, %v419
      %v421 = vpop.f32.mrb[0].mxu0
      %v422 = vpop.f32.mrb[0].mxu0
      %v423 = vpop.f32.mrb[0].mxu0
      %424 = vdwg.mxu0
      %v425 = vadd.f32 %v364, %v420
      %s426 = sadd.s32 %s195, 2
      %s427 = smul.u32 %s426, 2
      %s428 = smul.addr %s427, 4
      %s429 = scalar_lea.vmem %s183, %s428
      %v430 = vld [vmem:[%s429] sm:$0xf]
      %v431 = vld [vmem:[%s429 + $0x4] sm:$0x1]
      %s432 = scalar_lea.vmem %s1, 16
      %v433 = vld [vmem:[%s432] sm:$0x7]
      %v435 = vsel %vm216, %v430, 0
      %v438 = vsel %vm220, %v433, 0
      %440 = vmatprep.subr.bf16.mxu0 0
      %441 = vmatpush1.bf16.msra.mxu0 %v438
      %442 = vmatprep.subr.bf16.mxu0 0
      %443 = vmatpush1.bf16.msra.mxu0 0
      %444 = vmatprep.subr.bf16.mxu0 0
      %445 = vmatpush1.bf16.msra.mxu0 0
      %446 = vmatprep.subr.bf16.mxu0 0
      %447 = vmatpush1.bf16.msra.mxu0 0
      %448 = vmatprep.subr.bf16.mxu0 0
      %449 = vmatpush1.bf16.msra.mxu0 0
      %450 = vmatprep.subr.bf16.mxu0 0
      %451 = vmatpush1.bf16.msra.mxu0 0
      %452 = vmatprep.subr.bf16.mxu0 0
      %453 = vmatpush1.bf16.msra.mxu0 0
      %454 = vmatprep.subr.bf16.mxu0 0
      %455 = vmatpush1.bf16.msra.mxu0 0
      %456 = vmatprep.subr.bf16.mxu0 0
      %457 = vmatpush1.bf16.msra.mxu0 0
      %458 = vmatprep.subr.bf16.mxu0 0
      %459 = vmatpush1.bf16.msra.mxu0 0
      %460 = vmatprep.subr.bf16.mxu0 0
      %461 = vmatpush1.bf16.msra.mxu0 0
      %462 = vmatprep.subr.bf16.mxu0 0
      %463 = vmatpush1.bf16.msra.mxu0 0
      %464 = vmatprep.subr.bf16.mxu0 0
      %465 = vmatpush1.bf16.msra.mxu0 0
      %466 = vmatprep.subr.bf16.mxu0 0
      %467 = vmatpush1.bf16.msra.mxu0 0
      %468 = vmatprep.subr.bf16.mxu0 0
      %469 = vmatpush1.bf16.msra.mxu0 0
      %470 = vmatprep.subr.bf16.mxu0 0
      %471 = vmatpush1.bf16.msra.mxu0 0
      %472 = vmatprep.mubr.bf16.mxu0 0
      %473 = vmatmul.mubr.bf16.gmra.mrb[0].mxu0 %v435
      %v474 = vpop.f32.mrb[0].mxu0
      %v475 = vadd.f32 0.0, %v474
      %v476 = vpop.f32.mrb[0].mxu0
      %v477 = vpop.f32.mrb[0].mxu0
      %v478 = vpop.f32.mrb[0].mxu0
      %479 = vdwg.mxu0
      %v480 = vadd.f32 %v425, %v475
      %s481 = scalar_lea.vmem %s1, 20
      %v482 = vld [vmem:[%s481] sm:$0x7]
      %v485 = vunpack.c.l.b16 %v430
      %v486 = vunpack.c.l.b16 %v431
      %v487 = vpack.c.b16 %v486, %v485
      %v489 = vshrl.u32 %v487, 16
      %v491 = vshll.u32 %v487, 16
      %v493 = vrot.slane %v491, 1
      %v494 = vor.u32 %v489, %v493
      %v496 = vsel %vm216, %v494, 0
      %v499 = vsel %vm220, %v482, 0
      %501 = vmatprep.subr.bf16.mxu0 0
      %502 = vmatpush1.bf16.msra.mxu0 %v499
      %503 = vmatprep.subr.bf16.mxu0 0
      %504 = vmatpush1.bf16.msra.mxu0 0
      %505 = vmatprep.subr.bf16.mxu0 0
      %506 = vmatpush1.bf16.msra.mxu0 0
      %507 = vmatprep.subr.bf16.mxu0 0
      %508 = vmatpush1.bf16.msra.mxu0 0
      %509 = vmatprep.subr.bf16.mxu0 0
      %510 = vmatpush1.bf16.msra.mxu0 0
      %511 = vmatprep.subr.bf16.mxu0 0
      %512 = vmatpush1.bf16.msra.mxu0 0
      %513 = vmatprep.subr.bf16.mxu0 0
      %514 = vmatpush1.bf16.msra.mxu0 0
      %515 = vmatprep.subr.bf16.mxu0 0
      %516 = vmatpush1.bf16.msra.mxu0 0
      %517 = vmatprep.subr.bf16.mxu0 0
      %518 = vmatpush1.bf16.msra.mxu0 0
      %519 = vmatprep.subr.bf16.mxu0 0
      %520 = vmatpush1.bf16.msra.mxu0 0
      %521 = vmatprep.subr.bf16.mxu0 0
      %522 = vmatpush1.bf16.msra.mxu0 0
      %523 = vmatprep.subr.bf16.mxu0 0
      %524 = vmatpush1.bf16.msra.mxu0 0
      %525 = vmatprep.subr.bf16.mxu0 0
      %526 = vmatpush1.bf16.msra.mxu0 0
      %527 = vmatprep.subr.bf16.mxu0 0
      %528 = vmatpush1.bf16.msra.mxu0 0
      %529 = vmatprep.subr.bf16.mxu0 0
      %530 = vmatpush1.bf16.msra.mxu0 0
      %531 = vmatprep.subr.bf16.mxu0 0
      %532 = vmatpush1.bf16.msra.mxu0 0
      %533 = vmatprep.mubr.bf16.mxu0 0
      %534 = vmatmul.mubr.bf16.gmra.mrb[0].mxu0 %v496
      %v535 = vpop.f32.mrb[0].mxu0
      %v536 = vadd.f32 0.0, %v535
      %v537 = vpop.f32.mrb[0].mxu0
      %v538 = vpop.f32.mrb[0].mxu0
      %v539 = vpop.f32.mrb[0].mxu0
      %540 = vdwg.mxu0
      %v541 = vadd.f32 %v480, %v536
      %v542 = vld [vmem:[%s2] sm:$0x1]
      %v544 = vlaneseq
      %v545 = vshrl.u32 %v544, 7
      %v546 = vsub.s32 0, %v545
      %v547 = vrot.slane %v542, %v546
      %v549 = vadd.f32 %v541, %v547
      %v550 = vmax.f32 %v549, 0.0
      %v551 = vpack.c.bf16 %v550, %v550
      %vm552 = vcmask 257024
      %553 = vst.msk [vmem:[%s192] sm:$0xf] %vm552, %v551
      %s554 = smul.u32 %s19, 8
      %s555 = sadd.s32 %s554, 1
      %s556 = smul.u32 %s555, 2
      %s557 = smul.u32 %s556, 2
      %s558 = smul.addr %s557, 4
      %s559 = scalar_lea.vmem %s183, %s558
      %v560 = vld [vmem:[%s559] sm:$0xf]
      %v561 = vld [vmem:[%s559 + $0x4] sm:$0x1]
      %v562 = vld [vmem:[%s1] sm:$0x7]
      %v563 = vld [vmem:[%s202] sm:$0x7]
      %v566 = vunpack.c.l.b16 %v560
      %v567 = vunpack.c.l.b16 %v561
      %v568 = vpack.c.b16 %v567, %v566
      %v570 = vshrl.u32 %v568, 16
      %v572 = vshll.u32 %v568, 16
      %v574 = vrot.slane %v572, 1
      %v575 = vor.u32 %v570, %v574
      %v577 = vsel %vm216, %v575, 0
      %v580 = vsel %vm220, %v563, 0
      %582 = vmatprep.subr.bf16.mxu0 0
      %583 = vmatpush1.bf16.msra.mxu0 %v580
      %584 = vmatprep.subr.bf16.mxu0 0
      %585 = vmatpush1.bf16.msra.mxu0 0
      %586 = vmatprep.subr.bf16.mxu0 0
      %587 = vmatpush1.bf16.msra.mxu0 0
      %588 = vmatprep.subr.bf16.mxu0 0
      %589 = vmatpush1.bf16.msra.mxu0 0
      %590 = vmatprep.subr.bf16.mxu0 0
      %591 = vmatpush1.bf16.msra.mxu0 0
      %592 = vmatprep.subr.bf16.mxu0 0
      %593 = vmatpush1.bf16.msra.mxu0 0
      %594 = vmatprep.subr.bf16.mxu0 0
      %595 = vmatpush1.bf16.msra.mxu0 0
      %596 = vmatprep.subr.bf16.mxu0 0
      %597 = vmatpush1.bf16.msra.mxu0 0
      %598 = vmatprep.subr.bf16.mxu0 0
      %599 = vmatpush1.bf16.msra.mxu0 0
      %600 = vmatprep.subr.bf16.mxu0 0
      %601 = vmatpush1.bf16.msra.mxu0 0
      %602 = vmatprep.subr.bf16.mxu0 0
      %603 = vmatpush1.bf16.msra.mxu0 0
      %604 = vmatprep.subr.bf16.mxu0 0
      %605 = vmatpush1.bf16.msra.mxu0 0
      %606 = vmatprep.subr.bf16.mxu0 0
      %607 = vmatpush1.bf16.msra.mxu0 0
      %608 = vmatprep.subr.bf16.mxu0 0
      %609 = vmatpush1.bf16.msra.mxu0 0
      %610 = vmatprep.subr.bf16.mxu0 0
      %611 = vmatpush1.bf16.msra.mxu0 0
      %612 = vmatprep.subr.bf16.mxu0 0
      %613 = vmatpush1.bf16.msra.mxu0 0
      %614 = vmatprep.mubr.bf16.mxu0 0
      %615 = vmatmul.mubr.bf16.gmra.mrb[0].mxu0 %v577
      %v616 = vpop.f32.mrb[0].mxu0
      %v617 = vadd.f32 0.0, %v616
      %v618 = vpop.f32.mrb[0].mxu0
      %v619 = vpop.f32.mrb[0].mxu0
      %v620 = vpop.f32.mrb[0].mxu0
      %621 = vdwg.mxu0
      %v623 = vsel %vm216, %v560, 0
      %v626 = vsel %vm220, %v562, 0
      %628 = vmatprep.subr.bf16.mxu0 0
      %629 = vmatpush1.bf16.msra.mxu0 %v626
      %630 = vmatprep.subr.bf16.mxu0 0
      %631 = vmatpush1.bf16.msra.mxu0 0
      %632 = vmatprep.subr.bf16.mxu0 0
      %633 = vmatpush1.bf16.msra.mxu0 0
      %634 = vmatprep.subr.bf16.mxu0 0
      %635 = vmatpush1.bf16.msra.mxu0 0
      %636 = vmatprep.subr.bf16.mxu0 0
      %637 = vmatpush1.bf16.msra.mxu0 0
      %638 = vmatprep.subr.bf16.mxu0 0
      %639 = vmatpush1.bf16.msra.mxu0 0
      %640 = vmatprep.subr.bf16.mxu0 0
      %641 = vmatpush1.bf16.msra.mxu0 0
      %642 = vmatprep.subr.bf16.mxu0 0
      %643 = vmatpush1.bf16.msra.mxu0 0
      %644 = vmatprep.subr.bf16.mxu0 0
      %645 = vmatpush1.bf16.msra.mxu0 0
      %646 = vmatprep.subr.bf16.mxu0 0
      %647 = vmatpush1.bf16.msra.mxu0 0
      %648 = vmatprep.subr.bf16.mxu0 0
      %649 = vmatpush1.bf16.msra.mxu0 0
      %650 = vmatprep.subr.bf16.mxu0 0
      %651 = vmatpush1.bf16.msra.mxu0 0
      %652 = vmatprep.subr.bf16.mxu0 0
      %653 = vmatpush1.bf16.msra.mxu0 0
      %654 = vmatprep.subr.bf16.mxu0 0
      %655 = vmatpush1.bf16.msra.mxu0 0
      %656 = vmatprep.subr.bf16.mxu0 0
      %657 = vmatpush1.bf16.msra.mxu0 0
      %658 = vmatprep.subr.bf16.mxu0 0
      %659 = vmatpush1.bf16.msra.mxu0 0
      %660 = vmatprep.mubr.bf16.mxu0 0
      %661 = vmatmul.mubr.bf16.gmra.mrb[0].mxu0 %v623
      %v662 = vpop.f32.mrb[0].mxu0
      %v663 = vadd.f32 %v617, %v662
      %v664 = vpop.f32.mrb[0].mxu0
      %v665 = vpop.f32.mrb[0].mxu0
      %v666 = vpop.f32.mrb[0].mxu0
      %667 = vdwg.mxu0
      %s668 = sadd.s32 %s556, 1
      %s669 = smul.u32 %s668, 2
      %s670 = smul.addr %s669, 4
      %s671 = scalar_lea.vmem %s183, %s670
      %v672 = vld [vmem:[%s671] sm:$0xf]
      %v673 = vld [vmem:[%s671 + $0x4] sm:$0x1]
      %v674 = vld [vmem:[%s316] sm:$0x7]
      %v676 = vsel %vm216, %v672, 0
      %v679 = vsel %vm220, %v674, 0
      %681 = vmatprep.subr.bf16.mxu0 0
      %682 = vmatpush1.bf16.msra.mxu0 %v679
      %683 = vmatprep.subr.bf16.mxu0 0
      %684 = vmatpush1.bf16.msra.mxu0 0
      %685 = vmatprep.subr.bf16.mxu0 0
      %686 = vmatpush1.bf16.msra.mxu0 0
      %687 = vmatprep.subr.bf16.mxu0 0
      %688 = vmatpush1.bf16.msra.mxu0 0
      %689 = vmatprep.subr.bf16.mxu0 0
      %690 = vmatpush1.bf16.msra.mxu0 0
      %691 = vmatprep.subr.bf16.mxu0 0
      %692 = vmatpush1.bf16.msra.mxu0 0
      %693 = vmatprep.subr.bf16.mxu0 0
      %694 = vmatpush1.bf16.msra.mxu0 0
      %695 = vmatprep.subr.bf16.mxu0 0
      %696 = vmatpush1.bf16.msra.mxu0 0
      %697 = vmatprep.subr.bf16.mxu0 0
      %698 = vmatpush1.bf16.msra.mxu0 0
      %699 = vmatprep.subr.bf16.mxu0 0
      %700 = vmatpush1.bf16.msra.mxu0 0
      %701 = vmatprep.subr.bf16.mxu0 0
      %702 = vmatpush1.bf16.msra.mxu0 0
      %703 = vmatprep.subr.bf16.mxu0 0
      %704 = vmatpush1.bf16.msra.mxu0 0
      %705 = vmatprep.subr.bf16.mxu0 0
      %706 = vmatpush1.bf16.msra.mxu0 0
      %707 = vmatprep.subr.bf16.mxu0 0
      %708 = vmatpush1.bf16.msra.mxu0 0
      %709 = vmatprep.subr.bf16.mxu0 0
      %710 = vmatpush1.bf16.msra.mxu0 0
      %711 = vmatprep.subr.bf16.mxu0 0
      %712 = vmatpush1.bf16.msra.mxu0 0
      %713 = vmatprep.mubr.bf16.mxu0 0
      %714 = vmatmul.mubr.bf16.gmra.mrb[0].mxu0 %v676
      %v715 = vpop.f32.mrb[0].mxu0
      %v716 = vadd.f32 0.0, %v715
      %v717 = vpop.f32.mrb[0].mxu0
      %v718 = vpop.f32.mrb[0].mxu0
      %v719 = vpop.f32.mrb[0].mxu0
      %720 = vdwg.mxu0
      %v721 = vadd.f32 %v663, %v716
      %v722 = vld [vmem:[%s365] sm:$0x7]
      %v725 = vunpack.c.l.b16 %v672
      %v726 = vunpack.c.l.b16 %v673
      %v727 = vpack.c.b16 %v726, %v725
      %v729 = vshrl.u32 %v727, 16
      %v731 = vshll.u32 %v727, 16
      %v733 = vrot.slane %v731, 1
      %v734 = vor.u32 %v729, %v733
      %v736 = vsel %vm216, %v734, 0
      %v739 = vsel %vm220, %v722, 0
      %741 = vmatprep.subr.bf16.mxu0 0
      %742 = vmatpush1.bf16.msra.mxu0 %v739
      %743 = vmatprep.subr.bf16.mxu0 0
      %744 = vmatpush1.bf16.msra.mxu0 0
      %745 = vmatprep.subr.bf16.mxu0 0
      %746 = vmatpush1.bf16.msra.mxu0 0
      %747 = vmatprep.subr.bf16.mxu0 0
      %748 = vmatpush1.bf16.msra.mxu0 0
      %749 = vmatprep.subr.bf16.mxu0 0
      %750 = vmatpush1.bf16.msra.mxu0 0
      %751 = vmatprep.subr.bf16.mxu0 0
      %752 = vmatpush1.bf16.msra.mxu0 0
      %753 = vmatprep.subr.bf16.mxu0 0
      %754 = vmatpush1.bf16.msra.mxu0 0
      %755 = vmatprep.subr.bf16.mxu0 0
      %756 = vmatpush1.bf16.msra.mxu0 0
      %757 = vmatprep.subr.bf16.mxu0 0
      %758 = vmatpush1.bf16.msra.mxu0 0
      %759 = vmatprep.subr.bf16.mxu0 0
      %760 = vmatpush1.bf16.msra.mxu0 0
      %761 = vmatprep.subr.bf16.mxu0 0
      %762 = vmatpush1.bf16.msra.mxu0 0
      %763 = vmatprep.subr.bf16.mxu0 0
      %764 = vmatpush1.bf16.msra.mxu0 0
      %765 = vmatprep.subr.bf16.mxu0 0
      %766 = vmatpush1.bf16.msra.mxu0 0
      %767 = vmatprep.subr.bf16.mxu0 0
      %768 = vmatpush1.bf16.msra.mxu0 0
      %769 = vmatprep.subr.bf16.mxu0 0
      %770 = vmatpush1.bf16.msra.mxu0 0
      %771 = vmatprep.subr.bf16.mxu0 0
      %772 = vmatpush1.bf16.msra.mxu0 0
      %773 = vmatprep.mubr.bf16.mxu0 0
      %774 = vmatmul.mubr.bf16.gmra.mrb[0].mxu0 %v736
      %v775 = vpop.f32.mrb[0].mxu0
      %v776 = vadd.f32 0.0, %v775
      %v777 = vpop.f32.mrb[0].mxu0
      %v778 = vpop.f32.mrb[0].mxu0
      %v779 = vpop.f32.mrb[0].mxu0
      %780 = vdwg.mxu0
      %v781 = vadd.f32 %v721, %v776
      %s782 = sadd.s32 %s556, 2
      %s783 = smul.u32 %s782, 2
      %s784 = smul.addr %s783, 4
      %s785 = scalar_lea.vmem %s183, %s784
      %v786 = vld [vmem:[%s785] sm:$0xf]
      %v787 = vld [vmem:[%s785 + $0x4] sm:$0x1]
      %v788 = vld [vmem:[%s432] sm:$0x7]
      %v790 = vsel %vm216, %v786, 0
      %v793 = vsel %vm220, %v788, 0
      %795 = vmatprep.subr.bf16.mxu0 0
      %796 = vmatpush1.bf16.msra.mxu0 %v793
      %797 = vmatprep.subr.bf16.mxu0 0
      %798 = vmatpush1.bf16.msra.mxu0 0
      %799 = vmatprep.subr.bf16.mxu0 0
      %800 = vmatpush1.bf16.msra.mxu0 0
      %801 = vmatprep.subr.bf16.mxu0 0
      %802 = vmatpush1.bf16.msra.mxu0 0
      %803 = vmatprep.subr.bf16.mxu0 0
      %804 = vmatpush1.bf16.msra.mxu0 0
      %805 = vmatprep.subr.bf16.mxu0 0
      %806 = vmatpush1.bf16.msra.mxu0 0
      %807 = vmatprep.subr.bf16.mxu0 0
      %808 = vmatpush1.bf16.msra.mxu0 0
      %809 = vmatprep.subr.bf16.mxu0 0
      %810 = vmatpush1.bf16.msra.mxu0 0
      %811 = vmatprep.subr.bf16.mxu0 0
      %812 = vmatpush1.bf16.msra.mxu0 0
      %813 = vmatprep.subr.bf16.mxu0 0
      %814 = vmatpush1.bf16.msra.mxu0 0
      %815 = vmatprep.subr.bf16.mxu0 0
      %816 = vmatpush1.bf16.msra.mxu0 0
      %817 = vmatprep.subr.bf16.mxu0 0
      %818 = vmatpush1.bf16.msra.mxu0 0
      %819 = vmatprep.subr.bf16.mxu0 0
      %820 = vmatpush1.bf16.msra.mxu0 0
      %821 = vmatprep.subr.bf16.mxu0 0
      %822 = vmatpush1.bf16.msra.mxu0 0
      %823 = vmatprep.subr.bf16.mxu0 0
      %824 = vmatpush1.bf16.msra.mxu0 0
      %825 = vmatprep.subr.bf16.mxu0 0
      %826 = vmatpush1.bf16.msra.mxu0 0
      %827 = vmatprep.mubr.bf16.mxu0 0
      %828 = vmatmul.mubr.bf16.gmra.mrb[0].mxu0 %v790
      %v829 = vpop.f32.mrb[0].mxu0
      %v830 = vadd.f32 0.0, %v829
      %v831 = vpop.f32.mrb[0].mxu0
      %v832 = vpop.f32.mrb[0].mxu0
      %v833 = vpop.f32.mrb[0].mxu0
      %834 = vdwg.mxu0
      %v835 = vadd.f32 %v781, %v830
      %v836 = vld [vmem:[%s481] sm:$0x7]
      %v839 = vunpack.c.l.b16 %v786
      %v840 = vunpack.c.l.b16 %v787
      %v841 = vpack.c.b16 %v840, %v839
      %v843 = vshrl.u32 %v841, 16
      %v845 = vshll.u32 %v841, 16
      %v847 = vrot.slane %v845, 1
      %v848 = vor.u32 %v843, %v847
      %v850 = vsel %vm216, %v848, 0
      %v853 = vsel %vm220, %v836, 0
      %855 = vmatprep.subr.bf16.mxu0 0
      %856 = vmatpush1.bf16.msra.mxu0 %v853
      %857 = vmatprep.subr.bf16.mxu0 0
      %858 = vmatpush1.bf16.msra.mxu0 0
      %859 = vmatprep.subr.bf16.mxu0 0
      %860 = vmatpush1.bf16.msra.mxu0 0
      %861 = vmatprep.subr.bf16.mxu0 0
      %862 = vmatpush1.bf16.msra.mxu0 0
      %863 = vmatprep.subr.bf16.mxu0 0
      %864 = vmatpush1.bf16.msra.mxu0 0
      %865 = vmatprep.subr.bf16.mxu0 0
      %866 = vmatpush1.bf16.msra.mxu0 0
      %867 = vmatprep.subr.bf16.mxu0 0
      %868 = vmatpush1.bf16.msra.mxu0 0
      %869 = vmatprep.subr.bf16.mxu0 0
      %870 = vmatpush1.bf16.msra.mxu0 0
      %871 = vmatprep.subr.bf16.mxu0 0
      %872 = vmatpush1.bf16.msra.mxu0 0
      %873 = vmatprep.subr.bf16.mxu0 0
      %874 = vmatpush1.bf16.msra.mxu0 0
      %875 = vmatprep.subr.bf16.mxu0 0
      %876 = vmatpush1.bf16.msra.mxu0 0
      %877 = vmatprep.subr.bf16.mxu0 0
      %878 = vmatpush1.bf16.msra.mxu0 0
      %879 = vmatprep.subr.bf16.mxu0 0
      %880 = vmatpush1.bf16.msra.mxu0 0
      %881 = vmatprep.subr.bf16.mxu0 0
      %882 = vmatpush1.bf16.msra.mxu0 0
      %883 = vmatprep.subr.bf16.mxu0 0
      %884 = vmatpush1.bf16.msra.mxu0 0
      %885 = vmatprep.subr.bf16.mxu0 0
      %886 = vmatpush1.bf16.msra.mxu0 0
      %887 = vmatprep.mubr.bf16.mxu0 0
      %888 = vmatmul.mubr.bf16.gmra.mrb[0].mxu0 %v850
      %v889 = vpop.f32.mrb[0].mxu0
      %v890 = vadd.f32 0.0, %v889
      %v891 = vpop.f32.mrb[0].mxu0
      %v892 = vpop.f32.mrb[0].mxu0
      %v893 = vpop.f32.mrb[0].mxu0
      %894 = vdwg.mxu0
      %v895 = vadd.f32 %v835, %v890
      %v896 = vld [vmem:[%s2] sm:$0x1]
      %v898 = vlaneseq
      %v899 = vshrl.u32 %v898, 7
      %v900 = vsub.s32 0, %v899
      %v901 = vrot.slane %v896, %v900
      %v903 = vadd.f32 %v895, %v901
      %v904 = vmax.f32 %v903, 0.0
      %v905 = vpack.c.bf16 %v904, %v904
      %s906 = scalar_lea.vmem %s192, 4
      %907 = vst.msk [vmem:[%s906] sm:$0xf] %vm552, %v905
      %s908 = sadd.s32 %s554, 2
      %s909 = smul.u32 %s908, 2
      %s910 = smul.u32 %s909, 2
      %s911 = smul.addr %s910, 4
      %s912 = scalar_lea.vmem %s183, %s911
      %v913 = vld [vmem:[%s912] sm:$0xf]
      %v914 = vld [vmem:[%s912 + $0x4] sm:$0x1]
      %v915 = vld [vmem:[%s1] sm:$0x7]
      %v916 = vld [vmem:[%s202] sm:$0x7]
      %v919 = vunpack.c.l.b16 %v913
      %v920 = vunpack.c.l.b16 %v914
      %v921 = vpack.c.b16 %v920, %v919
      %v923 = vshrl.u32 %v921, 16
      %v925 = vshll.u32 %v921, 16
      %v927 = vrot.slane %v925, 1
      %v928 = vor.u32 %v923, %v927
      %v930 = vsel %vm216, %v928, 0
      %v933 = vsel %vm220, %v916, 0
      %935 = vmatprep.subr.bf16.mxu0 0
      %936 = vmatpush1.bf16.msra.mxu0 %v933
      %937 = vmatprep.subr.bf16.mxu0 0
      %938 = vmatpush1.bf16.msra.mxu0 0
      %939 = vmatprep.subr.bf16.mxu0 0
      %940 = vmatpush1.bf16.msra.mxu0 0
      %941 = vmatprep.subr.bf16.mxu0 0
      %942 = vmatpush1.bf16.msra.mxu0 0
      %943 = vmatprep.subr.bf16.mxu0 0
      %944 = vmatpush1.bf16.msra.mxu0 0
      %945 = vmatprep.subr.bf16.mxu0 0
      %946 = vmatpush1.bf16.msra.mxu0 0
      %947 = vmatprep.subr.bf16.mxu0 0
      %948 = vmatpush1.bf16.msra.mxu0 0
      %949 = vmatprep.subr.bf16.mxu0 0
      %950 = vmatpush1.bf16.msra.mxu0 0
      %951 = vmatprep.subr.bf16.mxu0 0
      %952 = vmatpush1.bf16.msra.mxu0 0
      %953 = vmatprep.subr.bf16.mxu0 0
      %954 = vmatpush1.bf16.msra.mxu0 0
      %955 = vmatprep.subr.bf16.mxu0 0
      %956 = vmatpush1.bf16.msra.mxu0 0
      %957 = vmatprep.subr.bf16.mxu0 0
      %958 = vmatpush1.bf16.msra.mxu0 0
      %959 = vmatprep.subr.bf16.mxu0 0
      %960 = vmatpush1.bf16.msra.mxu0 0
      %961 = vmatprep.subr.bf16.mxu0 0
      %962 = vmatpush1.bf16.msra.mxu0 0
      %963 = vmatprep.subr.bf16.mxu0 0
      %964 = vmatpush1.bf16.msra.mxu0 0
      %965 = vmatprep.subr.bf16.mxu0 0
      %966 = vmatpush1.bf16.msra.mxu0 0
      %967 = vmatprep.mubr.bf16.mxu0 0
      %968 = vmatmul.mubr.bf16.gmra.mrb[0].mxu0 %v930
      %v969 = vpop.f32.mrb[0].mxu0
      %v970 = vadd.f32 0.0, %v969
      %v971 = vpop.f32.mrb[0].mxu0
      %v972 = vpop.f32.mrb[0].mxu0
      %v973 = vpop.f32.mrb[0].mxu0
      %974 = vdwg.mxu0
      %v976 = vsel %vm216, %v913, 0
      %v979 = vsel %vm220, %v915, 0
      %981 = vmatprep.subr.bf16.mxu0 0
      %982 = vmatpush1.bf16.msra.mxu0 %v979
      %983 = vmatprep.subr.bf16.mxu0 0
      %984 = vmatpush1.bf16.msra.mxu0 0
      %985 = vmatprep.subr.bf16.mxu0 0
      %986 = vmatpush1.bf16.msra.mxu0 0
      %987 = vmatprep.subr.bf16.mxu0 0
      %988 = vmatpush1.bf16.msra.mxu0 0
      %989 = vmatprep.subr.bf16.mxu0 0
      %990 = vmatpush1.bf16.msra.mxu0 0
      %991 = vmatprep.subr.bf16.mxu0 0
      %992 = vmatpush1.bf16.msra.mxu0 0
      %993 = vmatprep.subr.bf16.mxu0 0
      %994 = vmatpush1.bf16.msra.mxu0 0
      %995 = vmatprep.subr.bf16.mxu0 0
      %996 = vmatpush1.bf16.msra.mxu0 0
      %997 = vmatprep.subr.bf16.mxu0 0
      %998 = vmatpush1.bf16.msra.mxu0 0
      %999 = vmatprep.subr.bf16.mxu0 0
      %1000 = vmatpush1.bf16.msra.mxu0 0
      %1001 = vmatprep.subr.bf16.mxu0 0
      %1002 = vmatpush1.bf16.msra.mxu0 0
      %1003 = vmatprep.subr.bf16.mxu0 0
      %1004 = vmatpush1.bf16.msra.mxu0 0
      %1005 = vmatprep.subr.bf16.mxu0 0
      %1006 = vmatpush1.bf16.msra.mxu0 0
      %1007 = vmatprep.subr.bf16.mxu0 0
      %1008 = vmatpush1.bf16.msra.mxu0 0
      %1009 = vmatprep.subr.bf16.mxu0 0
      %1010 = vmatpush1.bf16.msra.mxu0 0
      %1011 = vmatprep.subr.bf16.mxu0 0
      %1012 = vmatpush1.bf16.msra.mxu0 0
      %1013 = vmatprep.mubr.bf16.mxu0 0
      %1014 = vmatmul.mubr.bf16.gmra.mrb[0].mxu0 %v976
      %v1015 = vpop.f32.mrb[0].mxu0
      %v1016 = vadd.f32 %v970, %v1015
      %v1017 = vpop.f32.mrb[0].mxu0
      %v1018 = vpop.f32.mrb[0].mxu0
      %v1019 = vpop.f32.mrb[0].mxu0
      %1020 = vdwg.mxu0
      %s1021 = sadd.s32 %s909, 1
      %s1022 = smul.u32 %s1021, 2
      %s1023 = smul.addr %s1022, 4
      %s1024 = scalar_lea.vmem %s183, %s1023
      %v1025 = vld [vmem:[%s1024] sm:$0xf]
      %v1026 = vld [vmem:[%s1024 + $0x4] sm:$0x1]
      %v1027 = vld [vmem:[%s316] sm:$0x7]
      %v1029 = vsel %vm216, %v1025, 0
      %v1032 = vsel %vm220, %v1027, 0
      %1034 = vmatprep.subr.bf16.mxu0 0
      %1035 = vmatpush1.bf16.msra.mxu0 %v1032
      %1036 = vmatprep.subr.bf16.mxu0 0
      %1037 = vmatpush1.bf16.msra.mxu0 0
      %1038 = vmatprep.subr.bf16.mxu0 0
      %1039 = vmatpush1.bf16.msra.mxu0 0
      %1040 = vmatprep.subr.bf16.mxu0 0
      %1041 = vmatpush1.bf16.msra.mxu0 0
      %1042 = vmatprep.subr.bf16.mxu0 0
      %1043 = vmatpush1.bf16.msra.mxu0 0
      %1044 = vmatprep.subr.bf16.mxu0 0
      %1045 = vmatpush1.bf16.msra.mxu0 0
      %1046 = vmatprep.subr.bf16.mxu0 0
      %1047 = vmatpush1.bf16.msra.mxu0 0
      %1048 = vmatprep.subr.bf16.mxu0 0
      %1049 = vmatpush1.bf16.msra.mxu0 0
      %1050 = vmatprep.subr.bf16.mxu0 0
      %1051 = vmatpush1.bf16.msra.mxu0 0
      %1052 = vmatprep.subr.bf16.mxu0 0
      %1053 = vmatpush1.bf16.msra.mxu0 0
      %1054 = vmatprep.subr.bf16.mxu0 0
      %1055 = vmatpush1.bf16.msra.mxu0 0
      %1056 = vmatprep.subr.bf16.mxu0 0
      %1057 = vmatpush1.bf16.msra.mxu0 0
      %1058 = vmatprep.subr.bf16.mxu0 0
      %1059 = vmatpush1.bf16.msra.mxu0 0
      %1060 = vmatprep.subr.bf16.mxu0 0
      %1061 = vmatpush1.bf16.msra.mxu0 0
      %1062 = vmatprep.subr.bf16.mxu0 0
      %1063 = vmatpush1.bf16.msra.mxu0 0
      %1064 = vmatprep.subr.bf16.mxu0 0
      %1065 = vmatpush1.bf16.msra.mxu0 0
      %1066 = vmatprep.mubr.bf16.mxu0 0
      %1067 = vmatmul.mubr.bf16.gmra.mrb[0].mxu0 %v1029
      %v1068 = vpop.f32.mrb[0].mxu0
      %v1069 = vadd.f32 0.0, %v1068
      %v1070 = vpop.f32.mrb[0].mxu0
      %v1071 = vpop.f32.mrb[0].mxu0
      %v1072 = vpop.f32.mrb[0].mxu0
      %1073 = vdwg.mxu0
      %v1074 = vadd.f32 %v1016, %v1069
      %v1075 = vld [vmem:[%s365] sm:$0x7]
      %v1078 = vunpack.c.l.b16 %v1025
      %v1079 = vunpack.c.l.b16 %v1026
      %v1080 = vpack.c.b16 %v1079, %v1078
      %v1082 = vshrl.u32 %v1080, 16
      %v1084 = vshll.u32 %v1080, 16
      %v1086 = vrot.slane %v1084, 1
      %v1087 = vor.u32 %v1082, %v1086
      %v1089 = vsel %vm216, %v1087, 0
      %v1092 = vsel %vm220, %v1075, 0
      %1094 = vmatprep.subr.bf16.mxu0 0
      %1095 = vmatpush1.bf16.msra.mxu0 %v1092
      %1096 = vmatprep.subr.bf16.mxu0 0
      %1097 = vmatpush1.bf16.msra.mxu0 0
      %1098 = vmatprep.subr.bf16.mxu0 0
      %1099 = vmatpush1.bf16.msra.mxu0 0
      %1100 = vmatprep.subr.bf16.mxu0 0
      %1101 = vmatpush1.bf16.msra.mxu0 0
      %1102 = vmatprep.subr.bf16.mxu0 0
      %1103 = vmatpush1.bf16.msra.mxu0 0
      %1104 = vmatprep.subr.bf16.mxu0 0
      %1105 = vmatpush1.bf16.msra.mxu0 0
      %1106 = vmatprep.subr.bf16.mxu0 0
      %1107 = vmatpush1.bf16.msra.mxu0 0
      %1108 = vmatprep.subr.bf16.mxu0 0
      %1109 = vmatpush1.bf16.msra.mxu0 0
      %1110 = vmatprep.subr.bf16.mxu0 0
      %1111 = vmatpush1.bf16.msra.mxu0 0
      %1112 = vmatprep.subr.bf16.mxu0 0
      %1113 = vmatpush1.bf16.msra.mxu0 0
      %1114 = vmatprep.subr.bf16.mxu0 0
      %1115 = vmatpush1.bf16.msra.mxu0 0
      %1116 = vmatprep.subr.bf16.mxu0 0
      %1117 = vmatpush1.bf16.msra.mxu0 0
      %1118 = vmatprep.subr.bf16.mxu0 0
      %1119 = vmatpush1.bf16.msra.mxu0 0
      %1120 = vmatprep.subr.bf16.mxu0 0
      %1121 = vmatpush1.bf16.msra.mxu0 0
      %1122 = vmatprep.subr.bf16.mxu0 0
      %1123 = vmatpush1.bf16.msra.mxu0 0
      %1124 = vmatprep.subr.bf16.mxu0 0
      %1125 = vmatpush1.bf16.msra.mxu0 0
      %1126 = vmatprep.mubr.bf16.mxu0 0
      %1127 = vmatmul.mubr.bf16.gmra.mrb[0].mxu0 %v1089
      %v1128 = vpop.f32.mrb[0].mxu0
      %v1129 = vadd.f32 0.0, %v1128
      %v1130 = vpop.f32.mrb[0].mxu0
      %v1131 = vpop.f32.mrb[0].mxu0
      %v1132 = vpop.f32.mrb[0].mxu0
      %1133 = vdwg.mxu0
      %v1134 = vadd.f32 %v1074, %v1129
      %s1135 = sadd.s32 %s909, 2
      %s1136 = smul.u32 %s1135, 2
      %s1137 = smul.addr %s1136, 4
      %s1138 = scalar_lea.vmem %s183, %s1137
      %v1139 = vld [vmem:[%s1138] sm:$0xf]
      %v1140 = vld [vmem:[%s1138 + $0x4] sm:$0x1]
      %v1141 = vld [vmem:[%s432] sm:$0x7]
      %v1143 = vsel %vm216, %v1139, 0
      %v1146 = vsel %vm220, %v1141, 0
      %1148 = vmatprep.subr.bf16.mxu0 0
      %1149 = vmatpush1.bf16.msra.mxu0 %v1146
      %1150 = vmatprep.subr.bf16.mxu0 0
      %1151 = vmatpush1.bf16.msra.mxu0 0
      %1152 = vmatprep.subr.bf16.mxu0 0
      %1153 = vmatpush1.bf16.msra.mxu0 0
      %1154 = vmatprep.subr.bf16.mxu0 0
      %1155 = vmatpush1.bf16.msra.mxu0 0
      %1156 = vmatprep.subr.bf16.mxu0 0
      %1157 = vmatpush1.bf16.msra.mxu0 0
      %1158 = vmatprep.subr.bf16.mxu0 0
      %1159 = vmatpush1.bf16.msra.mxu0 0
      %1160 = vmatprep.subr.bf16.mxu0 0
      %1161 = vmatpush1.bf16.msra.mxu0 0
      %1162 = vmatprep.subr.bf16.mxu0 0
      %1163 = vmatpush1.bf16.msra.mxu0 0
      %1164 = vmatprep.subr.bf16.mxu0 0
      %1165 = vmatpush1.bf16.msra.mxu0 0
      %1166 = vmatprep.subr.bf16.mxu0 0
      %1167 = vmatpush1.bf16.msra.mxu0 0
      %1168 = vmatprep.subr.bf16.mxu0 0
      %1169 = vmatpush1.bf16.msra.mxu0 0
      %1170 = vmatprep.subr.bf16.mxu0 0
      %1171 = vmatpush1.bf16.msra.mxu0 0
      %1172 = vmatprep.subr.bf16.mxu0 0
      %1173 = vmatpush1.bf16.msra.mxu0 0
      %1174 = vmatprep.subr.bf16.mxu0 0
      %1175 = vmatpush1.bf16.msra.mxu0 0
      %1176 = vmatprep.subr.bf16.mxu0 0
      %1177 = vmatpush1.bf16.msra.mxu0 0
      %1178 = vmatprep.subr.bf16.mxu0 0
      %1179 = vmatpush1.bf16.msra.mxu0 0
      %1180 = vmatprep.mubr.bf16.mxu0 0
      %1181 = vmatmul.mubr.bf16.gmra.mrb[0].mxu0 %v1143
      %v1182 = vpop.f32.mrb[0].mxu0
      %v1183 = vadd.f32 0.0, %v1182
      %v1184 = vpop.f32.mrb[0].mxu0
      %v1185 = vpop.f32.mrb[0].mxu0
      %v1186 = vpop.f32.mrb[0].mxu0
      %1187 = vdwg.mxu0
      %v1188 = vadd.f32 %v1134, %v1183
      %v1189 = vld [vmem:[%s481] sm:$0x7]
      %v1192 = vunpack.c.l.b16 %v1139
      %v1193 = vunpack.c.l.b16 %v1140
      %v1194 = vpack.c.b16 %v1193, %v1192
      %v1196 = vshrl.u32 %v1194, 16
      %v1198 = vshll.u32 %v1194, 16
      %v1200 = vrot.slane %v1198, 1
      %v1201 = vor.u32 %v1196, %v1200
      %v1203 = vsel %vm216, %v1201, 0
      %v1206 = vsel %vm220, %v1189, 0
      %1208 = vmatprep.subr.bf16.mxu0 0
      %1209 = vmatpush1.bf16.msra.mxu0 %v1206
      %1210 = vmatprep.subr.bf16.mxu0 0
      %1211 = vmatpush1.bf16.msra.mxu0 0
      %1212 = vmatprep.subr.bf16.mxu0 0
      %1213 = vmatpush1.bf16.msra.mxu0 0
      %1214 = vmatprep.subr.bf16.mxu0 0
      %1215 = vmatpush1.bf16.msra.mxu0 0
      %1216 = vmatprep.subr.bf16.mxu0 0
      %1217 = vmatpush1.bf16.msra.mxu0 0
      %1218 = vmatprep.subr.bf16.mxu0 0
      %1219 = vmatpush1.bf16.msra.mxu0 0
      %1220 = vmatprep.subr.bf16.mxu0 0
      %1221 = vmatpush1.bf16.msra.mxu0 0
      %1222 = vmatprep.subr.bf16.mxu0 0
      %1223 = vmatpush1.bf16.msra.mxu0 0
      %1224 = vmatprep.subr.bf16.mxu0 0
      %1225 = vmatpush1.bf16.msra.mxu0 0
      %1226 = vmatprep.subr.bf16.mxu0 0
      %1227 = vmatpush1.bf16.msra.mxu0 0
      %1228 = vmatprep.subr.bf16.mxu0 0
      %1229 = vmatpush1.bf16.msra.mxu0 0
      %1230 = vmatprep.subr.bf16.mxu0 0
      %1231 = vmatpush1.bf16.msra.mxu0 0
      %1232 = vmatprep.subr.bf16.mxu0 0
      %1233 = vmatpush1.bf16.msra.mxu0 0
      %1234 = vmatprep.subr.bf16.mxu0 0
      %1235 = vmatpush1.bf16.msra.mxu0 0
      %1236 = vmatprep.subr.bf16.mxu0 0
      %1237 = vmatpush1.bf16.msra.mxu0 0
      %1238 = vmatprep.subr.bf16.mxu0 0
      %1239 = vmatpush1.bf16.msra.mxu0 0
      %1240 = vmatprep.mubr.bf16.mxu0 0
      %1241 = vmatmul.mubr.bf16.gmra.mrb[0].mxu0 %v1203
      %v1242 = vpop.f32.mrb[0].mxu0
      %v1243 = vadd.f32 0.0, %v1242
      %v1244 = vpop.f32.mrb[0].mxu0
      %v1245 = vpop.f32.mrb[0].mxu0
      %v1246 = vpop.f32.mrb[0].mxu0
      %1247 = vdwg.mxu0
      %v1248 = vadd.f32 %v1188, %v1243
      %v1249 = vld [vmem:[%s2] sm:$0x1]
      %v1251 = vlaneseq
      %v1252 = vshrl.u32 %v1251, 7
      %v1253 = vsub.s32 0, %v1252
      %v1254 = vrot.slane %v1249, %v1253
      %v1256 = vadd.f32 %v1248, %v1254
      %v1257 = vmax.f32 %v1256, 0.0
      %v1258 = vpack.c.bf16 %v1257, %v1257
      %s1259 = scalar_lea.vmem %s192, 8
      %1260 = vst.msk [vmem:[%s1259] sm:$0xf] %vm552, %v1258
      %s1261 = sadd.s32 %s554, 3
      %s1262 = smul.u32 %s1261, 2
      %s1263 = smul.u32 %s1262, 2
      %s1264 = smul.addr %s1263, 4
      %s1265 = scalar_lea.vmem %s183, %s1264
      %v1266 = vld [vmem:[%s1265] sm:$0xf]
      %v1267 = vld [vmem:[%s1265 + $0x4] sm:$0x1]
      %v1268 = vld [vmem:[%s1] sm:$0x7]
      %v1269 = vld [vmem:[%s202] sm:$0x7]
      %v1272 = vunpack.c.l.b16 %v1266
      %v1273 = vunpack.c.l.b16 %v1267
      %v1274 = vpack.c.b16 %v1273, %v1272
      %v1276 = vshrl.u32 %v1274, 16
      %v1278 = vshll.u32 %v1274, 16
      %v1280 = vrot.slane %v1278, 1
      %v1281 = vor.u32 %v1276, %v1280
      %v1283 = vsel %vm216, %v1281, 0
      %v1286 = vsel %vm220, %v1269, 0
      %1288 = vmatprep.subr.bf16.mxu0 0
      %1289 = vmatpush1.bf16.msra.mxu0 %v1286
      %1290 = vmatprep.subr.bf16.mxu0 0
      %1291 = vmatpush1.bf16.msra.mxu0 0
      %1292 = vmatprep.subr.bf16.mxu0 0
      %1293 = vmatpush1.bf16.msra.mxu0 0
      %1294 = vmatprep.subr.bf16.mxu0 0
      %1295 = vmatpush1.bf16.msra.mxu0 0
      %1296 = vmatprep.subr.bf16.mxu0 0
      %1297 = vmatpush1.bf16.msra.mxu0 0
      %1298 = vmatprep.subr.bf16.mxu0 0
      %1299 = vmatpush1.bf16.msra.mxu0 0
      %1300 = vmatprep.subr.bf16.mxu0 0
      %1301 = vmatpush1.bf16.msra.mxu0 0
      %1302 = vmatprep.subr.bf16.mxu0 0
      %1303 = vmatpush1.bf16.msra.mxu0 0
      %1304 = vmatprep.subr.bf16.mxu0 0
      %1305 = vmatpush1.bf16.msra.mxu0 0
      %1306 = vmatprep.subr.bf16.mxu0 0
      %1307 = vmatpush1.bf16.msra.mxu0 0
      %1308 = vmatprep.subr.bf16.mxu0 0
      %1309 = vmatpush1.bf16.msra.mxu0 0
      %1310 = vmatprep.subr.bf16.mxu0 0
      %1311 = vmatpush1.bf16.msra.mxu0 0
      %1312 = vmatprep.subr.bf16.mxu0 0
      %1313 = vmatpush1.bf16.msra.mxu0 0
      %1314 = vmatprep.subr.bf16.mxu0 0
      %1315 = vmatpush1.bf16.msra.mxu0 0
      %1316 = vmatprep.subr.bf16.mxu0 0
      %1317 = vmatpush1.bf16.msra.mxu0 0
      %1318 = vmatprep.subr.bf16.mxu0 0
      %1319 = vmatpush1.bf16.msra.mxu0 0
      %1320 = vmatprep.mubr.bf16.mxu0 0
      %1321 = vmatmul.mubr.bf16.gmra.mrb[0].mxu0 %v1283
      %v1322 = vpop.f32.mrb[0].mxu0
      %v1323 = vadd.f32 0.0, %v1322
      %v1324 = vpop.f32.mrb[0].mxu0
      %v1325 = vpop.f32.mrb[0].mxu0
      %v1326 = vpop.f32.mrb[0].mxu0
      %1327 = vdwg.mxu0
      %v1329 = vsel %vm216, %v1266, 0
      %v1332 = vsel %vm220, %v1268, 0
      %1334 = vmatprep.subr.bf16.mxu0 0
      %1335 = vmatpush1.bf16.msra.mxu0 %v1332
      %1336 = vmatprep.subr.bf16.mxu0 0
      %1337 = vmatpush1.bf16.msra.mxu0 0
      %1338 = vmatprep.subr.bf16.mxu0 0
      %1339 = vmatpush1.bf16.msra.mxu0 0
      %1340 = vmatprep.subr.bf16.mxu0 0
      %1341 = vmatpush1.bf16.msra.mxu0 0
      %1342 = vmatprep.subr.bf16.mxu0 0
      %1343 = vmatpush1.bf16.msra.mxu0 0
      %1344 = vmatprep.subr.bf16.mxu0 0
      %1345 = vmatpush1.bf16.msra.mxu0 0
      %1346 = vmatprep.subr.bf16.mxu0 0
      %1347 = vmatpush1.bf16.msra.mxu0 0
      %1348 = vmatprep.subr.bf16.mxu0 0
      %1349 = vmatpush1.bf16.msra.mxu0 0
      %1350 = vmatprep.subr.bf16.mxu0 0
      %1351 = vmatpush1.bf16.msra.mxu0 0
      %1352 = vmatprep.subr.bf16.mxu0 0
      %1353 = vmatpush1.bf16.msra.mxu0 0
      %1354 = vmatprep.subr.bf16.mxu0 0
      %1355 = vmatpush1.bf16.msra.mxu0 0
      %1356 = vmatprep.subr.bf16.mxu0 0
      %1357 = vmatpush1.bf16.msra.mxu0 0
      %1358 = vmatprep.subr.bf16.mxu0 0
      %1359 = vmatpush1.bf16.msra.mxu0 0
      %1360 = vmatprep.subr.bf16.mxu0 0
      %1361 = vmatpush1.bf16.msra.mxu0 0
      %1362 = vmatprep.subr.bf16.mxu0 0
      %1363 = vmatpush1.bf16.msra.mxu0 0
      %1364 = vmatprep.subr.bf16.mxu0 0
      %1365 = vmatpush1.bf16.msra.mxu0 0
      %1366 = vmatprep.mubr.bf16.mxu0 0
      %1367 = vmatmul.mubr.bf16.gmra.mrb[0].mxu0 %v1329
      %v1368 = vpop.f32.mrb[0].mxu0
      %v1369 = vadd.f32 %v1323, %v1368
      %v1370 = vpop.f32.mrb[0].mxu0
      %v1371 = vpop.f32.mrb[0].mxu0
      %v1372 = vpop.f32.mrb[0].mxu0
      %1373 = vdwg.mxu0
      %s1374 = sadd.s32 %s1262, 1
      %s1375 = smul.u32 %s1374, 2
      %s1376 = smul.addr %s1375, 4
      %s1377 = scalar_lea.vmem %s183, %s1376
      %v1378 = vld [vmem:[%s1377] sm:$0xf]
      %v1379 = vld [vmem:[%s1377 + $0x4] sm:$0x1]
      %v1380 = vld [vmem:[%s316] sm:$0x7]
      %v1382 = vsel %vm216, %v1378, 0
      %v1385 = vsel %vm220, %v1380, 0
      %1387 = vmatprep.subr.bf16.mxu0 0
      %1388 = vmatpush1.bf16.msra.mxu0 %v1385
      %1389 = vmatprep.subr.bf16.mxu0 0
      %1390 = vmatpush1.bf16.msra.mxu0 0
      %1391 = vmatprep.subr.bf16.mxu0 0
      %1392 = vmatpush1.bf16.msra.mxu0 0
      %1393 = vmatprep.subr.bf16.mxu0 0
      %1394 = vmatpush1.bf16.msra.mxu0 0
      %1395 = vmatprep.subr.bf16.mxu0 0
      %1396 = vmatpush1.bf16.msra.mxu0 0
      %1397 = vmatprep.subr.bf16.mxu0 0
      %1398 = vmatpush1.bf16.msra.mxu0 0
      %1399 = vmatprep.subr.bf16.mxu0 0
      %1400 = vmatpush1.bf16.msra.mxu0 0
      %1401 = vmatprep.subr.bf16.mxu0 0
      %1402 = vmatpush1.bf16.msra.mxu0 0
      %1403 = vmatprep.subr.bf16.mxu0 0
      %1404 = vmatpush1.bf16.msra.mxu0 0
      %1405 = vmatprep.subr.bf16.mxu0 0
      %1406 = vmatpush1.bf16.msra.mxu0 0
      %1407 = vmatprep.subr.bf16.mxu0 0
      %1408 = vmatpush1.bf16.msra.mxu0 0
      %1409 = vmatprep.subr.bf16.mxu0 0
      %1410 = vmatpush1.bf16.msra.mxu0 0
      %1411 = vmatprep.subr.bf16.mxu0 0
      %1412 = vmatpush1.bf16.msra.mxu0 0
      %1413 = vmatprep.subr.bf16.mxu0 0
      %1414 = vmatpush1.bf16.msra.mxu0 0
      %1415 = vmatprep.subr.bf16.mxu0 0
      %1416 = vmatpush1.bf16.msra.mxu0 0
      %1417 = vmatprep.subr.bf16.mxu0 0
      %1418 = vmatpush1.bf16.msra.mxu0 0
      %1419 = vmatprep.mubr.bf16.mxu0 0
      %1420 = vmatmul.mubr.bf16.gmra.mrb[0].mxu0 %v1382
      %v1421 = vpop.f32.mrb[0].mxu0
      %v1422 = vadd.f32 0.0, %v1421
      %v1423 = vpop.f32.mrb[0].mxu0
      %v1424 = vpop.f32.mrb[0].mxu0
      %v1425 = vpop.f32.mrb[0].mxu0
      %1426 = vdwg.mxu0
      %v1427 = vadd.f32 %v1369, %v1422
      %v1428 = vld [vmem:[%s365] sm:$0x7]
      %v1431 = vunpack.c.l.b16 %v1378
      %v1432 = vunpack.c.l.b16 %v1379
      %v1433 = vpack.c.b16 %v1432, %v1431
      %v1435 = vshrl.u32 %v1433, 16
      %v1437 = vshll.u32 %v1433, 16
      %v1439 = vrot.slane %v1437, 1
      %v1440 = vor.u32 %v1435, %v1439
      %v1442 = vsel %vm216, %v1440, 0
      %v1445 = vsel %vm220, %v1428, 0
      %1447 = vmatprep.subr.bf16.mxu0 0
      %1448 = vmatpush1.bf16.msra.mxu0 %v1445
      %1449 = vmatprep.subr.bf16.mxu0 0
      %1450 = vmatpush1.bf16.msra.mxu0 0
      %1451 = vmatprep.subr.bf16.mxu0 0
      %1452 = vmatpush1.bf16.msra.mxu0 0
      %1453 = vmatprep.subr.bf16.mxu0 0
      %1454 = vmatpush1.bf16.msra.mxu0 0
      %1455 = vmatprep.subr.bf16.mxu0 0
      %1456 = vmatpush1.bf16.msra.mxu0 0
      %1457 = vmatprep.subr.bf16.mxu0 0
      %1458 = vmatpush1.bf16.msra.mxu0 0
      %1459 = vmatprep.subr.bf16.mxu0 0
      %1460 = vmatpush1.bf16.msra.mxu0 0
      %1461 = vmatprep.subr.bf16.mxu0 0
      %1462 = vmatpush1.bf16.msra.mxu0 0
      %1463 = vmatprep.subr.bf16.mxu0 0
      %1464 = vmatpush1.bf16.msra.mxu0 0
      %1465 = vmatprep.subr.bf16.mxu0 0
      %1466 = vmatpush1.bf16.msra.mxu0 0
      %1467 = vmatprep.subr.bf16.mxu0 0
      %1468 = vmatpush1.bf16.msra.mxu0 0
      %1469 = vmatprep.subr.bf16.mxu0 0
      %1470 = vmatpush1.bf16.msra.mxu0 0
      %1471 = vmatprep.subr.bf16.mxu0 0
      %1472 = vmatpush1.bf16.msra.mxu0 0
      %1473 = vmatprep.subr.bf16.mxu0 0
      %1474 = vmatpush1.bf16.msra.mxu0 0
      %1475 = vmatprep.subr.bf16.mxu0 0
      %1476 = vmatpush1.bf16.msra.mxu0 0
      %1477 = vmatprep.subr.bf16.mxu0 0
      %1478 = vmatpush1.bf16.msra.mxu0 0
      %1479 = vmatprep.mubr.bf16.mxu0 0
      %1480 = vmatmul.mubr.bf16.gmra.mrb[0].mxu0 %v1442
      %v1481 = vpop.f32.mrb[0].mxu0
      %v1482 = vadd.f32 0.0, %v1481
      %v1483 = vpop.f32.mrb[0].mxu0
      %v1484 = vpop.f32.mrb[0].mxu0
      %v1485 = vpop.f32.mrb[0].mxu0
      %1486 = vdwg.mxu0
      %v1487 = vadd.f32 %v1427, %v1482
      %s1488 = sadd.s32 %s1262, 2
      %s1489 = smul.u32 %s1488, 2
      %s1490 = smul.addr %s1489, 4
      %s1491 = scalar_lea.vmem %s183, %s1490
      %v1492 = vld [vmem:[%s1491] sm:$0xf]
      %v1493 = vld [vmem:[%s1491 + $0x4] sm:$0x1]
      %v1494 = vld [vmem:[%s432] sm:$0x7]
      %v1496 = vsel %vm216, %v1492, 0
      %v1499 = vsel %vm220, %v1494, 0
      %1501 = vmatprep.subr.bf16.mxu0 0
      %1502 = vmatpush1.bf16.msra.mxu0 %v1499
      %1503 = vmatprep.subr.bf16.mxu0 0
      %1504 = vmatpush1.bf16.msra.mxu0 0
      %1505 = vmatprep.subr.bf16.mxu0 0
      %1506 = vmatpush1.bf16.msra.mxu0 0
      %1507 = vmatprep.subr.bf16.mxu0 0
      %1508 = vmatpush1.bf16.msra.mxu0 0
      %1509 = vmatprep.subr.bf16.mxu0 0
      %1510 = vmatpush1.bf16.msra.mxu0 0
      %1511 = vmatprep.subr.bf16.mxu0 0
      %1512 = vmatpush1.bf16.msra.mxu0 0
      %1513 = vmatprep.subr.bf16.mxu0 0
      %1514 = vmatpush1.bf16.msra.mxu0 0
      %1515 = vmatprep.subr.bf16.mxu0 0
      %1516 = vmatpush1.bf16.msra.mxu0 0
      %1517 = vmatprep.subr.bf16.mxu0 0
      %1518 = vmatpush1.bf16.msra.mxu0 0
      %1519 = vmatprep.subr.bf16.mxu0 0
      %1520 = vmatpush1.bf16.msra.mxu0 0
      %1521 = vmatprep.subr.bf16.mxu0 0
      %1522 = vmatpush1.bf16.msra.mxu0 0
      %1523 = vmatprep.subr.bf16.mxu0 0
      %1524 = vmatpush1.bf16.msra.mxu0 0
      %1525 = vmatprep.subr.bf16.mxu0 0
      %1526 = vmatpush1.bf16.msra.mxu0 0
      %1527 = vmatprep.subr.bf16.mxu0 0
      %1528 = vmatpush1.bf16.msra.mxu0 0
      %1529 = vmatprep.subr.bf16.mxu0 0
      %1530 = vmatpush1.bf16.msra.mxu0 0
      %1531 = vmatprep.subr.bf16.mxu0 0
      %1532 = vmatpush1.bf16.msra.mxu0 0
      %1533 = vmatprep.mubr.bf16.mxu0 0
      %1534 = vmatmul.mubr.bf16.gmra.mrb[0].mxu0 %v1496
      %v1535 = vpop.f32.mrb[0].mxu0
      %v1536 = vadd.f32 0.0, %v1535
      %v1537 = vpop.f32.mrb[0].mxu0
      %v1538 = vpop.f32.mrb[0].mxu0
      %v1539 = vpop.f32.mrb[0].mxu0
      %1540 = vdwg.mxu0
      %v1541 = vadd.f32 %v1487, %v1536
      %v1542 = vld [vmem:[%s481] sm:$0x7]
      %v1545 = vunpack.c.l.b16 %v1492
      %v1546 = vunpack.c.l.b16 %v1493
      %v1547 = vpack.c.b16 %v1546, %v1545
      %v1549 = vshrl.u32 %v1547, 16
      %v1551 = vshll.u32 %v1547, 16
      %v1553 = vrot.slane %v1551, 1
      %v1554 = vor.u32 %v1549, %v1553
      %v1556 = vsel %vm216, %v1554, 0
      %v1559 = vsel %vm220, %v1542, 0
      %1561 = vmatprep.subr.bf16.mxu0 0
      %1562 = vmatpush1.bf16.msra.mxu0 %v1559
      %1563 = vmatprep.subr.bf16.mxu0 0
      %1564 = vmatpush1.bf16.msra.mxu0 0
      %1565 = vmatprep.subr.bf16.mxu0 0
      %1566 = vmatpush1.bf16.msra.mxu0 0
      %1567 = vmatprep.subr.bf16.mxu0 0
      %1568 = vmatpush1.bf16.msra.mxu0 0
      %1569 = vmatprep.subr.bf16.mxu0 0
      %1570 = vmatpush1.bf16.msra.mxu0 0
      %1571 = vmatprep.subr.bf16.mxu0 0
      %1572 = vmatpush1.bf16.msra.mxu0 0
      %1573 = vmatprep.subr.bf16.mxu0 0
      %1574 = vmatpush1.bf16.msra.mxu0 0
      %1575 = vmatprep.subr.bf16.mxu0 0
      %1576 = vmatpush1.bf16.msra.mxu0 0
      %1577 = vmatprep.subr.bf16.mxu0 0
      %1578 = vmatpush1.bf16.msra.mxu0 0
      %1579 = vmatprep.subr.bf16.mxu0 0
      %1580 = vmatpush1.bf16.msra.mxu0 0
      %1581 = vmatprep.subr.bf16.mxu0 0
      %1582 = vmatpush1.bf16.msra.mxu0 0
      %1583 = vmatprep.subr.bf16.mxu0 0
      %1584 = vmatpush1.bf16.msra.mxu0 0
      %1585 = vmatprep.subr.bf16.mxu0 0
      %1586 = vmatpush1.bf16.msra.mxu0 0
      %1587 = vmatprep.subr.bf16.mxu0 0
      %1588 = vmatpush1.bf16.msra.mxu0 0
      %1589 = vmatprep.subr.bf16.mxu0 0
      %1590 = vmatpush1.bf16.msra.mxu0 0
      %1591 = vmatprep.subr.bf16.mxu0 0
      %1592 = vmatpush1.bf16.msra.mxu0 0
      %1593 = vmatprep.mubr.bf16.mxu0 0
      %1594 = vmatmul.mubr.bf16.gmra.mrb[0].mxu0 %v1556
      %v1595 = vpop.f32.mrb[0].mxu0
      %v1596 = vadd.f32 0.0, %v1595
      %v1597 = vpop.f32.mrb[0].mxu0
      %v1598 = vpop.f32.mrb[0].mxu0
      %v1599 = vpop.f32.mrb[0].mxu0
      %1600 = vdwg.mxu0
      %v1601 = vadd.f32 %v1541, %v1596
      %v1602 = vld [vmem:[%s2] sm:$0x1]
      %v1604 = vlaneseq
      %v1605 = vshrl.u32 %v1604, 7
      %v1606 = vsub.s32 0, %v1605
      %v1607 = vrot.slane %v1602, %v1606
      %v1609 = vadd.f32 %v1601, %v1607
      %v1610 = vmax.f32 %v1609, 0.0
      %v1611 = vpack.c.bf16 %v1610, %v1610
      %s1612 = scalar_lea.vmem %s192, 12
      %1613 = vst.msk [vmem:[%s1612] sm:$0xf] %vm552, %v1611
      %s1614 = sadd.s32 %s554, 4
      %s1615 = smul.u32 %s1614, 2
      %s1616 = smul.u32 %s1615, 2
      %s1617 = smul.addr %s1616, 4
      %s1618 = scalar_lea.vmem %s183, %s1617
      %v1619 = vld [vmem:[%s1618] sm:$0xf]
      %v1620 = vld [vmem:[%s1618 + $0x4] sm:$0x1]
      %v1621 = vld [vmem:[%s1] sm:$0x7]
      %v1622 = vld [vmem:[%s202] sm:$0x7]
      %v1625 = vunpack.c.l.b16 %v1619
      %v1626 = vunpack.c.l.b16 %v1620
      %v1627 = vpack.c.b16 %v1626, %v1625
      %v1629 = vshrl.u32 %v1627, 16
      %v1631 = vshll.u32 %v1627, 16
      %v1633 = vrot.slane %v1631, 1
      %v1634 = vor.u32 %v1629, %v1633
      %v1636 = vsel %vm216, %v1634, 0
      %v1639 = vsel %vm220, %v1622, 0
      %1641 = vmatprep.subr.bf16.mxu0 0
      %1642 = vmatpush1.bf16.msra.mxu0 %v1639
      %1643 = vmatprep.subr.bf16.mxu0 0
      %1644 = vmatpush1.bf16.msra.mxu0 0
      %1645 = vmatprep.subr.bf16.mxu0 0
      %1646 = vmatpush1.bf16.msra.mxu0 0
      %1647 = vmatprep.subr.bf16.mxu0 0
      %1648 = vmatpush1.bf16.msra.mxu0 0
      %1649 = vmatprep.subr.bf16.mxu0 0
      %1650 = vmatpush1.bf16.msra.mxu0 0
      %1651 = vmatprep.subr.bf16.mxu0 0
      %1652 = vmatpush1.bf16.msra.mxu0 0
      %1653 = vmatprep.subr.bf16.mxu0 0
      %1654 = vmatpush1.bf16.msra.mxu0 0
      %1655 = vmatprep.subr.bf16.mxu0 0
      %1656 = vmatpush1.bf16.msra.mxu0 0
      %1657 = vmatprep.subr.bf16.mxu0 0
      %1658 = vmatpush1.bf16.msra.mxu0 0
      %1659 = vmatprep.subr.bf16.mxu0 0
      %1660 = vmatpush1.bf16.msra.mxu0 0
      %1661 = vmatprep.subr.bf16.mxu0 0
      %1662 = vmatpush1.bf16.msra.mxu0 0
      %1663 = vmatprep.subr.bf16.mxu0 0
      %1664 = vmatpush1.bf16.msra.mxu0 0
      %1665 = vmatprep.subr.bf16.mxu0 0
      %1666 = vmatpush1.bf16.msra.mxu0 0
      %1667 = vmatprep.subr.bf16.mxu0 0
      %1668 = vmatpush1.bf16.msra.mxu0 0
      %1669 = vmatprep.subr.bf16.mxu0 0
      %1670 = vmatpush1.bf16.msra.mxu0 0
      %1671 = vmatprep.subr.bf16.mxu0 0
      %1672 = vmatpush1.bf16.msra.mxu0 0
      %1673 = vmatprep.mubr.bf16.mxu0 0
      %1674 = vmatmul.mubr.bf16.gmra.mrb[0].mxu0 %v1636
      %v1675 = vpop.f32.mrb[0].mxu0
      %v1676 = vadd.f32 0.0, %v1675
      %v1677 = vpop.f32.mrb[0].mxu0
      %v1678 = vpop.f32.mrb[0].mxu0
      %v1679 = vpop.f32.mrb[0].mxu0
      %1680 = vdwg.mxu0
      %v1682 = vsel %vm216, %v1619, 0
      %v1685 = vsel %vm220, %v1621, 0
      %1687 = vmatprep.subr.bf16.mxu0 0
      %1688 = vmatpush1.bf16.msra.mxu0 %v1685
      %1689 = vmatprep.subr.bf16.mxu0 0
      %1690 = vmatpush1.bf16.msra.mxu0 0
      %1691 = vmatprep.subr.bf16.mxu0 0
      %1692 = vmatpush1.bf16.msra.mxu0 0
      %1693 = vmatprep.subr.bf16.mxu0 0
      %1694 = vmatpush1.bf16.msra.mxu0 0
      %1695 = vmatprep.subr.bf16.mxu0 0
      %1696 = vmatpush1.bf16.msra.mxu0 0
      %1697 = vmatprep.subr.bf16.mxu0 0
      %1698 = vmatpush1.bf16.msra.mxu0 0
      %1699 = vmatprep.subr.bf16.mxu0 0
      %1700 = vmatpush1.bf16.msra.mxu0 0
      %1701 = vmatprep.subr.bf16.mxu0 0
      %1702 = vmatpush1.bf16.msra.mxu0 0
      %1703 = vmatprep.subr.bf16.mxu0 0
      %1704 = vmatpush1.bf16.msra.mxu0 0
      %1705 = vmatprep.subr.bf16.mxu0 0
      %1706 = vmatpush1.bf16.msra.mxu0 0
      %1707 = vmatprep.subr.bf16.mxu0 0
      %1708 = vmatpush1.bf16.msra.mxu0 0
      %1709 = vmatprep.subr.bf16.mxu0 0
      %1710 = vmatpush1.bf16.msra.mxu0 0
      %1711 = vmatprep.subr.bf16.mxu0 0
      %1712 = vmatpush1.bf16.msra.mxu0 0
      %1713 = vmatprep.subr.bf16.mxu0 0
      %1714 = vmatpush1.bf16.msra.mxu0 0
      %1715 = vmatprep.subr.bf16.mxu0 0
      %1716 = vmatpush1.bf16.msra.mxu0 0
      %1717 = vmatprep.subr.bf16.mxu0 0
      %1718 = vmatpush1.bf16.msra.mxu0 0
      %1719 = vmatprep.mubr.bf16.mxu0 0
      %1720 = vmatmul.mubr.bf16.gmra.mrb[0].mxu0 %v1682
      %v1721 = vpop.f32.mrb[0].mxu0
      %v1722 = vadd.f32 %v1676, %v1721
      %v1723 = vpop.f32.mrb[0].mxu0
      %v1724 = vpop.f32.mrb[0].mxu0
      %v1725 = vpop.f32.mrb[0].mxu0
      %1726 = vdwg.mxu0
      %s1727 = sadd.s32 %s1615, 1
      %s1728 = smul.u32 %s1727, 2
      %s1729 = smul.addr %s1728, 4
      %s1730 = scalar_lea.vmem %s183, %s1729
      %v1731 = vld [vmem:[%s1730] sm:$0xf]
      %v1732 = vld [vmem:[%s1730 + $0x4] sm:$0x1]
      %v1733 = vld [vmem:[%s316] sm:$0x7]
      %v1735 = vsel %vm216, %v1731, 0
      %v1738 = vsel %vm220, %v1733, 0
      %1740 = vmatprep.subr.bf16.mxu0 0
      %1741 = vmatpush1.bf16.msra.mxu0 %v1738
      %1742 = vmatprep.subr.bf16.mxu0 0
      %1743 = vmatpush1.bf16.msra.mxu0 0
      %1744 = vmatprep.subr.bf16.mxu0 0
      %1745 = vmatpush1.bf16.msra.mxu0 0
      %1746 = vmatprep.subr.bf16.mxu0 0
      %1747 = vmatpush1.bf16.msra.mxu0 0
      %1748 = vmatprep.subr.bf16.mxu0 0
      %1749 = vmatpush1.bf16.msra.mxu0 0
      %1750 = vmatprep.subr.bf16.mxu0 0
      %1751 = vmatpush1.bf16.msra.mxu0 0
      %1752 = vmatprep.subr.bf16.mxu0 0
      %1753 = vmatpush1.bf16.msra.mxu0 0
      %1754 = vmatprep.subr.bf16.mxu0 0
      %1755 = vmatpush1.bf16.msra.mxu0 0
      %1756 = vmatprep.subr.bf16.mxu0 0
      %1757 = vmatpush1.bf16.msra.mxu0 0
      %1758 = vmatprep.subr.bf16.mxu0 0
      %1759 = vmatpush1.bf16.msra.mxu0 0
      %1760 = vmatprep.subr.bf16.mxu0 0
      %1761 = vmatpush1.bf16.msra.mxu0 0
      %1762 = vmatprep.subr.bf16.mxu0 0
      %1763 = vmatpush1.bf16.msra.mxu0 0
      %1764 = vmatprep.subr.bf16.mxu0 0
      %1765 = vmatpush1.bf16.msra.mxu0 0
      %1766 = vmatprep.subr.bf16.mxu0 0
      %1767 = vmatpush1.bf16.msra.mxu0 0
      %1768 = vmatprep.subr.bf16.mxu0 0
      %1769 = vmatpush1.bf16.msra.mxu0 0
      %1770 = vmatprep.subr.bf16.mxu0 0
      %1771 = vmatpush1.bf16.msra.mxu0 0
      %1772 = vmatprep.mubr.bf16.mxu0 0
      %1773 = vmatmul.mubr.bf16.gmra.mrb[0].mxu0 %v1735
      %v1774 = vpop.f32.mrb[0].mxu0
      %v1775 = vadd.f32 0.0, %v1774
      %v1776 = vpop.f32.mrb[0].mxu0
      %v1777 = vpop.f32.mrb[0].mxu0
      %v1778 = vpop.f32.mrb[0].mxu0
      %1779 = vdwg.mxu0
      %v1780 = vadd.f32 %v1722, %v1775
      %v1781 = vld [vmem:[%s365] sm:$0x7]
      %v1784 = vunpack.c.l.b16 %v1731
      %v1785 = vunpack.c.l.b16 %v1732
      %v1786 = vpack.c.b16 %v1785, %v1784
      %v1788 = vshrl.u32 %v1786, 16
      %v1790 = vshll.u32 %v1786, 16
      %v1792 = vrot.slane %v1790, 1
      %v1793 = vor.u32 %v1788, %v1792
      %v1795 = vsel %vm216, %v1793, 0
      %v1798 = vsel %vm220, %v1781, 0
      %1800 = vmatprep.subr.bf16.mxu0 0
      %1801 = vmatpush1.bf16.msra.mxu0 %v1798
      %1802 = vmatprep.subr.bf16.mxu0 0
      %1803 = vmatpush1.bf16.msra.mxu0 0
      %1804 = vmatprep.subr.bf16.mxu0 0
      %1805 = vmatpush1.bf16.msra.mxu0 0
      %1806 = vmatprep.subr.bf16.mxu0 0
      %1807 = vmatpush1.bf16.msra.mxu0 0
      %1808 = vmatprep.subr.bf16.mxu0 0
      %1809 = vmatpush1.bf16.msra.mxu0 0
      %1810 = vmatprep.subr.bf16.mxu0 0
      %1811 = vmatpush1.bf16.msra.mxu0 0
      %1812 = vmatprep.subr.bf16.mxu0 0
      %1813 = vmatpush1.bf16.msra.mxu0 0
      %1814 = vmatprep.subr.bf16.mxu0 0
      %1815 = vmatpush1.bf16.msra.mxu0 0
      %1816 = vmatprep.subr.bf16.mxu0 0
      %1817 = vmatpush1.bf16.msra.mxu0 0
      %1818 = vmatprep.subr.bf16.mxu0 0
      %1819 = vmatpush1.bf16.msra.mxu0 0
      %1820 = vmatprep.subr.bf16.mxu0 0
      %1821 = vmatpush1.bf16.msra.mxu0 0
      %1822 = vmatprep.subr.bf16.mxu0 0
      %1823 = vmatpush1.bf16.msra.mxu0 0
      %1824 = vmatprep.subr.bf16.mxu0 0
      %1825 = vmatpush1.bf16.msra.mxu0 0
      %1826 = vmatprep.subr.bf16.mxu0 0
      %1827 = vmatpush1.bf16.msra.mxu0 0
      %1828 = vmatprep.subr.bf16.mxu0 0
      %1829 = vmatpush1.bf16.msra.mxu0 0
      %1830 = vmatprep.subr.bf16.mxu0 0
      %1831 = vmatpush1.bf16.msra.mxu0 0
      %1832 = vmatprep.mubr.bf16.mxu0 0
      %1833 = vmatmul.mubr.bf16.gmra.mrb[0].mxu0 %v1795
      %v1834 = vpop.f32.mrb[0].mxu0
      %v1835 = vadd.f32 0.0, %v1834
      %v1836 = vpop.f32.mrb[0].mxu0
      %v1837 = vpop.f32.mrb[0].mxu0
      %v1838 = vpop.f32.mrb[0].mxu0
      %1839 = vdwg.mxu0
      %v1840 = vadd.f32 %v1780, %v1835
      %s1841 = sadd.s32 %s1615, 2
      %s1842 = smul.u32 %s1841, 2
      %s1843 = smul.addr %s1842, 4
      %s1844 = scalar_lea.vmem %s183, %s1843
      %v1845 = vld [vmem:[%s1844] sm:$0xf]
      %v1846 = vld [vmem:[%s1844 + $0x4] sm:$0x1]
      %v1847 = vld [vmem:[%s432] sm:$0x7]
      %v1849 = vsel %vm216, %v1845, 0
      %v1852 = vsel %vm220, %v1847, 0
      %1854 = vmatprep.subr.bf16.mxu0 0
      %1855 = vmatpush1.bf16.msra.mxu0 %v1852
      %1856 = vmatprep.subr.bf16.mxu0 0
      %1857 = vmatpush1.bf16.msra.mxu0 0
      %1858 = vmatprep.subr.bf16.mxu0 0
      %1859 = vmatpush1.bf16.msra.mxu0 0
      %1860 = vmatprep.subr.bf16.mxu0 0
      %1861 = vmatpush1.bf16.msra.mxu0 0
      %1862 = vmatprep.subr.bf16.mxu0 0
      %1863 = vmatpush1.bf16.msra.mxu0 0
      %1864 = vmatprep.subr.bf16.mxu0 0
      %1865 = vmatpush1.bf16.msra.mxu0 0
      %1866 = vmatprep.subr.bf16.mxu0 0
      %1867 = vmatpush1.bf16.msra.mxu0 0
      %1868 = vmatprep.subr.bf16.mxu0 0
      %1869 = vmatpush1.bf16.msra.mxu0 0
      %1870 = vmatprep.subr.bf16.mxu0 0
      %1871 = vmatpush1.bf16.msra.mxu0 0
      %1872 = vmatprep.subr.bf16.mxu0 0
      %1873 = vmatpush1.bf16.msra.mxu0 0
      %1874 = vmatprep.subr.bf16.mxu0 0
      %1875 = vmatpush1.bf16.msra.mxu0 0
      %1876 = vmatprep.subr.bf16.mxu0 0
      %1877 = vmatpush1.bf16.msra.mxu0 0
      %1878 = vmatprep.subr.bf16.mxu0 0
      %1879 = vmatpush1.bf16.msra.mxu0 0
      %1880 = vmatprep.subr.bf16.mxu0 0
      %1881 = vmatpush1.bf16.msra.mxu0 0
      %1882 = vmatprep.subr.bf16.mxu0 0
      %1883 = vmatpush1.bf16.msra.mxu0 0
      %1884 = vmatprep.subr.bf16.mxu0 0
      %1885 = vmatpush1.bf16.msra.mxu0 0
      %1886 = vmatprep.mubr.bf16.mxu0 0
      %1887 = vmatmul.mubr.bf16.gmra.mrb[0].mxu0 %v1849
      %v1888 = vpop.f32.mrb[0].mxu0
      %v1889 = vadd.f32 0.0, %v1888
      %v1890 = vpop.f32.mrb[0].mxu0
      %v1891 = vpop.f32.mrb[0].mxu0
      %v1892 = vpop.f32.mrb[0].mxu0
      %1893 = vdwg.mxu0
      %v1894 = vadd.f32 %v1840, %v1889
      %v1895 = vld [vmem:[%s481] sm:$0x7]
      %v1898 = vunpack.c.l.b16 %v1845
      %v1899 = vunpack.c.l.b16 %v1846
      %v1900 = vpack.c.b16 %v1899, %v1898
      %v1902 = vshrl.u32 %v1900, 16
      %v1904 = vshll.u32 %v1900, 16
      %v1906 = vrot.slane %v1904, 1
      %v1907 = vor.u32 %v1902, %v1906
      %v1909 = vsel %vm216, %v1907, 0
      %v1912 = vsel %vm220, %v1895, 0
      %1914 = vmatprep.subr.bf16.mxu0 0
      %1915 = vmatpush1.bf16.msra.mxu0 %v1912
      %1916 = vmatprep.subr.bf16.mxu0 0
      %1917 = vmatpush1.bf16.msra.mxu0 0
      %1918 = vmatprep.subr.bf16.mxu0 0
      %1919 = vmatpush1.bf16.msra.mxu0 0
      %1920 = vmatprep.subr.bf16.mxu0 0
      %1921 = vmatpush1.bf16.msra.mxu0 0
      %1922 = vmatprep.subr.bf16.mxu0 0
      %1923 = vmatpush1.bf16.msra.mxu0 0
      %1924 = vmatprep.subr.bf16.mxu0 0
      %1925 = vmatpush1.bf16.msra.mxu0 0
      %1926 = vmatprep.subr.bf16.mxu0 0
      %1927 = vmatpush1.bf16.msra.mxu0 0
      %1928 = vmatprep.subr.bf16.mxu0 0
      %1929 = vmatpush1.bf16.msra.mxu0 0
      %1930 = vmatprep.subr.bf16.mxu0 0
      %1931 = vmatpush1.bf16.msra.mxu0 0
      %1932 = vmatprep.subr.bf16.mxu0 0
      %1933 = vmatpush1.bf16.msra.mxu0 0
      %1934 = vmatprep.subr.bf16.mxu0 0
      %1935 = vmatpush1.bf16.msra.mxu0 0
      %1936 = vmatprep.subr.bf16.mxu0 0
      %1937 = vmatpush1.bf16.msra.mxu0 0
      %1938 = vmatprep.subr.bf16.mxu0 0
      %1939 = vmatpush1.bf16.msra.mxu0 0
      %1940 = vmatprep.subr.bf16.mxu0 0
      %1941 = vmatpush1.bf16.msra.mxu0 0
      %1942 = vmatprep.subr.bf16.mxu0 0
      %1943 = vmatpush1.bf16.msra.mxu0 0
      %1944 = vmatprep.subr.bf16.mxu0 0
      %1945 = vmatpush1.bf16.msra.mxu0 0
      %1946 = vmatprep.mubr.bf16.mxu0 0
      %1947 = vmatmul.mubr.bf16.gmra.mrb[0].mxu0 %v1909
      %v1948 = vpop.f32.mrb[0].mxu0
      %v1949 = vadd.f32 0.0, %v1948
      %v1950 = vpop.f32.mrb[0].mxu0
      %v1951 = vpop.f32.mrb[0].mxu0
      %v1952 = vpop.f32.mrb[0].mxu0
      %1953 = vdwg.mxu0
      %v1954 = vadd.f32 %v1894, %v1949
      %v1955 = vld [vmem:[%s2] sm:$0x1]
      %v1957 = vlaneseq
      %v1958 = vshrl.u32 %v1957, 7
      %v1959 = vsub.s32 0, %v1958
      %v1960 = vrot.slane %v1955, %v1959
      %v1962 = vadd.f32 %v1954, %v1960
      %v1963 = vmax.f32 %v1962, 0.0
      %v1964 = vpack.c.bf16 %v1963, %v1963
      %s1965 = scalar_lea.vmem %s192, 16
      %1966 = vst.msk [vmem:[%s1965] sm:$0xf] %vm552, %v1964
      %s1967 = sadd.s32 %s554, 5
      %s1968 = smul.u32 %s1967, 2
      %s1969 = smul.u32 %s1968, 2
      %s1970 = smul.addr %s1969, 4
      %s1971 = scalar_lea.vmem %s183, %s1970
      %v1972 = vld [vmem:[%s1971] sm:$0xf]
      %v1973 = vld [vmem:[%s1971 + $0x4] sm:$0x1]
      %v1974 = vld [vmem:[%s1] sm:$0x7]
      %v1975 = vld [vmem:[%s202] sm:$0x7]
      %v1978 = vunpack.c.l.b16 %v1972
      %v1979 = vunpack.c.l.b16 %v1973
      %v1980 = vpack.c.b16 %v1979, %v1978
      %v1982 = vshrl.u32 %v1980, 16
      %v1984 = vshll.u32 %v1980, 16
      %v1986 = vrot.slane %v1984, 1
      %v1987 = vor.u32 %v1982, %v1986
      %v1989 = vsel %vm216, %v1987, 0
      %v1992 = vsel %vm220, %v1975, 0
      %1994 = vmatprep.subr.bf16.mxu0 0
      %1995 = vmatpush1.bf16.msra.mxu0 %v1992
      %1996 = vmatprep.subr.bf16.mxu0 0
      %1997 = vmatpush1.bf16.msra.mxu0 0
      %1998 = vmatprep.subr.bf16.mxu0 0
      %1999 = vmatpush1.bf16.msra.mxu0 0
      %2000 = vmatprep.subr.bf16.mxu0 0
      %2001 = vmatpush1.bf16.msra.mxu0 0
      %2002 = vmatprep.subr.bf16.mxu0 0
      %2003 = vmatpush1.bf16.msra.mxu0 0
      %2004 = vmatprep.subr.bf16.mxu0 0
      %2005 = vmatpush1.bf16.msra.mxu0 0
      %2006 = vmatprep.subr.bf16.mxu0 0
      %2007 = vmatpush1.bf16.msra.mxu0 0
      %2008 = vmatprep.subr.bf16.mxu0 0
      %2009 = vmatpush1.bf16.msra.mxu0 0
      %2010 = vmatprep.subr.bf16.mxu0 0
      %2011 = vmatpush1.bf16.msra.mxu0 0
      %2012 = vmatprep.subr.bf16.mxu0 0
      %2013 = vmatpush1.bf16.msra.mxu0 0
      %2014 = vmatprep.subr.bf16.mxu0 0
      %2015 = vmatpush1.bf16.msra.mxu0 0
      %2016 = vmatprep.subr.bf16.mxu0 0
      %2017 = vmatpush1.bf16.msra.mxu0 0
      %2018 = vmatprep.subr.bf16.mxu0 0
      %2019 = vmatpush1.bf16.msra.mxu0 0
      %2020 = vmatprep.subr.bf16.mxu0 0
      %2021 = vmatpush1.bf16.msra.mxu0 0
      %2022 = vmatprep.subr.bf16.mxu0 0
      %2023 = vmatpush1.bf16.msra.mxu0 0
      %2024 = vmatprep.subr.bf16.mxu0 0
      %2025 = vmatpush1.bf16.msra.mxu0 0
      %2026 = vmatprep.mubr.bf16.mxu0 0
      %2027 = vmatmul.mubr.bf16.gmra.mrb[0].mxu0 %v1989
      %v2028 = vpop.f32.mrb[0].mxu0
      %v2029 = vadd.f32 0.0, %v2028
      %v2030 = vpop.f32.mrb[0].mxu0
      %v2031 = vpop.f32.mrb[0].mxu0
      %v2032 = vpop.f32.mrb[0].mxu0
      %2033 = vdwg.mxu0
      %v2035 = vsel %vm216, %v1972, 0
      %v2038 = vsel %vm220, %v1974, 0
      %2040 = vmatprep.subr.bf16.mxu0 0
      %2041 = vmatpush1.bf16.msra.mxu0 %v2038
      %2042 = vmatprep.subr.bf16.mxu0 0
      %2043 = vmatpush1.bf16.msra.mxu0 0
      %2044 = vmatprep.subr.bf16.mxu0 0
      %2045 = vmatpush1.bf16.msra.mxu0 0
      %2046 = vmatprep.subr.bf16.mxu0 0
      %2047 = vmatpush1.bf16.msra.mxu0 0
      %2048 = vmatprep.subr.bf16.mxu0 0
      %2049 = vmatpush1.bf16.msra.mxu0 0
      %2050 = vmatprep.subr.bf16.mxu0 0
      %2051 = vmatpush1.bf16.msra.mxu0 0
      %2052 = vmatprep.subr.bf16.mxu0 0
      %2053 = vmatpush1.bf16.msra.mxu0 0
      %2054 = vmatprep.subr.bf16.mxu0 0
      %2055 = vmatpush1.bf16.msra.mxu0 0
      %2056 = vmatprep.subr.bf16.mxu0 0
      %2057 = vmatpush1.bf16.msra.mxu0 0
      %2058 = vmatprep.subr.bf16.mxu0 0
      %2059 = vmatpush1.bf16.msra.mxu0 0
      %2060 = vmatprep.subr.bf16.mxu0 0
      %2061 = vmatpush1.bf16.msra.mxu0 0
      %2062 = vmatprep.subr.bf16.mxu0 0
      %2063 = vmatpush1.bf16.msra.mxu0 0
      %2064 = vmatprep.subr.bf16.mxu0 0
      %2065 = vmatpush1.bf16.msra.mxu0 0
      %2066 = vmatprep.subr.bf16.mxu0 0
      %2067 = vmatpush1.bf16.msra.mxu0 0
      %2068 = vmatprep.subr.bf16.mxu0 0
      %2069 = vmatpush1.bf16.msra.mxu0 0
      %2070 = vmatprep.subr.bf16.mxu0 0
      %2071 = vmatpush1.bf16.msra.mxu0 0
      %2072 = vmatprep.mubr.bf16.mxu0 0
      %2073 = vmatmul.mubr.bf16.gmra.mrb[0].mxu0 %v2035
      %v2074 = vpop.f32.mrb[0].mxu0
      %v2075 = vadd.f32 %v2029, %v2074
      %v2076 = vpop.f32.mrb[0].mxu0
      %v2077 = vpop.f32.mrb[0].mxu0
      %v2078 = vpop.f32.mrb[0].mxu0
      %2079 = vdwg.mxu0
      %s2080 = sadd.s32 %s1968, 1
      %s2081 = smul.u32 %s2080, 2
      %s2082 = smul.addr %s2081, 4
      %s2083 = scalar_lea.vmem %s183, %s2082
      %v2084 = vld [vmem:[%s2083] sm:$0xf]
      %v2085 = vld [vmem:[%s2083 + $0x4] sm:$0x1]
      %v2086 = vld [vmem:[%s316] sm:$0x7]
      %v2088 = vsel %vm216, %v2084, 0
      %v2091 = vsel %vm220, %v2086, 0
      %2093 = vmatprep.subr.bf16.mxu0 0
      %2094 = vmatpush1.bf16.msra.mxu0 %v2091
      %2095 = vmatprep.subr.bf16.mxu0 0
      %2096 = vmatpush1.bf16.msra.mxu0 0
      %2097 = vmatprep.subr.bf16.mxu0 0
      %2098 = vmatpush1.bf16.msra.mxu0 0
      %2099 = vmatprep.subr.bf16.mxu0 0
      %2100 = vmatpush1.bf16.msra.mxu0 0
      %2101 = vmatprep.subr.bf16.mxu0 0
      %2102 = vmatpush1.bf16.msra.mxu0 0
      %2103 = vmatprep.subr.bf16.mxu0 0
      %2104 = vmatpush1.bf16.msra.mxu0 0
      %2105 = vmatprep.subr.bf16.mxu0 0
      %2106 = vmatpush1.bf16.msra.mxu0 0
      %2107 = vmatprep.subr.bf16.mxu0 0
      %2108 = vmatpush1.bf16.msra.mxu0 0
      %2109 = vmatprep.subr.bf16.mxu0 0
      %2110 = vmatpush1.bf16.msra.mxu0 0
      %2111 = vmatprep.subr.bf16.mxu0 0
      %2112 = vmatpush1.bf16.msra.mxu0 0
      %2113 = vmatprep.subr.bf16.mxu0 0
      %2114 = vmatpush1.bf16.msra.mxu0 0
      %2115 = vmatprep.subr.bf16.mxu0 0
      %2116 = vmatpush1.bf16.msra.mxu0 0
      %2117 = vmatprep.subr.bf16.mxu0 0
      %2118 = vmatpush1.bf16.msra.mxu0 0
      %2119 = vmatprep.subr.bf16.mxu0 0
      %2120 = vmatpush1.bf16.msra.mxu0 0
      %2121 = vmatprep.subr.bf16.mxu0 0
      %2122 = vmatpush1.bf16.msra.mxu0 0
      %2123 = vmatprep.subr.bf16.mxu0 0
      %2124 = vmatpush1.bf16.msra.mxu0 0
      %2125 = vmatprep.mubr.bf16.mxu0 0
      %2126 = vmatmul.mubr.bf16.gmra.mrb[0].mxu0 %v2088
      %v2127 = vpop.f32.mrb[0].mxu0
      %v2128 = vadd.f32 0.0, %v2127
      %v2129 = vpop.f32.mrb[0].mxu0
      %v2130 = vpop.f32.mrb[0].mxu0
      %v2131 = vpop.f32.mrb[0].mxu0
      %2132 = vdwg.mxu0
      %v2133 = vadd.f32 %v2075, %v2128
      %v2134 = vld [vmem:[%s365] sm:$0x7]
      %v2137 = vunpack.c.l.b16 %v2084
      %v2138 = vunpack.c.l.b16 %v2085
      %v2139 = vpack.c.b16 %v2138, %v2137
      %v2141 = vshrl.u32 %v2139, 16
      %v2143 = vshll.u32 %v2139, 16
      %v2145 = vrot.slane %v2143, 1
      %v2146 = vor.u32 %v2141, %v2145
      %v2148 = vsel %vm216, %v2146, 0
      %v2151 = vsel %vm220, %v2134, 0
      %2153 = vmatprep.subr.bf16.mxu0 0
      %2154 = vmatpush1.bf16.msra.mxu0 %v2151
      %2155 = vmatprep.subr.bf16.mxu0 0
      %2156 = vmatpush1.bf16.msra.mxu0 0
      %2157 = vmatprep.subr.bf16.mxu0 0
      %2158 = vmatpush1.bf16.msra.mxu0 0
      %2159 = vmatprep.subr.bf16.mxu0 0
      %2160 = vmatpush1.bf16.msra.mxu0 0
      %2161 = vmatprep.subr.bf16.mxu0 0
      %2162 = vmatpush1.bf16.msra.mxu0 0
      %2163 = vmatprep.subr.bf16.mxu0 0
      %2164 = vmatpush1.bf16.msra.mxu0 0
      %2165 = vmatprep.subr.bf16.mxu0 0
      %2166 = vmatpush1.bf16.msra.mxu0 0
      %2167 = vmatprep.subr.bf16.mxu0 0
      %2168 = vmatpush1.bf16.msra.mxu0 0
      %2169 = vmatprep.subr.bf16.mxu0 0
      %2170 = vmatpush1.bf16.msra.mxu0 0
      %2171 = vmatprep.subr.bf16.mxu0 0
      %2172 = vmatpush1.bf16.msra.mxu0 0
      %2173 = vmatprep.subr.bf16.mxu0 0
      %2174 = vmatpush1.bf16.msra.mxu0 0
      %2175 = vmatprep.subr.bf16.mxu0 0
      %2176 = vmatpush1.bf16.msra.mxu0 0
      %2177 = vmatprep.subr.bf16.mxu0 0
      %2178 = vmatpush1.bf16.msra.mxu0 0
      %2179 = vmatprep.subr.bf16.mxu0 0
      %2180 = vmatpush1.bf16.msra.mxu0 0
      %2181 = vmatprep.subr.bf16.mxu0 0
      %2182 = vmatpush1.bf16.msra.mxu0 0
      %2183 = vmatprep.subr.bf16.mxu0 0
      %2184 = vmatpush1.bf16.msra.mxu0 0
      %2185 = vmatprep.mubr.bf16.mxu0 0
      %2186 = vmatmul.mubr.bf16.gmra.mrb[0].mxu0 %v2148
      %v2187 = vpop.f32.mrb[0].mxu0
      %v2188 = vadd.f32 0.0, %v2187
      %v2189 = vpop.f32.mrb[0].mxu0
      %v2190 = vpop.f32.mrb[0].mxu0
      %v2191 = vpop.f32.mrb[0].mxu0
      %2192 = vdwg.mxu0
      %v2193 = vadd.f32 %v2133, %v2188
      %s2194 = sadd.s32 %s1968, 2
      %s2195 = smul.u32 %s2194, 2
      %s2196 = smul.addr %s2195, 4
      %s2197 = scalar_lea.vmem %s183, %s2196
      %v2198 = vld [vmem:[%s2197] sm:$0xf]
      %v2199 = vld [vmem:[%s2197 + $0x4] sm:$0x1]
      %v2200 = vld [vmem:[%s432] sm:$0x7]
      %v2202 = vsel %vm216, %v2198, 0
      %v2205 = vsel %vm220, %v2200, 0
      %2207 = vmatprep.subr.bf16.mxu0 0
      %2208 = vmatpush1.bf16.msra.mxu0 %v2205
      %2209 = vmatprep.subr.bf16.mxu0 0
      %2210 = vmatpush1.bf16.msra.mxu0 0
      %2211 = vmatprep.subr.bf16.mxu0 0
      %2212 = vmatpush1.bf16.msra.mxu0 0
      %2213 = vmatprep.subr.bf16.mxu0 0
      %2214 = vmatpush1.bf16.msra.mxu0 0
      %2215 = vmatprep.subr.bf16.mxu0 0
      %2216 = vmatpush1.bf16.msra.mxu0 0
      %2217 = vmatprep.subr.bf16.mxu0 0
      %2218 = vmatpush1.bf16.msra.mxu0 0
      %2219 = vmatprep.subr.bf16.mxu0 0
      %2220 = vmatpush1.bf16.msra.mxu0 0
      %2221 = vmatprep.subr.bf16.mxu0 0
      %2222 = vmatpush1.bf16.msra.mxu0 0
      %2223 = vmatprep.subr.bf16.mxu0 0
      %2224 = vmatpush1.bf16.msra.mxu0 0
      %2225 = vmatprep.subr.bf16.mxu0 0
      %2226 = vmatpush1.bf16.msra.mxu0 0
      %2227 = vmatprep.subr.bf16.mxu0 0
      %2228 = vmatpush1.bf16.msra.mxu0 0
      %2229 = vmatprep.subr.bf16.mxu0 0
      %2230 = vmatpush1.bf16.msra.mxu0 0
      %2231 = vmatprep.subr.bf16.mxu0 0
      %2232 = vmatpush1.bf16.msra.mxu0 0
      %2233 = vmatprep.subr.bf16.mxu0 0
      %2234 = vmatpush1.bf16.msra.mxu0 0
      %2235 = vmatprep.subr.bf16.mxu0 0
      %2236 = vmatpush1.bf16.msra.mxu0 0
      %2237 = vmatprep.subr.bf16.mxu0 0
      %2238 = vmatpush1.bf16.msra.mxu0 0
      %2239 = vmatprep.mubr.bf16.mxu0 0
      %2240 = vmatmul.mubr.bf16.gmra.mrb[0].mxu0 %v2202
      %v2241 = vpop.f32.mrb[0].mxu0
      %v2242 = vadd.f32 0.0, %v2241
      %v2243 = vpop.f32.mrb[0].mxu0
      %v2244 = vpop.f32.mrb[0].mxu0
      %v2245 = vpop.f32.mrb[0].mxu0
      %2246 = vdwg.mxu0
      %v2247 = vadd.f32 %v2193, %v2242
      %v2248 = vld [vmem:[%s481] sm:$0x7]
      %v2251 = vunpack.c.l.b16 %v2198
      %v2252 = vunpack.c.l.b16 %v2199
      %v2253 = vpack.c.b16 %v2252, %v2251
      %v2255 = vshrl.u32 %v2253, 16
      %v2257 = vshll.u32 %v2253, 16
      %v2259 = vrot.slane %v2257, 1
      %v2260 = vor.u32 %v2255, %v2259
      %v2262 = vsel %vm216, %v2260, 0
      %v2265 = vsel %vm220, %v2248, 0
      %2267 = vmatprep.subr.bf16.mxu0 0
      %2268 = vmatpush1.bf16.msra.mxu0 %v2265
      %2269 = vmatprep.subr.bf16.mxu0 0
      %2270 = vmatpush1.bf16.msra.mxu0 0
      %2271 = vmatprep.subr.bf16.mxu0 0
      %2272 = vmatpush1.bf16.msra.mxu0 0
      %2273 = vmatprep.subr.bf16.mxu0 0
      %2274 = vmatpush1.bf16.msra.mxu0 0
      %2275 = vmatprep.subr.bf16.mxu0 0
      %2276 = vmatpush1.bf16.msra.mxu0 0
      %2277 = vmatprep.subr.bf16.mxu0 0
      %2278 = vmatpush1.bf16.msra.mxu0 0
      %2279 = vmatprep.subr.bf16.mxu0 0
      %2280 = vmatpush1.bf16.msra.mxu0 0
      %2281 = vmatprep.subr.bf16.mxu0 0
      %2282 = vmatpush1.bf16.msra.mxu0 0
      %2283 = vmatprep.subr.bf16.mxu0 0
      %2284 = vmatpush1.bf16.msra.mxu0 0
      %2285 = vmatprep.subr.bf16.mxu0 0
      %2286 = vmatpush1.bf16.msra.mxu0 0
      %2287 = vmatprep.subr.bf16.mxu0 0
      %2288 = vmatpush1.bf16.msra.mxu0 0
      %2289 = vmatprep.subr.bf16.mxu0 0
      %2290 = vmatpush1.bf16.msra.mxu0 0
      %2291 = vmatprep.subr.bf16.mxu0 0
      %2292 = vmatpush1.bf16.msra.mxu0 0
      %2293 = vmatprep.subr.bf16.mxu0 0
      %2294 = vmatpush1.bf16.msra.mxu0 0
      %2295 = vmatprep.subr.bf16.mxu0 0
      %2296 = vmatpush1.bf16.msra.mxu0 0
      %2297 = vmatprep.subr.bf16.mxu0 0
      %2298 = vmatpush1.bf16.msra.mxu0 0
      %2299 = vmatprep.mubr.bf16.mxu0 0
      %2300 = vmatmul.mubr.bf16.gmra.mrb[0].mxu0 %v2262
      %v2301 = vpop.f32.mrb[0].mxu0
      %v2302 = vadd.f32 0.0, %v2301
      %v2303 = vpop.f32.mrb[0].mxu0
      %v2304 = vpop.f32.mrb[0].mxu0
      %v2305 = vpop.f32.mrb[0].mxu0
      %2306 = vdwg.mxu0
      %v2307 = vadd.f32 %v2247, %v2302
      %v2308 = vld [vmem:[%s2] sm:$0x1]
      %v2310 = vlaneseq
      %v2311 = vshrl.u32 %v2310, 7
      %v2312 = vsub.s32 0, %v2311
      %v2313 = vrot.slane %v2308, %v2312
      %v2315 = vadd.f32 %v2307, %v2313
      %v2316 = vmax.f32 %v2315, 0.0
      %v2317 = vpack.c.bf16 %v2316, %v2316
      %s2318 = scalar_lea.vmem %s192, 20
      %2319 = vst.msk [vmem:[%s2318] sm:$0xf] %vm552, %v2317
      %s2320 = sadd.s32 %s554, 6
      %s2321 = smul.u32 %s2320, 2
      %s2322 = smul.u32 %s2321, 2
      %s2323 = smul.addr %s2322, 4
      %s2324 = scalar_lea.vmem %s183, %s2323
      %v2325 = vld [vmem:[%s2324] sm:$0xf]
      %v2326 = vld [vmem:[%s2324 + $0x4] sm:$0x1]
      %v2327 = vld [vmem:[%s1] sm:$0x7]
      %v2328 = vld [vmem:[%s202] sm:$0x7]
      %v2331 = vunpack.c.l.b16 %v2325
      %v2332 = vunpack.c.l.b16 %v2326
      %v2333 = vpack.c.b16 %v2332, %v2331
      %v2335 = vshrl.u32 %v2333, 16
      %v2337 = vshll.u32 %v2333, 16
      %v2339 = vrot.slane %v2337, 1
      %v2340 = vor.u32 %v2335, %v2339
      %v2342 = vsel %vm216, %v2340, 0
      %v2345 = vsel %vm220, %v2328, 0
      %2347 = vmatprep.subr.bf16.mxu0 0
      %2348 = vmatpush1.bf16.msra.mxu0 %v2345
      %2349 = vmatprep.subr.bf16.mxu0 0
      %2350 = vmatpush1.bf16.msra.mxu0 0
      %2351 = vmatprep.subr.bf16.mxu0 0
      %2352 = vmatpush1.bf16.msra.mxu0 0
      %2353 = vmatprep.subr.bf16.mxu0 0
      %2354 = vmatpush1.bf16.msra.mxu0 0
      %2355 = vmatprep.subr.bf16.mxu0 0
      %2356 = vmatpush1.bf16.msra.mxu0 0
      %2357 = vmatprep.subr.bf16.mxu0 0
      %2358 = vmatpush1.bf16.msra.mxu0 0
      %2359 = vmatprep.subr.bf16.mxu0 0
      %2360 = vmatpush1.bf16.msra.mxu0 0
      %2361 = vmatprep.subr.bf16.mxu0 0
      %2362 = vmatpush1.bf16.msra.mxu0 0
      %2363 = vmatprep.subr.bf16.mxu0 0
      %2364 = vmatpush1.bf16.msra.mxu0 0
      %2365 = vmatprep.subr.bf16.mxu0 0
      %2366 = vmatpush1.bf16.msra.mxu0 0
      %2367 = vmatprep.subr.bf16.mxu0 0
      %2368 = vmatpush1.bf16.msra.mxu0 0
      %2369 = vmatprep.subr.bf16.mxu0 0
      %2370 = vmatpush1.bf16.msra.mxu0 0
      %2371 = vmatprep.subr.bf16.mxu0 0
      %2372 = vmatpush1.bf16.msra.mxu0 0
      %2373 = vmatprep.subr.bf16.mxu0 0
      %2374 = vmatpush1.bf16.msra.mxu0 0
      %2375 = vmatprep.subr.bf16.mxu0 0
      %2376 = vmatpush1.bf16.msra.mxu0 0
      %2377 = vmatprep.subr.bf16.mxu0 0
      %2378 = vmatpush1.bf16.msra.mxu0 0
      %2379 = vmatprep.mubr.bf16.mxu0 0
      %2380 = vmatmul.mubr.bf16.gmra.mrb[0].mxu0 %v2342
      %v2381 = vpop.f32.mrb[0].mxu0
      %v2382 = vadd.f32 0.0, %v2381
      %v2383 = vpop.f32.mrb[0].mxu0
      %v2384 = vpop.f32.mrb[0].mxu0
      %v2385 = vpop.f32.mrb[0].mxu0
      %2386 = vdwg.mxu0
      %v2388 = vsel %vm216, %v2325, 0
      %v2391 = vsel %vm220, %v2327, 0
      %2393 = vmatprep.subr.bf16.mxu0 0
      %2394 = vmatpush1.bf16.msra.mxu0 %v2391
      %2395 = vmatprep.subr.bf16.mxu0 0
      %2396 = vmatpush1.bf16.msra.mxu0 0
      %2397 = vmatprep.subr.bf16.mxu0 0
      %2398 = vmatpush1.bf16.msra.mxu0 0
      %2399 = vmatprep.subr.bf16.mxu0 0
      %2400 = vmatpush1.bf16.msra.mxu0 0
      %2401 = vmatprep.subr.bf16.mxu0 0
      %2402 = vmatpush1.bf16.msra.mxu0 0
      %2403 = vmatprep.subr.bf16.mxu0 0
      %2404 = vmatpush1.bf16.msra.mxu0 0
      %2405 = vmatprep.subr.bf16.mxu0 0
      %2406 = vmatpush1.bf16.msra.mxu0 0
      %2407 = vmatprep.subr.bf16.mxu0 0
      %2408 = vmatpush1.bf16.msra.mxu0 0
      %2409 = vmatprep.subr.bf16.mxu0 0
      %2410 = vmatpush1.bf16.msra.mxu0 0
      %2411 = vmatprep.subr.bf16.mxu0 0
      %2412 = vmatpush1.bf16.msra.mxu0 0
      %2413 = vmatprep.subr.bf16.mxu0 0
      %2414 = vmatpush1.bf16.msra.mxu0 0
      %2415 = vmatprep.subr.bf16.mxu0 0
      %2416 = vmatpush1.bf16.msra.mxu0 0
      %2417 = vmatprep.subr.bf16.mxu0 0
      %2418 = vmatpush1.bf16.msra.mxu0 0
      %2419 = vmatprep.subr.bf16.mxu0 0
      %2420 = vmatpush1.bf16.msra.mxu0 0
      %2421 = vmatprep.subr.bf16.mxu0 0
      %2422 = vmatpush1.bf16.msra.mxu0 0
      %2423 = vmatprep.subr.bf16.mxu0 0
      %2424 = vmatpush1.bf16.msra.mxu0 0
      %2425 = vmatprep.mubr.bf16.mxu0 0
      %2426 = vmatmul.mubr.bf16.gmra.mrb[0].mxu0 %v2388
      %v2427 = vpop.f32.mrb[0].mxu0
      %v2428 = vadd.f32 %v2382, %v2427
      %v2429 = vpop.f32.mrb[0].mxu0
      %v2430 = vpop.f32.mrb[0].mxu0
      %v2431 = vpop.f32.mrb[0].mxu0
      %2432 = vdwg.mxu0
      %s2433 = sadd.s32 %s2321, 1
      %s2434 = smul.u32 %s2433, 2
      %s2435 = smul.addr %s2434, 4
      %s2436 = scalar_lea.vmem %s183, %s2435
      %v2437 = vld [vmem:[%s2436] sm:$0xf]
      %v2438 = vld [vmem:[%s2436 + $0x4] sm:$0x1]
      %v2439 = vld [vmem:[%s316] sm:$0x7]
      %v2441 = vsel %vm216, %v2437, 0
      %v2444 = vsel %vm220, %v2439, 0
      %2446 = vmatprep.subr.bf16.mxu0 0
      %2447 = vmatpush1.bf16.msra.mxu0 %v2444
      %2448 = vmatprep.subr.bf16.mxu0 0
      %2449 = vmatpush1.bf16.msra.mxu0 0
      %2450 = vmatprep.subr.bf16.mxu0 0
      %2451 = vmatpush1.bf16.msra.mxu0 0
      %2452 = vmatprep.subr.bf16.mxu0 0
      %2453 = vmatpush1.bf16.msra.mxu0 0
      %2454 = vmatprep.subr.bf16.mxu0 0
      %2455 = vmatpush1.bf16.msra.mxu0 0
      %2456 = vmatprep.subr.bf16.mxu0 0
      %2457 = vmatpush1.bf16.msra.mxu0 0
      %2458 = vmatprep.subr.bf16.mxu0 0
      %2459 = vmatpush1.bf16.msra.mxu0 0
      %2460 = vmatprep.subr.bf16.mxu0 0
      %2461 = vmatpush1.bf16.msra.mxu0 0
      %2462 = vmatprep.subr.bf16.mxu0 0
      %2463 = vmatpush1.bf16.msra.mxu0 0
      %2464 = vmatprep.subr.bf16.mxu0 0
      %2465 = vmatpush1.bf16.msra.mxu0 0
      %2466 = vmatprep.subr.bf16.mxu0 0
      %2467 = vmatpush1.bf16.msra.mxu0 0
      %2468 = vmatprep.subr.bf16.mxu0 0
      %2469 = vmatpush1.bf16.msra.mxu0 0
      %2470 = vmatprep.subr.bf16.mxu0 0
      %2471 = vmatpush1.bf16.msra.mxu0 0
      %2472 = vmatprep.subr.bf16.mxu0 0
      %2473 = vmatpush1.bf16.msra.mxu0 0
      %2474 = vmatprep.subr.bf16.mxu0 0
      %2475 = vmatpush1.bf16.msra.mxu0 0
      %2476 = vmatprep.subr.bf16.mxu0 0
      %2477 = vmatpush1.bf16.msra.mxu0 0
      %2478 = vmatprep.mubr.bf16.mxu0 0
      %2479 = vmatmul.mubr.bf16.gmra.mrb[0].mxu0 %v2441
      %v2480 = vpop.f32.mrb[0].mxu0
      %v2481 = vadd.f32 0.0, %v2480
      %v2482 = vpop.f32.mrb[0].mxu0
      %v2483 = vpop.f32.mrb[0].mxu0
      %v2484 = vpop.f32.mrb[0].mxu0
      %2485 = vdwg.mxu0
      %v2486 = vadd.f32 %v2428, %v2481
      %v2487 = vld [vmem:[%s365] sm:$0x7]
      %v2490 = vunpack.c.l.b16 %v2437
      %v2491 = vunpack.c.l.b16 %v2438
      %v2492 = vpack.c.b16 %v2491, %v2490
      %v2494 = vshrl.u32 %v2492, 16
      %v2496 = vshll.u32 %v2492, 16
      %v2498 = vrot.slane %v2496, 1
      %v2499 = vor.u32 %v2494, %v2498
      %v2501 = vsel %vm216, %v2499, 0
      %v2504 = vsel %vm220, %v2487, 0
      %2506 = vmatprep.subr.bf16.mxu0 0
      %2507 = vmatpush1.bf16.msra.mxu0 %v2504
      %2508 = vmatprep.subr.bf16.mxu0 0
      %2509 = vmatpush1.bf16.msra.mxu0 0
      %2510 = vmatprep.subr.bf16.mxu0 0
      %2511 = vmatpush1.bf16.msra.mxu0 0
      %2512 = vmatprep.subr.bf16.mxu0 0
      %2513 = vmatpush1.bf16.msra.mxu0 0
      %2514 = vmatprep.subr.bf16.mxu0 0
      %2515 = vmatpush1.bf16.msra.mxu0 0
      %2516 = vmatprep.subr.bf16.mxu0 0
      %2517 = vmatpush1.bf16.msra.mxu0 0
      %2518 = vmatprep.subr.bf16.mxu0 0
      %2519 = vmatpush1.bf16.msra.mxu0 0
      %2520 = vmatprep.subr.bf16.mxu0 0
      %2521 = vmatpush1.bf16.msra.mxu0 0
      %2522 = vmatprep.subr.bf16.mxu0 0
      %2523 = vmatpush1.bf16.msra.mxu0 0
      %2524 = vmatprep.subr.bf16.mxu0 0
      %2525 = vmatpush1.bf16.msra.mxu0 0
      %2526 = vmatprep.subr.bf16.mxu0 0
      %2527 = vmatpush1.bf16.msra.mxu0 0
      %2528 = vmatprep.subr.bf16.mxu0 0
      %2529 = vmatpush1.bf16.msra.mxu0 0
      %2530 = vmatprep.subr.bf16.mxu0 0
      %2531 = vmatpush1.bf16.msra.mxu0 0
      %2532 = vmatprep.subr.bf16.mxu0 0
      %2533 = vmatpush1.bf16.msra.mxu0 0
      %2534 = vmatprep.subr.bf16.mxu0 0
      %2535 = vmatpush1.bf16.msra.mxu0 0
      %2536 = vmatprep.subr.bf16.mxu0 0
      %2537 = vmatpush1.bf16.msra.mxu0 0
      %2538 = vmatprep.mubr.bf16.mxu0 0
      %2539 = vmatmul.mubr.bf16.gmra.mrb[0].mxu0 %v2501
      %v2540 = vpop.f32.mrb[0].mxu0
      %v2541 = vadd.f32 0.0, %v2540
      %v2542 = vpop.f32.mrb[0].mxu0
      %v2543 = vpop.f32.mrb[0].mxu0
      %v2544 = vpop.f32.mrb[0].mxu0
      %2545 = vdwg.mxu0
      %v2546 = vadd.f32 %v2486, %v2541
      %s2547 = sadd.s32 %s2321, 2
      %s2548 = smul.u32 %s2547, 2
      %s2549 = smul.addr %s2548, 4
      %s2550 = scalar_lea.vmem %s183, %s2549
      %v2551 = vld [vmem:[%s2550] sm:$0xf]
      %v2552 = vld [vmem:[%s2550 + $0x4] sm:$0x1]
      %v2553 = vld [vmem:[%s432] sm:$0x7]
      %v2555 = vsel %vm216, %v2551, 0
      %v2558 = vsel %vm220, %v2553, 0
      %2560 = vmatprep.subr.bf16.mxu0 0
      %2561 = vmatpush1.bf16.msra.mxu0 %v2558
      %2562 = vmatprep.subr.bf16.mxu0 0
      %2563 = vmatpush1.bf16.msra.mxu0 0
      %2564 = vmatprep.subr.bf16.mxu0 0
      %2565 = vmatpush1.bf16.msra.mxu0 0
      %2566 = vmatprep.subr.bf16.mxu0 0
      %2567 = vmatpush1.bf16.msra.mxu0 0
      %2568 = vmatprep.subr.bf16.mxu0 0
      %2569 = vmatpush1.bf16.msra.mxu0 0
      %2570 = vmatprep.subr.bf16.mxu0 0
      %2571 = vmatpush1.bf16.msra.mxu0 0
      %2572 = vmatprep.subr.bf16.mxu0 0
      %2573 = vmatpush1.bf16.msra.mxu0 0
      %2574 = vmatprep.subr.bf16.mxu0 0
      %2575 = vmatpush1.bf16.msra.mxu0 0
      %2576 = vmatprep.subr.bf16.mxu0 0
      %2577 = vmatpush1.bf16.msra.mxu0 0
      %2578 = vmatprep.subr.bf16.mxu0 0
      %2579 = vmatpush1.bf16.msra.mxu0 0
      %2580 = vmatprep.subr.bf16.mxu0 0
      %2581 = vmatpush1.bf16.msra.mxu0 0
      %2582 = vmatprep.subr.bf16.mxu0 0
      %2583 = vmatpush1.bf16.msra.mxu0 0
      %2584 = vmatprep.subr.bf16.mxu0 0
      %2585 = vmatpush1.bf16.msra.mxu0 0
      %2586 = vmatprep.subr.bf16.mxu0 0
      %2587 = vmatpush1.bf16.msra.mxu0 0
      %2588 = vmatprep.subr.bf16.mxu0 0
      %2589 = vmatpush1.bf16.msra.mxu0 0
      %2590 = vmatprep.subr.bf16.mxu0 0
      %2591 = vmatpush1.bf16.msra.mxu0 0
      %2592 = vmatprep.mubr.bf16.mxu0 0
      %2593 = vmatmul.mubr.bf16.gmra.mrb[0].mxu0 %v2555
      %v2594 = vpop.f32.mrb[0].mxu0
      %v2595 = vadd.f32 0.0, %v2594
      %v2596 = vpop.f32.mrb[0].mxu0
      %v2597 = vpop.f32.mrb[0].mxu0
      %v2598 = vpop.f32.mrb[0].mxu0
      %2599 = vdwg.mxu0
      %v2600 = vadd.f32 %v2546, %v2595
      %v2601 = vld [vmem:[%s481] sm:$0x7]
      %v2604 = vunpack.c.l.b16 %v2551
      %v2605 = vunpack.c.l.b16 %v2552
      %v2606 = vpack.c.b16 %v2605, %v2604
      %v2608 = vshrl.u32 %v2606, 16
      %v2610 = vshll.u32 %v2606, 16
      %v2612 = vrot.slane %v2610, 1
      %v2613 = vor.u32 %v2608, %v2612
      %v2615 = vsel %vm216, %v2613, 0
      %v2618 = vsel %vm220, %v2601, 0
      %2620 = vmatprep.subr.bf16.mxu0 0
      %2621 = vmatpush1.bf16.msra.mxu0 %v2618
      %2622 = vmatprep.subr.bf16.mxu0 0
      %2623 = vmatpush1.bf16.msra.mxu0 0
      %2624 = vmatprep.subr.bf16.mxu0 0
      %2625 = vmatpush1.bf16.msra.mxu0 0
      %2626 = vmatprep.subr.bf16.mxu0 0
      %2627 = vmatpush1.bf16.msra.mxu0 0
      %2628 = vmatprep.subr.bf16.mxu0 0
      %2629 = vmatpush1.bf16.msra.mxu0 0
      %2630 = vmatprep.subr.bf16.mxu0 0
      %2631 = vmatpush1.bf16.msra.mxu0 0
      %2632 = vmatprep.subr.bf16.mxu0 0
      %2633 = vmatpush1.bf16.msra.mxu0 0
      %2634 = vmatprep.subr.bf16.mxu0 0
      %2635 = vmatpush1.bf16.msra.mxu0 0
      %2636 = vmatprep.subr.bf16.mxu0 0
      %2637 = vmatpush1.bf16.msra.mxu0 0
      %2638 = vmatprep.subr.bf16.mxu0 0
      %2639 = vmatpush1.bf16.msra.mxu0 0
      %2640 = vmatprep.subr.bf16.mxu0 0
      %2641 = vmatpush1.bf16.msra.mxu0 0
      %2642 = vmatprep.subr.bf16.mxu0 0
      %2643 = vmatpush1.bf16.msra.mxu0 0
      %2644 = vmatprep.subr.bf16.mxu0 0
      %2645 = vmatpush1.bf16.msra.mxu0 0
      %2646 = vmatprep.subr.bf16.mxu0 0
      %2647 = vmatpush1.bf16.msra.mxu0 0
      %2648 = vmatprep.subr.bf16.mxu0 0
      %2649 = vmatpush1.bf16.msra.mxu0 0
      %2650 = vmatprep.subr.bf16.mxu0 0
      %2651 = vmatpush1.bf16.msra.mxu0 0
      %2652 = vmatprep.mubr.bf16.mxu0 0
      %2653 = vmatmul.mubr.bf16.gmra.mrb[0].mxu0 %v2615
      %v2654 = vpop.f32.mrb[0].mxu0
      %v2655 = vadd.f32 0.0, %v2654
      %v2656 = vpop.f32.mrb[0].mxu0
      %v2657 = vpop.f32.mrb[0].mxu0
      %v2658 = vpop.f32.mrb[0].mxu0
      %2659 = vdwg.mxu0
      %v2660 = vadd.f32 %v2600, %v2655
      %v2661 = vld [vmem:[%s2] sm:$0x1]
      %v2663 = vlaneseq
      %v2664 = vshrl.u32 %v2663, 7
      %v2665 = vsub.s32 0, %v2664
      %v2666 = vrot.slane %v2661, %v2665
      %v2668 = vadd.f32 %v2660, %v2666
      %v2669 = vmax.f32 %v2668, 0.0
      %v2670 = vpack.c.bf16 %v2669, %v2669
      %s2671 = scalar_lea.vmem %s192, 24
      %2672 = vst.msk [vmem:[%s2671] sm:$0xf] %vm552, %v2670
      %s2673 = sadd.s32 %s554, 7
      %s2674 = smul.u32 %s2673, 2
      %s2675 = smul.u32 %s2674, 2
      %s2676 = smul.addr %s2675, 4
      %s2677 = scalar_lea.vmem %s183, %s2676
      %v2678 = vld [vmem:[%s2677] sm:$0xf]
      %v2679 = vld [vmem:[%s2677 + $0x4] sm:$0x1]
      %v2680 = vld [vmem:[%s1] sm:$0x7]
      %v2681 = vld [vmem:[%s202] sm:$0x7]
      %v2684 = vunpack.c.l.b16 %v2678
      %v2685 = vunpack.c.l.b16 %v2679
      %v2686 = vpack.c.b16 %v2685, %v2684
      %v2688 = vshrl.u32 %v2686, 16
      %v2690 = vshll.u32 %v2686, 16
      %v2692 = vrot.slane %v2690, 1
      %v2693 = vor.u32 %v2688, %v2692
      %v2695 = vsel %vm216, %v2693, 0
      %v2698 = vsel %vm220, %v2681, 0
      %2700 = vmatprep.subr.bf16.mxu0 0
      %2701 = vmatpush1.bf16.msra.mxu0 %v2698
      %2702 = vmatprep.subr.bf16.mxu0 0
      %2703 = vmatpush1.bf16.msra.mxu0 0
      %2704 = vmatprep.subr.bf16.mxu0 0
      %2705 = vmatpush1.bf16.msra.mxu0 0
      %2706 = vmatprep.subr.bf16.mxu0 0
      %2707 = vmatpush1.bf16.msra.mxu0 0
      %2708 = vmatprep.subr.bf16.mxu0 0
      %2709 = vmatpush1.bf16.msra.mxu0 0
      %2710 = vmatprep.subr.bf16.mxu0 0
      %2711 = vmatpush1.bf16.msra.mxu0 0
      %2712 = vmatprep.subr.bf16.mxu0 0
      %2713 = vmatpush1.bf16.msra.mxu0 0
      %2714 = vmatprep.subr.bf16.mxu0 0
      %2715 = vmatpush1.bf16.msra.mxu0 0
      %2716 = vmatprep.subr.bf16.mxu0 0
      %2717 = vmatpush1.bf16.msra.mxu0 0
      %2718 = vmatprep.subr.bf16.mxu0 0
      %2719 = vmatpush1.bf16.msra.mxu0 0
      %2720 = vmatprep.subr.bf16.mxu0 0
      %2721 = vmatpush1.bf16.msra.mxu0 0
      %2722 = vmatprep.subr.bf16.mxu0 0
      %2723 = vmatpush1.bf16.msra.mxu0 0
      %2724 = vmatprep.subr.bf16.mxu0 0
      %2725 = vmatpush1.bf16.msra.mxu0 0
      %2726 = vmatprep.subr.bf16.mxu0 0
      %2727 = vmatpush1.bf16.msra.mxu0 0
      %2728 = vmatprep.subr.bf16.mxu0 0
      %2729 = vmatpush1.bf16.msra.mxu0 0
      %2730 = vmatprep.subr.bf16.mxu0 0
      %2731 = vmatpush1.bf16.msra.mxu0 0
      %2732 = vmatprep.mubr.bf16.mxu0 0
      %2733 = vmatmul.mubr.bf16.gmra.mrb[0].mxu0 %v2695
      %v2734 = vpop.f32.mrb[0].mxu0
      %v2735 = vadd.f32 0.0, %v2734
      %v2736 = vpop.f32.mrb[0].mxu0
      %v2737 = vpop.f32.mrb[0].mxu0
      %v2738 = vpop.f32.mrb[0].mxu0
      %2739 = vdwg.mxu0
      %v2741 = vsel %vm216, %v2678, 0
      %v2744 = vsel %vm220, %v2680, 0
      %2746 = vmatprep.subr.bf16.mxu0 0
      %2747 = vmatpush1.bf16.msra.mxu0 %v2744
      %2748 = vmatprep.subr.bf16.mxu0 0
      %2749 = vmatpush1.bf16.msra.mxu0 0
      %2750 = vmatprep.subr.bf16.mxu0 0
      %2751 = vmatpush1.bf16.msra.mxu0 0
      %2752 = vmatprep.subr.bf16.mxu0 0
      %2753 = vmatpush1.bf16.msra.mxu0 0
      %2754 = vmatprep.subr.bf16.mxu0 0
      %2755 = vmatpush1.bf16.msra.mxu0 0
      %2756 = vmatprep.subr.bf16.mxu0 0
      %2757 = vmatpush1.bf16.msra.mxu0 0
      %2758 = vmatprep.subr.bf16.mxu0 0
      %2759 = vmatpush1.bf16.msra.mxu0 0
      %2760 = vmatprep.subr.bf16.mxu0 0
      %2761 = vmatpush1.bf16.msra.mxu0 0
      %2762 = vmatprep.subr.bf16.mxu0 0
      %2763 = vmatpush1.bf16.msra.mxu0 0
      %2764 = vmatprep.subr.bf16.mxu0 0
      %2765 = vmatpush1.bf16.msra.mxu0 0
      %2766 = vmatprep.subr.bf16.mxu0 0
      %2767 = vmatpush1.bf16.msra.mxu0 0
      %2768 = vmatprep.subr.bf16.mxu0 0
      %2769 = vmatpush1.bf16.msra.mxu0 0
      %2770 = vmatprep.subr.bf16.mxu0 0
      %2771 = vmatpush1.bf16.msra.mxu0 0
      %2772 = vmatprep.subr.bf16.mxu0 0
      %2773 = vmatpush1.bf16.msra.mxu0 0
      %2774 = vmatprep.subr.bf16.mxu0 0
      %2775 = vmatpush1.bf16.msra.mxu0 0
      %2776 = vmatprep.subr.bf16.mxu0 0
      %2777 = vmatpush1.bf16.msra.mxu0 0
      %2778 = vmatprep.mubr.bf16.mxu0 0
      %2779 = vmatmul.mubr.bf16.gmra.mrb[0].mxu0 %v2741
      %v2780 = vpop.f32.mrb[0].mxu0
      %v2781 = vadd.f32 %v2735, %v2780
      %v2782 = vpop.f32.mrb[0].mxu0
      %v2783 = vpop.f32.mrb[0].mxu0
      %v2784 = vpop.f32.mrb[0].mxu0
      %2785 = vdwg.mxu0
      %s2786 = sadd.s32 %s2674, 1
      %s2787 = smul.u32 %s2786, 2
      %s2788 = smul.addr %s2787, 4
      %s2789 = scalar_lea.vmem %s183, %s2788
      %v2790 = vld [vmem:[%s2789] sm:$0xf]
      %v2791 = vld [vmem:[%s2789 + $0x4] sm:$0x1]
      %v2792 = vld [vmem:[%s316] sm:$0x7]
      %v2794 = vsel %vm216, %v2790, 0
      %v2797 = vsel %vm220, %v2792, 0
      %2799 = vmatprep.subr.bf16.mxu0 0
      %2800 = vmatpush1.bf16.msra.mxu0 %v2797
      %2801 = vmatprep.subr.bf16.mxu0 0
      %2802 = vmatpush1.bf16.msra.mxu0 0
      %2803 = vmatprep.subr.bf16.mxu0 0
      %2804 = vmatpush1.bf16.msra.mxu0 0
      %2805 = vmatprep.subr.bf16.mxu0 0
      %2806 = vmatpush1.bf16.msra.mxu0 0
      %2807 = vmatprep.subr.bf16.mxu0 0
      %2808 = vmatpush1.bf16.msra.mxu0 0
      %2809 = vmatprep.subr.bf16.mxu0 0
      %2810 = vmatpush1.bf16.msra.mxu0 0
      %2811 = vmatprep.subr.bf16.mxu0 0
      %2812 = vmatpush1.bf16.msra.mxu0 0
      %2813 = vmatprep.subr.bf16.mxu0 0
      %2814 = vmatpush1.bf16.msra.mxu0 0
      %2815 = vmatprep.subr.bf16.mxu0 0
      %2816 = vmatpush1.bf16.msra.mxu0 0
      %2817 = vmatprep.subr.bf16.mxu0 0
      %2818 = vmatpush1.bf16.msra.mxu0 0
      %2819 = vmatprep.subr.bf16.mxu0 0
      %2820 = vmatpush1.bf16.msra.mxu0 0
      %2821 = vmatprep.subr.bf16.mxu0 0
      %2822 = vmatpush1.bf16.msra.mxu0 0
      %2823 = vmatprep.subr.bf16.mxu0 0
      %2824 = vmatpush1.bf16.msra.mxu0 0
      %2825 = vmatprep.subr.bf16.mxu0 0
      %2826 = vmatpush1.bf16.msra.mxu0 0
      %2827 = vmatprep.subr.bf16.mxu0 0
      %2828 = vmatpush1.bf16.msra.mxu0 0
      %2829 = vmatprep.subr.bf16.mxu0 0
      %2830 = vmatpush1.bf16.msra.mxu0 0
      %2831 = vmatprep.mubr.bf16.mxu0 0
      %2832 = vmatmul.mubr.bf16.gmra.mrb[0].mxu0 %v2794
      %v2833 = vpop.f32.mrb[0].mxu0
      %v2834 = vadd.f32 0.0, %v2833
      %v2835 = vpop.f32.mrb[0].mxu0
      %v2836 = vpop.f32.mrb[0].mxu0
      %v2837 = vpop.f32.mrb[0].mxu0
      %2838 = vdwg.mxu0
      %v2839 = vadd.f32 %v2781, %v2834
      %v2840 = vld [vmem:[%s365] sm:$0x7]
      %v2843 = vunpack.c.l.b16 %v2790
      %v2844 = vunpack.c.l.b16 %v2791
      %v2845 = vpack.c.b16 %v2844, %v2843
      %v2847 = vshrl.u32 %v2845, 16
      %v2849 = vshll.u32 %v2845, 16
      %v2851 = vrot.slane %v2849, 1
      %v2852 = vor.u32 %v2847, %v2851
      %v2854 = vsel %vm216, %v2852, 0
      %v2857 = vsel %vm220, %v2840, 0
      %2859 = vmatprep.subr.bf16.mxu0 0
      %2860 = vmatpush1.bf16.msra.mxu0 %v2857
      %2861 = vmatprep.subr.bf16.mxu0 0
      %2862 = vmatpush1.bf16.msra.mxu0 0
      %2863 = vmatprep.subr.bf16.mxu0 0
      %2864 = vmatpush1.bf16.msra.mxu0 0
      %2865 = vmatprep.subr.bf16.mxu0 0
      %2866 = vmatpush1.bf16.msra.mxu0 0
      %2867 = vmatprep.subr.bf16.mxu0 0
      %2868 = vmatpush1.bf16.msra.mxu0 0
      %2869 = vmatprep.subr.bf16.mxu0 0
      %2870 = vmatpush1.bf16.msra.mxu0 0
      %2871 = vmatprep.subr.bf16.mxu0 0
      %2872 = vmatpush1.bf16.msra.mxu0 0
      %2873 = vmatprep.subr.bf16.mxu0 0
      %2874 = vmatpush1.bf16.msra.mxu0 0
      %2875 = vmatprep.subr.bf16.mxu0 0
      %2876 = vmatpush1.bf16.msra.mxu0 0
      %2877 = vmatprep.subr.bf16.mxu0 0
      %2878 = vmatpush1.bf16.msra.mxu0 0
      %2879 = vmatprep.subr.bf16.mxu0 0
      %2880 = vmatpush1.bf16.msra.mxu0 0
      %2881 = vmatprep.subr.bf16.mxu0 0
      %2882 = vmatpush1.bf16.msra.mxu0 0
      %2883 = vmatprep.subr.bf16.mxu0 0
      %2884 = vmatpush1.bf16.msra.mxu0 0
      %2885 = vmatprep.subr.bf16.mxu0 0
      %2886 = vmatpush1.bf16.msra.mxu0 0
      %2887 = vmatprep.subr.bf16.mxu0 0
      %2888 = vmatpush1.bf16.msra.mxu0 0
      %2889 = vmatprep.subr.bf16.mxu0 0
      %2890 = vmatpush1.bf16.msra.mxu0 0
      %2891 = vmatprep.mubr.bf16.mxu0 0
      %2892 = vmatmul.mubr.bf16.gmra.mrb[0].mxu0 %v2854
      %v2893 = vpop.f32.mrb[0].mxu0
      %v2894 = vadd.f32 0.0, %v2893
      %v2895 = vpop.f32.mrb[0].mxu0
      %v2896 = vpop.f32.mrb[0].mxu0
      %v2897 = vpop.f32.mrb[0].mxu0
      %2898 = vdwg.mxu0
      %v2899 = vadd.f32 %v2839, %v2894
      %s2900 = sadd.s32 %s2674, 2
      %s2901 = smul.u32 %s2900, 2
      %s2902 = smul.addr %s2901, 4
      %s2903 = scalar_lea.vmem %s183, %s2902
      %v2904 = vld [vmem:[%s2903] sm:$0xf]
      %v2905 = vld [vmem:[%s2903 + $0x4] sm:$0x1]
      %v2906 = vld [vmem:[%s432] sm:$0x7]
      %v2908 = vsel %vm216, %v2904, 0
      %v2911 = vsel %vm220, %v2906, 0
      %2913 = vmatprep.subr.bf16.mxu0 0
      %2914 = vmatpush1.bf16.msra.mxu0 %v2911
      %2915 = vmatprep.subr.bf16.mxu0 0
      %2916 = vmatpush1.bf16.msra.mxu0 0
      %2917 = vmatprep.subr.bf16.mxu0 0
      %2918 = vmatpush1.bf16.msra.mxu0 0
      %2919 = vmatprep.subr.bf16.mxu0 0
      %2920 = vmatpush1.bf16.msra.mxu0 0
      %2921 = vmatprep.subr.bf16.mxu0 0
      %2922 = vmatpush1.bf16.msra.mxu0 0
      %2923 = vmatprep.subr.bf16.mxu0 0
      %2924 = vmatpush1.bf16.msra.mxu0 0
      %2925 = vmatprep.subr.bf16.mxu0 0
      %2926 = vmatpush1.bf16.msra.mxu0 0
      %2927 = vmatprep.subr.bf16.mxu0 0
      %2928 = vmatpush1.bf16.msra.mxu0 0
      %2929 = vmatprep.subr.bf16.mxu0 0
      %2930 = vmatpush1.bf16.msra.mxu0 0
      %2931 = vmatprep.subr.bf16.mxu0 0
      %2932 = vmatpush1.bf16.msra.mxu0 0
      %2933 = vmatprep.subr.bf16.mxu0 0
      %2934 = vmatpush1.bf16.msra.mxu0 0
      %2935 = vmatprep.subr.bf16.mxu0 0
      %2936 = vmatpush1.bf16.msra.mxu0 0
      %2937 = vmatprep.subr.bf16.mxu0 0
      %2938 = vmatpush1.bf16.msra.mxu0 0
      %2939 = vmatprep.subr.bf16.mxu0 0
      %2940 = vmatpush1.bf16.msra.mxu0 0
      %2941 = vmatprep.subr.bf16.mxu0 0
      %2942 = vmatpush1.bf16.msra.mxu0 0
      %2943 = vmatprep.subr.bf16.mxu0 0
      %2944 = vmatpush1.bf16.msra.mxu0 0
      %2945 = vmatprep.mubr.bf16.mxu0 0
      %2946 = vmatmul.mubr.bf16.gmra.mrb[0].mxu0 %v2908
      %v2947 = vpop.f32.mrb[0].mxu0
      %v2948 = vadd.f32 0.0, %v2947
      %v2949 = vpop.f32.mrb[0].mxu0
      %v2950 = vpop.f32.mrb[0].mxu0
      %v2951 = vpop.f32.mrb[0].mxu0
      %2952 = vdwg.mxu0
      %v2953 = vadd.f32 %v2899, %v2948
      %v2954 = vld [vmem:[%s481] sm:$0x7]
      %v2957 = vunpack.c.l.b16 %v2904
      %v2958 = vunpack.c.l.b16 %v2905
      %v2959 = vpack.c.b16 %v2958, %v2957
      %v2961 = vshrl.u32 %v2959, 16
      %v2963 = vshll.u32 %v2959, 16
      %v2965 = vrot.slane %v2963, 1
      %v2966 = vor.u32 %v2961, %v2965
      %v2968 = vsel %vm216, %v2966, 0
      %v2971 = vsel %vm220, %v2954, 0
      %2973 = vmatprep.subr.bf16.mxu0 0
      %2974 = vmatpush1.bf16.msra.mxu0 %v2971
      %2975 = vmatprep.subr.bf16.mxu0 0
      %2976 = vmatpush1.bf16.msra.mxu0 0
      %2977 = vmatprep.subr.bf16.mxu0 0
      %2978 = vmatpush1.bf16.msra.mxu0 0
      %2979 = vmatprep.subr.bf16.mxu0 0
      %2980 = vmatpush1.bf16.msra.mxu0 0
      %2981 = vmatprep.subr.bf16.mxu0 0
      %2982 = vmatpush1.bf16.msra.mxu0 0
      %2983 = vmatprep.subr.bf16.mxu0 0
      %2984 = vmatpush1.bf16.msra.mxu0 0
      %2985 = vmatprep.subr.bf16.mxu0 0
      %2986 = vmatpush1.bf16.msra.mxu0 0
      %2987 = vmatprep.subr.bf16.mxu0 0
      %2988 = vmatpush1.bf16.msra.mxu0 0
      %2989 = vmatprep.subr.bf16.mxu0 0
      %2990 = vmatpush1.bf16.msra.mxu0 0
      %2991 = vmatprep.subr.bf16.mxu0 0
      %2992 = vmatpush1.bf16.msra.mxu0 0
      %2993 = vmatprep.subr.bf16.mxu0 0
      %2994 = vmatpush1.bf16.msra.mxu0 0
      %2995 = vmatprep.subr.bf16.mxu0 0
      %2996 = vmatpush1.bf16.msra.mxu0 0
      %2997 = vmatprep.subr.bf16.mxu0 0
      %2998 = vmatpush1.bf16.msra.mxu0 0
      %2999 = vmatprep.subr.bf16.mxu0 0
      %3000 = vmatpush1.bf16.msra.mxu0 0
      %3001 = vmatprep.subr.bf16.mxu0 0
      %3002 = vmatpush1.bf16.msra.mxu0 0
      %3003 = vmatprep.subr.bf16.mxu0 0
      %3004 = vmatpush1.bf16.msra.mxu0 0
      %3005 = vmatprep.mubr.bf16.mxu0 0
      %3006 = vmatmul.mubr.bf16.gmra.mrb[0].mxu0 %v2968
      %v3007 = vpop.f32.mrb[0].mxu0
      %v3008 = vadd.f32 0.0, %v3007
      %v3009 = vpop.f32.mrb[0].mxu0
      %v3010 = vpop.f32.mrb[0].mxu0
      %v3011 = vpop.f32.mrb[0].mxu0
      %3012 = vdwg.mxu0
      %v3013 = vadd.f32 %v2953, %v3008
      %v3014 = vld [vmem:[%s2] sm:$0x1]
      %v3016 = vlaneseq
      %v3017 = vshrl.u32 %v3016, 7
      %v3018 = vsub.s32 0, %v3017
      %v3019 = vrot.slane %v3014, %v3018
      %v3021 = vadd.f32 %v3013, %v3019
      %v3022 = vmax.f32 %v3021, 0.0
      %v3023 = vpack.c.bf16 %v3022, %v3022
      %s3024 = scalar_lea.vmem %s192, 28
      %3025 = vst.msk [vmem:[%s3024] sm:$0xf] %vm552, %v3023
      %s3026 = smul.u32 8, %s19
      %p3027 = scmp.lt.s32.totalorder %s18, 1
      %s3028 = scalar_select %p3027, %s18, 1
      %p3029 = scmp.lt.s32.totalorder %s3026, 7
      %s3030 = scalar_select %p3029, %s3026, 7
      %s3031 = smul.addr %s3028, 8
      %s3032 = sadd.s32 %s3030, %s3031
      %s3033 = smul.addr %s3032, 4
      %s3034 = scalar_lea.vmem %s3, %s3033
      // Predicated region
      $region33: #{stem_block_forward.5} parent=31 // pred_check
        %p3035 = pneg %p114
      $region34: #{stem_block_forward.5} parent=31 // pred_check_branch
        %3037 = sbr.rel (%p3035) target = $region36
      $region35: #{stem_block_forward.5} parent=31 // pred_region
        %s3038 = smul.u32 8, %s19
      $region36: #{stem_block_forward.5} parent=31 // pred_fallthru
        _
    $region32: #{stem_block_forward.5} parent=5 // pred_fallthru
      _
    %p3039 = scmp.le.s32.totalorder 2, %s9
    // Predicated region
    $region37: #{stem_block_forward.5} parent=5 // pred_check
      %p3040 = pneg %p3039
    $region38: #{stem_block_forward.5} parent=5 // pred_check_branch
      %3042 = sbr.rel (%p3040) target = $region40
    $region39: #{stem_block_forward.5} parent=5 // pred_region
      %s3043 = ssub.s32 %s9, 2
      // Predicated region
      $region41: #{stem_block_forward.5} parent=39 // pred_check
        %p3044 = pneg %p120
      $region42: #{stem_block_forward.5} parent=39 // pred_check_branch
        %3046 = sbr.rel (%p3044) target = $region44
      $region43: #{stem_block_forward.5} parent=39 // pred_region
        %s3047 = smul.u32 8, %s21
        %p3048 = scmp.lt.s32.totalorder %s20, 1
        %s3049 = scalar_select %p3048, %s20, 1
        %p3050 = scmp.lt.s32.totalorder %s3047, 7
        %s3051 = scalar_select %p3050, %s3047, 7
        %s3052 = smul.addr %s3049, 8
        %s3053 = sadd.s32 %s3051, %s3052
        %s3054 = smul.addr %s3053, 4
        %s3055 = scalar_lea.vmem %s3, %s3054
      $region44: #{stem_block_forward.5} parent=39 // pred_fallthru
        _
    $region40: #{stem_block_forward.5} parent=5 // pred_fallthru
      _
  $region6: #{stem_block_forward.5} parent=0 // loop_footer
    %s13 = sadd.s32 1, %s9
  $region7: #{stem_block_forward.5} parent=0 // loop_footer_branch
    %8 = sbr.rel target = $region3
  $region8: #{stem_block_forward.5} parent=0 // loop_exit
    _

// kernel: stem_block_forward.7
$region0: #{stem_block_forward.7}
  #allocation0 [shape = 'u32[]', space=smem, size = 0x4, offset = 0x4, fixed_abs, tag = 'smem constant byte address 0x4 - core index']
  #allocation1 [shape = 'u32[144,128]{1,0:T(1,128)}', space=vmem, size = 0x12000, scoped, tag = 'internal scratch']
  %s0 = inlined_call_operand.vmem [shape: bf16[2,10,5,32], index: 0, kind: input, shape index: {}]
  %s1 = inlined_call_operand.vmem [shape: bf16[6,32,32], index: 1, kind: input, shape index: {}]
  %s2 = inlined_call_operand.vmem [shape: f32[1,32], index: 2, kind: input, shape index: {}]
  %s3 = inlined_call_operand.vmem [shape: bf16[2,4,4,32], index: 3, kind: output, shape index: {}]
  %s4 = sld [smem:[#allocation0]]
  $region45: #{stem_block_forward.7} parent=0
    _
  %s6 = ssub.s32 1, %s4
  %s7 = scalar_select 0, %s6, %s4
  loop: start=0, step=1, limit=4
  $region2: #{stem_block_forward.7} parent=0 // loop_pre_header
    _
  $region3: #{stem_block_forward.7} parent=0 // loop_header
    %s9 = sphi 0, %s13
    %p10 = scmp.ge.s32.totalorder %s9, 4
    %s16 = sphi 0, %s28
    %s17 = sphi 0, %s24
    %s18 = sphi 0, %s16
    %s19 = sphi 0, %s17
    %s20 = sphi 0, %s18
    %s21 = sphi 0, %s19
    %s31 = sphi 0, %s33
    %s34 = sphi 0, %s31
    %s35 = sphi 0, %s34
    %s51 = sphi 0, %s35
    %s55 = sphi 0, %s55
    %s57 = sphi 0, %s55
    %s58 = sphi 0, %s57
    %s72 = sphi 0, %s58
    %s76 = sphi 0, %s76
    %s78 = sphi 0, %s76
    %s79 = sphi 0, %s78
    %s93 = sphi 0, %s79
    %s101 = sphi 0, %s103
    %s104 = sphi 0, %s101
    %s105 = sphi 0, %s104
    %s121 = sphi 0, %s105
  $region4: #{stem_block_forward.7} parent=0 // loop_header_branch
    %12 = sbr.rel (%p10) target = $region8
  $region5: #{stem_block_forward.7} parent=0 // loop_body
    %s14 = ssub.s32 %s9, 1
    %s15 = ssub.s32 %s9, 2
    %s22 = sadd.s32 1, %s17
    %p23 = scmp.ge.s32.totalorder %s22, 1
    %s24 = scalar_select %p23, 0, %s22
    %s25 = sadd.s32 1, %s16
    %s26 = scalar_select %p23, %s25, %s16
    %p27 = scmp.ge.s32.totalorder %s26, 2
    %s28 = scalar_select %p27, 0, %s26
    %s29 = ssub.s32 %s16, %s28
    %p30 = scmp.eq.s32.totalorder %s29, 0
    %s32 = sadd.s32 %s31, 1
    %s33 = scalar_select %p30, %s31, %s32
    %p36 = pneg %p30
    %p37 = scmp.eq.s32.totalorder %s9, 1
    %p38 = por %p36, %p37
    %p39 = scmp.ne.s32.totalorder %s31, %s34
    %p40 = scmp.eq.s32.totalorder %s9, 0
    %p41 = por %p39, %p40
    %p42 = scmp.ne.s32.totalorder %s31, %s34
    %p43 = scmp.eq.s32.totalorder %s14, 1
    %p44 = por %p42, %p43
    %p45 = scmp.ne.s32.totalorder %s34, %s35
    %p46 = scmp.eq.s32.totalorder %s14, 0
    %p47 = por %p45, %p46
    %p48 = scmp.ne.s32.totalorder %s34, %s35
    %p49 = scmp.eq.s32.totalorder %s15, 1
    %p50 = por %p48, %p49
    %p52 = scmp.ne.s32.totalorder %s35, %s51
    %p53 = scmp.eq.s32.totalorder %s15, 0
    %p54 = por %p52, %p53
    %s56 = sadd.s32 %s55, 1
    %p59 = scmp.eq.s32.totalorder %s9, 1
    %p60 = scmp.ne.s32.totalorder %s55, %s57
    %p61 = scmp.eq.s32.totalorder %s9, 0
    %p62 = por %p60, %p61
    %p63 = scmp.ne.s32.totalorder %s55, %s57
    %p64 = scmp.eq.s32.totalorder %s14, 1
    %p65 = por %p63, %p64
    %p66 = scmp.ne.s32.totalorder %s57, %s58
    %p67 = scmp.eq.s32.totalorder %s14, 0
    %p68 = por %p66, %p67
    %p69 = scmp.ne.s32.totalorder %s57, %s58
    %p70 = scmp.eq.s32.totalorder %s15, 1
    %p71 = por %p69, %p70
    %p73 = scmp.ne.s32.totalorder %s58, %s72
    %p74 = scmp.eq.s32.totalorder %s15, 0
    %p75 = por %p73, %p74
    %s77 = sadd.s32 %s76, 1
    %p80 = scmp.eq.s32.totalorder %s9, 1
    %p81 = scmp.ne.s32.totalorder %s76, %s78
    %p82 = scmp.eq.s32.totalorder %s9, 0
    %p83 = por %p81, %p82
    %p84 = scmp.ne.s32.totalorder %s76, %s78
    %p85 = scmp.eq.s32.totalorder %s14, 1
    %p86 = por %p84, %p85
    %p87 = scmp.ne.s32.totalorder %s78, %s79
    %p88 = scmp.eq.s32.totalorder %s14, 0
    %p89 = por %p87, %p88
    %p90 = scmp.ne.s32.totalorder %s78, %s79
    %p91 = scmp.eq.s32.totalorder %s15, 1
    %p92 = por %p90, %p91
    %p94 = scmp.ne.s32.totalorder %s79, %s93
    %p95 = scmp.eq.s32.totalorder %s15, 0
    %p96 = por %p94, %p95
    %s97 = ssub.s32 %s16, %s28
    %s98 = ssub.s32 %s17, %s24
    %s99 = sor.u32 %s97, %s98
    %p100 = scmp.eq.s32.totalorder %s99, 0
    %s102 = sadd.s32 %s101, 1
    %s103 = scalar_select %p100, %s101, %s102
    %p106 = pneg %p100
    %p107 = scmp.eq.s32.totalorder %s9, 1
    %p108 = por %p106, %p107
    %p109 = scmp.ne.s32.totalorder %s101, %s104
    %p110 = scmp.eq.s32.totalorder %s9, 0
    %p111 = por %p109, %p110
    %p112 = scmp.ne.s32.totalorder %s101, %s104
    %p113 = scmp.eq.s32.totalorder %s14, 1
    %p114 = por %p112, %p113
    %p115 = scmp.ne.s32.totalorder %s104, %s105
    %p116 = scmp.eq.s32.totalorder %s14, 0
    %p117 = por %p115, %p116
    %p118 = scmp.ne.s32.totalorder %s104, %s105
    %p119 = scmp.eq.s32.totalorder %s15, 1
    %p120 = por %p118, %p119
    %p122 = scmp.ne.s32.totalorder %s105, %s121
    %p123 = scmp.eq.s32.totalorder %s15, 0
    %p124 = por %p122, %p123
    %p125 = scmp.le.s32.totalorder 1, %s9
    %p126 = scmp.lt.s32.totalorder %s9, 3
    %p127 = pnand %p125, %p126
    %p128 = pneg %p127
    // Predicated region
    $region9: #{stem_block_forward.7} parent=5 // pred_check
      _
    $region10: #{stem_block_forward.7} parent=5 // pred_check_branch
      %130 = sbr.rel (%p127) target = $region12
    $region11: #{stem_block_forward.7} parent=5 // pred_region
      %s131 = ssub.s32 %s9, 1
      // Predicated region
      $region13: #{stem_block_forward.7} parent=11 // pred_check
        %p132 = pneg %p68
      $region14: #{stem_block_forward.7} parent=11 // pred_check_branch
        %134 = sbr.rel (%p132) target = $region16
      $region15: #{stem_block_forward.7} parent=11 // pred_region
        _
      $region16: #{stem_block_forward.7} parent=11 // pred_fallthru
        _
      // Predicated region
      $region17: #{stem_block_forward.7} parent=11 // pred_check
        %p135 = pneg %p89
      $region18: #{stem_block_forward.7} parent=11 // pred_check_branch
        %137 = sbr.rel (%p135) target = $region20
      $region19: #{stem_block_forward.7} parent=11 // pred_region
        _
      $region20: #{stem_block_forward.7} parent=11 // pred_fallthru
        _
    $region12: #{stem_block_forward.7} parent=5 // pred_fallthru
      _
    %p138 = scmp.lt.s32.totalorder %s9, 2
    // Predicated region
    $region21: #{stem_block_forward.7} parent=5 // pred_check
      %p139 = pneg %p138
    $region22: #{stem_block_forward.7} parent=5 // pred_check_branch
      %141 = sbr.rel (%p139) target = $region24
    $region23: #{stem_block_forward.7} parent=5 // pred_region
      // Predicated region
      $region25: #{stem_block_forward.7} parent=23 // pred_check
        %p142 = pneg %p41
      $region26: #{stem_block_forward.7} parent=23 // pred_check_branch
        %144 = sbr.rel (%p142) target = $region28
      $region27: #{stem_block_forward.7} parent=23 // pred_region
        %p145 = scmp.lt.s32.totalorder %s16, 1
        %s146 = scalar_select %p145, %s16, 1
        %s147 = smul.addr %s146, 10
        %s148 = smul.addr %s147, 4
        %s149 = scalar_lea.vmem %s0, %s148
      $region28: #{stem_block_forward.7} parent=23 // pred_fallthru
        _
    $region24: #{stem_block_forward.7} parent=5 // pred_fallthru
      _
    %p150 = scmp.le.s32.totalorder 1, %s9
    %p151 = scmp.lt.s32.totalorder %s9, 3
    %p152 = pnand %p150, %p151
    %p153 = pneg %p152
    // Predicated region
    $region29: #{stem_block_forward.7} parent=5 // pred_check
      _
    $region30: #{stem_block_forward.7} parent=5 // pred_check_branch
      %155 = sbr.rel (%p152) target = $region32
    $region31: #{stem_block_forward.7} parent=5 // pred_region
      %s156 = ssub.s32 %s9, 1
      %p157 = scmp.lt.s32.totalorder %s18, 1
      %s158 = scalar_select %p157, %s18, 1
      %s159 = smul.addr %s158, 10
      %s160 = smul.addr %s159, 4
      %s161 = scalar_lea.vmem %s0, %s160
      %p162 = pneg %p47
      %p163 = pneg %p44
      %p164 = pneg %p68
      %p165 = pneg %p65
      %p166 = pneg %p89
      %p167 = pneg %p86
      %p168 = pneg %p117
      %p169 = pneg %p114
      %s170 = smul.u32 4, %s19
      %p171 = scmp.lt.s32.totalorder %s18, 1
      %s172 = scalar_select %p171, %s18, 1
      %p173 = scmp.lt.s32.totalorder %s170, 3
      %s174 = scalar_select %p173, %s170, 3
      %s175 = smul.addr %s172, 4
      %s176 = sadd.s32 %s174, %s175
      %s177 = smul.addr %s176, 2
      %s178 = scalar_lea.vmem %s3, %s177
      %p179 = scmp.lt.s32.totalorder %s18, 1
      %s180 = scalar_select %p179, %s18, 1
      %s181 = smul.addr %s180, 10
      %s182 = smul.addr %s181, 4
      %s183 = scalar_lea.vmem %s0, %s182
      %s184 = smul.u32 4, %s19
      %p185 = scmp.lt.s32.totalorder %s18, 1
      %s186 = scalar_select %p185, %s18, 1
      %p187 = scmp.lt.s32.totalorder %s184, 3
      %s188 = scalar_select %p187, %s184, 3
      %s189 = smul.addr %s186, 4
      %s190 = sadd.s32 %s188, %s189
      %s191 = smul.addr %s190, 2
      %s192 = scalar_lea.vmem %s3, %s191
      %s193 = smul.u32 4, %s19
      %s195 = smul.u32 %s19, 8
      %s196 = smul.addr %s195, 4
      %s197 = scalar_lea.vmem %s183, %s196
      %v198 = vld [vmem:[%s197] sm:$0x7]
      %v199 = vld [vmem:[%s1] sm:$0xf]
      %v200 = vld [vmem:[%s1 + $0x4] sm:$0xf]
      %v201 = vld [vmem:[%s1 + $0x8] sm:$0xf]
      %v202 = vld [vmem:[%s1 + $0xc] sm:$0xf]
      %s203 = scalar_lea.vmem %s1, 16
      %v204 = vld [vmem:[%s203] sm:$0xf]
      %v205 = vld [vmem:[%s203 + $0x4] sm:$0xf]
      %v206 = vld [vmem:[%s203 + $0x8] sm:$0xf]
      %v207 = vld [vmem:[%s203 + $0xc] sm:$0xf]
      %v209 = vunpack.c.l.b16 %v198
      %v210 = vpack.c.b16 %v209, %v209
      %v212 = vshrl.u32 %v210, 16
      %v214 = vshll.u32 %v210, 16
      %v216 = vrot.slane %v214, 1
      %v217 = vor.u32 %v212, %v216
      %v222 = vunpack.c.l.b16 %v204
      %v223 = vunpack.c.l.b16 %v205
      %v224 = vunpack.c.l.b16 %v206
      %v225 = vunpack.c.l.b16 %v207
      %v226 = vpack.c.b16 %v223, %v222
      %v227 = vpack.c.b16 %v225, %v224
      %vm230 = vcmask 261120
      %v232 = vsel %vm230, %v217, 0
      %234 = vmatprep.subr.bf16.mxu0 0
      %235 = vmatpush1.bf16.msra.mxu0 %v226
      %236 = vmatprep.subr.bf16.mxu0 0
      %237 = vmatpush1.bf16.msra.mxu0 %v227
      %238 = vmatprep.subr.bf16.mxu0 0
      %239 = vmatpush1.bf16.msra.mxu0 0
      %240 = vmatprep.subr.bf16.mxu0 0
      %241 = vmatpush1.bf16.msra.mxu0 0
      %242 = vmatprep.subr.bf16.mxu0 0
      %243 = vmatpush1.bf16.msra.mxu0 0
      %244 = vmatprep.subr.bf16.mxu0 0
      %245 = vmatpush1.bf16.msra.mxu0 0
      %246 = vmatprep.subr.bf16.mxu0 0
      %247 = vmatpush1.bf16.msra.mxu0 0
      %248 = vmatprep.subr.bf16.mxu0 0
      %249 = vmatpush1.bf16.msra.mxu0 0
      %250 = vmatprep.subr.bf16.mxu0 0
      %251 = vmatpush1.bf16.msra.mxu0 0
      %252 = vmatprep.subr.bf16.mxu0 0
      %253 = vmatpush1.bf16.msra.mxu0 0
      %254 = vmatprep.subr.bf16.mxu0 0
      %255 = vmatpush1.bf16.msra.mxu0 0
      %256 = vmatprep.subr.bf16.mxu0 0
      %257 = vmatpush1.bf16.msra.mxu0 0
      %258 = vmatprep.subr.bf16.mxu0 0
      %259 = vmatpush1.bf16.msra.mxu0 0
      %260 = vmatprep.subr.bf16.mxu0 0
      %261 = vmatpush1.bf16.msra.mxu0 0
      %262 = vmatprep.subr.bf16.mxu0 0
      %263 = vmatpush1.bf16.msra.mxu0 0
      %264 = vmatprep.subr.bf16.mxu0 0
      %265 = vmatpush1.bf16.msra.mxu0 0
      %266 = vmatprep.mubr.bf16.mxu0 0
      %267 = vmatmul.mubr.bf16.gmra.mrb[0].mxu0 %v232
      %v268 = vpop.f32.mrb[0].mxu0
      %v269 = vadd.f32 0.0, %v268
      %v270 = vpop.f32.mrb[0].mxu0
      %v271 = vpop.f32.mrb[0].mxu0
      %v272 = vpop.f32.mrb[0].mxu0
      %273 = vdwg.mxu0
      %v278 = vunpack.c.l.b16 %v199
      %v279 = vunpack.c.l.b16 %v200
      %v280 = vunpack.c.l.b16 %v201
      %v281 = vunpack.c.l.b16 %v202
      %v282 = vpack.c.b16 %v279, %v278
      %v283 = vpack.c.b16 %v281, %v280
      %v287 = vsel %vm230, %v198, 0
      %289 = vmatprep.subr.bf16.mxu0 0
      %290 = vmatpush1.bf16.msra.mxu0 %v282
      %291 = vmatprep.subr.bf16.mxu0 0
      %292 = vmatpush1.bf16.msra.mxu0 %v283
      %293 = vmatprep.subr.bf16.mxu0 0
      %294 = vmatpush1.bf16.msra.mxu0 0
      %295 = vmatprep.subr.bf16.mxu0 0
      %296 = vmatpush1.bf16.msra.mxu0 0
      %297 = vmatprep.subr.bf16.mxu0 0
      %298 = vmatpush1.bf16.msra.mxu0 0
      %299 = vmatprep.subr.bf16.mxu0 0
      %300 = vmatpush1.bf16.msra.mxu0 0
      %301 = vmatprep.subr.bf16.mxu0 0
      %302 = vmatpush1.bf16.msra.mxu0 0
      %303 = vmatprep.subr.bf16.mxu0 0
      %304 = vmatpush1.bf16.msra.mxu0 0
      %305 = vmatprep.subr.bf16.mxu0 0
      %306 = vmatpush1.bf16.msra.mxu0 0
      %307 = vmatprep.subr.bf16.mxu0 0
      %308 = vmatpush1.bf16.msra.mxu0 0
      %309 = vmatprep.subr.bf16.mxu0 0
      %310 = vmatpush1.bf16.msra.mxu0 0
      %311 = vmatprep.subr.bf16.mxu0 0
      %312 = vmatpush1.bf16.msra.mxu0 0
      %313 = vmatprep.subr.bf16.mxu0 0
      %314 = vmatpush1.bf16.msra.mxu0 0
      %315 = vmatprep.subr.bf16.mxu0 0
      %316 = vmatpush1.bf16.msra.mxu0 0
      %317 = vmatprep.subr.bf16.mxu0 0
      %318 = vmatpush1.bf16.msra.mxu0 0
      %319 = vmatprep.subr.bf16.mxu0 0
      %320 = vmatpush1.bf16.msra.mxu0 0
      %321 = vmatprep.mubr.bf16.mxu0 0
      %322 = vmatmul.mubr.bf16.gmra.mrb[0].mxu0 %v287
      %v323 = vpop.f32.mrb[0].mxu0
      %v324 = vadd.f32 %v269, %v323
      %v325 = vpop.f32.mrb[0].mxu0
      %v326 = vpop.f32.mrb[0].mxu0
      %v327 = vpop.f32.mrb[0].mxu0
      %328 = vdwg.mxu0
      %s329 = sadd.s32 %s195, 1
      %s330 = smul.addr %s329, 4
      %s331 = scalar_lea.vmem %s183, %s330
      %v332 = vld [vmem:[%s331] sm:$0x7]
      %s333 = scalar_lea.vmem %s1, 32
      %v334 = vld [vmem:[%s333] sm:$0xf]
      %v335 = vld [vmem:[%s333 + $0x4] sm:$0xf]
      %v336 = vld [vmem:[%s333 + $0x8] sm:$0xf]
      %v337 = vld [vmem:[%s333 + $0xc] sm:$0xf]
      %v342 = vunpack.c.l.b16 %v334
      %v343 = vunpack.c.l.b16 %v335
      %v344 = vunpack.c.l.b16 %v336
      %v345 = vunpack.c.l.b16 %v337
      %v346 = vpack.c.b16 %v343, %v342
      %v347 = vpack.c.b16 %v345, %v344
      %v351 = vsel %vm230, %v332, 0
      %353 = vmatprep.subr.bf16.mxu0 0
      %354 = vmatpush1.bf16.msra.mxu0 %v346
      %355 = vmatprep.subr.bf16.mxu0 0
      %356 = vmatpush1.bf16.msra.mxu0 %v347
      %357 = vmatprep.subr.bf16.mxu0 0
      %358 = vmatpush1.bf16.msra.mxu0 0
      %359 = vmatprep.subr.bf16.mxu0 0
      %360 = vmatpush1.bf16.msra.mxu0 0
      %361 = vmatprep.subr.bf16.mxu0 0
      %362 = vmatpush1.bf16.msra.mxu0 0
      %363 = vmatprep.subr.bf16.mxu0 0
      %364 = vmatpush1.bf16.msra.mxu0 0
      %365 = vmatprep.subr.bf16.mxu0 0
      %366 = vmatpush1.bf16.msra.mxu0 0
      %367 = vmatprep.subr.bf16.mxu0 0
      %368 = vmatpush1.bf16.msra.mxu0 0
      %369 = vmatprep.subr.bf16.mxu0 0
      %370 = vmatpush1.bf16.msra.mxu0 0
      %371 = vmatprep.subr.bf16.mxu0 0
      %372 = vmatpush1.bf16.msra.mxu0 0
      %373 = vmatprep.subr.bf16.mxu0 0
      %374 = vmatpush1.bf16.msra.mxu0 0
      %375 = vmatprep.subr.bf16.mxu0 0
      %376 = vmatpush1.bf16.msra.mxu0 0
      %377 = vmatprep.subr.bf16.mxu0 0
      %378 = vmatpush1.bf16.msra.mxu0 0
      %379 = vmatprep.subr.bf16.mxu0 0
      %380 = vmatpush1.bf16.msra.mxu0 0
      %381 = vmatprep.subr.bf16.mxu0 0
      %382 = vmatpush1.bf16.msra.mxu0 0
      %383 = vmatprep.subr.bf16.mxu0 0
      %384 = vmatpush1.bf16.msra.mxu0 0
      %385 = vmatprep.mubr.bf16.mxu0 0
      %386 = vmatmul.mubr.bf16.gmra.mrb[0].mxu0 %v351
      %v387 = vpop.f32.mrb[0].mxu0
      %v388 = vadd.f32 0.0, %v387
      %v389 = vpop.f32.mrb[0].mxu0
      %v390 = vpop.f32.mrb[0].mxu0
      %v391 = vpop.f32.mrb[0].mxu0
      %392 = vdwg.mxu0
      %v393 = vadd.f32 %v324, %v388
      %s394 = scalar_lea.vmem %s1, 48
      %v395 = vld [vmem:[%s394] sm:$0xf]
      %v396 = vld [vmem:[%s394 + $0x4] sm:$0xf]
      %v397 = vld [vmem:[%s394 + $0x8] sm:$0xf]
      %v398 = vld [vmem:[%s394 + $0xc] sm:$0xf]
      %v400 = vunpack.c.l.b16 %v332
      %v401 = vpack.c.b16 %v400, %v400
      %v403 = vshrl.u32 %v401, 16
      %v405 = vshll.u32 %v401, 16
      %v407 = vrot.slane %v405, 1
      %v408 = vor.u32 %v403, %v407
      %v413 = vunpack.c.l.b16 %v395
      %v414 = vunpack.c.l.b16 %v396
      %v415 = vunpack.c.l.b16 %v397
      %v416 = vunpack.c.l.b16 %v398
      %v417 = vpack.c.b16 %v414, %v413
      %v418 = vpack.c.b16 %v416, %v415
      %v422 = vsel %vm230, %v408, 0
      %424 = vmatprep.subr.bf16.mxu0 0
      %425 = vmatpush1.bf16.msra.mxu0 %v417
      %426 = vmatprep.subr.bf16.mxu0 0
      %427 = vmatpush1.bf16.msra.mxu0 %v418
      %428 = vmatprep.subr.bf16.mxu0 0
      %429 = vmatpush1.bf16.msra.mxu0 0
      %430 = vmatprep.subr.bf16.mxu0 0
      %431 = vmatpush1.bf16.msra.mxu0 0
      %432 = vmatprep.subr.bf16.mxu0 0
      %433 = vmatpush1.bf16.msra.mxu0 0
      %434 = vmatprep.subr.bf16.mxu0 0
      %435 = vmatpush1.bf16.msra.mxu0 0
      %436 = vmatprep.subr.bf16.mxu0 0
      %437 = vmatpush1.bf16.msra.mxu0 0
      %438 = vmatprep.subr.bf16.mxu0 0
      %439 = vmatpush1.bf16.msra.mxu0 0
      %440 = vmatprep.subr.bf16.mxu0 0
      %441 = vmatpush1.bf16.msra.mxu0 0
      %442 = vmatprep.subr.bf16.mxu0 0
      %443 = vmatpush1.bf16.msra.mxu0 0
      %444 = vmatprep.subr.bf16.mxu0 0
      %445 = vmatpush1.bf16.msra.mxu0 0
      %446 = vmatprep.subr.bf16.mxu0 0
      %447 = vmatpush1.bf16.msra.mxu0 0
      %448 = vmatprep.subr.bf16.mxu0 0
      %449 = vmatpush1.bf16.msra.mxu0 0
      %450 = vmatprep.subr.bf16.mxu0 0
      %451 = vmatpush1.bf16.msra.mxu0 0
      %452 = vmatprep.subr.bf16.mxu0 0
      %453 = vmatpush1.bf16.msra.mxu0 0
      %454 = vmatprep.subr.bf16.mxu0 0
      %455 = vmatpush1.bf16.msra.mxu0 0
      %456 = vmatprep.mubr.bf16.mxu0 0
      %457 = vmatmul.mubr.bf16.gmra.mrb[0].mxu0 %v422
      %v458 = vpop.f32.mrb[0].mxu0
      %v459 = vadd.f32 0.0, %v458
      %v460 = vpop.f32.mrb[0].mxu0
      %v461 = vpop.f32.mrb[0].mxu0
      %v462 = vpop.f32.mrb[0].mxu0
      %463 = vdwg.mxu0
      %v464 = vadd.f32 %v393, %v459
      %s465 = sadd.s32 %s195, 2
      %s466 = smul.addr %s465, 4
      %s467 = scalar_lea.vmem %s183, %s466
      %v468 = vld [vmem:[%s467] sm:$0x7]
      %s469 = scalar_lea.vmem %s1, 64
      %v470 = vld [vmem:[%s469] sm:$0xf]
      %v471 = vld [vmem:[%s469 + $0x4] sm:$0xf]
      %v472 = vld [vmem:[%s469 + $0x8] sm:$0xf]
      %v473 = vld [vmem:[%s469 + $0xc] sm:$0xf]
      %v478 = vunpack.c.l.b16 %v470
      %v479 = vunpack.c.l.b16 %v471
      %v480 = vunpack.c.l.b16 %v472
      %v481 = vunpack.c.l.b16 %v473
      %v482 = vpack.c.b16 %v479, %v478
      %v483 = vpack.c.b16 %v481, %v480
      %v487 = vsel %vm230, %v468, 0
      %489 = vmatprep.subr.bf16.mxu0 0
      %490 = vmatpush1.bf16.msra.mxu0 %v482
      %491 = vmatprep.subr.bf16.mxu0 0
      %492 = vmatpush1.bf16.msra.mxu0 %v483
      %493 = vmatprep.subr.bf16.mxu0 0
      %494 = vmatpush1.bf16.msra.mxu0 0
      %495 = vmatprep.subr.bf16.mxu0 0
      %496 = vmatpush1.bf16.msra.mxu0 0
      %497 = vmatprep.subr.bf16.mxu0 0
      %498 = vmatpush1.bf16.msra.mxu0 0
      %499 = vmatprep.subr.bf16.mxu0 0
      %500 = vmatpush1.bf16.msra.mxu0 0
      %501 = vmatprep.subr.bf16.mxu0 0
      %502 = vmatpush1.bf16.msra.mxu0 0
      %503 = vmatprep.subr.bf16.mxu0 0
      %504 = vmatpush1.bf16.msra.mxu0 0
      %505 = vmatprep.subr.bf16.mxu0 0
      %506 = vmatpush1.bf16.msra.mxu0 0
      %507 = vmatprep.subr.bf16.mxu0 0
      %508 = vmatpush1.bf16.msra.mxu0 0
      %509 = vmatprep.subr.bf16.mxu0 0
      %510 = vmatpush1.bf16.msra.mxu0 0
      %511 = vmatprep.subr.bf16.mxu0 0
      %512 = vmatpush1.bf16.msra.mxu0 0
      %513 = vmatprep.subr.bf16.mxu0 0
      %514 = vmatpush1.bf16.msra.mxu0 0
      %515 = vmatprep.subr.bf16.mxu0 0
      %516 = vmatpush1.bf16.msra.mxu0 0
      %517 = vmatprep.subr.bf16.mxu0 0
      %518 = vmatpush1.bf16.msra.mxu0 0
      %519 = vmatprep.subr.bf16.mxu0 0
      %520 = vmatpush1.bf16.msra.mxu0 0
      %521 = vmatprep.mubr.bf16.mxu0 0
      %522 = vmatmul.mubr.bf16.gmra.mrb[0].mxu0 %v487
      %v523 = vpop.f32.mrb[0].mxu0
      %v524 = vadd.f32 0.0, %v523
      %v525 = vpop.f32.mrb[0].mxu0
      %v526 = vpop.f32.mrb[0].mxu0
      %v527 = vpop.f32.mrb[0].mxu0
      %528 = vdwg.mxu0
      %v529 = vadd.f32 %v464, %v524
      %s530 = scalar_lea.vmem %s1, 80
      %v531 = vld [vmem:[%s530] sm:$0xf]
      %v532 = vld [vmem:[%s530 + $0x4] sm:$0xf]
      %v533 = vld [vmem:[%s530 + $0x8] sm:$0xf]
      %v534 = vld [vmem:[%s530 + $0xc] sm:$0xf]
      %v536 = vunpack.c.l.b16 %v468
      %v537 = vpack.c.b16 %v536, %v536
      %v539 = vshrl.u32 %v537, 16
      %v541 = vshll.u32 %v537, 16
      %v543 = vrot.slane %v541, 1
      %v544 = vor.u32 %v539, %v543
      %v549 = vunpack.c.l.b16 %v531
      %v550 = vunpack.c.l.b16 %v532
      %v551 = vunpack.c.l.b16 %v533
      %v552 = vunpack.c.l.b16 %v534
      %v553 = vpack.c.b16 %v550, %v549
      %v554 = vpack.c.b16 %v552, %v551
      %v558 = vsel %vm230, %v544, 0
      %560 = vmatprep.subr.bf16.mxu0 0
      %561 = vmatpush1.bf16.msra.mxu0 %v553
      %562 = vmatprep.subr.bf16.mxu0 0
      %563 = vmatpush1.bf16.msra.mxu0 %v554
      %564 = vmatprep.subr.bf16.mxu0 0
      %565 = vmatpush1.bf16.msra.mxu0 0
      %566 = vmatprep.subr.bf16.mxu0 0
      %567 = vmatpush1.bf16.msra.mxu0 0
      %568 = vmatprep.subr.bf16.mxu0 0
      %569 = vmatpush1.bf16.msra.mxu0 0
      %570 = vmatprep.subr.bf16.mxu0 0
      %571 = vmatpush1.bf16.msra.mxu0 0
      %572 = vmatprep.subr.bf16.mxu0 0
      %573 = vmatpush1.bf16.msra.mxu0 0
      %574 = vmatprep.subr.bf16.mxu0 0
      %575 = vmatpush1.bf16.msra.mxu0 0
      %576 = vmatprep.subr.bf16.mxu0 0
      %577 = vmatpush1.bf16.msra.mxu0 0
      %578 = vmatprep.subr.bf16.mxu0 0
      %579 = vmatpush1.bf16.msra.mxu0 0
      %580 = vmatprep.subr.bf16.mxu0 0
      %581 = vmatpush1.bf16.msra.mxu0 0
      %582 = vmatprep.subr.bf16.mxu0 0
      %583 = vmatpush1.bf16.msra.mxu0 0
      %584 = vmatprep.subr.bf16.mxu0 0
      %585 = vmatpush1.bf16.msra.mxu0 0
      %586 = vmatprep.subr.bf16.mxu0 0
      %587 = vmatpush1.bf16.msra.mxu0 0
      %588 = vmatprep.subr.bf16.mxu0 0
      %589 = vmatpush1.bf16.msra.mxu0 0
      %590 = vmatprep.subr.bf16.mxu0 0
      %591 = vmatpush1.bf16.msra.mxu0 0
      %592 = vmatprep.mubr.bf16.mxu0 0
      %593 = vmatmul.mubr.bf16.gmra.mrb[0].mxu0 %v558
      %v594 = vpop.f32.mrb[0].mxu0
      %v595 = vadd.f32 0.0, %v594
      %v596 = vpop.f32.mrb[0].mxu0
      %v597 = vpop.f32.mrb[0].mxu0
      %v598 = vpop.f32.mrb[0].mxu0
      %599 = vdwg.mxu0
      %v600 = vadd.f32 %v529, %v595
      %v601 = vld [vmem:[%s2] sm:$0x1]
      %v603 = vlaneseq
      %v604 = vshrl.u32 %v603, 7
      %v605 = vsub.s32 0, %v604
      %v606 = vrot.slane %v601, %v605
      %v608 = vadd.f32 %v600, %v606
      %v609 = vmax.f32 %v608, 0.0
      %v610 = vpack.c.bf16 %v609, %v609
      %vm611 = vcmask 254976
      %612 = vst.msk [vmem:[%s192] sm:$0x3] %vm611, %v610
      %s613 = smul.u32 %s19, 4
      %s614 = sadd.s32 %s613, 1
      %s615 = smul.u32 %s614, 2
      %s616 = smul.addr %s615, 4
      %s617 = scalar_lea.vmem %s183, %s616
      %v618 = vld [vmem:[%s617] sm:$0x7]
      %v619 = vld [vmem:[%s1] sm:$0xf]
      %v620 = vld [vmem:[%s1 + $0x4] sm:$0xf]
      %v621 = vld [vmem:[%s1 + $0x8] sm:$0xf]
      %v622 = vld [vmem:[%s1 + $0xc] sm:$0xf]
      %v623 = vld [vmem:[%s203] sm:$0xf]
      %v624 = vld [vmem:[%s203 + $0x4] sm:$0xf]
      %v625 = vld [vmem:[%s203 + $0x8] sm:$0xf]
      %v626 = vld [vmem:[%s203 + $0xc] sm:$0xf]
      %v628 = vunpack.c.l.b16 %v618
      %v629 = vpack.c.b16 %v628, %v628
      %v631 = vshrl.u32 %v629, 16
      %v633 = vshll.u32 %v629, 16
      %v635 = vrot.slane %v633, 1
      %v636 = vor.u32 %v631, %v635
      %v641 = vunpack.c.l.b16 %v623
      %v642 = vunpack.c.l.b16 %v624
      %v643 = vunpack.c.l.b16 %v625
      %v644 = vunpack.c.l.b16 %v626
      %v645 = vpack.c.b16 %v642, %v641
      %v646 = vpack.c.b16 %v644, %v643
      %v650 = vsel %vm230, %v636, 0
      %652 = vmatprep.subr.bf16.mxu0 0
      %653 = vmatpush1.bf16.msra.mxu0 %v645
      %654 = vmatprep.subr.bf16.mxu0 0
      %655 = vmatpush1.bf16.msra.mxu0 %v646
      %656 = vmatprep.subr.bf16.mxu0 0
      %657 = vmatpush1.bf16.msra.mxu0 0
      %658 = vmatprep.subr.bf16.mxu0 0
      %659 = vmatpush1.bf16.msra.mxu0 0
      %660 = vmatprep.subr.bf16.mxu0 0
      %661 = vmatpush1.bf16.msra.mxu0 0
      %662 = vmatprep.subr.bf16.mxu0 0
      %663 = vmatpush1.bf16.msra.mxu0 0
      %664 = vmatprep.subr.bf16.mxu0 0
      %665 = vmatpush1.bf16.msra.mxu0 0
      %666 = vmatprep.subr.bf16.mxu0 0
      %667 = vmatpush1.bf16.msra.mxu0 0
      %668 = vmatprep.subr.bf16.mxu0 0
      %669 = vmatpush1.bf16.msra.mxu0 0
      %670 = vmatprep.subr.bf16.mxu0 0
      %671 = vmatpush1.bf16.msra.mxu0 0
      %672 = vmatprep.subr.bf16.mxu0 0
      %673 = vmatpush1.bf16.msra.mxu0 0
      %674 = vmatprep.subr.bf16.mxu0 0
      %675 = vmatpush1.bf16.msra.mxu0 0
      %676 = vmatprep.subr.bf16.mxu0 0
      %677 = vmatpush1.bf16.msra.mxu0 0
      %678 = vmatprep.subr.bf16.mxu0 0
      %679 = vmatpush1.bf16.msra.mxu0 0
      %680 = vmatprep.subr.bf16.mxu0 0
      %681 = vmatpush1.bf16.msra.mxu0 0
      %682 = vmatprep.subr.bf16.mxu0 0
      %683 = vmatpush1.bf16.msra.mxu0 0
      %684 = vmatprep.mubr.bf16.mxu0 0
      %685 = vmatmul.mubr.bf16.gmra.mrb[0].mxu0 %v650
      %v686 = vpop.f32.mrb[0].mxu0
      %v687 = vadd.f32 0.0, %v686
      %v688 = vpop.f32.mrb[0].mxu0
      %v689 = vpop.f32.mrb[0].mxu0
      %v690 = vpop.f32.mrb[0].mxu0
      %691 = vdwg.mxu0
      %v696 = vunpack.c.l.b16 %v619
      %v697 = vunpack.c.l.b16 %v620
      %v698 = vunpack.c.l.b16 %v621
      %v699 = vunpack.c.l.b16 %v622
      %v700 = vpack.c.b16 %v697, %v696
      %v701 = vpack.c.b16 %v699, %v698
      %v705 = vsel %vm230, %v618, 0
      %707 = vmatprep.subr.bf16.mxu0 0
      %708 = vmatpush1.bf16.msra.mxu0 %v700
      %709 = vmatprep.subr.bf16.mxu0 0
      %710 = vmatpush1.bf16.msra.mxu0 %v701
      %711 = vmatprep.subr.bf16.mxu0 0
      %712 = vmatpush1.bf16.msra.mxu0 0
      %713 = vmatprep.subr.bf16.mxu0 0
      %714 = vmatpush1.bf16.msra.mxu0 0
      %715 = vmatprep.subr.bf16.mxu0 0
      %716 = vmatpush1.bf16.msra.mxu0 0
      %717 = vmatprep.subr.bf16.mxu0 0
      %718 = vmatpush1.bf16.msra.mxu0 0
      %719 = vmatprep.subr.bf16.mxu0 0
      %720 = vmatpush1.bf16.msra.mxu0 0
      %721 = vmatprep.subr.bf16.mxu0 0
      %722 = vmatpush1.bf16.msra.mxu0 0
      %723 = vmatprep.subr.bf16.mxu0 0
      %724 = vmatpush1.bf16.msra.mxu0 0
      %725 = vmatprep.subr.bf16.mxu0 0
      %726 = vmatpush1.bf16.msra.mxu0 0
      %727 = vmatprep.subr.bf16.mxu0 0
      %728 = vmatpush1.bf16.msra.mxu0 0
      %729 = vmatprep.subr.bf16.mxu0 0
      %730 = vmatpush1.bf16.msra.mxu0 0
      %731 = vmatprep.subr.bf16.mxu0 0
      %732 = vmatpush1.bf16.msra.mxu0 0
      %733 = vmatprep.subr.bf16.mxu0 0
      %734 = vmatpush1.bf16.msra.mxu0 0
      %735 = vmatprep.subr.bf16.mxu0 0
      %736 = vmatpush1.bf16.msra.mxu0 0
      %737 = vmatprep.subr.bf16.mxu0 0
      %738 = vmatpush1.bf16.msra.mxu0 0
      %739 = vmatprep.mubr.bf16.mxu0 0
      %740 = vmatmul.mubr.bf16.gmra.mrb[0].mxu0 %v705
      %v741 = vpop.f32.mrb[0].mxu0
      %v742 = vadd.f32 %v687, %v741
      %v743 = vpop.f32.mrb[0].mxu0
      %v744 = vpop.f32.mrb[0].mxu0
      %v745 = vpop.f32.mrb[0].mxu0
      %746 = vdwg.mxu0
      %s747 = sadd.s32 %s615, 1
      %s748 = smul.addr %s747, 4
      %s749 = scalar_lea.vmem %s183, %s748
      %v750 = vld [vmem:[%s749] sm:$0x7]
      %v751 = vld [vmem:[%s333] sm:$0xf]
      %v752 = vld [vmem:[%s333 + $0x4] sm:$0xf]
      %v753 = vld [vmem:[%s333 + $0x8] sm:$0xf]
      %v754 = vld [vmem:[%s333 + $0xc] sm:$0xf]
      %v759 = vunpack.c.l.b16 %v751
      %v760 = vunpack.c.l.b16 %v752
      %v761 = vunpack.c.l.b16 %v753
      %v762 = vunpack.c.l.b16 %v754
      %v763 = vpack.c.b16 %v760, %v759
      %v764 = vpack.c.b16 %v762, %v761
      %v768 = vsel %vm230, %v750, 0
      %770 = vmatprep.subr.bf16.mxu0 0
      %771 = vmatpush1.bf16.msra.mxu0 %v763
      %772 = vmatprep.subr.bf16.mxu0 0
      %773 = vmatpush1.bf16.msra.mxu0 %v764
      %774 = vmatprep.subr.bf16.mxu0 0
      %775 = vmatpush1.bf16.msra.mxu0 0
      %776 = vmatprep.subr.bf16.mxu0 0
      %777 = vmatpush1.bf16.msra.mxu0 0
      %778 = vmatprep.subr.bf16.mxu0 0
      %779 = vmatpush1.bf16.msra.mxu0 0
      %780 = vmatprep.subr.bf16.mxu0 0
      %781 = vmatpush1.bf16.msra.mxu0 0
      %782 = vmatprep.subr.bf16.mxu0 0
      %783 = vmatpush1.bf16.msra.mxu0 0
      %784 = vmatprep.subr.bf16.mxu0 0
      %785 = vmatpush1.bf16.msra.mxu0 0
      %786 = vmatprep.subr.bf16.mxu0 0
      %787 = vmatpush1.bf16.msra.mxu0 0
      %788 = vmatprep.subr.bf16.mxu0 0
      %789 = vmatpush1.bf16.msra.mxu0 0
      %790 = vmatprep.subr.bf16.mxu0 0
      %791 = vmatpush1.bf16.msra.mxu0 0
      %792 = vmatprep.subr.bf16.mxu0 0
      %793 = vmatpush1.bf16.msra.mxu0 0
      %794 = vmatprep.subr.bf16.mxu0 0
      %795 = vmatpush1.bf16.msra.mxu0 0
      %796 = vmatprep.subr.bf16.mxu0 0
      %797 = vmatpush1.bf16.msra.mxu0 0
      %798 = vmatprep.subr.bf16.mxu0 0
      %799 = vmatpush1.bf16.msra.mxu0 0
      %800 = vmatprep.subr.bf16.mxu0 0
      %801 = vmatpush1.bf16.msra.mxu0 0
      %802 = vmatprep.mubr.bf16.mxu0 0
      %803 = vmatmul.mubr.bf16.gmra.mrb[0].mxu0 %v768
      %v804 = vpop.f32.mrb[0].mxu0
      %v805 = vadd.f32 0.0, %v804
      %v806 = vpop.f32.mrb[0].mxu0
      %v807 = vpop.f32.mrb[0].mxu0
      %v808 = vpop.f32.mrb[0].mxu0
      %809 = vdwg.mxu0
      %v810 = vadd.f32 %v742, %v805
      %v811 = vld [vmem:[%s394] sm:$0xf]
      %v812 = vld [vmem:[%s394 + $0x4] sm:$0xf]
      %v813 = vld [vmem:[%s394 + $0x8] sm:$0xf]
      %v814 = vld [vmem:[%s394 + $0xc] sm:$0xf]
      %v816 = vunpack.c.l.b16 %v750
      %v817 = vpack.c.b16 %v816, %v816
      %v819 = vshrl.u32 %v817, 16
      %v821 = vshll.u32 %v817, 16
      %v823 = vrot.slane %v821, 1
      %v824 = vor.u32 %v819, %v823
      %v829 = vunpack.c.l.b16 %v811
      %v830 = vunpack.c.l.b16 %v812
      %v831 = vunpack.c.l.b16 %v813
      %v832 = vunpack.c.l.b16 %v814
      %v833 = vpack.c.b16 %v830, %v829
      %v834 = vpack.c.b16 %v832, %v831
      %v838 = vsel %vm230, %v824, 0
      %840 = vmatprep.subr.bf16.mxu0 0
      %841 = vmatpush1.bf16.msra.mxu0 %v833
      %842 = vmatprep.subr.bf16.mxu0 0
      %843 = vmatpush1.bf16.msra.mxu0 %v834
      %844 = vmatprep.subr.bf16.mxu0 0
      %845 = vmatpush1.bf16.msra.mxu0 0
      %846 = vmatprep.subr.bf16.mxu0 0
      %847 = vmatpush1.bf16.msra.mxu0 0
      %848 = vmatprep.subr.bf16.mxu0 0
      %849 = vmatpush1.bf16.msra.mxu0 0
      %850 = vmatprep.subr.bf16.mxu0 0
      %851 = vmatpush1.bf16.msra.mxu0 0
      %852 = vmatprep.subr.bf16.mxu0 0
      %853 = vmatpush1.bf16.msra.mxu0 0
      %854 = vmatprep.subr.bf16.mxu0 0
      %855 = vmatpush1.bf16.msra.mxu0 0
      %856 = vmatprep.subr.bf16.mxu0 0
      %857 = vmatpush1.bf16.msra.mxu0 0
      %858 = vmatprep.subr.bf16.mxu0 0
      %859 = vmatpush1.bf16.msra.mxu0 0
      %860 = vmatprep.subr.bf16.mxu0 0
      %861 = vmatpush1.bf16.msra.mxu0 0
      %862 = vmatprep.subr.bf16.mxu0 0
      %863 = vmatpush1.bf16.msra.mxu0 0
      %864 = vmatprep.subr.bf16.mxu0 0
      %865 = vmatpush1.bf16.msra.mxu0 0
      %866 = vmatprep.subr.bf16.mxu0 0
      %867 = vmatpush1.bf16.msra.mxu0 0
      %868 = vmatprep.subr.bf16.mxu0 0
      %869 = vmatpush1.bf16.msra.mxu0 0
      %870 = vmatprep.subr.bf16.mxu0 0
      %871 = vmatpush1.bf16.msra.mxu0 0
      %872 = vmatprep.mubr.bf16.mxu0 0
      %873 = vmatmul.mubr.bf16.gmra.mrb[0].mxu0 %v838
      %v874 = vpop.f32.mrb[0].mxu0
      %v875 = vadd.f32 0.0, %v874
      %v876 = vpop.f32.mrb[0].mxu0
      %v877 = vpop.f32.mrb[0].mxu0
      %v878 = vpop.f32.mrb[0].mxu0
      %879 = vdwg.mxu0
      %v880 = vadd.f32 %v810, %v875
      %s881 = sadd.s32 %s615, 2
      %s882 = smul.addr %s881, 4
      %s883 = scalar_lea.vmem %s183, %s882
      %v884 = vld [vmem:[%s883] sm:$0x7]
      %v885 = vld [vmem:[%s469] sm:$0xf]
      %v886 = vld [vmem:[%s469 + $0x4] sm:$0xf]
      %v887 = vld [vmem:[%s469 + $0x8] sm:$0xf]
      %v888 = vld [vmem:[%s469 + $0xc] sm:$0xf]
      %v893 = vunpack.c.l.b16 %v885
      %v894 = vunpack.c.l.b16 %v886
      %v895 = vunpack.c.l.b16 %v887
      %v896 = vunpack.c.l.b16 %v888
      %v897 = vpack.c.b16 %v894, %v893
      %v898 = vpack.c.b16 %v896, %v895
      %v902 = vsel %vm230, %v884, 0
      %904 = vmatprep.subr.bf16.mxu0 0
      %905 = vmatpush1.bf16.msra.mxu0 %v897
      %906 = vmatprep.subr.bf16.mxu0 0
      %907 = vmatpush1.bf16.msra.mxu0 %v898
      %908 = vmatprep.subr.bf16.mxu0 0
      %909 = vmatpush1.bf16.msra.mxu0 0
      %910 = vmatprep.subr.bf16.mxu0 0
      %911 = vmatpush1.bf16.msra.mxu0 0
      %912 = vmatprep.subr.bf16.mxu0 0
      %913 = vmatpush1.bf16.msra.mxu0 0
      %914 = vmatprep.subr.bf16.mxu0 0
      %915 = vmatpush1.bf16.msra.mxu0 0
      %916 = vmatprep.subr.bf16.mxu0 0
      %917 = vmatpush1.bf16.msra.mxu0 0
      %918 = vmatprep.subr.bf16.mxu0 0
      %919 = vmatpush1.bf16.msra.mxu0 0
      %920 = vmatprep.subr.bf16.mxu0 0
      %921 = vmatpush1.bf16.msra.mxu0 0
      %922 = vmatprep.subr.bf16.mxu0 0
      %923 = vmatpush1.bf16.msra.mxu0 0
      %924 = vmatprep.subr.bf16.mxu0 0
      %925 = vmatpush1.bf16.msra.mxu0 0
      %926 = vmatprep.subr.bf16.mxu0 0
      %927 = vmatpush1.bf16.msra.mxu0 0
      %928 = vmatprep.subr.bf16.mxu0 0
      %929 = vmatpush1.bf16.msra.mxu0 0
      %930 = vmatprep.subr.bf16.mxu0 0
      %931 = vmatpush1.bf16.msra.mxu0 0
      %932 = vmatprep.subr.bf16.mxu0 0
      %933 = vmatpush1.bf16.msra.mxu0 0
      %934 = vmatprep.subr.bf16.mxu0 0
      %935 = vmatpush1.bf16.msra.mxu0 0
      %936 = vmatprep.mubr.bf16.mxu0 0
      %937 = vmatmul.mubr.bf16.gmra.mrb[0].mxu0 %v902
      %v938 = vpop.f32.mrb[0].mxu0
      %v939 = vadd.f32 0.0, %v938
      %v940 = vpop.f32.mrb[0].mxu0
      %v941 = vpop.f32.mrb[0].mxu0
      %v942 = vpop.f32.mrb[0].mxu0
      %943 = vdwg.mxu0
      %v944 = vadd.f32 %v880, %v939
      %v945 = vld [vmem:[%s530] sm:$0xf]
      %v946 = vld [vmem:[%s530 + $0x4] sm:$0xf]
      %v947 = vld [vmem:[%s530 + $0x8] sm:$0xf]
      %v948 = vld [vmem:[%s530 + $0xc] sm:$0xf]
      %v950 = vunpack.c.l.b16 %v884
      %v951 = vpack.c.b16 %v950, %v950
      %v953 = vshrl.u32 %v951, 16
      %v955 = vshll.u32 %v951, 16
      %v957 = vrot.slane %v955, 1
      %v958 = vor.u32 %v953, %v957
      %v963 = vunpack.c.l.b16 %v945
      %v964 = vunpack.c.l.b16 %v946
      %v965 = vunpack.c.l.b16 %v947
      %v966 = vunpack.c.l.b16 %v948
      %v967 = vpack.c.b16 %v964, %v963
      %v968 = vpack.c.b16 %v966, %v965
      %v972 = vsel %vm230, %v958, 0
      %974 = vmatprep.subr.bf16.mxu0 0
      %975 = vmatpush1.bf16.msra.mxu0 %v967
      %976 = vmatprep.subr.bf16.mxu0 0
      %977 = vmatpush1.bf16.msra.mxu0 %v968
      %978 = vmatprep.subr.bf16.mxu0 0
      %979 = vmatpush1.bf16.msra.mxu0 0
      %980 = vmatprep.subr.bf16.mxu0 0
      %981 = vmatpush1.bf16.msra.mxu0 0
      %982 = vmatprep.subr.bf16.mxu0 0
      %983 = vmatpush1.bf16.msra.mxu0 0
      %984 = vmatprep.subr.bf16.mxu0 0
      %985 = vmatpush1.bf16.msra.mxu0 0
      %986 = vmatprep.subr.bf16.mxu0 0
      %987 = vmatpush1.bf16.msra.mxu0 0
      %988 = vmatprep.subr.bf16.mxu0 0
      %989 = vmatpush1.bf16.msra.mxu0 0
      %990 = vmatprep.subr.bf16.mxu0 0
      %991 = vmatpush1.bf16.msra.mxu0 0
      %992 = vmatprep.subr.bf16.mxu0 0
      %993 = vmatpush1.bf16.msra.mxu0 0
      %994 = vmatprep.subr.bf16.mxu0 0
      %995 = vmatpush1.bf16.msra.mxu0 0
      %996 = vmatprep.subr.bf16.mxu0 0
      %997 = vmatpush1.bf16.msra.mxu0 0
      %998 = vmatprep.subr.bf16.mxu0 0
      %999 = vmatpush1.bf16.msra.mxu0 0
      %1000 = vmatprep.subr.bf16.mxu0 0
      %1001 = vmatpush1.bf16.msra.mxu0 0
      %1002 = vmatprep.subr.bf16.mxu0 0
      %1003 = vmatpush1.bf16.msra.mxu0 0
      %1004 = vmatprep.subr.bf16.mxu0 0
      %1005 = vmatpush1.bf16.msra.mxu0 0
      %1006 = vmatprep.mubr.bf16.mxu0 0
      %1007 = vmatmul.mubr.bf16.gmra.mrb[0].mxu0 %v972
      %v1008 = vpop.f32.mrb[0].mxu0
      %v1009 = vadd.f32 0.0, %v1008
      %v1010 = vpop.f32.mrb[0].mxu0
      %v1011 = vpop.f32.mrb[0].mxu0
      %v1012 = vpop.f32.mrb[0].mxu0
      %1013 = vdwg.mxu0
      %v1014 = vadd.f32 %v944, %v1009
      %v1015 = vld [vmem:[%s2] sm:$0x1]
      %v1017 = vlaneseq
      %v1018 = vshrl.u32 %v1017, 7
      %v1019 = vsub.s32 0, %v1018
      %v1020 = vrot.slane %v1015, %v1019
      %v1022 = vadd.f32 %v1014, %v1020
      %v1023 = vmax.f32 %v1022, 0.0
      %v1024 = vpack.c.bf16 %v1023, %v1023
      %s1025 = scalar_lea.vmem %s192, 2
      %1026 = vst.msk [vmem:[%s1025] sm:$0x3] %vm611, %v1024
      %s1027 = sadd.s32 %s613, 2
      %s1028 = smul.u32 %s1027, 2
      %s1029 = smul.addr %s1028, 4
      %s1030 = scalar_lea.vmem %s183, %s1029
      %v1031 = vld [vmem:[%s1030] sm:$0x7]
      %v1032 = vld [vmem:[%s1] sm:$0xf]
      %v1033 = vld [vmem:[%s1 + $0x4] sm:$0xf]
      %v1034 = vld [vmem:[%s1 + $0x8] sm:$0xf]
      %v1035 = vld [vmem:[%s1 + $0xc] sm:$0xf]
      %v1036 = vld [vmem:[%s203] sm:$0xf]
      %v1037 = vld [vmem:[%s203 + $0x4] sm:$0xf]
      %v1038 = vld [vmem:[%s203 + $0x8] sm:$0xf]
      %v1039 = vld [vmem:[%s203 + $0xc] sm:$0xf]
      %v1041 = vunpack.c.l.b16 %v1031
      %v1042 = vpack.c.b16 %v1041, %v1041
      %v1044 = vshrl.u32 %v1042, 16
      %v1046 = vshll.u32 %v1042, 16
      %v1048 = vrot.slane %v1046, 1
      %v1049 = vor.u32 %v1044, %v1048
      %v1054 = vunpack.c.l.b16 %v1036
      %v1055 = vunpack.c.l.b16 %v1037
      %v1056 = vunpack.c.l.b16 %v1038
      %v1057 = vunpack.c.l.b16 %v1039
      %v1058 = vpack.c.b16 %v1055, %v1054
      %v1059 = vpack.c.b16 %v1057, %v1056
      %v1063 = vsel %vm230, %v1049, 0
      %1065 = vmatprep.subr.bf16.mxu0 0
      %1066 = vmatpush1.bf16.msra.mxu0 %v1058
      %1067 = vmatprep.subr.bf16.mxu0 0
      %1068 = vmatpush1.bf16.msra.mxu0 %v1059
      %1069 = vmatprep.subr.bf16.mxu0 0
      %1070 = vmatpush1.bf16.msra.mxu0 0
      %1071 = vmatprep.subr.bf16.mxu0 0
      %1072 = vmatpush1.bf16.msra.mxu0 0
      %1073 = vmatprep.subr.bf16.mxu0 0
      %1074 = vmatpush1.bf16.msra.mxu0 0
      %1075 = vmatprep.subr.bf16.mxu0 0
      %1076 = vmatpush1.bf16.msra.mxu0 0
      %1077 = vmatprep.subr.bf16.mxu0 0
      %1078 = vmatpush1.bf16.msra.mxu0 0
      %1079 = vmatprep.subr.bf16.mxu0 0
      %1080 = vmatpush1.bf16.msra.mxu0 0
      %1081 = vmatprep.subr.bf16.mxu0 0
      %1082 = vmatpush1.bf16.msra.mxu0 0
      %1083 = vmatprep.subr.bf16.mxu0 0
      %1084 = vmatpush1.bf16.msra.mxu0 0
      %1085 = vmatprep.subr.bf16.mxu0 0
      %1086 = vmatpush1.bf16.msra.mxu0 0
      %1087 = vmatprep.subr.bf16.mxu0 0
      %1088 = vmatpush1.bf16.msra.mxu0 0
      %1089 = vmatprep.subr.bf16.mxu0 0
      %1090 = vmatpush1.bf16.msra.mxu0 0
      %1091 = vmatprep.subr.bf16.mxu0 0
      %1092 = vmatpush1.bf16.msra.mxu0 0
      %1093 = vmatprep.subr.bf16.mxu0 0
      %1094 = vmatpush1.bf16.msra.mxu0 0
      %1095 = vmatprep.subr.bf16.mxu0 0
      %1096 = vmatpush1.bf16.msra.mxu0 0
      %1097 = vmatprep.mubr.bf16.mxu0 0
      %1098 = vmatmul.mubr.bf16.gmra.mrb[0].mxu0 %v1063
      %v1099 = vpop.f32.mrb[0].mxu0
      %v1100 = vadd.f32 0.0, %v1099
      %v1101 = vpop.f32.mrb[0].mxu0
      %v1102 = vpop.f32.mrb[0].mxu0
      %v1103 = vpop.f32.mrb[0].mxu0
      %1104 = vdwg.mxu0
      %v1109 = vunpack.c.l.b16 %v1032
      %v1110 = vunpack.c.l.b16 %v1033
      %v1111 = vunpack.c.l.b16 %v1034
      %v1112 = vunpack.c.l.b16 %v1035
      %v1113 = vpack.c.b16 %v1110, %v1109
      %v1114 = vpack.c.b16 %v1112, %v1111
      %v1118 = vsel %vm230, %v1031, 0
      %1120 = vmatprep.subr.bf16.mxu0 0
      %1121 = vmatpush1.bf16.msra.mxu0 %v1113
      %1122 = vmatprep.subr.bf16.mxu0 0
      %1123 = vmatpush1.bf16.msra.mxu0 %v1114
      %1124 = vmatprep.subr.bf16.mxu0 0
      %1125 = vmatpush1.bf16.msra.mxu0 0
      %1126 = vmatprep.subr.bf16.mxu0 0
      %1127 = vmatpush1.bf16.msra.mxu0 0
      %1128 = vmatprep.subr.bf16.mxu0 0
      %1129 = vmatpush1.bf16.msra.mxu0 0
      %1130 = vmatprep.subr.bf16.mxu0 0
      %1131 = vmatpush1.bf16.msra.mxu0 0
      %1132 = vmatprep.subr.bf16.mxu0 0
      %1133 = vmatpush1.bf16.msra.mxu0 0
      %1134 = vmatprep.subr.bf16.mxu0 0
      %1135 = vmatpush1.bf16.msra.mxu0 0
      %1136 = vmatprep.subr.bf16.mxu0 0
      %1137 = vmatpush1.bf16.msra.mxu0 0
      %1138 = vmatprep.subr.bf16.mxu0 0
      %1139 = vmatpush1.bf16.msra.mxu0 0
      %1140 = vmatprep.subr.bf16.mxu0 0
      %1141 = vmatpush1.bf16.msra.mxu0 0
      %1142 = vmatprep.subr.bf16.mxu0 0
      %1143 = vmatpush1.bf16.msra.mxu0 0
      %1144 = vmatprep.subr.bf16.mxu0 0
      %1145 = vmatpush1.bf16.msra.mxu0 0
      %1146 = vmatprep.subr.bf16.mxu0 0
      %1147 = vmatpush1.bf16.msra.mxu0 0
      %1148 = vmatprep.subr.bf16.mxu0 0
      %1149 = vmatpush1.bf16.msra.mxu0 0
      %1150 = vmatprep.subr.bf16.mxu0 0
      %1151 = vmatpush1.bf16.msra.mxu0 0
      %1152 = vmatprep.mubr.bf16.mxu0 0
      %1153 = vmatmul.mubr.bf16.gmra.mrb[0].mxu0 %v1118
      %v1154 = vpop.f32.mrb[0].mxu0
      %v1155 = vadd.f32 %v1100, %v1154
      %v1156 = vpop.f32.mrb[0].mxu0
      %v1157 = vpop.f32.mrb[0].mxu0
      %v1158 = vpop.f32.mrb[0].mxu0
      %1159 = vdwg.mxu0
      %s1160 = sadd.s32 %s1028, 1
      %s1161 = smul.addr %s1160, 4
      %s1162 = scalar_lea.vmem %s183, %s1161
      %v1163 = vld [vmem:[%s1162] sm:$0x7]
      %v1164 = vld [vmem:[%s333] sm:$0xf]
      %v1165 = vld [vmem:[%s333 + $0x4] sm:$0xf]
      %v1166 = vld [vmem:[%s333 + $0x8] sm:$0xf]
      %v1167 = vld [vmem:[%s333 + $0xc] sm:$0xf]
      %v1172 = vunpack.c.l.b16 %v1164
      %v1173 = vunpack.c.l.b16 %v1165
      %v1174 = vunpack.c.l.b16 %v1166
      %v1175 = vunpack.c.l.b16 %v1167
      %v1176 = vpack.c.b16 %v1173, %v1172
      %v1177 = vpack.c.b16 %v1175, %v1174
      %v1181 = vsel %vm230, %v1163, 0
      %1183 = vmatprep.subr.bf16.mxu0 0
      %1184 = vmatpush1.bf16.msra.mxu0 %v1176
      %1185 = vmatprep.subr.bf16.mxu0 0
      %1186 = vmatpush1.bf16.msra.mxu0 %v1177
      %1187 = vmatprep.subr.bf16.mxu0 0
      %1188 = vmatpush1.bf16.msra.mxu0 0
      %1189 = vmatprep.subr.bf16.mxu0 0
      %1190 = vmatpush1.bf16.msra.mxu0 0
      %1191 = vmatprep.subr.bf16.mxu0 0
      %1192 = vmatpush1.bf16.msra.mxu0 0
      %1193 = vmatprep.subr.bf16.mxu0 0
      %1194 = vmatpush1.bf16.msra.mxu0 0
      %1195 = vmatprep.subr.bf16.mxu0 0
      %1196 = vmatpush1.bf16.msra.mxu0 0
      %1197 = vmatprep.subr.bf16.mxu0 0
      %1198 = vmatpush1.bf16.msra.mxu0 0
      %1199 = vmatprep.subr.bf16.mxu0 0
      %1200 = vmatpush1.bf16.msra.mxu0 0
      %1201 = vmatprep.subr.bf16.mxu0 0
      %1202 = vmatpush1.bf16.msra.mxu0 0
      %1203 = vmatprep.subr.bf16.mxu0 0
      %1204 = vmatpush1.bf16.msra.mxu0 0
      %1205 = vmatprep.subr.bf16.mxu0 0
      %1206 = vmatpush1.bf16.msra.mxu0 0
      %1207 = vmatprep.subr.bf16.mxu0 0
      %1208 = vmatpush1.bf16.msra.mxu0 0
      %1209 = vmatprep.subr.bf16.mxu0 0
      %1210 = vmatpush1.bf16.msra.mxu0 0
      %1211 = vmatprep.subr.bf16.mxu0 0
      %1212 = vmatpush1.bf16.msra.mxu0 0
      %1213 = vmatprep.subr.bf16.mxu0 0
      %1214 = vmatpush1.bf16.msra.mxu0 0
      %1215 = vmatprep.mubr.bf16.mxu0 0
      %1216 = vmatmul.mubr.bf16.gmra.mrb[0].mxu0 %v1181
      %v1217 = vpop.f32.mrb[0].mxu0
      %v1218 = vadd.f32 0.0, %v1217
      %v1219 = vpop.f32.mrb[0].mxu0
      %v1220 = vpop.f32.mrb[0].mxu0
      %v1221 = vpop.f32.mrb[0].mxu0
      %1222 = vdwg.mxu0
      %v1223 = vadd.f32 %v1155, %v1218
      %v1224 = vld [vmem:[%s394] sm:$0xf]
      %v1225 = vld [vmem:[%s394 + $0x4] sm:$0xf]
      %v1226 = vld [vmem:[%s394 + $0x8] sm:$0xf]
      %v1227 = vld [vmem:[%s394 + $0xc] sm:$0xf]
      %v1229 = vunpack.c.l.b16 %v1163
      %v1230 = vpack.c.b16 %v1229, %v1229
      %v1232 = vshrl.u32 %v1230, 16
      %v1234 = vshll.u32 %v1230, 16
      %v1236 = vrot.slane %v1234, 1
      %v1237 = vor.u32 %v1232, %v1236
      %v1242 = vunpack.c.l.b16 %v1224
      %v1243 = vunpack.c.l.b16 %v1225
      %v1244 = vunpack.c.l.b16 %v1226
      %v1245 = vunpack.c.l.b16 %v1227
      %v1246 = vpack.c.b16 %v1243, %v1242
      %v1247 = vpack.c.b16 %v1245, %v1244
      %v1251 = vsel %vm230, %v1237, 0
      %1253 = vmatprep.subr.bf16.mxu0 0
      %1254 = vmatpush1.bf16.msra.mxu0 %v1246
      %1255 = vmatprep.subr.bf16.mxu0 0
      %1256 = vmatpush1.bf16.msra.mxu0 %v1247
      %1257 = vmatprep.subr.bf16.mxu0 0
      %1258 = vmatpush1.bf16.msra.mxu0 0
      %1259 = vmatprep.subr.bf16.mxu0 0
      %1260 = vmatpush1.bf16.msra.mxu0 0
      %1261 = vmatprep.subr.bf16.mxu0 0
      %1262 = vmatpush1.bf16.msra.mxu0 0
      %1263 = vmatprep.subr.bf16.mxu0 0
      %1264 = vmatpush1.bf16.msra.mxu0 0
      %1265 = vmatprep.subr.bf16.mxu0 0
      %1266 = vmatpush1.bf16.msra.mxu0 0
      %1267 = vmatprep.subr.bf16.mxu0 0
      %1268 = vmatpush1.bf16.msra.mxu0 0
      %1269 = vmatprep.subr.bf16.mxu0 0
      %1270 = vmatpush1.bf16.msra.mxu0 0
      %1271 = vmatprep.subr.bf16.mxu0 0
      %1272 = vmatpush1.bf16.msra.mxu0 0
      %1273 = vmatprep.subr.bf16.mxu0 0
      %1274 = vmatpush1.bf16.msra.mxu0 0
      %1275 = vmatprep.subr.bf16.mxu0 0
      %1276 = vmatpush1.bf16.msra.mxu0 0
      %1277 = vmatprep.subr.bf16.mxu0 0
      %1278 = vmatpush1.bf16.msra.mxu0 0
      %1279 = vmatprep.subr.bf16.mxu0 0
      %1280 = vmatpush1.bf16.msra.mxu0 0
      %1281 = vmatprep.subr.bf16.mxu0 0
      %1282 = vmatpush1.bf16.msra.mxu0 0
      %1283 = vmatprep.subr.bf16.mxu0 0
      %1284 = vmatpush1.bf16.msra.mxu0 0
      %1285 = vmatprep.mubr.bf16.mxu0 0
      %1286 = vmatmul.mubr.bf16.gmra.mrb[0].mxu0 %v1251
      %v1287 = vpop.f32.mrb[0].mxu0
      %v1288 = vadd.f32 0.0, %v1287
      %v1289 = vpop.f32.mrb[0].mxu0
      %v1290 = vpop.f32.mrb[0].mxu0
      %v1291 = vpop.f32.mrb[0].mxu0
      %1292 = vdwg.mxu0
      %v1293 = vadd.f32 %v1223, %v1288
      %s1294 = sadd.s32 %s1028, 2
      %s1295 = smul.addr %s1294, 4
      %s1296 = scalar_lea.vmem %s183, %s1295
      %v1297 = vld [vmem:[%s1296] sm:$0x7]
      %v1298 = vld [vmem:[%s469] sm:$0xf]
      %v1299 = vld [vmem:[%s469 + $0x4] sm:$0xf]
      %v1300 = vld [vmem:[%s469 + $0x8] sm:$0xf]
      %v1301 = vld [vmem:[%s469 + $0xc] sm:$0xf]
      %v1306 = vunpack.c.l.b16 %v1298
      %v1307 = vunpack.c.l.b16 %v1299
      %v1308 = vunpack.c.l.b16 %v1300
      %v1309 = vunpack.c.l.b16 %v1301
      %v1310 = vpack.c.b16 %v1307, %v1306
      %v1311 = vpack.c.b16 %v1309, %v1308
      %v1315 = vsel %vm230, %v1297, 0
      %1317 = vmatprep.subr.bf16.mxu0 0
      %1318 = vmatpush1.bf16.msra.mxu0 %v1310
      %1319 = vmatprep.subr.bf16.mxu0 0
      %1320 = vmatpush1.bf16.msra.mxu0 %v1311
      %1321 = vmatprep.subr.bf16.mxu0 0
      %1322 = vmatpush1.bf16.msra.mxu0 0
      %1323 = vmatprep.subr.bf16.mxu0 0
      %1324 = vmatpush1.bf16.msra.mxu0 0
      %1325 = vmatprep.subr.bf16.mxu0 0
      %1326 = vmatpush1.bf16.msra.mxu0 0
      %1327 = vmatprep.subr.bf16.mxu0 0
      %1328 = vmatpush1.bf16.msra.mxu0 0
      %1329 = vmatprep.subr.bf16.mxu0 0
      %1330 = vmatpush1.bf16.msra.mxu0 0
      %1331 = vmatprep.subr.bf16.mxu0 0
      %1332 = vmatpush1.bf16.msra.mxu0 0
      %1333 = vmatprep.subr.bf16.mxu0 0
      %1334 = vmatpush1.bf16.msra.mxu0 0
      %1335 = vmatprep.subr.bf16.mxu0 0
      %1336 = vmatpush1.bf16.msra.mxu0 0
      %1337 = vmatprep.subr.bf16.mxu0 0
      %1338 = vmatpush1.bf16.msra.mxu0 0
      %1339 = vmatprep.subr.bf16.mxu0 0
      %1340 = vmatpush1.bf16.msra.mxu0 0
      %1341 = vmatprep.subr.bf16.mxu0 0
      %1342 = vmatpush1.bf16.msra.mxu0 0
      %1343 = vmatprep.subr.bf16.mxu0 0
      %1344 = vmatpush1.bf16.msra.mxu0 0
      %1345 = vmatprep.subr.bf16.mxu0 0
      %1346 = vmatpush1.bf16.msra.mxu0 0
      %1347 = vmatprep.subr.bf16.mxu0 0
      %1348 = vmatpush1.bf16.msra.mxu0 0
      %1349 = vmatprep.mubr.bf16.mxu0 0
      %1350 = vmatmul.mubr.bf16.gmra.mrb[0].mxu0 %v1315
      %v1351 = vpop.f32.mrb[0].mxu0
      %v1352 = vadd.f32 0.0, %v1351
      %v1353 = vpop.f32.mrb[0].mxu0
      %v1354 = vpop.f32.mrb[0].mxu0
      %v1355 = vpop.f32.mrb[0].mxu0
      %1356 = vdwg.mxu0
      %v1357 = vadd.f32 %v1293, %v1352
      %v1358 = vld [vmem:[%s530] sm:$0xf]
      %v1359 = vld [vmem:[%s530 + $0x4] sm:$0xf]
      %v1360 = vld [vmem:[%s530 + $0x8] sm:$0xf]
      %v1361 = vld [vmem:[%s530 + $0xc] sm:$0xf]
      %v1363 = vunpack.c.l.b16 %v1297
      %v1364 = vpack.c.b16 %v1363, %v1363
      %v1366 = vshrl.u32 %v1364, 16
      %v1368 = vshll.u32 %v1364, 16
      %v1370 = vrot.slane %v1368, 1
      %v1371 = vor.u32 %v1366, %v1370
      %v1376 = vunpack.c.l.b16 %v1358
      %v1377 = vunpack.c.l.b16 %v1359
      %v1378 = vunpack.c.l.b16 %v1360
      %v1379 = vunpack.c.l.b16 %v1361
      %v1380 = vpack.c.b16 %v1377, %v1376
      %v1381 = vpack.c.b16 %v1379, %v1378
      %v1385 = vsel %vm230, %v1371, 0
      %1387 = vmatprep.subr.bf16.mxu0 0
      %1388 = vmatpush1.bf16.msra.mxu0 %v1380
      %1389 = vmatprep.subr.bf16.mxu0 0
      %1390 = vmatpush1.bf16.msra.mxu0 %v1381
      %1391 = vmatprep.subr.bf16.mxu0 0
      %1392 = vmatpush1.bf16.msra.mxu0 0
      %1393 = vmatprep.subr.bf16.mxu0 0
      %1394 = vmatpush1.bf16.msra.mxu0 0
      %1395 = vmatprep.subr.bf16.mxu0 0
      %1396 = vmatpush1.bf16.msra.mxu0 0
      %1397 = vmatprep.subr.bf16.mxu0 0
      %1398 = vmatpush1.bf16.msra.mxu0 0
      %1399 = vmatprep.subr.bf16.mxu0 0
      %1400 = vmatpush1.bf16.msra.mxu0 0
      %1401 = vmatprep.subr.bf16.mxu0 0
      %1402 = vmatpush1.bf16.msra.mxu0 0
      %1403 = vmatprep.subr.bf16.mxu0 0
      %1404 = vmatpush1.bf16.msra.mxu0 0
      %1405 = vmatprep.subr.bf16.mxu0 0
      %1406 = vmatpush1.bf16.msra.mxu0 0
      %1407 = vmatprep.subr.bf16.mxu0 0
      %1408 = vmatpush1.bf16.msra.mxu0 0
      %1409 = vmatprep.subr.bf16.mxu0 0
      %1410 = vmatpush1.bf16.msra.mxu0 0
      %1411 = vmatprep.subr.bf16.mxu0 0
      %1412 = vmatpush1.bf16.msra.mxu0 0
      %1413 = vmatprep.subr.bf16.mxu0 0
      %1414 = vmatpush1.bf16.msra.mxu0 0
      %1415 = vmatprep.subr.bf16.mxu0 0
      %1416 = vmatpush1.bf16.msra.mxu0 0
      %1417 = vmatprep.subr.bf16.mxu0 0
      %1418 = vmatpush1.bf16.msra.mxu0 0
      %1419 = vmatprep.mubr.bf16.mxu0 0
      %1420 = vmatmul.mubr.bf16.gmra.mrb[0].mxu0 %v1385
      %v1421 = vpop.f32.mrb[0].mxu0
      %v1422 = vadd.f32 0.0, %v1421
      %v1423 = vpop.f32.mrb[0].mxu0
      %v1424 = vpop.f32.mrb[0].mxu0
      %v1425 = vpop.f32.mrb[0].mxu0
      %1426 = vdwg.mxu0
      %v1427 = vadd.f32 %v1357, %v1422
      %v1428 = vld [vmem:[%s2] sm:$0x1]
      %v1430 = vlaneseq
      %v1431 = vshrl.u32 %v1430, 7
      %v1432 = vsub.s32 0, %v1431
      %v1433 = vrot.slane %v1428, %v1432
      %v1435 = vadd.f32 %v1427, %v1433
      %v1436 = vmax.f32 %v1435, 0.0
      %v1437 = vpack.c.bf16 %v1436, %v1436
      %s1438 = scalar_lea.vmem %s192, 4
      %1439 = vst.msk [vmem:[%s1438] sm:$0x3] %vm611, %v1437
      %s1440 = sadd.s32 %s613, 3
      %s1441 = smul.u32 %s1440, 2
      %s1442 = smul.addr %s1441, 4
      %s1443 = scalar_lea.vmem %s183, %s1442
      %v1444 = vld [vmem:[%s1443] sm:$0x7]
      %v1445 = vld [vmem:[%s1] sm:$0xf]
      %v1446 = vld [vmem:[%s1 + $0x4] sm:$0xf]
      %v1447 = vld [vmem:[%s1 + $0x8] sm:$0xf]
      %v1448 = vld [vmem:[%s1 + $0xc] sm:$0xf]
      %v1449 = vld [vmem:[%s203] sm:$0xf]
      %v1450 = vld [vmem:[%s203 + $0x4] sm:$0xf]
      %v1451 = vld [vmem:[%s203 + $0x8] sm:$0xf]
      %v1452 = vld [vmem:[%s203 + $0xc] sm:$0xf]
      %v1454 = vunpack.c.l.b16 %v1444
      %v1455 = vpack.c.b16 %v1454, %v1454
      %v1457 = vshrl.u32 %v1455, 16
      %v1459 = vshll.u32 %v1455, 16
      %v1461 = vrot.slane %v1459, 1
      %v1462 = vor.u32 %v1457, %v1461
      %v1467 = vunpack.c.l.b16 %v1449
      %v1468 = vunpack.c.l.b16 %v1450
      %v1469 = vunpack.c.l.b16 %v1451
      %v1470 = vunpack.c.l.b16 %v1452
      %v1471 = vpack.c.b16 %v1468, %v1467
      %v1472 = vpack.c.b16 %v1470, %v1469
      %v1476 = vsel %vm230, %v1462, 0
      %1478 = vmatprep.subr.bf16.mxu0 0
      %1479 = vmatpush1.bf16.msra.mxu0 %v1471
      %1480 = vmatprep.subr.bf16.mxu0 0
      %1481 = vmatpush1.bf16.msra.mxu0 %v1472
      %1482 = vmatprep.subr.bf16.mxu0 0
      %1483 = vmatpush1.bf16.msra.mxu0 0
      %1484 = vmatprep.subr.bf16.mxu0 0
      %1485 = vmatpush1.bf16.msra.mxu0 0
      %1486 = vmatprep.subr.bf16.mxu0 0
      %1487 = vmatpush1.bf16.msra.mxu0 0
      %1488 = vmatprep.subr.bf16.mxu0 0
      %1489 = vmatpush1.bf16.msra.mxu0 0
      %1490 = vmatprep.subr.bf16.mxu0 0
      %1491 = vmatpush1.bf16.msra.mxu0 0
      %1492 = vmatprep.subr.bf16.mxu0 0
      %1493 = vmatpush1.bf16.msra.mxu0 0
      %1494 = vmatprep.subr.bf16.mxu0 0
      %1495 = vmatpush1.bf16.msra.mxu0 0
      %1496 = vmatprep.subr.bf16.mxu0 0
      %1497 = vmatpush1.bf16.msra.mxu0 0
      %1498 = vmatprep.subr.bf16.mxu0 0
      %1499 = vmatpush1.bf16.msra.mxu0 0
      %1500 = vmatprep.subr.bf16.mxu0 0
      %1501 = vmatpush1.bf16.msra.mxu0 0
      %1502 = vmatprep.subr.bf16.mxu0 0
      %1503 = vmatpush1.bf16.msra.mxu0 0
      %1504 = vmatprep.subr.bf16.mxu0 0
      %1505 = vmatpush1.bf16.msra.mxu0 0
      %1506 = vmatprep.subr.bf16.mxu0 0
      %1507 = vmatpush1.bf16.msra.mxu0 0
      %1508 = vmatprep.subr.bf16.mxu0 0
      %1509 = vmatpush1.bf16.msra.mxu0 0
      %1510 = vmatprep.mubr.bf16.mxu0 0
      %1511 = vmatmul.mubr.bf16.gmra.mrb[0].mxu0 %v1476
      %v1512 = vpop.f32.mrb[0].mxu0
      %v1513 = vadd.f32 0.0, %v1512
      %v1514 = vpop.f32.mrb[0].mxu0
      %v1515 = vpop.f32.mrb[0].mxu0
      %v1516 = vpop.f32.mrb[0].mxu0
      %1517 = vdwg.mxu0
      %v1522 = vunpack.c.l.b16 %v1445
      %v1523 = vunpack.c.l.b16 %v1446
      %v1524 = vunpack.c.l.b16 %v1447
      %v1525 = vunpack.c.l.b16 %v1448
      %v1526 = vpack.c.b16 %v1523, %v1522
      %v1527 = vpack.c.b16 %v1525, %v1524
      %v1531 = vsel %vm230, %v1444, 0
      %1533 = vmatprep.subr.bf16.mxu0 0
      %1534 = vmatpush1.bf16.msra.mxu0 %v1526
      %1535 = vmatprep.subr.bf16.mxu0 0
      %1536 = vmatpush1.bf16.msra.mxu0 %v1527
      %1537 = vmatprep.subr.bf16.mxu0 0
      %1538 = vmatpush1.bf16.msra.mxu0 0
      %1539 = vmatprep.subr.bf16.mxu0 0
      %1540 = vmatpush1.bf16.msra.mxu0 0
      %1541 = vmatprep.subr.bf16.mxu0 0
      %1542 = vmatpush1.bf16.msra.mxu0 0
      %1543 = vmatprep.subr.bf16.mxu0 0
      %1544 = vmatpush1.bf16.msra.mxu0 0
      %1545 = vmatprep.subr.bf16.mxu0 0
      %1546 = vmatpush1.bf16.msra.mxu0 0
      %1547 = vmatprep.subr.bf16.mxu0 0
      %1548 = vmatpush1.bf16.msra.mxu0 0
      %1549 = vmatprep.subr.bf16.mxu0 0
      %1550 = vmatpush1.bf16.msra.mxu0 0
      %1551 = vmatprep.subr.bf16.mxu0 0
      %1552 = vmatpush1.bf16.msra.mxu0 0
      %1553 = vmatprep.subr.bf16.mxu0 0
      %1554 = vmatpush1.bf16.msra.mxu0 0
      %1555 = vmatprep.subr.bf16.mxu0 0
      %1556 = vmatpush1.bf16.msra.mxu0 0
      %1557 = vmatprep.subr.bf16.mxu0 0
      %1558 = vmatpush1.bf16.msra.mxu0 0
      %1559 = vmatprep.subr.bf16.mxu0 0
      %1560 = vmatpush1.bf16.msra.mxu0 0
      %1561 = vmatprep.subr.bf16.mxu0 0
      %1562 = vmatpush1.bf16.msra.mxu0 0
      %1563 = vmatprep.subr.bf16.mxu0 0
      %1564 = vmatpush1.bf16.msra.mxu0 0
      %1565 = vmatprep.mubr.bf16.mxu0 0
      %1566 = vmatmul.mubr.bf16.gmra.mrb[0].mxu0 %v1531
      %v1567 = vpop.f32.mrb[0].mxu0
      %v1568 = vadd.f32 %v1513, %v1567
      %v1569 = vpop.f32.mrb[0].mxu0
      %v1570 = vpop.f32.mrb[0].mxu0
      %v1571 = vpop.f32.mrb[0].mxu0
      %1572 = vdwg.mxu0
      %s1573 = sadd.s32 %s1441, 1
      %s1574 = smul.addr %s1573, 4
      %s1575 = scalar_lea.vmem %s183, %s1574
      %v1576 = vld [vmem:[%s1575] sm:$0x7]
      %v1577 = vld [vmem:[%s333] sm:$0xf]
      %v1578 = vld [vmem:[%s333 + $0x4] sm:$0xf]
      %v1579 = vld [vmem:[%s333 + $0x8] sm:$0xf]
      %v1580 = vld [vmem:[%s333 + $0xc] sm:$0xf]
      %v1585 = vunpack.c.l.b16 %v1577
      %v1586 = vunpack.c.l.b16 %v1578
      %v1587 = vunpack.c.l.b16 %v1579
      %v1588 = vunpack.c.l.b16 %v1580
      %v1589 = vpack.c.b16 %v1586, %v1585
      %v1590 = vpack.c.b16 %v1588, %v1587
      %v1594 = vsel %vm230, %v1576, 0
      %1596 = vmatprep.subr.bf16.mxu0 0
      %1597 = vmatpush1.bf16.msra.mxu0 %v1589
      %1598 = vmatprep.subr.bf16.mxu0 0
      %1599 = vmatpush1.bf16.msra.mxu0 %v1590
      %1600 = vmatprep.subr.bf16.mxu0 0
      %1601 = vmatpush1.bf16.msra.mxu0 0
      %1602 = vmatprep.subr.bf16.mxu0 0
      %1603 = vmatpush1.bf16.msra.mxu0 0
      %1604 = vmatprep.subr.bf16.mxu0 0
      %1605 = vmatpush1.bf16.msra.mxu0 0
      %1606 = vmatprep.subr.bf16.mxu0 0
      %1607 = vmatpush1.bf16.msra.mxu0 0
      %1608 = vmatprep.subr.bf16.mxu0 0
      %1609 = vmatpush1.bf16.msra.mxu0 0
      %1610 = vmatprep.subr.bf16.mxu0 0
      %1611 = vmatpush1.bf16.msra.mxu0 0
      %1612 = vmatprep.subr.bf16.mxu0 0
      %1613 = vmatpush1.bf16.msra.mxu0 0
      %1614 = vmatprep.subr.bf16.mxu0 0
      %1615 = vmatpush1.bf16.msra.mxu0 0
      %1616 = vmatprep.subr.bf16.mxu0 0
      %1617 = vmatpush1.bf16.msra.mxu0 0
      %1618 = vmatprep.subr.bf16.mxu0 0
      %1619 = vmatpush1.bf16.msra.mxu0 0
      %1620 = vmatprep.subr.bf16.mxu0 0
      %1621 = vmatpush1.bf16.msra.mxu0 0
      %1622 = vmatprep.subr.bf16.mxu0 0
      %1623 = vmatpush1.bf16.msra.mxu0 0
      %1624 = vmatprep.subr.bf16.mxu0 0
      %1625 = vmatpush1.bf16.msra.mxu0 0
      %1626 = vmatprep.subr.bf16.mxu0 0
      %1627 = vmatpush1.bf16.msra.mxu0 0
      %1628 = vmatprep.mubr.bf16.mxu0 0
      %1629 = vmatmul.mubr.bf16.gmra.mrb[0].mxu0 %v1594
      %v1630 = vpop.f32.mrb[0].mxu0
      %v1631 = vadd.f32 0.0, %v1630
      %v1632 = vpop.f32.mrb[0].mxu0
      %v1633 = vpop.f32.mrb[0].mxu0
      %v1634 = vpop.f32.mrb[0].mxu0
      %1635 = vdwg.mxu0
      %v1636 = vadd.f32 %v1568, %v1631
      %v1637 = vld [vmem:[%s394] sm:$0xf]
      %v1638 = vld [vmem:[%s394 + $0x4] sm:$0xf]
      %v1639 = vld [vmem:[%s394 + $0x8] sm:$0xf]
      %v1640 = vld [vmem:[%s394 + $0xc] sm:$0xf]
      %v1642 = vunpack.c.l.b16 %v1576
      %v1643 = vpack.c.b16 %v1642, %v1642
      %v1645 = vshrl.u32 %v1643, 16
      %v1647 = vshll.u32 %v1643, 16
      %v1649 = vrot.slane %v1647, 1
      %v1650 = vor.u32 %v1645, %v1649
      %v1655 = vunpack.c.l.b16 %v1637
      %v1656 = vunpack.c.l.b16 %v1638
      %v1657 = vunpack.c.l.b16 %v1639
      %v1658 = vunpack.c.l.b16 %v1640
      %v1659 = vpack.c.b16 %v1656, %v1655
      %v1660 = vpack.c.b16 %v1658, %v1657
      %v1664 = vsel %vm230, %v1650, 0
      %1666 = vmatprep.subr.bf16.mxu0 0
      %1667 = vmatpush1.bf16.msra.mxu0 %v1659
      %1668 = vmatprep.subr.bf16.mxu0 0
      %1669 = vmatpush1.bf16.msra.mxu0 %v1660
      %1670 = vmatprep.subr.bf16.mxu0 0
      %1671 = vmatpush1.bf16.msra.mxu0 0
      %1672 = vmatprep.subr.bf16.mxu0 0
      %1673 = vmatpush1.bf16.msra.mxu0 0
      %1674 = vmatprep.subr.bf16.mxu0 0
      %1675 = vmatpush1.bf16.msra.mxu0 0
      %1676 = vmatprep.subr.bf16.mxu0 0
      %1677 = vmatpush1.bf16.msra.mxu0 0
      %1678 = vmatprep.subr.bf16.mxu0 0
      %1679 = vmatpush1.bf16.msra.mxu0 0
      %1680 = vmatprep.subr.bf16.mxu0 0
      %1681 = vmatpush1.bf16.msra.mxu0 0
      %1682 = vmatprep.subr.bf16.mxu0 0
      %1683 = vmatpush1.bf16.msra.mxu0 0
      %1684 = vmatprep.subr.bf16.mxu0 0
      %1685 = vmatpush1.bf16.msra.mxu0 0
      %1686 = vmatprep.subr.bf16.mxu0 0
      %1687 = vmatpush1.bf16.msra.mxu0 0
      %1688 = vmatprep.subr.bf16.mxu0 0
      %1689 = vmatpush1.bf16.msra.mxu0 0
      %1690 = vmatprep.subr.bf16.mxu0 0
      %1691 = vmatpush1.bf16.msra.mxu0 0
      %1692 = vmatprep.subr.bf16.mxu0 0
      %1693 = vmatpush1.bf16.msra.mxu0 0
      %1694 = vmatprep.subr.bf16.mxu0 0
      %1695 = vmatpush1.bf16.msra.mxu0 0
      %1696 = vmatprep.subr.bf16.mxu0 0
      %1697 = vmatpush1.bf16.msra.mxu0 0
      %1698 = vmatprep.mubr.bf16.mxu0 0
      %1699 = vmatmul.mubr.bf16.gmra.mrb[0].mxu0 %v1664
      %v1700 = vpop.f32.mrb[0].mxu0
      %v1701 = vadd.f32 0.0, %v1700
      %v1702 = vpop.f32.mrb[0].mxu0
      %v1703 = vpop.f32.mrb[0].mxu0
      %v1704 = vpop.f32.mrb[0].mxu0
      %1705 = vdwg.mxu0
      %v1706 = vadd.f32 %v1636, %v1701
      %s1707 = sadd.s32 %s1441, 2
      %s1708 = smul.addr %s1707, 4
      %s1709 = scalar_lea.vmem %s183, %s1708
      %v1710 = vld [vmem:[%s1709] sm:$0x7]
      %v1711 = vld [vmem:[%s469] sm:$0xf]
      %v1712 = vld [vmem:[%s469 + $0x4] sm:$0xf]
      %v1713 = vld [vmem:[%s469 + $0x8] sm:$0xf]
      %v1714 = vld [vmem:[%s469 + $0xc] sm:$0xf]
      %v1719 = vunpack.c.l.b16 %v1711
      %v1720 = vunpack.c.l.b16 %v1712
      %v1721 = vunpack.c.l.b16 %v1713
      %v1722 = vunpack.c.l.b16 %v1714
      %v1723 = vpack.c.b16 %v1720, %v1719
      %v1724 = vpack.c.b16 %v1722, %v1721
      %v1728 = vsel %vm230, %v1710, 0
      %1730 = vmatprep.subr.bf16.mxu0 0
      %1731 = vmatpush1.bf16.msra.mxu0 %v1723
      %1732 = vmatprep.subr.bf16.mxu0 0
      %1733 = vmatpush1.bf16.msra.mxu0 %v1724
      %1734 = vmatprep.subr.bf16.mxu0 0
      %1735 = vmatpush1.bf16.msra.mxu0 0
      %1736 = vmatprep.subr.bf16.mxu0 0
      %1737 = vmatpush1.bf16.msra.mxu0 0
      %1738 = vmatprep.subr.bf16.mxu0 0
      %1739 = vmatpush1.bf16.msra.mxu0 0
      %1740 = vmatprep.subr.bf16.mxu0 0
      %1741 = vmatpush1.bf16.msra.mxu0 0
      %1742 = vmatprep.subr.bf16.mxu0 0
      %1743 = vmatpush1.bf16.msra.mxu0 0
      %1744 = vmatprep.subr.bf16.mxu0 0
      %1745 = vmatpush1.bf16.msra.mxu0 0
      %1746 = vmatprep.subr.bf16.mxu0 0
      %1747 = vmatpush1.bf16.msra.mxu0 0
      %1748 = vmatprep.subr.bf16.mxu0 0
      %1749 = vmatpush1.bf16.msra.mxu0 0
      %1750 = vmatprep.subr.bf16.mxu0 0
      %1751 = vmatpush1.bf16.msra.mxu0 0
      %1752 = vmatprep.subr.bf16.mxu0 0
      %1753 = vmatpush1.bf16.msra.mxu0 0
      %1754 = vmatprep.subr.bf16.mxu0 0
      %1755 = vmatpush1.bf16.msra.mxu0 0
      %1756 = vmatprep.subr.bf16.mxu0 0
      %1757 = vmatpush1.bf16.msra.mxu0 0
      %1758 = vmatprep.subr.bf16.mxu0 0
      %1759 = vmatpush1.bf16.msra.mxu0 0
      %1760 = vmatprep.subr.bf16.mxu0 0
      %1761 = vmatpush1.bf16.msra.mxu0 0
      %1762 = vmatprep.mubr.bf16.mxu0 0
      %1763 = vmatmul.mubr.bf16.gmra.mrb[0].mxu0 %v1728
      %v1764 = vpop.f32.mrb[0].mxu0
      %v1765 = vadd.f32 0.0, %v1764
      %v1766 = vpop.f32.mrb[0].mxu0
      %v1767 = vpop.f32.mrb[0].mxu0
      %v1768 = vpop.f32.mrb[0].mxu0
      %1769 = vdwg.mxu0
      %v1770 = vadd.f32 %v1706, %v1765
      %v1771 = vld [vmem:[%s530] sm:$0xf]
      %v1772 = vld [vmem:[%s530 + $0x4] sm:$0xf]
      %v1773 = vld [vmem:[%s530 + $0x8] sm:$0xf]
      %v1774 = vld [vmem:[%s530 + $0xc] sm:$0xf]
      %v1776 = vunpack.c.l.b16 %v1710
      %v1777 = vpack.c.b16 %v1776, %v1776
      %v1779 = vshrl.u32 %v1777, 16
      %v1781 = vshll.u32 %v1777, 16
      %v1783 = vrot.slane %v1781, 1
      %v1784 = vor.u32 %v1779, %v1783
      %v1789 = vunpack.c.l.b16 %v1771
      %v1790 = vunpack.c.l.b16 %v1772
      %v1791 = vunpack.c.l.b16 %v1773
      %v1792 = vunpack.c.l.b16 %v1774
      %v1793 = vpack.c.b16 %v1790, %v1789
      %v1794 = vpack.c.b16 %v1792, %v1791
      %v1798 = vsel %vm230, %v1784, 0
      %1800 = vmatprep.subr.bf16.mxu0 0
      %1801 = vmatpush1.bf16.msra.mxu0 %v1793
      %1802 = vmatprep.subr.bf16.mxu0 0
      %1803 = vmatpush1.bf16.msra.mxu0 %v1794
      %1804 = vmatprep.subr.bf16.mxu0 0
      %1805 = vmatpush1.bf16.msra.mxu0 0
      %1806 = vmatprep.subr.bf16.mxu0 0
      %1807 = vmatpush1.bf16.msra.mxu0 0
      %1808 = vmatprep.subr.bf16.mxu0 0
      %1809 = vmatpush1.bf16.msra.mxu0 0
      %1810 = vmatprep.subr.bf16.mxu0 0
      %1811 = vmatpush1.bf16.msra.mxu0 0
      %1812 = vmatprep.subr.bf16.mxu0 0
      %1813 = vmatpush1.bf16.msra.mxu0 0
      %1814 = vmatprep.subr.bf16.mxu0 0
      %1815 = vmatpush1.bf16.msra.mxu0 0
      %1816 = vmatprep.subr.bf16.mxu0 0
      %1817 = vmatpush1.bf16.msra.mxu0 0
      %1818 = vmatprep.subr.bf16.mxu0 0
      %1819 = vmatpush1.bf16.msra.mxu0 0
      %1820 = vmatprep.subr.bf16.mxu0 0
      %1821 = vmatpush1.bf16.msra.mxu0 0
      %1822 = vmatprep.subr.bf16.mxu0 0
      %1823 = vmatpush1.bf16.msra.mxu0 0
      %1824 = vmatprep.subr.bf16.mxu0 0
      %1825 = vmatpush1.bf16.msra.mxu0 0
      %1826 = vmatprep.subr.bf16.mxu0 0
      %1827 = vmatpush1.bf16.msra.mxu0 0
      %1828 = vmatprep.subr.bf16.mxu0 0
      %1829 = vmatpush1.bf16.msra.mxu0 0
      %1830 = vmatprep.subr.bf16.mxu0 0
      %1831 = vmatpush1.bf16.msra.mxu0 0
      %1832 = vmatprep.mubr.bf16.mxu0 0
      %1833 = vmatmul.mubr.bf16.gmra.mrb[0].mxu0 %v1798
      %v1834 = vpop.f32.mrb[0].mxu0
      %v1835 = vadd.f32 0.0, %v1834
      %v1836 = vpop.f32.mrb[0].mxu0
      %v1837 = vpop.f32.mrb[0].mxu0
      %v1838 = vpop.f32.mrb[0].mxu0
      %1839 = vdwg.mxu0
      %v1840 = vadd.f32 %v1770, %v1835
      %v1841 = vld [vmem:[%s2] sm:$0x1]
      %v1843 = vlaneseq
      %v1844 = vshrl.u32 %v1843, 7
      %v1845 = vsub.s32 0, %v1844
      %v1846 = vrot.slane %v1841, %v1845
      %v1848 = vadd.f32 %v1840, %v1846
      %v1849 = vmax.f32 %v1848, 0.0
      %v1850 = vpack.c.bf16 %v1849, %v1849
      %s1851 = scalar_lea.vmem %s192, 6
      %1852 = vst.msk [vmem:[%s1851] sm:$0x3] %vm611, %v1850
      %s1853 = smul.u32 4, %s19
      %p1854 = scmp.lt.s32.totalorder %s18, 1
      %s1855 = scalar_select %p1854, %s18, 1
      %p1856 = scmp.lt.s32.totalorder %s1853, 3
      %s1857 = scalar_select %p1856, %s1853, 3
      %s1858 = smul.addr %s1855, 4
      %s1859 = sadd.s32 %s1857, %s1858
      %s1860 = smul.addr %s1859, 2
      %s1861 = scalar_lea.vmem %s3, %s1860
      // Predicated region
      $region33: #{stem_block_forward.7} parent=31 // pred_check
        %p1862 = pneg %p114
      $region34: #{stem_block_forward.7} parent=31 // pred_check_branch
        %1864 = sbr.rel (%p1862) target = $region36
      $region35: #{stem_block_forward.7} parent=31 // pred_region
        %s1865 = smul.u32 4, %s19
      $region36: #{stem_block_forward.7} parent=31 // pred_fallthru
        _
    $region32: #{stem_block_forward.7} parent=5 // pred_fallthru
      _
    %p1866 = scmp.le.s32.totalorder 2, %s9
    // Predicated region
    $region37: #{stem_block_forward.7} parent=5 // pred_check
      %p1867 = pneg %p1866
    $region38: #{stem_block_forward.7} parent=5 // pred_check_branch
      %1869 = sbr.rel (%p1867) target = $region40
    $region39: #{stem_block_forward.7} parent=5 // pred_region
      %s1870 = ssub.s32 %s9, 2
      // Predicated region
      $region41: #{stem_block_forward.7} parent=39 // pred_check
        %p1871 = pneg %p120
      $region42: #{stem_block_forward.7} parent=39 // pred_check_branch
        %1873 = sbr.rel (%p1871) target = $region44
      $region43: #{stem_block_forward.7} parent=39 // pred_region
        %s1874 = smul.u32 4, %s21
        %p1875 = scmp.lt.s32.totalorder %s20, 1
        %s1876 = scalar_select %p1875, %s20, 1
        %p1877 = scmp.lt.s32.totalorder %s1874, 3
        %s1878 = scalar_select %p1877, %s1874, 3
        %s1879 = smul.addr %s1876, 4
        %s1880 = sadd.s32 %s1878, %s1879
        %s1881 = smul.addr %s1880, 2
        %s1882 = scalar_lea.vmem %s3, %s1881
      $region44: #{stem_block_forward.7} parent=39 // pred_fallthru
        _
    $region40: #{stem_block_forward.7} parent=5 // pred_fallthru
      _
  $region6: #{stem_block_forward.7} parent=0 // loop_footer
    %s13 = sadd.s32 1, %s9
  $region7: #{stem_block_forward.7} parent=0 // loop_footer_branch
    %8 = sbr.rel target = $region3
  $region8: #{stem_block_forward.7} parent=0 // loop_exit
    _

</llo_original>
